<compile_context>
chip_gen: v7x
topology: tpu7x:2x2x1
jax: 0.10.0
libtpu: 0.0.40
codegen_flags: <defaults>
</compile_context>

<pallas_src>
import jax
import jax.numpy as jnp
from jax.experimental import pallas as pl
from jax.experimental.pallas import tpu as pltpu


# ---------------------------------------------------------------------------
# Pallas kernels
# ---------------------------------------------------------------------------
def _conv_relu_pool_kernel(p_ref, w_ref, b_ref, o_ref):
    # p_ref: (4, tm, K) bf16  -- one im2col slab per 2x2 pooling quadrant
    # w_ref: (K, Cout) bf16   -- VMEM-resident (constant block index)
    # b_ref: (1, Cout) f32
    # o_ref: (tm, Cout) f32   -- pooled + ReLU'd conv output rows
    w = w_ref[...]
    m = jnp.dot(p_ref[0], w, preferred_element_type=jnp.float32)
    for q in range(1, 4):
        m = jnp.maximum(m, jnp.dot(p_ref[q], w, preferred_element_type=jnp.float32))
    # max_q(x_q) + b == max_q(x_q + b); relu is monotonic, so relu-after-pool is OK.
    m = jnp.maximum(m + b_ref[...], 0.0)
    o_ref[...] = m.astype(o_ref.dtype)


def _mlp_kernel(x_ref, w1_ref, b1_ref, w2_ref, b2_ref, o_ref):
    # Fused linear(320->100) + out(100->10); no activation between them
    # (matches the PyTorch module).
    h = jnp.dot(x_ref[...], w1_ref[...], preferred_element_type=jnp.float32)
    h = h + b1_ref[...]
    y = jnp.dot(h.astype(w2_ref.dtype), w2_ref[...], preferred_element_type=jnp.float32)
    o_ref[...] = (y + b2_ref[...]).astype(o_ref.dtype)


# ---------------------------------------------------------------------------
# JAX glue: quadrant im2col + wrappers
# ---------------------------------------------------------------------------
def _pick_block_images(n_imgs, rows_per_image, target_rows=512):
    """Images per grid block: ~target_rows pooled rows per block, divides N,
    and a sublane-friendly (multiple of 8) row count."""
    want = max(1, min(n_imgs, target_rows // max(1, rows_per_image)))
    for d in range(want, 0, -1):
        if n_imgs % d == 0 and (d * rows_per_image) % 8 == 0:
            return d
    return n_imgs  # full extent is always a legal block


def _im2col_pooled(x_nhwc, kh, kw, stride, pad, OH, OW):
    """Build 4 bf16 im2col slabs, one per 2x2 pooling quadrant.

    Returns (4, N*PH*PW, KH*KW*C); row order (img, ph, pw); column order
    (i*KW + j)*C + c, matching the pre-reshaped conv weight layout.
    """
    N, H, W, C = x_nhwc.shape
    PH, PW = OH // 2, OW // 2
    xp = jnp.pad(x_nhwc.astype(jnp.bfloat16),
                 ((0, 0), (pad, pad), (pad, pad), (0, 0)))
    quads = []
    for dy in range(2):
        for dx in range(2):
            taps = []
            for i in range(kh):
                for j in range(kw):
                    r0 = dy * stride + i
                    c0 = dx * stride + j
                    taps.append(
                        xp[:, r0:r0 + 2 * stride * PH:2 * stride,
                              c0:c0 + 2 * stride * PW:2 * stride, :])  # (N,PH,PW,C)
            t = jnp.stack(taps, axis=3)                  # (N, PH, PW, KH*KW, C)
            quads.append(t.reshape(N * PH * PW, kh * kw * C))
    return jnp.stack(quads, axis=0)                      # (4, N*PH*PW, K)


def conv_relu_pool(x_nhwc, wmat, b, *, stride, pad, kh, kw):
    """Conv2d + ReLU + MaxPool2d(2), fused in one Pallas kernel. NHWC in/out."""
    N, H, W, C = x_nhwc.shape
    K, cout = wmat.shape
    assert K == kh * kw * C
    OH = (H + 2 * pad - kh) // stride + 1
    OW = (W + 2 * pad - kw) // stride + 1
    assert OH % 2 == 0 and OW % 2 == 0  # MaxPool2d(2) covers the map exactly here
    PH, PW = OH // 2, OW // 2

    patches = _im2col_pooled(x_nhwc, kh, kw, stride, pad, OH, OW)  # (4, Mp, K) bf16
    Mp = N * PH * PW
    ipb = _pick_block_images(N, PH * PW)
    tm = ipb * PH * PW
    grid = (Mp // tm,)

    # Explicit VMEM budget (double-buffered patch slabs + resident weight + out),
    # kept well under v7x's 64 MiB physical VMEM.
    est = 2 * (4 * tm * K * 2) + K * cout * 2 + 2 * tm * cout * 4 + 4 * cout
    vmem_limit = int(min(max(3 * est, 16 * 1024 * 1024), 48 * 1024 * 1024))
    cost = pl.CostEstimate(
        flops=2 * 4 * Mp * K * cout,
        transcendentals=0,
        bytes_accessed=4 * Mp * K * 2 + K * cout * 2 + 4 * cout + Mp * cout * 4,
    )

    out = pl.pallas_call(
        _conv_relu_pool_kernel,
        out_shape=jax.ShapeDtypeStruct((Mp, cout), jnp.float32),
        grid=grid,
        in_specs=[
            pl.BlockSpec((4, tm, K), lambda i: (0, i, 0)),
            pl.BlockSpec((K, cout), lambda i: (0, 0)),   # weight: VMEM-resident
            pl.BlockSpec((1, cout), lambda i: (0, 0)),   # bias:   VMEM-resident
        ],
        out_specs=pl.BlockSpec((tm, cout), lambda i: (i, 0)),
        compiler_params=pltpu.CompilerParams(
            dimension_semantics=("parallel",),           # v7x: shard rows on 2 TCs
            vmem_limit_bytes=vmem_limit,
        ),
        cost_estimate=cost,
    )(patches, wmat, b.reshape(1, cout).astype(jnp.float32))
    return out.reshape(N, PH, PW, cout)                  # NHWC


def mlp_head(x, w1, b1, w2, b2):
    """Fused linear(320->100) + out(100->10) in one Pallas call."""
    N, K1 = x.shape
    H = w1.shape[1]
    C = w2.shape[1]
    tm = N
    for cand in (2048, 1024, 512, 256, 128, 64, 32, 16, 8):
        if N > cand and N % cand == 0:
            tm = cand
            break
    grid = (N // tm,)
    return pl.pallas_call(
        _mlp_kernel,
        out_shape=jax.ShapeDtypeStruct((N, C), jnp.float32),
        grid=grid,
        in_specs=[
            pl.BlockSpec((tm, K1), lambda i: (i, 0)),
            pl.BlockSpec((K1, H), lambda i: (0, 0)),
            pl.BlockSpec((1, H), lambda i: (0, 0)),
            pl.BlockSpec((H, C), lambda i: (0, 0)),
            pl.BlockSpec((1, C), lambda i: (0, 0)),
        ],
        out_specs=pl.BlockSpec((tm, C), lambda i: (i, 0)),
        compiler_params=pltpu.CompilerParams(dimension_semantics=("parallel",)),
    )(x.astype(jnp.bfloat16), w1, b1.reshape(1, H).astype(jnp.float32),
      w2, b2.reshape(1, C).astype(jnp.float32))


# ---------------------------------------------------------------------------
# Parameters: PyTorch-layout init + one-time re-layout for the Pallas path
# ---------------------------------------------------------------------------
def init_params(key):
    ks = jax.random.split(key, 10)
    s = 0.05  # deterministic small-scale synthetic weights (not a checkpoint)
    return {
        "w1": jax.random.normal(ks[0], (30, 3, 5, 5), jnp.float32) * s,
        "b1": jax.random.normal(ks[1], (30,), jnp.float32) * s,
        "w2": jax.random.normal(ks[2], (40, 30, 5, 5), jnp.float32) * s,
        "b2": jax.random.normal(ks[3], (40,), jnp.float32) * s,
        "w3": jax.random.normal(ks[4], (80, 40, 4, 4), jnp.float32) * s,
        "b3": jax.random.normal(ks[5], (80,), jnp.float32) * s,
        "wl": jax.random.normal(ks[6], (100, 80 * 2 * 2), jnp.float32) * s,  # (out, in)
        "bl": jax.random.normal(ks[7], (100,), jnp.float32) * s,
        "wo": jax.random.normal(ks[8], (10, 100), jnp.float32) * s,
        "bo": jax.random.normal(ks[9], (10,), jnp.float32) * s,
    }


def prep_params(params):
    """One-time (outside jit) weight re-layout.

    Conv (Cout,Cin,KH,KW) -> (KH*KW*Cin, Cout) bf16, matching the im2col column
    order.  First linear's input rows are permuted from PyTorch's (C,H,W)
    flatten order to the NHWC flatten order produced by the Pallas conv path.
    """
    def conv_w(w):
        co, ci, kh, kw = w.shape
        return w.transpose(2, 3, 1, 0).reshape(kh * kw * ci, co).astype(jnp.bfloat16)

    c3 = params["w3"].shape[0]                       # 80 channels into the flatten
    out_f, in_f = params["wl"].shape                 # (100, 320)
    ph = pw = int(round((in_f // c3) ** 0.5))        # 2 x 2 spatial
    wl = params["wl"].reshape(out_f, c3, ph, pw)     # (100, C, H, W)
    wl = wl.transpose(0, 2, 3, 1).reshape(out_f, in_f).T  # (320 in H,W,C order, 100)

    return {
        "w1m": conv_w(params["w1"]), "b1": params["b1"],
        "w2m": conv_w(params["w2"]), "b2": params["b2"],
        "w3m": conv_w(params["w3"]), "b3": params["b3"],
        "wlm": wl.astype(jnp.bfloat16), "bl": params["bl"],
        "wom": params["wo"].T.astype(jnp.bfloat16), "bo": params["bo"],
    }


# ---------------------------------------------------------------------------
# Forward pass (Pallas) + pure-JAX reference (PyTorch semantics)
# ---------------------------------------------------------------------------
@jax.jit
def cnn_cifar_forward(prep, x):
    x = x.reshape(-1, 3, 32, 32).astype(jnp.float32)
    x = jnp.transpose(x, (0, 2, 3, 1))                       # NCHW -> NHWC once (3 ch)
    x = conv_relu_pool(x, prep["w1m"], prep["b1"], stride=1, pad=2, kh=5, kw=5)  # (N,16,16,30)
    x = conv_relu_pool(x, prep["w2m"], prep["b2"], stride=1, pad=2, kh=5, kw=5)  # (N, 8, 8,40)
    x = conv_relu_pool(x, prep["w3m"], prep["b3"], stride=2, pad=1, kh=4, kw=4)  # (N, 2, 2,80)
    x = x.reshape(x.shape[0], -1)                            # NHWC flatten (wlm rows match)
    return mlp_head(x, prep["wlm"], prep["bl"], prep["wom"], prep["bo"])


def reference_forward(params, x):
    """Pure-JAX f32 reference with exact PyTorch semantics."""
    x = x.reshape(-1, 3, 32, 32).astype(jnp.float32)

    def conv(x, w, b, stride, pad):
        y = jax.lax.conv_general_dilated(
            x, w, (stride, stride), [(pad, pad), (pad, pad)],
            dimension_numbers=("NCHW", "OIHW", "NCHW"))
        return jax.nn.relu(y + b.reshape(1, -1, 1, 1))

    def pool(x):
        return jax.lax.reduce_window(x, -jnp.inf, jax.lax.max,
                                     (1, 1, 2, 2), (1, 1, 2, 2), "VALID")

    x = pool(conv(x, params["w1"], params["b1"], 1, 2))
    x = pool(conv(x, params["w2"], params["b2"], 1, 2))
    x = pool(conv(x, params["w3"], params["b3"], 2, 1))
    x = x.reshape(x.shape[0], -1)
    x = x @ params["wl"].T + params["bl"]
    x = x @ params["wo"].T + params["bo"]
    return x


if __name__ == "__main__":
    key = jax.random.PRNGKey(0)
    pkey, xkey = jax.random.split(key)
    params = init_params(pkey)
    prep = prep_params(params)                # one-time weight re-layout, outside jit
    x = jax.random.normal(xkey, (2, 3, 32, 32), jnp.float32)

    out = jax.block_until_ready(cnn_cifar_forward(prep, x))
    assert out.shape == (2, 10), out.shape

    ref = jax.block_until_ready(jax.jit(reference_forward)(params, x))
    err = float(jnp.max(jnp.abs(out - ref)))
    assert jnp.allclose(out, ref, rtol=5e-2, atol=5e-2), f"max abs err {err}"

    print("KERNEL_OK")
</pallas_src>

<mosaic_0001>
module attributes {stable_mosaic.version = 11 : i64} {
  func.func @_conv_relu_pool_kernel(%arg0: i32, %arg1: memref<4x512x75xbf16, #tpu.memory_space<vmem>>, %arg2: memref<75x30xbf16, #tpu.memory_space<vmem>>, %arg3: memref<1x30xf32, #tpu.memory_space<vmem>>, %arg4: memref<512x30xf32, #tpu.memory_space<vmem>>) attributes {dimension_semantics = [#tpu.dimension_semantics<parallel>], iteration_bounds = array<i64: 1>, scalar_prefetch = 0 : i64, scratch_operands = 0 : i64, tpu.core_type = #tpu.core_type<tc>, window_params = [{transform_indices = @transform_0, window_bounds = array<i64: 4, 512, 75>}, {pipeline_mode = #tpu.pipeline_mode<synchronous>, transform_indices = @transform_1, window_bounds = array<i64: 75, 30>}, {pipeline_mode = #tpu.pipeline_mode<synchronous>, transform_indices = @transform_2, window_bounds = array<i64: 1, 30>}, {transform_indices = @transform_3, window_bounds = array<i64: 512, 30>}]} {
    %c0 = arith.constant 0 : index
    %c0_0 = arith.constant 0 : index
    %0 = vector.load %arg2[%c0, %c0_0] : memref<75x30xbf16, #tpu.memory_space<vmem>>, vector<75x30xbf16>
    %c0_1 = arith.constant 0 : index
    %c0_2 = arith.constant 0 : index
    %c0_3 = arith.constant 0 : index
    %1 = vector.load %arg1[%c0_1, %c0_2, %c0_3] : memref<4x512x75xbf16, #tpu.memory_space<vmem>>, vector<1x512x75xbf16>
    %2 = vector.shape_cast %1 : vector<1x512x75xbf16> to vector<512x75xbf16>
    %cst = arith.constant dense<0.000000e+00> : vector<512x30xf32>
    %3 = tpu.matmul %2, %0, %cst {dimension_numbers = #tpu.dot_dimension_numbers<[1], [0], [0], [1], [0, 0, 1, 1], [], []>} : vector<512x75xbf16>, vector<75x30xbf16>, vector<512x30xf32> -> vector<512x30xf32>
    %c1 = arith.constant 1 : index
    %c0_4 = arith.constant 0 : index
    %c0_5 = arith.constant 0 : index
    %4 = vector.load %arg1[%c1, %c0_4, %c0_5] : memref<4x512x75xbf16, #tpu.memory_space<vmem>>, vector<1x512x75xbf16>
    %5 = vector.shape_cast %4 : vector<1x512x75xbf16> to vector<512x75xbf16>
    %cst_6 = arith.constant dense<0.000000e+00> : vector<512x30xf32>
    %6 = tpu.matmul %5, %0, %cst_6 {dimension_numbers = #tpu.dot_dimension_numbers<[1], [0], [0], [1], [0, 0, 1, 1], [], []>} : vector<512x75xbf16>, vector<75x30xbf16>, vector<512x30xf32> -> vector<512x30xf32>
    %7 = arith.maximumf %3, %6 : vector<512x30xf32>
    %c2 = arith.constant 2 : index
    %c0_7 = arith.constant 0 : index
    %c0_8 = arith.constant 0 : index
    %8 = vector.load %arg1[%c2, %c0_7, %c0_8] : memref<4x512x75xbf16, #tpu.memory_space<vmem>>, vector<1x512x75xbf16>
    %9 = vector.shape_cast %8 : vector<1x512x75xbf16> to vector<512x75xbf16>
    %cst_9 = arith.constant dense<0.000000e+00> : vector<512x30xf32>
    %10 = tpu.matmul %9, %0, %cst_9 {dimension_numbers = #tpu.dot_dimension_numbers<[1], [0], [0], [1], [0, 0, 1, 1], [], []>} : vector<512x75xbf16>, vector<75x30xbf16>, vector<512x30xf32> -> vector<512x30xf32>
    %11 = arith.maximumf %7, %10 : vector<512x30xf32>
    %c3 = arith.constant 3 : index
    %c0_10 = arith.constant 0 : index
    %c0_11 = arith.constant 0 : index
    %12 = vector.load %arg1[%c3, %c0_10, %c0_11] : memref<4x512x75xbf16, #tpu.memory_space<vmem>>, vector<1x512x75xbf16>
    %13 = vector.shape_cast %12 : vector<1x512x75xbf16> to vector<512x75xbf16>
    %cst_12 = arith.constant dense<0.000000e+00> : vector<512x30xf32>
    %14 = tpu.matmul %13, %0, %cst_12 {dimension_numbers = #tpu.dot_dimension_numbers<[1], [0], [0], [1], [0, 0, 1, 1], [], []>} : vector<512x75xbf16>, vector<75x30xbf16>, vector<512x30xf32> -> vector<512x30xf32>
    %15 = arith.maximumf %11, %14 : vector<512x30xf32>
    %c0_13 = arith.constant 0 : index
    %c0_14 = arith.constant 0 : index
    %16 = vector.load %arg3[%c0_13, %c0_14] : memref<1x30xf32, #tpu.memory_space<vmem>>, vector<1x30xf32>
    %17 = vector.broadcast %16 : vector<1x30xf32> to vector<512x30xf32>
    %18 = arith.addf %15, %17 : vector<512x30xf32>
    %cst_15 = arith.constant 0.000000e+00 : f32
    %19 = vector.broadcast %cst_15 : f32 to vector<512x30xf32>
    %20 = arith.maximumf %18, %19 : vector<512x30xf32>
    %c0_16 = arith.constant 0 : index
    %c0_17 = arith.constant 0 : index
    %21 = vector.load %arg4[%c0_16, %c0_17] : memref<512x30xf32, #tpu.memory_space<vmem>>, vector<512x30xf32>
    tpu.vector_store %arg4[%c0_16, %c0_17], %20 {strides = array<i32>} : memref<512x30xf32, #tpu.memory_space<vmem>>, vector<512x30xf32>,
    return
  }
  func.func @transform_0(%arg0: i32) -> (i32, i32, i32) {
    %c0_i32 = arith.constant 0 : i32
    %c0_i32_0 = arith.constant 0 : i32
    %c0_i32_1 = arith.constant 0 : i32
    return %c0_i32, %arg0, %c0_i32_0 : i32, i32, i32
  }
  func.func @transform_1(%arg0: i32) -> (i32, i32) {
    %c0_i32 = arith.constant 0 : i32
    %c0_i32_0 = arith.constant 0 : i32
    %c0_i32_1 = arith.constant 0 : i32
    return %c0_i32, %c0_i32_0 : i32, i32
  }
  func.func @transform_2(%arg0: i32) -> (i32, i32) {
    %c0_i32 = arith.constant 0 : i32
    %c0_i32_0 = arith.constant 0 : i32
    %c0_i32_1 = arith.constant 0 : i32
    return %c0_i32, %c0_i32_0 : i32, i32
  }
  func.func @transform_3(%arg0: i32) -> (i32, i32) {
    %c0_i32 = arith.constant 0 : i32
    %c0_i32_0 = arith.constant 0 : i32
    return %arg0, %c0_i32 : i32, i32
  }
}

module attributes {stable_mosaic.version = 11 : i64} {
  func.func @_conv_relu_pool_kernel(%arg0: i32, %arg1: memref<4x128x750xbf16, #tpu.memory_space<vmem>>, %arg2: memref<750x40xbf16, #tpu.memory_space<vmem>>, %arg3: memref<1x40xf32, #tpu.memory_space<vmem>>, %arg4: memref<128x40xf32, #tpu.memory_space<vmem>>) attributes {dimension_semantics = [#tpu.dimension_semantics<parallel>], iteration_bounds = array<i64: 1>, scalar_prefetch = 0 : i64, scratch_operands = 0 : i64, tpu.core_type = #tpu.core_type<tc>, window_params = [{transform_indices = @transform_0, window_bounds = array<i64: 4, 128, 750>}, {pipeline_mode = #tpu.pipeline_mode<synchronous>, transform_indices = @transform_1, window_bounds = array<i64: 750, 40>}, {pipeline_mode = #tpu.pipeline_mode<synchronous>, transform_indices = @transform_2, window_bounds = array<i64: 1, 40>}, {transform_indices = @transform_3, window_bounds = array<i64: 128, 40>}]} {
    %c0 = arith.constant 0 : index
    %c0_0 = arith.constant 0 : index
    %0 = vector.load %arg2[%c0, %c0_0] : memref<750x40xbf16, #tpu.memory_space<vmem>>, vector<750x40xbf16>
    %c0_1 = arith.constant 0 : index
    %c0_2 = arith.constant 0 : index
    %c0_3 = arith.constant 0 : index
    %1 = vector.load %arg1[%c0_1, %c0_2, %c0_3] : memref<4x128x750xbf16, #tpu.memory_space<vmem>>, vector<1x128x750xbf16>
    %2 = vector.shape_cast %1 : vector<1x128x750xbf16> to vector<128x750xbf16>
    %cst = arith.constant dense<0.000000e+00> : vector<128x40xf32>
    %3 = tpu.matmul %2, %0, %cst {dimension_numbers = #tpu.dot_dimension_numbers<[1], [0], [0], [1], [0, 0, 1, 1], [], []>} : vector<128x750xbf16>, vector<750x40xbf16>, vector<128x40xf32> -> vector<128x40xf32>
    %c1 = arith.constant 1 : index
    %c0_4 = arith.constant 0 : index
    %c0_5 = arith.constant 0 : index
    %4 = vector.load %arg1[%c1, %c0_4, %c0_5] : memref<4x128x750xbf16, #tpu.memory_space<vmem>>, vector<1x128x750xbf16>
    %5 = vector.shape_cast %4 : vector<1x128x750xbf16> to vector<128x750xbf16>
    %cst_6 = arith.constant dense<0.000000e+00> : vector<128x40xf32>
    %6 = tpu.matmul %5, %0, %cst_6 {dimension_numbers = #tpu.dot_dimension_numbers<[1], [0], [0], [1], [0, 0, 1, 1], [], []>} : vector<128x750xbf16>, vector<750x40xbf16>, vector<128x40xf32> -> vector<128x40xf32>
    %7 = arith.maximumf %3, %6 : vector<128x40xf32>
    %c2 = arith.constant 2 : index
    %c0_7 = arith.constant 0 : index
    %c0_8 = arith.constant 0 : index
    %8 = vector.load %arg1[%c2, %c0_7, %c0_8] : memref<4x128x750xbf16, #tpu.memory_space<vmem>>, vector<1x128x750xbf16>
    %9 = vector.shape_cast %8 : vector<1x128x750xbf16> to vector<128x750xbf16>
    %cst_9 = arith.constant dense<0.000000e+00> : vector<128x40xf32>
    %10 = tpu.matmul %9, %0, %cst_9 {dimension_numbers = #tpu.dot_dimension_numbers<[1], [0], [0], [1], [0, 0, 1, 1], [], []>} : vector<128x750xbf16>, vector<750x40xbf16>, vector<128x40xf32> -> vector<128x40xf32>
    %11 = arith.maximumf %7, %10 : vector<128x40xf32>
    %c3 = arith.constant 3 : index
    %c0_10 = arith.constant 0 : index
    %c0_11 = arith.constant 0 : index
    %12 = vector.load %arg1[%c3, %c0_10, %c0_11] : memref<4x128x750xbf16, #tpu.memory_space<vmem>>, vector<1x128x750xbf16>
    %13 = vector.shape_cast %12 : vector<1x128x750xbf16> to vector<128x750xbf16>
    %cst_12 = arith.constant dense<0.000000e+00> : vector<128x40xf32>
    %14 = tpu.matmul %13, %0, %cst_12 {dimension_numbers = #tpu.dot_dimension_numbers<[1], [0], [0], [1], [0, 0, 1, 1], [], []>} : vector<128x750xbf16>, vector<750x40xbf16>, vector<128x40xf32> -> vector<128x40xf32>
    %15 = arith.maximumf %11, %14 : vector<128x40xf32>
    %c0_13 = arith.constant 0 : index
    %c0_14 = arith.constant 0 : index
    %16 = vector.load %arg3[%c0_13, %c0_14] : memref<1x40xf32, #tpu.memory_space<vmem>>, vector<1x40xf32>
    %17 = vector.broadcast %16 : vector<1x40xf32> to vector<128x40xf32>
    %18 = arith.addf %15, %17 : vector<128x40xf32>
    %cst_15 = arith.constant 0.000000e+00 : f32
    %19 = vector.broadcast %cst_15 : f32 to vector<128x40xf32>
    %20 = arith.maximumf %18, %19 : vector<128x40xf32>
    %c0_16 = arith.constant 0 : index
    %c0_17 = arith.constant 0 : index
    %21 = vector.load %arg4[%c0_16, %c0_17] : memref<128x40xf32, #tpu.memory_space<vmem>>, vector<128x40xf32>
    tpu.vector_store %arg4[%c0_16, %c0_17], %20 {strides = array<i32>} : memref<128x40xf32, #tpu.memory_space<vmem>>, vector<128x40xf32>,
    return
  }
  func.func @transform_0(%arg0: i32) -> (i32, i32, i32) {
    %c0_i32 = arith.constant 0 : i32
    %c0_i32_0 = arith.constant 0 : i32
    %c0_i32_1 = arith.constant 0 : i32
    return %c0_i32, %arg0, %c0_i32_0 : i32, i32, i32
  }
  func.func @transform_1(%arg0: i32) -> (i32, i32) {
    %c0_i32 = arith.constant 0 : i32
    %c0_i32_0 = arith.constant 0 : i32
    %c0_i32_1 = arith.constant 0 : i32
    return %c0_i32, %c0_i32_0 : i32, i32
  }
  func.func @transform_2(%arg0: i32) -> (i32, i32) {
    %c0_i32 = arith.constant 0 : i32
    %c0_i32_0 = arith.constant 0 : i32
    %c0_i32_1 = arith.constant 0 : i32
    return %c0_i32, %c0_i32_0 : i32, i32
  }
  func.func @transform_3(%arg0: i32) -> (i32, i32) {
    %c0_i32 = arith.constant 0 : i32
    %c0_i32_0 = arith.constant 0 : i32
    return %arg0, %c0_i32 : i32, i32
  }
}

module attributes {stable_mosaic.version = 11 : i64} {
  func.func @_conv_relu_pool_kernel(%arg0: i32, %arg1: memref<4x8x640xbf16, #tpu.memory_space<vmem>>, %arg2: memref<640x80xbf16, #tpu.memory_space<vmem>>, %arg3: memref<1x80xf32, #tpu.memory_space<vmem>>, %arg4: memref<8x80xf32, #tpu.memory_space<vmem>>) attributes {dimension_semantics = [#tpu.dimension_semantics<parallel>], iteration_bounds = array<i64: 1>, scalar_prefetch = 0 : i64, scratch_operands = 0 : i64, tpu.core_type = #tpu.core_type<tc>, window_params = [{transform_indices = @transform_0, window_bounds = array<i64: 4, 8, 640>}, {pipeline_mode = #tpu.pipeline_mode<synchronous>, transform_indices = @transform_1, window_bounds = array<i64: 640, 80>}, {pipeline_mode = #tpu.pipeline_mode<synchronous>, transform_indices = @transform_2, window_bounds = array<i64: 1, 80>}, {transform_indices = @transform_3, window_bounds = array<i64: 8, 80>}]} {
    %c0 = arith.constant 0 : index
    %c0_0 = arith.constant 0 : index
    %0 = vector.load %arg2[%c0, %c0_0] : memref<640x80xbf16, #tpu.memory_space<vmem>>, vector<640x80xbf16>
    %c0_1 = arith.constant 0 : index
    %c0_2 = arith.constant 0 : index
    %c0_3 = arith.constant 0 : index
    %1 = vector.load %arg1[%c0_1, %c0_2, %c0_3] : memref<4x8x640xbf16, #tpu.memory_space<vmem>>, vector<1x8x640xbf16>
    %2 = vector.shape_cast %1 : vector<1x8x640xbf16> to vector<8x640xbf16>
    %cst = arith.constant dense<0.000000e+00> : vector<8x80xf32>
    %3 = tpu.matmul %2, %0, %cst {dimension_numbers = #tpu.dot_dimension_numbers<[1], [0], [0], [1], [0, 0, 1, 1], [], []>} : vector<8x640xbf16>, vector<640x80xbf16>, vector<8x80xf32> -> vector<8x80xf32>
    %c1 = arith.constant 1 : index
    %c0_4 = arith.constant 0 : index
    %c0_5 = arith.constant 0 : index
    %4 = vector.load %arg1[%c1, %c0_4, %c0_5] : memref<4x8x640xbf16, #tpu.memory_space<vmem>>, vector<1x8x640xbf16>
    %5 = vector.shape_cast %4 : vector<1x8x640xbf16> to vector<8x640xbf16>
    %cst_6 = arith.constant dense<0.000000e+00> : vector<8x80xf32>
    %6 = tpu.matmul %5, %0, %cst_6 {dimension_numbers = #tpu.dot_dimension_numbers<[1], [0], [0], [1], [0, 0, 1, 1], [], []>} : vector<8x640xbf16>, vector<640x80xbf16>, vector<8x80xf32> -> vector<8x80xf32>
    %7 = arith.maximumf %3, %6 : vector<8x80xf32>
    %c2 = arith.constant 2 : index
    %c0_7 = arith.constant 0 : index
    %c0_8 = arith.constant 0 : index
    %8 = vector.load %arg1[%c2, %c0_7, %c0_8] : memref<4x8x640xbf16, #tpu.memory_space<vmem>>, vector<1x8x640xbf16>
    %9 = vector.shape_cast %8 : vector<1x8x640xbf16> to vector<8x640xbf16>
    %cst_9 = arith.constant dense<0.000000e+00> : vector<8x80xf32>
    %10 = tpu.matmul %9, %0, %cst_9 {dimension_numbers = #tpu.dot_dimension_numbers<[1], [0], [0], [1], [0, 0, 1, 1], [], []>} : vector<8x640xbf16>, vector<640x80xbf16>, vector<8x80xf32> -> vector<8x80xf32>
    %11 = arith.maximumf %7, %10 : vector<8x80xf32>
    %c3 = arith.constant 3 : index
    %c0_10 = arith.constant 0 : index
    %c0_11 = arith.constant 0 : index
    %12 = vector.load %arg1[%c3, %c0_10, %c0_11] : memref<4x8x640xbf16, #tpu.memory_space<vmem>>, vector<1x8x640xbf16>
    %13 = vector.shape_cast %12 : vector<1x8x640xbf16> to vector<8x640xbf16>
    %cst_12 = arith.constant dense<0.000000e+00> : vector<8x80xf32>
    %14 = tpu.matmul %13, %0, %cst_12 {dimension_numbers = #tpu.dot_dimension_numbers<[1], [0], [0], [1], [0, 0, 1, 1], [], []>} : vector<8x640xbf16>, vector<640x80xbf16>, vector<8x80xf32> -> vector<8x80xf32>
    %15 = arith.maximumf %11, %14 : vector<8x80xf32>
    %c0_13 = arith.constant 0 : index
    %c0_14 = arith.constant 0 : index
    %16 = vector.load %arg3[%c0_13, %c0_14] : memref<1x80xf32, #tpu.memory_space<vmem>>, vector<1x80xf32>
    %17 = vector.broadcast %16 : vector<1x80xf32> to vector<8x80xf32>
    %18 = arith.addf %15, %17 : vector<8x80xf32>
    %cst_15 = arith.constant 0.000000e+00 : f32
    %19 = vector.broadcast %cst_15 : f32 to vector<8x80xf32>
    %20 = arith.maximumf %18, %19 : vector<8x80xf32>
    %c0_16 = arith.constant 0 : index
    %c0_17 = arith.constant 0 : index
    %21 = vector.load %arg4[%c0_16, %c0_17] : memref<8x80xf32, #tpu.memory_space<vmem>>, vector<8x80xf32>
    tpu.vector_store %arg4[%c0_16, %c0_17], %20 {strides = array<i32>} : memref<8x80xf32, #tpu.memory_space<vmem>>, vector<8x80xf32>,
    return
  }
  func.func @transform_0(%arg0: i32) -> (i32, i32, i32) {
    %c0_i32 = arith.constant 0 : i32
    %c0_i32_0 = arith.constant 0 : i32
    %c0_i32_1 = arith.constant 0 : i32
    return %c0_i32, %arg0, %c0_i32_0 : i32, i32, i32
  }
  func.func @transform_1(%arg0: i32) -> (i32, i32) {
    %c0_i32 = arith.constant 0 : i32
    %c0_i32_0 = arith.constant 0 : i32
    %c0_i32_1 = arith.constant 0 : i32
    return %c0_i32, %c0_i32_0 : i32, i32
  }
  func.func @transform_2(%arg0: i32) -> (i32, i32) {
    %c0_i32 = arith.constant 0 : i32
    %c0_i32_0 = arith.constant 0 : i32
    %c0_i32_1 = arith.constant 0 : i32
    return %c0_i32, %c0_i32_0 : i32, i32
  }
  func.func @transform_3(%arg0: i32) -> (i32, i32) {
    %c0_i32 = arith.constant 0 : i32
    %c0_i32_0 = arith.constant 0 : i32
    return %arg0, %c0_i32 : i32, i32
  }
}

module attributes {stable_mosaic.version = 11 : i64} {
  func.func @_mlp_kernel(%arg0: i32, %arg1: memref<2x320xbf16, #tpu.memory_space<vmem>>, %arg2: memref<320x100xbf16, #tpu.memory_space<vmem>>, %arg3: memref<1x100xf32, #tpu.memory_space<vmem>>, %arg4: memref<100x10xbf16, #tpu.memory_space<vmem>>, %arg5: memref<1x10xf32, #tpu.memory_space<vmem>>, %arg6: memref<2x10xf32, #tpu.memory_space<vmem>>) attributes {dimension_semantics = [#tpu.dimension_semantics<parallel>], iteration_bounds = array<i64: 1>, scalar_prefetch = 0 : i64, scratch_operands = 0 : i64, tpu.core_type = #tpu.core_type<tc>, window_params = [{transform_indices = @transform_0, window_bounds = array<i64: 2, 320>}, {pipeline_mode = #tpu.pipeline_mode<synchronous>, transform_indices = @transform_1, window_bounds = array<i64: 320, 100>}, {pipeline_mode = #tpu.pipeline_mode<synchronous>, transform_indices = @transform_2, window_bounds = array<i64: 1, 100>}, {pipeline_mode = #tpu.pipeline_mode<synchronous>, transform_indices = @transform_3, window_bounds = array<i64: 100, 10>}, {pipeline_mode = #tpu.pipeline_mode<synchronous>, transform_indices = @transform_4, window_bounds = array<i64: 1, 10>}, {transform_indices = @transform_5, window_bounds = array<i64: 2, 10>}]} {
    %c0 = arith.constant 0 : index
    %c0_0 = arith.constant 0 : index
    %0 = vector.load %arg1[%c0, %c0_0] : memref<2x320xbf16, #tpu.memory_space<vmem>>, vector<2x320xbf16>
    %c0_1 = arith.constant 0 : index
    %c0_2 = arith.constant 0 : index
    %1 = vector.load %arg2[%c0_1, %c0_2] : memref<320x100xbf16, #tpu.memory_space<vmem>>, vector<320x100xbf16>
    %cst = arith.constant dense<0.000000e+00> : vector<2x100xf32>
    %2 = tpu.matmul %0, %1, %cst {dimension_numbers = #tpu.dot_dimension_numbers<[1], [0], [0], [1], [0, 0, 1, 1], [], []>} : vector<2x320xbf16>, vector<320x100xbf16>, vector<2x100xf32> -> vector<2x100xf32>
    %c0_3 = arith.constant 0 : index
    %c0_4 = arith.constant 0 : index
    %3 = vector.load %arg3[%c0_3, %c0_4] : memref<1x100xf32, #tpu.memory_space<vmem>>, vector<1x100xf32>
    %4 = vector.broadcast %3 : vector<1x100xf32> to vector<2x100xf32>
    %5 = arith.addf %2, %4 : vector<2x100xf32>
    %6 = arith.truncf %5 : vector<2x100xf32> to vector<2x100xbf16>
    %c0_5 = arith.constant 0 : index
    %c0_6 = arith.constant 0 : index
    %7 = vector.load %arg4[%c0_5, %c0_6] : memref<100x10xbf16, #tpu.memory_space<vmem>>, vector<100x10xbf16>
    %cst_7 = arith.constant dense<0.000000e+00> : vector<2x10xf32>
    %8 = tpu.matmul %6, %7, %cst_7 {dimension_numbers = #tpu.dot_dimension_numbers<[1], [0], [0], [1], [0, 0, 1, 1], [], []>} : vector<2x100xbf16>, vector<100x10xbf16>, vector<2x10xf32> -> vector<2x10xf32>
    %c0_8 = arith.constant 0 : index
    %c0_9 = arith.constant 0 : index
    %9 = vector.load %arg5[%c0_8, %c0_9] : memref<1x10xf32, #tpu.memory_space<vmem>>, vector<1x10xf32>
    %10 = vector.broadcast %9 : vector<1x10xf32> to vector<2x10xf32>
    %11 = arith.addf %8, %10 : vector<2x10xf32>
    %c0_10 = arith.constant 0 : index
    %c0_11 = arith.constant 0 : index
    %12 = vector.load %arg6[%c0_10, %c0_11] : memref<2x10xf32, #tpu.memory_space<vmem>>, vector<2x10xf32>
    tpu.vector_store %arg6[%c0_10, %c0_11], %11 {strides = array<i32>} : memref<2x10xf32, #tpu.memory_space<vmem>>, vector<2x10xf32>,
    return
  }
  func.func @transform_0(%arg0: i32) -> (i32, i32) {
    %c0_i32 = arith.constant 0 : i32
    %c0_i32_0 = arith.constant 0 : i32
    return %arg0, %c0_i32 : i32, i32
  }
  func.func @transform_1(%arg0: i32) -> (i32, i32) {
    %c0_i32 = arith.constant 0 : i32
    %c0_i32_0 = arith.constant 0 : i32
    %c0_i32_1 = arith.constant 0 : i32
    return %c0_i32, %c0_i32_0 : i32, i32
  }
  func.func @transform_2(%arg0: i32) -> (i32, i32) {
    %c0_i32 = arith.constant 0 : i32
    %c0_i32_0 = arith.constant 0 : i32
    %c0_i32_1 = arith.constant 0 : i32
    return %c0_i32, %c0_i32_0 : i32, i32
  }
  func.func @transform_3(%arg0: i32) -> (i32, i32) {
    %c0_i32 = arith.constant 0 : i32
    %c0_i32_0 = arith.constant 0 : i32
    %c0_i32_1 = arith.constant 0 : i32
    return %c0_i32, %c0_i32_0 : i32, i32
  }
  func.func @transform_4(%arg0: i32) -> (i32, i32) {
    %c0_i32 = arith.constant 0 : i32
    %c0_i32_0 = arith.constant 0 : i32
    %c0_i32_1 = arith.constant 0 : i32
    return %c0_i32, %c0_i32_0 : i32, i32
  }
  func.func @transform_5(%arg0: i32) -> (i32, i32) {
    %c0_i32 = arith.constant 0 : i32
    %c0_i32_0 = arith.constant 0 : i32
    return %arg0, %c0_i32 : i32, i32
  }
}

</mosaic_0001>

<llo_original>
// kernel: cnn_cifar_forward.4
$region0: #{cnn_cifar_forward.4}
  #allocation0 [shape = 'u32[]', space=smem, size = 0x4, offset = 0x4, fixed_abs, tag = 'smem constant byte address 0x4 - core index']
  #allocation1 [shape = 'u32[144,128]{1,0:T(1,128)}', space=vmem, size = 0x12000, scoped, tag = 'internal scratch']
  %s0 = inlined_call_operand.vmem [shape: bf16[4,512,75], index: 0, kind: input, shape index: {}]
  %s1 = inlined_call_operand.vmem [shape: bf16[75,30], index: 1, kind: input, shape index: {}]
  %s2 = inlined_call_operand.vmem [shape: f32[1,30], index: 2, kind: input, shape index: {}]
  %s3 = inlined_call_operand.vmem [shape: f32[512,30], index: 3, kind: output, shape index: {}]
  %s4 = sld [smem:[#allocation0]]
  $region22: #{cnn_cifar_forward.4} parent=0
    _
  %s6 = ssub.s32 1, %s4
  %s7 = scalar_select 0, %s6, %s4
  // Predicated region
  $region2: #{cnn_cifar_forward.4} parent=0 // pred_check
    _
  $region3: #{cnn_cifar_forward.4} parent=0 // pred_check_branch
    %9 = sbr.rel (0) target = $region5
  $region4: #{cnn_cifar_forward.4} parent=0 // pred_region
    _
  $region5: #{cnn_cifar_forward.4} parent=0 // pred_fallthru
    _
  // Predicated region
  $region6: #{cnn_cifar_forward.4} parent=0 // pred_check
    _
  $region7: #{cnn_cifar_forward.4} parent=0 // pred_check_branch
    %11 = sbr.rel (0) target = $region9
  $region8: #{cnn_cifar_forward.4} parent=0 // pred_region
    _
  $region9: #{cnn_cifar_forward.4} parent=0 // pred_fallthru
    _
  // Predicated region
  $region10: #{cnn_cifar_forward.4} parent=0 // pred_check
    _
  $region11: #{cnn_cifar_forward.4} parent=0 // pred_check_branch
    %13 = sbr.rel (0) target = $region13
  $region12: #{cnn_cifar_forward.4} parent=0 // pred_region
    _
  $region13: #{cnn_cifar_forward.4} parent=0 // pred_fallthru
    _
  %v15 = vld [vmem:[%s1] sm:$0xf]
  %v16 = vld [vmem:[%s1 + $0x4] sm:$0xf]
  %v17 = vld [vmem:[%s1 + $0x8] sm:$0xf]
  %v18 = vld [vmem:[%s1 + $0xc] sm:$0xf]
  %v19 = vld [vmem:[%s1 + $0x10] sm:$0xf]
  %v20 = vld [vmem:[%s1 + $0x14] sm:$0xf]
  %v21 = vld [vmem:[%s1 + $0x18] sm:$0xf]
  %v22 = vld [vmem:[%s1 + $0x1c] sm:$0xf]
  %v23 = vld [vmem:[%s1 + $0x20] sm:$0xf]
  %v24 = vld [vmem:[%s1 + $0x24] sm:$0x3]
  %v25 = vld [vmem:[%s0] sm:$0xf]
  %v26 = vld [vmem:[%s0 + $0x4] sm:$0xf]
  %v27 = vld [vmem:[%s0 + $0x8] sm:$0xf]
  %v28 = vld [vmem:[%s0 + $0xc] sm:$0xf]
  %v29 = vld [vmem:[%s0 + $0x10] sm:$0xf]
  %v30 = vld [vmem:[%s0 + $0x14] sm:$0xf]
  %v31 = vld [vmem:[%s0 + $0x18] sm:$0xf]
  %v32 = vld [vmem:[%s0 + $0x1c] sm:$0xf]
  %v33 = vld [vmem:[%s0 + $0x20] sm:$0xf]
  %v34 = vld [vmem:[%s0 + $0x24] sm:$0xf]
  %v35 = vld [vmem:[%s0 + $0x28] sm:$0xf]
  %v36 = vld [vmem:[%s0 + $0x2c] sm:$0xf]
  %v37 = vld [vmem:[%s0 + $0x30] sm:$0xf]
  %v38 = vld [vmem:[%s0 + $0x34] sm:$0xf]
  %v39 = vld [vmem:[%s0 + $0x38] sm:$0xf]
  %v40 = vld [vmem:[%s0 + $0x3c] sm:$0xf]
  %v41 = vld [vmem:[%s0 + $0x40] sm:$0xf]
  %v42 = vld [vmem:[%s0 + $0x44] sm:$0xf]
  %v43 = vld [vmem:[%s0 + $0x48] sm:$0xf]
  %v44 = vld [vmem:[%s0 + $0x4c] sm:$0xf]
  %v45 = vld [vmem:[%s0 + $0x50] sm:$0xf]
  %v46 = vld [vmem:[%s0 + $0x54] sm:$0xf]
  %v47 = vld [vmem:[%s0 + $0x58] sm:$0xf]
  %v48 = vld [vmem:[%s0 + $0x5c] sm:$0xf]
  %v49 = vld [vmem:[%s0 + $0x60] sm:$0xf]
  %v50 = vld [vmem:[%s0 + $0x64] sm:$0xf]
  %v51 = vld [vmem:[%s0 + $0x68] sm:$0xf]
  %v52 = vld [vmem:[%s0 + $0x6c] sm:$0xf]
  %v53 = vld [vmem:[%s0 + $0x70] sm:$0xf]
  %v54 = vld [vmem:[%s0 + $0x74] sm:$0xf]
  %v55 = vld [vmem:[%s0 + $0x78] sm:$0xf]
  %v56 = vld [vmem:[%s0 + $0x7c] sm:$0xf]
  %v57 = vld [vmem:[%s0 + $0x80] sm:$0xf]
  %v58 = vld [vmem:[%s0 + $0x84] sm:$0xf]
  %v59 = vld [vmem:[%s0 + $0x88] sm:$0xf]
  %v60 = vld [vmem:[%s0 + $0x8c] sm:$0xf]
  %v61 = vld [vmem:[%s0 + $0x90] sm:$0xf]
  %v62 = vld [vmem:[%s0 + $0x94] sm:$0xf]
  %v63 = vld [vmem:[%s0 + $0x98] sm:$0xf]
  %v64 = vld [vmem:[%s0 + $0x9c] sm:$0xf]
  %v65 = vld [vmem:[%s0 + $0xa0] sm:$0xf]
  %v66 = vld [vmem:[%s0 + $0xa4] sm:$0xf]
  %v67 = vld [vmem:[%s0 + $0xa8] sm:$0xf]
  %v68 = vld [vmem:[%s0 + $0xac] sm:$0xf]
  %v69 = vld [vmem:[%s0 + $0xb0] sm:$0xf]
  %v70 = vld [vmem:[%s0 + $0xb4] sm:$0xf]
  %v71 = vld [vmem:[%s0 + $0xb8] sm:$0xf]
  %v72 = vld [vmem:[%s0 + $0xbc] sm:$0xf]
  %v73 = vld [vmem:[%s0 + $0xc0] sm:$0xf]
  %v74 = vld [vmem:[%s0 + $0xc4] sm:$0xf]
  %v75 = vld [vmem:[%s0 + $0xc8] sm:$0xf]
  %v76 = vld [vmem:[%s0 + $0xcc] sm:$0xf]
  %v77 = vld [vmem:[%s0 + $0xd0] sm:$0xf]
  %v78 = vld [vmem:[%s0 + $0xd4] sm:$0xf]
  %v79 = vld [vmem:[%s0 + $0xd8] sm:$0xf]
  %v80 = vld [vmem:[%s0 + $0xdc] sm:$0xf]
  %v81 = vld [vmem:[%s0 + $0xe0] sm:$0xf]
  %v82 = vld [vmem:[%s0 + $0xe4] sm:$0xf]
  %v83 = vld [vmem:[%s0 + $0xe8] sm:$0xf]
  %v84 = vld [vmem:[%s0 + $0xec] sm:$0xf]
  %v85 = vld [vmem:[%s0 + $0xf0] sm:$0xf]
  %v86 = vld [vmem:[%s0 + $0xf4] sm:$0xf]
  %v87 = vld [vmem:[%s0 + $0xf8] sm:$0xf]
  %v88 = vld [vmem:[%s0 + $0xfc] sm:$0xf]
  %v153 = vunpack.c.l.b16 %v25
  %v154 = vunpack.c.l.b16 %v26
  %v155 = vunpack.c.l.b16 %v27
  %v156 = vunpack.c.l.b16 %v28
  %v157 = vunpack.c.l.b16 %v29
  %v158 = vunpack.c.l.b16 %v30
  %v159 = vunpack.c.l.b16 %v31
  %v160 = vunpack.c.l.b16 %v32
  %v161 = vunpack.c.l.b16 %v33
  %v162 = vunpack.c.l.b16 %v34
  %v163 = vunpack.c.l.b16 %v35
  %v164 = vunpack.c.l.b16 %v36
  %v165 = vunpack.c.l.b16 %v37
  %v166 = vunpack.c.l.b16 %v38
  %v167 = vunpack.c.l.b16 %v39
  %v168 = vunpack.c.l.b16 %v40
  %v169 = vunpack.c.l.b16 %v41
  %v170 = vunpack.c.l.b16 %v42
  %v171 = vunpack.c.l.b16 %v43
  %v172 = vunpack.c.l.b16 %v44
  %v173 = vunpack.c.l.b16 %v45
  %v174 = vunpack.c.l.b16 %v46
  %v175 = vunpack.c.l.b16 %v47
  %v176 = vunpack.c.l.b16 %v48
  %v177 = vunpack.c.l.b16 %v49
  %v178 = vunpack.c.l.b16 %v50
  %v179 = vunpack.c.l.b16 %v51
  %v180 = vunpack.c.l.b16 %v52
  %v181 = vunpack.c.l.b16 %v53
  %v182 = vunpack.c.l.b16 %v54
  %v183 = vunpack.c.l.b16 %v55
  %v184 = vunpack.c.l.b16 %v56
  %v185 = vunpack.c.l.b16 %v57
  %v186 = vunpack.c.l.b16 %v58
  %v187 = vunpack.c.l.b16 %v59
  %v188 = vunpack.c.l.b16 %v60
  %v189 = vunpack.c.l.b16 %v61
  %v190 = vunpack.c.l.b16 %v62
  %v191 = vunpack.c.l.b16 %v63
  %v192 = vunpack.c.l.b16 %v64
  %v193 = vunpack.c.l.b16 %v65
  %v194 = vunpack.c.l.b16 %v66
  %v195 = vunpack.c.l.b16 %v67
  %v196 = vunpack.c.l.b16 %v68
  %v197 = vunpack.c.l.b16 %v69
  %v198 = vunpack.c.l.b16 %v70
  %v199 = vunpack.c.l.b16 %v71
  %v200 = vunpack.c.l.b16 %v72
  %v201 = vunpack.c.l.b16 %v73
  %v202 = vunpack.c.l.b16 %v74
  %v203 = vunpack.c.l.b16 %v75
  %v204 = vunpack.c.l.b16 %v76
  %v205 = vunpack.c.l.b16 %v77
  %v206 = vunpack.c.l.b16 %v78
  %v207 = vunpack.c.l.b16 %v79
  %v208 = vunpack.c.l.b16 %v80
  %v209 = vunpack.c.l.b16 %v81
  %v210 = vunpack.c.l.b16 %v82
  %v211 = vunpack.c.l.b16 %v83
  %v212 = vunpack.c.l.b16 %v84
  %v213 = vunpack.c.l.b16 %v85
  %v214 = vunpack.c.l.b16 %v86
  %v215 = vunpack.c.l.b16 %v87
  %v216 = vunpack.c.l.b16 %v88
  %v217 = vpack.c.b16 %v154, %v153
  %v218 = vpack.c.b16 %v156, %v155
  %v219 = vpack.c.b16 %v158, %v157
  %v220 = vpack.c.b16 %v160, %v159
  %v221 = vpack.c.b16 %v162, %v161
  %v222 = vpack.c.b16 %v164, %v163
  %v223 = vpack.c.b16 %v166, %v165
  %v224 = vpack.c.b16 %v168, %v167
  %v225 = vpack.c.b16 %v170, %v169
  %v226 = vpack.c.b16 %v172, %v171
  %v227 = vpack.c.b16 %v174, %v173
  %v228 = vpack.c.b16 %v176, %v175
  %v229 = vpack.c.b16 %v178, %v177
  %v230 = vpack.c.b16 %v180, %v179
  %v231 = vpack.c.b16 %v182, %v181
  %v232 = vpack.c.b16 %v184, %v183
  %v233 = vpack.c.b16 %v186, %v185
  %v234 = vpack.c.b16 %v188, %v187
  %v235 = vpack.c.b16 %v190, %v189
  %v236 = vpack.c.b16 %v192, %v191
  %v237 = vpack.c.b16 %v194, %v193
  %v238 = vpack.c.b16 %v196, %v195
  %v239 = vpack.c.b16 %v198, %v197
  %v240 = vpack.c.b16 %v200, %v199
  %v241 = vpack.c.b16 %v202, %v201
  %v242 = vpack.c.b16 %v204, %v203
  %v243 = vpack.c.b16 %v206, %v205
  %v244 = vpack.c.b16 %v208, %v207
  %v245 = vpack.c.b16 %v210, %v209
  %v246 = vpack.c.b16 %v212, %v211
  %v247 = vpack.c.b16 %v214, %v213
  %v248 = vpack.c.b16 %v216, %v215
  %v259 = vunpack.c.l.b16 %v15
  %v260 = vunpack.c.l.b16 %v16
  %v261 = vunpack.c.l.b16 %v17
  %v262 = vunpack.c.l.b16 %v18
  %v263 = vunpack.c.l.b16 %v19
  %v264 = vunpack.c.l.b16 %v20
  %v265 = vunpack.c.l.b16 %v21
  %v266 = vunpack.c.l.b16 %v22
  %v267 = vunpack.c.l.b16 %v23
  %v268 = vunpack.c.l.b16 %v24
  %v269 = vpack.c.b16 %v260, %v259
  %v270 = vpack.c.b16 %v262, %v261
  %v271 = vpack.c.b16 %v264, %v263
  %v272 = vpack.c.b16 %v266, %v265
  %v273 = vpack.c.b16 %v268, %v267
  %vm278 = vcmask 613376
  %v280 = vsel %vm278, %v217, 0
  %v283 = vsel %vm278, %v218, 0
  %v286 = vsel %vm278, %v219, 0
  %v289 = vsel %vm278, %v220, 0
  %v292 = vsel %vm278, %v221, 0
  %v295 = vsel %vm278, %v222, 0
  %v298 = vsel %vm278, %v223, 0
  %v301 = vsel %vm278, %v224, 0
  %v304 = vsel %vm278, %v225, 0
  %v307 = vsel %vm278, %v226, 0
  %v310 = vsel %vm278, %v227, 0
  %v313 = vsel %vm278, %v228, 0
  %v316 = vsel %vm278, %v229, 0
  %v319 = vsel %vm278, %v230, 0
  %v322 = vsel %vm278, %v231, 0
  %v325 = vsel %vm278, %v232, 0
  %v328 = vsel %vm278, %v233, 0
  %v331 = vsel %vm278, %v234, 0
  %v334 = vsel %vm278, %v235, 0
  %v337 = vsel %vm278, %v236, 0
  %v340 = vsel %vm278, %v237, 0
  %v343 = vsel %vm278, %v238, 0
  %v346 = vsel %vm278, %v239, 0
  %v349 = vsel %vm278, %v240, 0
  %v352 = vsel %vm278, %v241, 0
  %v355 = vsel %vm278, %v242, 0
  %v358 = vsel %vm278, %v243, 0
  %v361 = vsel %vm278, %v244, 0
  %v364 = vsel %vm278, %v245, 0
  %v367 = vsel %vm278, %v246, 0
  %v370 = vsel %vm278, %v247, 0
  %v373 = vsel %vm278, %v248, 0
  %vm375 = vcmask 1044480
  %vm376 = vcmask 1045504
  %v377 = vsel %vm375, 4294967295, 65535
  %v378 = vsel %vm376, %v377, 0
  %v380 = vand.u32 %v273, %v378
  %382 = vmatprep.subr.bf16.mxu0 0
  %383 = vmatpush1.bf16.msra.mxu0 %v269
  %384 = vmatprep.subr.bf16.mxu0 0
  %385 = vmatpush1.bf16.msra.mxu0 %v270
  %386 = vmatprep.subr.bf16.mxu0 0
  %387 = vmatpush1.bf16.msra.mxu0 %v271
  %388 = vmatprep.subr.bf16.mxu0 0
  %389 = vmatpush1.bf16.msra.mxu0 %v272
  %390 = vmatprep.subr.bf16.mxu0 0
  %391 = vmatpush1.bf16.msra.mxu0 %v380
  %392 = vmatprep.subr.bf16.mxu0 0
  %393 = vmatpush1.bf16.msra.mxu0 0
  %394 = vmatprep.subr.bf16.mxu0 0
  %395 = vmatpush1.bf16.msra.mxu0 0
  %396 = vmatprep.subr.bf16.mxu0 0
  %397 = vmatpush1.bf16.msra.mxu0 0
  %398 = vmatprep.subr.bf16.mxu0 0
  %399 = vmatpush1.bf16.msra.mxu0 0
  %400 = vmatprep.subr.bf16.mxu0 0
  %401 = vmatpush1.bf16.msra.mxu0 0
  %402 = vmatprep.subr.bf16.mxu0 0
  %403 = vmatpush1.bf16.msra.mxu0 0
  %404 = vmatprep.subr.bf16.mxu0 0
  %405 = vmatpush1.bf16.msra.mxu0 0
  %406 = vmatprep.subr.bf16.mxu0 0
  %407 = vmatpush1.bf16.msra.mxu0 0
  %408 = vmatprep.subr.bf16.mxu0 0
  %409 = vmatpush1.bf16.msra.mxu0 0
  %410 = vmatprep.subr.bf16.mxu0 0
  %411 = vmatpush1.bf16.msra.mxu0 0
  %412 = vmatprep.subr.bf16.mxu0 0
  %413 = vmatpush1.bf16.msra.mxu0 0
  %414 = vmatprep.mubr.bf16.mxu0 0
  %415 = vmatmul.mubr.bf16.gmra.mrb[0].mxu0 %v280
  %v416 = vpop.f32.mrb[0].mxu0
  %v417 = vadd.f32 0.0, %v416
  %v418 = vpop.f32.mrb[0].mxu0
  %v419 = vpop.f32.mrb[0].mxu0
  %v420 = vadd.f32 0.0, %v419
  %v421 = vpop.f32.mrb[0].mxu0
  %422 = vmatprep.mubr.bf16.mxu0 0
  %423 = vmatmul.mubr.bf16.gmra.mrb[0].mxu0 %v283
  %v424 = vpop.f32.mrb[0].mxu0
  %v425 = vadd.f32 0.0, %v424
  %v426 = vpop.f32.mrb[0].mxu0
  %v427 = vpop.f32.mrb[0].mxu0
  %v428 = vadd.f32 0.0, %v427
  %v429 = vpop.f32.mrb[0].mxu0
  %430 = vmatprep.mubr.bf16.mxu0 0
  %431 = vmatmul.mubr.bf16.gmra.mrb[0].mxu0 %v286
  %v432 = vpop.f32.mrb[0].mxu0
  %v433 = vadd.f32 0.0, %v432
  %v434 = vpop.f32.mrb[0].mxu0
  %v435 = vpop.f32.mrb[0].mxu0
  %v436 = vadd.f32 0.0, %v435
  %v437 = vpop.f32.mrb[0].mxu0
  %438 = vmatprep.mubr.bf16.mxu0 0
  %439 = vmatmul.mubr.bf16.gmra.mrb[0].mxu0 %v289
  %v440 = vpop.f32.mrb[0].mxu0
  %v441 = vadd.f32 0.0, %v440
  %v442 = vpop.f32.mrb[0].mxu0
  %v443 = vpop.f32.mrb[0].mxu0
  %v444 = vadd.f32 0.0, %v443
  %v445 = vpop.f32.mrb[0].mxu0
  %446 = vmatprep.mubr.bf16.mxu0 0
  %447 = vmatmul.mubr.bf16.gmra.mrb[0].mxu0 %v292
  %v448 = vpop.f32.mrb[0].mxu0
  %v449 = vadd.f32 0.0, %v448
  %v450 = vpop.f32.mrb[0].mxu0
  %v451 = vpop.f32.mrb[0].mxu0
  %v452 = vadd.f32 0.0, %v451
  %v453 = vpop.f32.mrb[0].mxu0
  %454 = vmatprep.mubr.bf16.mxu0 0
  %455 = vmatmul.mubr.bf16.gmra.mrb[0].mxu0 %v295
  %v456 = vpop.f32.mrb[0].mxu0
  %v457 = vadd.f32 0.0, %v456
  %v458 = vpop.f32.mrb[0].mxu0
  %v459 = vpop.f32.mrb[0].mxu0
  %v460 = vadd.f32 0.0, %v459
  %v461 = vpop.f32.mrb[0].mxu0
  %462 = vmatprep.mubr.bf16.mxu0 0
  %463 = vmatmul.mubr.bf16.gmra.mrb[0].mxu0 %v298
  %v464 = vpop.f32.mrb[0].mxu0
  %v465 = vadd.f32 0.0, %v464
  %v466 = vpop.f32.mrb[0].mxu0
  %v467 = vpop.f32.mrb[0].mxu0
  %v468 = vadd.f32 0.0, %v467
  %v469 = vpop.f32.mrb[0].mxu0
  %470 = vmatprep.mubr.bf16.mxu0 0
  %471 = vmatmul.mubr.bf16.gmra.mrb[0].mxu0 %v301
  %v472 = vpop.f32.mrb[0].mxu0
  %v473 = vadd.f32 0.0, %v472
  %v474 = vpop.f32.mrb[0].mxu0
  %v475 = vpop.f32.mrb[0].mxu0
  %v476 = vadd.f32 0.0, %v475
  %v477 = vpop.f32.mrb[0].mxu0
  %478 = vmatprep.mubr.bf16.mxu0 0
  %479 = vmatmul.mubr.bf16.gmra.mrb[0].mxu0 %v304
  %v480 = vpop.f32.mrb[0].mxu0
  %v481 = vadd.f32 0.0, %v480
  %v482 = vpop.f32.mrb[0].mxu0
  %v483 = vpop.f32.mrb[0].mxu0
  %v484 = vadd.f32 0.0, %v483
  %v485 = vpop.f32.mrb[0].mxu0
  %486 = vmatprep.mubr.bf16.mxu0 0
  %487 = vmatmul.mubr.bf16.gmra.mrb[0].mxu0 %v307
  %v488 = vpop.f32.mrb[0].mxu0
  %v489 = vadd.f32 0.0, %v488
  %v490 = vpop.f32.mrb[0].mxu0
  %v491 = vpop.f32.mrb[0].mxu0
  %v492 = vadd.f32 0.0, %v491
  %v493 = vpop.f32.mrb[0].mxu0
  %494 = vmatprep.mubr.bf16.mxu0 0
  %495 = vmatmul.mubr.bf16.gmra.mrb[0].mxu0 %v310
  %v496 = vpop.f32.mrb[0].mxu0
  %v497 = vadd.f32 0.0, %v496
  %v498 = vpop.f32.mrb[0].mxu0
  %v499 = vpop.f32.mrb[0].mxu0
  %v500 = vadd.f32 0.0, %v499
  %v501 = vpop.f32.mrb[0].mxu0
  %502 = vmatprep.mubr.bf16.mxu0 0
  %503 = vmatmul.mubr.bf16.gmra.mrb[0].mxu0 %v313
  %v504 = vpop.f32.mrb[0].mxu0
  %v505 = vadd.f32 0.0, %v504
  %v506 = vpop.f32.mrb[0].mxu0
  %v507 = vpop.f32.mrb[0].mxu0
  %v508 = vadd.f32 0.0, %v507
  %v509 = vpop.f32.mrb[0].mxu0
  %510 = vmatprep.mubr.bf16.mxu0 0
  %511 = vmatmul.mubr.bf16.gmra.mrb[0].mxu0 %v316
  %v512 = vpop.f32.mrb[0].mxu0
  %v513 = vadd.f32 0.0, %v512
  %v514 = vpop.f32.mrb[0].mxu0
  %v515 = vpop.f32.mrb[0].mxu0
  %v516 = vadd.f32 0.0, %v515
  %v517 = vpop.f32.mrb[0].mxu0
  %518 = vmatprep.mubr.bf16.mxu0 0
  %519 = vmatmul.mubr.bf16.gmra.mrb[0].mxu0 %v319
  %v520 = vpop.f32.mrb[0].mxu0
  %v521 = vadd.f32 0.0, %v520
  %v522 = vpop.f32.mrb[0].mxu0
  %v523 = vpop.f32.mrb[0].mxu0
  %v524 = vadd.f32 0.0, %v523
  %v525 = vpop.f32.mrb[0].mxu0
  %526 = vmatprep.mubr.bf16.mxu0 0
  %527 = vmatmul.mubr.bf16.gmra.mrb[0].mxu0 %v322
  %v528 = vpop.f32.mrb[0].mxu0
  %v529 = vadd.f32 0.0, %v528
  %v530 = vpop.f32.mrb[0].mxu0
  %v531 = vpop.f32.mrb[0].mxu0
  %v532 = vadd.f32 0.0, %v531
  %v533 = vpop.f32.mrb[0].mxu0
  %534 = vmatprep.mubr.bf16.mxu0 0
  %535 = vmatmul.mubr.bf16.gmra.mrb[0].mxu0 %v325
  %v536 = vpop.f32.mrb[0].mxu0
  %v537 = vadd.f32 0.0, %v536
  %v538 = vpop.f32.mrb[0].mxu0
  %v539 = vpop.f32.mrb[0].mxu0
  %v540 = vadd.f32 0.0, %v539
  %v541 = vpop.f32.mrb[0].mxu0
  %542 = vmatprep.mubr.bf16.mxu0 0
  %543 = vmatmul.mubr.bf16.gmra.mrb[0].mxu0 %v328
  %v544 = vpop.f32.mrb[0].mxu0
  %v545 = vadd.f32 0.0, %v544
  %v546 = vpop.f32.mrb[0].mxu0
  %v547 = vpop.f32.mrb[0].mxu0
  %v548 = vadd.f32 0.0, %v547
  %v549 = vpop.f32.mrb[0].mxu0
  %550 = vmatprep.mubr.bf16.mxu0 0
  %551 = vmatmul.mubr.bf16.gmra.mrb[0].mxu0 %v331
  %v552 = vpop.f32.mrb[0].mxu0
  %v553 = vadd.f32 0.0, %v552
  %v554 = vpop.f32.mrb[0].mxu0
  %v555 = vpop.f32.mrb[0].mxu0
  %v556 = vadd.f32 0.0, %v555
  %v557 = vpop.f32.mrb[0].mxu0
  %558 = vmatprep.mubr.bf16.mxu0 0
  %559 = vmatmul.mubr.bf16.gmra.mrb[0].mxu0 %v334
  %v560 = vpop.f32.mrb[0].mxu0
  %v561 = vadd.f32 0.0, %v560
  %v562 = vpop.f32.mrb[0].mxu0
  %v563 = vpop.f32.mrb[0].mxu0
  %v564 = vadd.f32 0.0, %v563
  %v565 = vpop.f32.mrb[0].mxu0
  %566 = vmatprep.mubr.bf16.mxu0 0
  %567 = vmatmul.mubr.bf16.gmra.mrb[0].mxu0 %v337
  %v568 = vpop.f32.mrb[0].mxu0
  %v569 = vadd.f32 0.0, %v568
  %v570 = vpop.f32.mrb[0].mxu0
  %v571 = vpop.f32.mrb[0].mxu0
  %v572 = vadd.f32 0.0, %v571
  %v573 = vpop.f32.mrb[0].mxu0
  %574 = vmatprep.mubr.bf16.mxu0 0
  %575 = vmatmul.mubr.bf16.gmra.mrb[0].mxu0 %v340
  %v576 = vpop.f32.mrb[0].mxu0
  %v577 = vadd.f32 0.0, %v576
  %v578 = vpop.f32.mrb[0].mxu0
  %v579 = vpop.f32.mrb[0].mxu0
  %v580 = vadd.f32 0.0, %v579
  %v581 = vpop.f32.mrb[0].mxu0
  %582 = vmatprep.mubr.bf16.mxu0 0
  %583 = vmatmul.mubr.bf16.gmra.mrb[0].mxu0 %v343
  %v584 = vpop.f32.mrb[0].mxu0
  %v585 = vadd.f32 0.0, %v584
  %v586 = vpop.f32.mrb[0].mxu0
  %v587 = vpop.f32.mrb[0].mxu0
  %v588 = vadd.f32 0.0, %v587
  %v589 = vpop.f32.mrb[0].mxu0
  %590 = vmatprep.mubr.bf16.mxu0 0
  %591 = vmatmul.mubr.bf16.gmra.mrb[0].mxu0 %v346
  %v592 = vpop.f32.mrb[0].mxu0
  %v593 = vadd.f32 0.0, %v592
  %v594 = vpop.f32.mrb[0].mxu0
  %v595 = vpop.f32.mrb[0].mxu0
  %v596 = vadd.f32 0.0, %v595
  %v597 = vpop.f32.mrb[0].mxu0
  %598 = vmatprep.mubr.bf16.mxu0 0
  %599 = vmatmul.mubr.bf16.gmra.mrb[0].mxu0 %v349
  %v600 = vpop.f32.mrb[0].mxu0
  %v601 = vadd.f32 0.0, %v600
  %v602 = vpop.f32.mrb[0].mxu0
  %v603 = vpop.f32.mrb[0].mxu0
  %v604 = vadd.f32 0.0, %v603
  %v605 = vpop.f32.mrb[0].mxu0
  %606 = vmatprep.mubr.bf16.mxu0 0
  %607 = vmatmul.mubr.bf16.gmra.mrb[0].mxu0 %v352
  %v608 = vpop.f32.mrb[0].mxu0
  %v609 = vadd.f32 0.0, %v608
  %v610 = vpop.f32.mrb[0].mxu0
  %v611 = vpop.f32.mrb[0].mxu0
  %v612 = vadd.f32 0.0, %v611
  %v613 = vpop.f32.mrb[0].mxu0
  %614 = vmatprep.mubr.bf16.mxu0 0
  %615 = vmatmul.mubr.bf16.gmra.mrb[0].mxu0 %v355
  %v616 = vpop.f32.mrb[0].mxu0
  %v617 = vadd.f32 0.0, %v616
  %v618 = vpop.f32.mrb[0].mxu0
  %v619 = vpop.f32.mrb[0].mxu0
  %v620 = vadd.f32 0.0, %v619
  %v621 = vpop.f32.mrb[0].mxu0
  %622 = vmatprep.mubr.bf16.mxu0 0
  %623 = vmatmul.mubr.bf16.gmra.mrb[0].mxu0 %v358
  %v624 = vpop.f32.mrb[0].mxu0
  %v625 = vadd.f32 0.0, %v624
  %v626 = vpop.f32.mrb[0].mxu0
  %v627 = vpop.f32.mrb[0].mxu0
  %v628 = vadd.f32 0.0, %v627
  %v629 = vpop.f32.mrb[0].mxu0
  %630 = vmatprep.mubr.bf16.mxu0 0
  %631 = vmatmul.mubr.bf16.gmra.mrb[0].mxu0 %v361
  %v632 = vpop.f32.mrb[0].mxu0
  %v633 = vadd.f32 0.0, %v632
  %v634 = vpop.f32.mrb[0].mxu0
  %v635 = vpop.f32.mrb[0].mxu0
  %v636 = vadd.f32 0.0, %v635
  %v637 = vpop.f32.mrb[0].mxu0
  %638 = vmatprep.mubr.bf16.mxu0 0
  %639 = vmatmul.mubr.bf16.gmra.mrb[0].mxu0 %v364
  %v640 = vpop.f32.mrb[0].mxu0
  %v641 = vadd.f32 0.0, %v640
  %v642 = vpop.f32.mrb[0].mxu0
  %v643 = vpop.f32.mrb[0].mxu0
  %v644 = vadd.f32 0.0, %v643
  %v645 = vpop.f32.mrb[0].mxu0
  %646 = vmatprep.mubr.bf16.mxu0 0
  %647 = vmatmul.mubr.bf16.gmra.mrb[0].mxu0 %v367
  %v648 = vpop.f32.mrb[0].mxu0
  %v649 = vadd.f32 0.0, %v648
  %v650 = vpop.f32.mrb[0].mxu0
  %v651 = vpop.f32.mrb[0].mxu0
  %v652 = vadd.f32 0.0, %v651
  %v653 = vpop.f32.mrb[0].mxu0
  %654 = vmatprep.mubr.bf16.mxu0 0
  %655 = vmatmul.mubr.bf16.gmra.mrb[0].mxu0 %v370
  %v656 = vpop.f32.mrb[0].mxu0
  %v657 = vadd.f32 0.0, %v656
  %v658 = vpop.f32.mrb[0].mxu0
  %v659 = vpop.f32.mrb[0].mxu0
  %v660 = vadd.f32 0.0, %v659
  %v661 = vpop.f32.mrb[0].mxu0
  %662 = vmatprep.mubr.bf16.mxu0 0
  %663 = vmatmul.mubr.bf16.gmra.mrb[0].mxu0 %v373
  %v664 = vpop.f32.mrb[0].mxu0
  %v665 = vadd.f32 0.0, %v664
  %v666 = vpop.f32.mrb[0].mxu0
  %v667 = vpop.f32.mrb[0].mxu0
  %v668 = vadd.f32 0.0, %v667
  %v669 = vpop.f32.mrb[0].mxu0
  %670 = vdwg.mxu0
  %s671 = scalar_lea.vmem %s0, 256
  %v672 = vld [vmem:[%s671] sm:$0xf]
  %v673 = vld [vmem:[%s671 + $0x4] sm:$0xf]
  %v674 = vld [vmem:[%s671 + $0x8] sm:$0xf]
  %v675 = vld [vmem:[%s671 + $0xc] sm:$0xf]
  %v676 = vld [vmem:[%s671 + $0x10] sm:$0xf]
  %v677 = vld [vmem:[%s671 + $0x14] sm:$0xf]
  %v678 = vld [vmem:[%s671 + $0x18] sm:$0xf]
  %v679 = vld [vmem:[%s671 + $0x1c] sm:$0xf]
  %v680 = vld [vmem:[%s671 + $0x20] sm:$0xf]
  %v681 = vld [vmem:[%s671 + $0x24] sm:$0xf]
  %v682 = vld [vmem:[%s671 + $0x28] sm:$0xf]
  %v683 = vld [vmem:[%s671 + $0x2c] sm:$0xf]
  %v684 = vld [vmem:[%s671 + $0x30] sm:$0xf]
  %v685 = vld [vmem:[%s671 + $0x34] sm:$0xf]
  %v686 = vld [vmem:[%s671 + $0x38] sm:$0xf]
  %v687 = vld [vmem:[%s671 + $0x3c] sm:$0xf]
  %v688 = vld [vmem:[%s671 + $0x40] sm:$0xf]
  %v689 = vld [vmem:[%s671 + $0x44] sm:$0xf]
  %v690 = vld [vmem:[%s671 + $0x48] sm:$0xf]
  %v691 = vld [vmem:[%s671 + $0x4c] sm:$0xf]
  %v692 = vld [vmem:[%s671 + $0x50] sm:$0xf]
  %v693 = vld [vmem:[%s671 + $0x54] sm:$0xf]
  %v694 = vld [vmem:[%s671 + $0x58] sm:$0xf]
  %v695 = vld [vmem:[%s671 + $0x5c] sm:$0xf]
  %v696 = vld [vmem:[%s671 + $0x60] sm:$0xf]
  %v697 = vld [vmem:[%s671 + $0x64] sm:$0xf]
  %v698 = vld [vmem:[%s671 + $0x68] sm:$0xf]
  %v699 = vld [vmem:[%s671 + $0x6c] sm:$0xf]
  %v700 = vld [vmem:[%s671 + $0x70] sm:$0xf]
  %v701 = vld [vmem:[%s671 + $0x74] sm:$0xf]
  %v702 = vld [vmem:[%s671 + $0x78] sm:$0xf]
  %v703 = vld [vmem:[%s671 + $0x7c] sm:$0xf]
  %v704 = vld [vmem:[%s671 + $0x80] sm:$0xf]
  %v705 = vld [vmem:[%s671 + $0x84] sm:$0xf]
  %v706 = vld [vmem:[%s671 + $0x88] sm:$0xf]
  %v707 = vld [vmem:[%s671 + $0x8c] sm:$0xf]
  %v708 = vld [vmem:[%s671 + $0x90] sm:$0xf]
  %v709 = vld [vmem:[%s671 + $0x94] sm:$0xf]
  %v710 = vld [vmem:[%s671 + $0x98] sm:$0xf]
  %v711 = vld [vmem:[%s671 + $0x9c] sm:$0xf]
  %v712 = vld [vmem:[%s671 + $0xa0] sm:$0xf]
  %v713 = vld [vmem:[%s671 + $0xa4] sm:$0xf]
  %v714 = vld [vmem:[%s671 + $0xa8] sm:$0xf]
  %v715 = vld [vmem:[%s671 + $0xac] sm:$0xf]
  %v716 = vld [vmem:[%s671 + $0xb0] sm:$0xf]
  %v717 = vld [vmem:[%s671 + $0xb4] sm:$0xf]
  %v718 = vld [vmem:[%s671 + $0xb8] sm:$0xf]
  %v719 = vld [vmem:[%s671 + $0xbc] sm:$0xf]
  %v720 = vld [vmem:[%s671 + $0xc0] sm:$0xf]
  %v721 = vld [vmem:[%s671 + $0xc4] sm:$0xf]
  %v722 = vld [vmem:[%s671 + $0xc8] sm:$0xf]
  %v723 = vld [vmem:[%s671 + $0xcc] sm:$0xf]
  %v724 = vld [vmem:[%s671 + $0xd0] sm:$0xf]
  %v725 = vld [vmem:[%s671 + $0xd4] sm:$0xf]
  %v726 = vld [vmem:[%s671 + $0xd8] sm:$0xf]
  %v727 = vld [vmem:[%s671 + $0xdc] sm:$0xf]
  %v728 = vld [vmem:[%s671 + $0xe0] sm:$0xf]
  %v729 = vld [vmem:[%s671 + $0xe4] sm:$0xf]
  %v730 = vld [vmem:[%s671 + $0xe8] sm:$0xf]
  %v731 = vld [vmem:[%s671 + $0xec] sm:$0xf]
  %v732 = vld [vmem:[%s671 + $0xf0] sm:$0xf]
  %v733 = vld [vmem:[%s671 + $0xf4] sm:$0xf]
  %v734 = vld [vmem:[%s671 + $0xf8] sm:$0xf]
  %v735 = vld [vmem:[%s671 + $0xfc] sm:$0xf]
  %v800 = vunpack.c.l.b16 %v672
  %v801 = vunpack.c.l.b16 %v673
  %v802 = vunpack.c.l.b16 %v674
  %v803 = vunpack.c.l.b16 %v675
  %v804 = vunpack.c.l.b16 %v676
  %v805 = vunpack.c.l.b16 %v677
  %v806 = vunpack.c.l.b16 %v678
  %v807 = vunpack.c.l.b16 %v679
  %v808 = vunpack.c.l.b16 %v680
  %v809 = vunpack.c.l.b16 %v681
  %v810 = vunpack.c.l.b16 %v682
  %v811 = vunpack.c.l.b16 %v683
  %v812 = vunpack.c.l.b16 %v684
  %v813 = vunpack.c.l.b16 %v685
  %v814 = vunpack.c.l.b16 %v686
  %v815 = vunpack.c.l.b16 %v687
  %v816 = vunpack.c.l.b16 %v688
  %v817 = vunpack.c.l.b16 %v689
  %v818 = vunpack.c.l.b16 %v690
  %v819 = vunpack.c.l.b16 %v691
  %v820 = vunpack.c.l.b16 %v692
  %v821 = vunpack.c.l.b16 %v693
  %v822 = vunpack.c.l.b16 %v694
  %v823 = vunpack.c.l.b16 %v695
  %v824 = vunpack.c.l.b16 %v696
  %v825 = vunpack.c.l.b16 %v697
  %v826 = vunpack.c.l.b16 %v698
  %v827 = vunpack.c.l.b16 %v699
  %v828 = vunpack.c.l.b16 %v700
  %v829 = vunpack.c.l.b16 %v701
  %v830 = vunpack.c.l.b16 %v702
  %v831 = vunpack.c.l.b16 %v703
  %v832 = vunpack.c.l.b16 %v704
  %v833 = vunpack.c.l.b16 %v705
  %v834 = vunpack.c.l.b16 %v706
  %v835 = vunpack.c.l.b16 %v707
  %v836 = vunpack.c.l.b16 %v708
  %v837 = vunpack.c.l.b16 %v709
  %v838 = vunpack.c.l.b16 %v710
  %v839 = vunpack.c.l.b16 %v711
  %v840 = vunpack.c.l.b16 %v712
  %v841 = vunpack.c.l.b16 %v713
  %v842 = vunpack.c.l.b16 %v714
  %v843 = vunpack.c.l.b16 %v715
  %v844 = vunpack.c.l.b16 %v716
  %v845 = vunpack.c.l.b16 %v717
  %v846 = vunpack.c.l.b16 %v718
  %v847 = vunpack.c.l.b16 %v719
  %v848 = vunpack.c.l.b16 %v720
  %v849 = vunpack.c.l.b16 %v721
  %v850 = vunpack.c.l.b16 %v722
  %v851 = vunpack.c.l.b16 %v723
  %v852 = vunpack.c.l.b16 %v724
  %v853 = vunpack.c.l.b16 %v725
  %v854 = vunpack.c.l.b16 %v726
  %v855 = vunpack.c.l.b16 %v727
  %v856 = vunpack.c.l.b16 %v728
  %v857 = vunpack.c.l.b16 %v729
  %v858 = vunpack.c.l.b16 %v730
  %v859 = vunpack.c.l.b16 %v731
  %v860 = vunpack.c.l.b16 %v732
  %v861 = vunpack.c.l.b16 %v733
  %v862 = vunpack.c.l.b16 %v734
  %v863 = vunpack.c.l.b16 %v735
  %v864 = vpack.c.b16 %v801, %v800
  %v865 = vpack.c.b16 %v803, %v802
  %v866 = vpack.c.b16 %v805, %v804
  %v867 = vpack.c.b16 %v807, %v806
  %v868 = vpack.c.b16 %v809, %v808
  %v869 = vpack.c.b16 %v811, %v810
  %v870 = vpack.c.b16 %v813, %v812
  %v871 = vpack.c.b16 %v815, %v814
  %v872 = vpack.c.b16 %v817, %v816
  %v873 = vpack.c.b16 %v819, %v818
  %v874 = vpack.c.b16 %v821, %v820
  %v875 = vpack.c.b16 %v823, %v822
  %v876 = vpack.c.b16 %v825, %v824
  %v877 = vpack.c.b16 %v827, %v826
  %v878 = vpack.c.b16 %v829, %v828
  %v879 = vpack.c.b16 %v831, %v830
  %v880 = vpack.c.b16 %v833, %v832
  %v881 = vpack.c.b16 %v835, %v834
  %v882 = vpack.c.b16 %v837, %v836
  %v883 = vpack.c.b16 %v839, %v838
  %v884 = vpack.c.b16 %v841, %v840
  %v885 = vpack.c.b16 %v843, %v842
  %v886 = vpack.c.b16 %v845, %v844
  %v887 = vpack.c.b16 %v847, %v846
  %v888 = vpack.c.b16 %v849, %v848
  %v889 = vpack.c.b16 %v851, %v850
  %v890 = vpack.c.b16 %v853, %v852
  %v891 = vpack.c.b16 %v855, %v854
  %v892 = vpack.c.b16 %v857, %v856
  %v893 = vpack.c.b16 %v859, %v858
  %v894 = vpack.c.b16 %v861, %v860
  %v895 = vpack.c.b16 %v863, %v862
  %v897 = vsel %vm278, %v864, 0
  %v900 = vsel %vm278, %v865, 0
  %v903 = vsel %vm278, %v866, 0
  %v906 = vsel %vm278, %v867, 0
  %v909 = vsel %vm278, %v868, 0
  %v912 = vsel %vm278, %v869, 0
  %v915 = vsel %vm278, %v870, 0
  %v918 = vsel %vm278, %v871, 0
  %v921 = vsel %vm278, %v872, 0
  %v924 = vsel %vm278, %v873, 0
  %v927 = vsel %vm278, %v874, 0
  %v930 = vsel %vm278, %v875, 0
  %v933 = vsel %vm278, %v876, 0
  %v936 = vsel %vm278, %v877, 0
  %v939 = vsel %vm278, %v878, 0
  %v942 = vsel %vm278, %v879, 0
  %v945 = vsel %vm278, %v880, 0
  %v948 = vsel %vm278, %v881, 0
  %v951 = vsel %vm278, %v882, 0
  %v954 = vsel %vm278, %v883, 0
  %v957 = vsel %vm278, %v884, 0
  %v960 = vsel %vm278, %v885, 0
  %v963 = vsel %vm278, %v886, 0
  %v966 = vsel %vm278, %v887, 0
  %v969 = vsel %vm278, %v888, 0
  %v972 = vsel %vm278, %v889, 0
  %v975 = vsel %vm278, %v890, 0
  %v978 = vsel %vm278, %v891, 0
  %v981 = vsel %vm278, %v892, 0
  %v984 = vsel %vm278, %v893, 0
  %v987 = vsel %vm278, %v894, 0
  %v990 = vsel %vm278, %v895, 0
  %992 = vmatprep.subr.bf16.mxu0 0
  %993 = vmatpush1.bf16.msra.mxu0 %v269
  %994 = vmatprep.subr.bf16.mxu0 0
  %995 = vmatpush1.bf16.msra.mxu0 %v270
  %996 = vmatprep.subr.bf16.mxu0 0
  %997 = vmatpush1.bf16.msra.mxu0 %v271
  %998 = vmatprep.subr.bf16.mxu0 0
  %999 = vmatpush1.bf16.msra.mxu0 %v272
  %1000 = vmatprep.subr.bf16.mxu0 0
  %1001 = vmatpush1.bf16.msra.mxu0 %v380
  %1002 = vmatprep.subr.bf16.mxu0 0
  %1003 = vmatpush1.bf16.msra.mxu0 0
  %1004 = vmatprep.subr.bf16.mxu0 0
  %1005 = vmatpush1.bf16.msra.mxu0 0
  %1006 = vmatprep.subr.bf16.mxu0 0
  %1007 = vmatpush1.bf16.msra.mxu0 0
  %1008 = vmatprep.subr.bf16.mxu0 0
  %1009 = vmatpush1.bf16.msra.mxu0 0
  %1010 = vmatprep.subr.bf16.mxu0 0
  %1011 = vmatpush1.bf16.msra.mxu0 0
  %1012 = vmatprep.subr.bf16.mxu0 0
  %1013 = vmatpush1.bf16.msra.mxu0 0
  %1014 = vmatprep.subr.bf16.mxu0 0
  %1015 = vmatpush1.bf16.msra.mxu0 0
  %1016 = vmatprep.subr.bf16.mxu0 0
  %1017 = vmatpush1.bf16.msra.mxu0 0
  %1018 = vmatprep.subr.bf16.mxu0 0
  %1019 = vmatpush1.bf16.msra.mxu0 0
  %1020 = vmatprep.subr.bf16.mxu0 0
  %1021 = vmatpush1.bf16.msra.mxu0 0
  %1022 = vmatprep.subr.bf16.mxu0 0
  %1023 = vmatpush1.bf16.msra.mxu0 0
  %1024 = vmatprep.mubr.bf16.mxu0 0
  %1025 = vmatmul.mubr.bf16.gmra.mrb[0].mxu0 %v897
  %v1026 = vpop.f32.mrb[0].mxu0
  %v1027 = vadd.f32 0.0, %v1026
  %v1028 = vpop.f32.mrb[0].mxu0
  %v1029 = vpop.f32.mrb[0].mxu0
  %v1030 = vadd.f32 0.0, %v1029
  %v1031 = vpop.f32.mrb[0].mxu0
  %1032 = vmatprep.mubr.bf16.mxu0 0
  %1033 = vmatmul.mubr.bf16.gmra.mrb[0].mxu0 %v900
  %v1034 = vpop.f32.mrb[0].mxu0
  %v1035 = vadd.f32 0.0, %v1034
  %v1036 = vpop.f32.mrb[0].mxu0
  %v1037 = vpop.f32.mrb[0].mxu0
  %v1038 = vadd.f32 0.0, %v1037
  %v1039 = vpop.f32.mrb[0].mxu0
  %1040 = vmatprep.mubr.bf16.mxu0 0
  %1041 = vmatmul.mubr.bf16.gmra.mrb[0].mxu0 %v903
  %v1042 = vpop.f32.mrb[0].mxu0
  %v1043 = vadd.f32 0.0, %v1042
  %v1044 = vpop.f32.mrb[0].mxu0
  %v1045 = vpop.f32.mrb[0].mxu0
  %v1046 = vadd.f32 0.0, %v1045
  %v1047 = vpop.f32.mrb[0].mxu0
  %1048 = vmatprep.mubr.bf16.mxu0 0
  %1049 = vmatmul.mubr.bf16.gmra.mrb[0].mxu0 %v906
  %v1050 = vpop.f32.mrb[0].mxu0
  %v1051 = vadd.f32 0.0, %v1050
  %v1052 = vpop.f32.mrb[0].mxu0
  %v1053 = vpop.f32.mrb[0].mxu0
  %v1054 = vadd.f32 0.0, %v1053
  %v1055 = vpop.f32.mrb[0].mxu0
  %1056 = vmatprep.mubr.bf16.mxu0 0
  %1057 = vmatmul.mubr.bf16.gmra.mrb[0].mxu0 %v909
  %v1058 = vpop.f32.mrb[0].mxu0
  %v1059 = vadd.f32 0.0, %v1058
  %v1060 = vpop.f32.mrb[0].mxu0
  %v1061 = vpop.f32.mrb[0].mxu0
  %v1062 = vadd.f32 0.0, %v1061
  %v1063 = vpop.f32.mrb[0].mxu0
  %1064 = vmatprep.mubr.bf16.mxu0 0
  %1065 = vmatmul.mubr.bf16.gmra.mrb[0].mxu0 %v912
  %v1066 = vpop.f32.mrb[0].mxu0
  %v1067 = vadd.f32 0.0, %v1066
  %v1068 = vpop.f32.mrb[0].mxu0
  %v1069 = vpop.f32.mrb[0].mxu0
  %v1070 = vadd.f32 0.0, %v1069
  %v1071 = vpop.f32.mrb[0].mxu0
  %1072 = vmatprep.mubr.bf16.mxu0 0
  %1073 = vmatmul.mubr.bf16.gmra.mrb[0].mxu0 %v915
  %v1074 = vpop.f32.mrb[0].mxu0
  %v1075 = vadd.f32 0.0, %v1074
  %v1076 = vpop.f32.mrb[0].mxu0
  %v1077 = vpop.f32.mrb[0].mxu0
  %v1078 = vadd.f32 0.0, %v1077
  %v1079 = vpop.f32.mrb[0].mxu0
  %1080 = vmatprep.mubr.bf16.mxu0 0
  %1081 = vmatmul.mubr.bf16.gmra.mrb[0].mxu0 %v918
  %v1082 = vpop.f32.mrb[0].mxu0
  %v1083 = vadd.f32 0.0, %v1082
  %v1084 = vpop.f32.mrb[0].mxu0
  %v1085 = vpop.f32.mrb[0].mxu0
  %v1086 = vadd.f32 0.0, %v1085
  %v1087 = vpop.f32.mrb[0].mxu0
  %1088 = vmatprep.mubr.bf16.mxu0 0
  %1089 = vmatmul.mubr.bf16.gmra.mrb[0].mxu0 %v921
  %v1090 = vpop.f32.mrb[0].mxu0
  %v1091 = vadd.f32 0.0, %v1090
  %v1092 = vpop.f32.mrb[0].mxu0
  %v1093 = vpop.f32.mrb[0].mxu0
  %v1094 = vadd.f32 0.0, %v1093
  %v1095 = vpop.f32.mrb[0].mxu0
  %1096 = vmatprep.mubr.bf16.mxu0 0
  %1097 = vmatmul.mubr.bf16.gmra.mrb[0].mxu0 %v924
  %v1098 = vpop.f32.mrb[0].mxu0
  %v1099 = vadd.f32 0.0, %v1098
  %v1100 = vpop.f32.mrb[0].mxu0
  %v1101 = vpop.f32.mrb[0].mxu0
  %v1102 = vadd.f32 0.0, %v1101
  %v1103 = vpop.f32.mrb[0].mxu0
  %1104 = vmatprep.mubr.bf16.mxu0 0
  %1105 = vmatmul.mubr.bf16.gmra.mrb[0].mxu0 %v927
  %v1106 = vpop.f32.mrb[0].mxu0
  %v1107 = vadd.f32 0.0, %v1106
  %v1108 = vpop.f32.mrb[0].mxu0
  %v1109 = vpop.f32.mrb[0].mxu0
  %v1110 = vadd.f32 0.0, %v1109
  %v1111 = vpop.f32.mrb[0].mxu0
  %1112 = vmatprep.mubr.bf16.mxu0 0
  %1113 = vmatmul.mubr.bf16.gmra.mrb[0].mxu0 %v930
  %v1114 = vpop.f32.mrb[0].mxu0
  %v1115 = vadd.f32 0.0, %v1114
  %v1116 = vpop.f32.mrb[0].mxu0
  %v1117 = vpop.f32.mrb[0].mxu0
  %v1118 = vadd.f32 0.0, %v1117
  %v1119 = vpop.f32.mrb[0].mxu0
  %1120 = vmatprep.mubr.bf16.mxu0 0
  %1121 = vmatmul.mubr.bf16.gmra.mrb[0].mxu0 %v933
  %v1122 = vpop.f32.mrb[0].mxu0
  %v1123 = vadd.f32 0.0, %v1122
  %v1124 = vpop.f32.mrb[0].mxu0
  %v1125 = vpop.f32.mrb[0].mxu0
  %v1126 = vadd.f32 0.0, %v1125
  %v1127 = vpop.f32.mrb[0].mxu0
  %1128 = vmatprep.mubr.bf16.mxu0 0
  %1129 = vmatmul.mubr.bf16.gmra.mrb[0].mxu0 %v936
  %v1130 = vpop.f32.mrb[0].mxu0
  %v1131 = vadd.f32 0.0, %v1130
  %v1132 = vpop.f32.mrb[0].mxu0
  %v1133 = vpop.f32.mrb[0].mxu0
  %v1134 = vadd.f32 0.0, %v1133
  %v1135 = vpop.f32.mrb[0].mxu0
  %1136 = vmatprep.mubr.bf16.mxu0 0
  %1137 = vmatmul.mubr.bf16.gmra.mrb[0].mxu0 %v939
  %v1138 = vpop.f32.mrb[0].mxu0
  %v1139 = vadd.f32 0.0, %v1138
  %v1140 = vpop.f32.mrb[0].mxu0
  %v1141 = vpop.f32.mrb[0].mxu0
  %v1142 = vadd.f32 0.0, %v1141
  %v1143 = vpop.f32.mrb[0].mxu0
  %1144 = vmatprep.mubr.bf16.mxu0 0
  %1145 = vmatmul.mubr.bf16.gmra.mrb[0].mxu0 %v942
  %v1146 = vpop.f32.mrb[0].mxu0
  %v1147 = vadd.f32 0.0, %v1146
  %v1148 = vpop.f32.mrb[0].mxu0
  %v1149 = vpop.f32.mrb[0].mxu0
  %v1150 = vadd.f32 0.0, %v1149
  %v1151 = vpop.f32.mrb[0].mxu0
  %1152 = vmatprep.mubr.bf16.mxu0 0
  %1153 = vmatmul.mubr.bf16.gmra.mrb[0].mxu0 %v945
  %v1154 = vpop.f32.mrb[0].mxu0
  %v1155 = vadd.f32 0.0, %v1154
  %v1156 = vpop.f32.mrb[0].mxu0
  %v1157 = vpop.f32.mrb[0].mxu0
  %v1158 = vadd.f32 0.0, %v1157
  %v1159 = vpop.f32.mrb[0].mxu0
  %1160 = vmatprep.mubr.bf16.mxu0 0
  %1161 = vmatmul.mubr.bf16.gmra.mrb[0].mxu0 %v948
  %v1162 = vpop.f32.mrb[0].mxu0
  %v1163 = vadd.f32 0.0, %v1162
  %v1164 = vpop.f32.mrb[0].mxu0
  %v1165 = vpop.f32.mrb[0].mxu0
  %v1166 = vadd.f32 0.0, %v1165
  %v1167 = vpop.f32.mrb[0].mxu0
  %1168 = vmatprep.mubr.bf16.mxu0 0
  %1169 = vmatmul.mubr.bf16.gmra.mrb[0].mxu0 %v951
  %v1170 = vpop.f32.mrb[0].mxu0
  %v1171 = vadd.f32 0.0, %v1170
  %v1172 = vpop.f32.mrb[0].mxu0
  %v1173 = vpop.f32.mrb[0].mxu0
  %v1174 = vadd.f32 0.0, %v1173
  %v1175 = vpop.f32.mrb[0].mxu0
  %1176 = vmatprep.mubr.bf16.mxu0 0
  %1177 = vmatmul.mubr.bf16.gmra.mrb[0].mxu0 %v954
  %v1178 = vpop.f32.mrb[0].mxu0
  %v1179 = vadd.f32 0.0, %v1178
  %v1180 = vpop.f32.mrb[0].mxu0
  %v1181 = vpop.f32.mrb[0].mxu0
  %v1182 = vadd.f32 0.0, %v1181
  %v1183 = vpop.f32.mrb[0].mxu0
  %1184 = vmatprep.mubr.bf16.mxu0 0
  %1185 = vmatmul.mubr.bf16.gmra.mrb[0].mxu0 %v957
  %v1186 = vpop.f32.mrb[0].mxu0
  %v1187 = vadd.f32 0.0, %v1186
  %v1188 = vpop.f32.mrb[0].mxu0
  %v1189 = vpop.f32.mrb[0].mxu0
  %v1190 = vadd.f32 0.0, %v1189
  %v1191 = vpop.f32.mrb[0].mxu0
  %1192 = vmatprep.mubr.bf16.mxu0 0
  %1193 = vmatmul.mubr.bf16.gmra.mrb[0].mxu0 %v960
  %v1194 = vpop.f32.mrb[0].mxu0
  %v1195 = vadd.f32 0.0, %v1194
  %v1196 = vpop.f32.mrb[0].mxu0
  %v1197 = vpop.f32.mrb[0].mxu0
  %v1198 = vadd.f32 0.0, %v1197
  %v1199 = vpop.f32.mrb[0].mxu0
  %1200 = vmatprep.mubr.bf16.mxu0 0
  %1201 = vmatmul.mubr.bf16.gmra.mrb[0].mxu0 %v963
  %v1202 = vpop.f32.mrb[0].mxu0
  %v1203 = vadd.f32 0.0, %v1202
  %v1204 = vpop.f32.mrb[0].mxu0
  %v1205 = vpop.f32.mrb[0].mxu0
  %v1206 = vadd.f32 0.0, %v1205
  %v1207 = vpop.f32.mrb[0].mxu0
  %1208 = vmatprep.mubr.bf16.mxu0 0
  %1209 = vmatmul.mubr.bf16.gmra.mrb[0].mxu0 %v966
  %v1210 = vpop.f32.mrb[0].mxu0
  %v1211 = vadd.f32 0.0, %v1210
  %v1212 = vpop.f32.mrb[0].mxu0
  %v1213 = vpop.f32.mrb[0].mxu0
  %v1214 = vadd.f32 0.0, %v1213
  %v1215 = vpop.f32.mrb[0].mxu0
  %1216 = vmatprep.mubr.bf16.mxu0 0
  %1217 = vmatmul.mubr.bf16.gmra.mrb[0].mxu0 %v969
  %v1218 = vpop.f32.mrb[0].mxu0
  %v1219 = vadd.f32 0.0, %v1218
  %v1220 = vpop.f32.mrb[0].mxu0
  %v1221 = vpop.f32.mrb[0].mxu0
  %v1222 = vadd.f32 0.0, %v1221
  %v1223 = vpop.f32.mrb[0].mxu0
  %1224 = vmatprep.mubr.bf16.mxu0 0
  %1225 = vmatmul.mubr.bf16.gmra.mrb[0].mxu0 %v972
  %v1226 = vpop.f32.mrb[0].mxu0
  %v1227 = vadd.f32 0.0, %v1226
  %v1228 = vpop.f32.mrb[0].mxu0
  %v1229 = vpop.f32.mrb[0].mxu0
  %v1230 = vadd.f32 0.0, %v1229
  %v1231 = vpop.f32.mrb[0].mxu0
  %1232 = vmatprep.mubr.bf16.mxu0 0
  %1233 = vmatmul.mubr.bf16.gmra.mrb[0].mxu0 %v975
  %v1234 = vpop.f32.mrb[0].mxu0
  %v1235 = vadd.f32 0.0, %v1234
  %v1236 = vpop.f32.mrb[0].mxu0
  %v1237 = vpop.f32.mrb[0].mxu0
  %v1238 = vadd.f32 0.0, %v1237
  %v1239 = vpop.f32.mrb[0].mxu0
  %1240 = vmatprep.mubr.bf16.mxu0 0
  %1241 = vmatmul.mubr.bf16.gmra.mrb[0].mxu0 %v978
  %v1242 = vpop.f32.mrb[0].mxu0
  %v1243 = vadd.f32 0.0, %v1242
  %v1244 = vpop.f32.mrb[0].mxu0
  %v1245 = vpop.f32.mrb[0].mxu0
  %v1246 = vadd.f32 0.0, %v1245
  %v1247 = vpop.f32.mrb[0].mxu0
  %1248 = vmatprep.mubr.bf16.mxu0 0
  %1249 = vmatmul.mubr.bf16.gmra.mrb[0].mxu0 %v981
  %v1250 = vpop.f32.mrb[0].mxu0
  %v1251 = vadd.f32 0.0, %v1250
  %v1252 = vpop.f32.mrb[0].mxu0
  %v1253 = vpop.f32.mrb[0].mxu0
  %v1254 = vadd.f32 0.0, %v1253
  %v1255 = vpop.f32.mrb[0].mxu0
  %1256 = vmatprep.mubr.bf16.mxu0 0
  %1257 = vmatmul.mubr.bf16.gmra.mrb[0].mxu0 %v984
  %v1258 = vpop.f32.mrb[0].mxu0
  %v1259 = vadd.f32 0.0, %v1258
  %v1260 = vpop.f32.mrb[0].mxu0
  %v1261 = vpop.f32.mrb[0].mxu0
  %v1262 = vadd.f32 0.0, %v1261
  %v1263 = vpop.f32.mrb[0].mxu0
  %1264 = vmatprep.mubr.bf16.mxu0 0
  %1265 = vmatmul.mubr.bf16.gmra.mrb[0].mxu0 %v987
  %v1266 = vpop.f32.mrb[0].mxu0
  %v1267 = vadd.f32 0.0, %v1266
  %v1268 = vpop.f32.mrb[0].mxu0
  %v1269 = vpop.f32.mrb[0].mxu0
  %v1270 = vadd.f32 0.0, %v1269
  %v1271 = vpop.f32.mrb[0].mxu0
  %1272 = vmatprep.mubr.bf16.mxu0 0
  %1273 = vmatmul.mubr.bf16.gmra.mrb[0].mxu0 %v990
  %v1274 = vpop.f32.mrb[0].mxu0
  %v1275 = vadd.f32 0.0, %v1274
  %v1276 = vpop.f32.mrb[0].mxu0
  %v1277 = vpop.f32.mrb[0].mxu0
  %v1278 = vadd.f32 0.0, %v1277
  %v1279 = vpop.f32.mrb[0].mxu0
  %1280 = vdwg.mxu0
  %v1281 = vmax.f32 %v417, %v1027
  %v1282 = vmax.f32 %v420, %v1030
  %v1283 = vmax.f32 %v425, %v1035
  %v1284 = vmax.f32 %v428, %v1038
  %v1285 = vmax.f32 %v433, %v1043
  %v1286 = vmax.f32 %v436, %v1046
  %v1287 = vmax.f32 %v441, %v1051
  %v1288 = vmax.f32 %v444, %v1054
  %v1289 = vmax.f32 %v449, %v1059
  %v1290 = vmax.f32 %v452, %v1062
  %v1291 = vmax.f32 %v457, %v1067
  %v1292 = vmax.f32 %v460, %v1070
  %v1293 = vmax.f32 %v465, %v1075
  %v1294 = vmax.f32 %v468, %v1078
  %v1295 = vmax.f32 %v473, %v1083
  %v1296 = vmax.f32 %v476, %v1086
  %v1297 = vmax.f32 %v481, %v1091
  %v1298 = vmax.f32 %v484, %v1094
  %v1299 = vmax.f32 %v489, %v1099
  %v1300 = vmax.f32 %v492, %v1102
  %v1301 = vmax.f32 %v497, %v1107
  %v1302 = vmax.f32 %v500, %v1110
  %v1303 = vmax.f32 %v505, %v1115
  %v1304 = vmax.f32 %v508, %v1118
  %v1305 = vmax.f32 %v513, %v1123
  %v1306 = vmax.f32 %v516, %v1126
  %v1307 = vmax.f32 %v521, %v1131
  %v1308 = vmax.f32 %v524, %v1134
  %v1309 = vmax.f32 %v529, %v1139
  %v1310 = vmax.f32 %v532, %v1142
  %v1311 = vmax.f32 %v537, %v1147
  %v1312 = vmax.f32 %v540, %v1150
  %v1313 = vmax.f32 %v545, %v1155
  %v1314 = vmax.f32 %v548, %v1158
  %v1315 = vmax.f32 %v553, %v1163
  %v1316 = vmax.f32 %v556, %v1166
  %v1317 = vmax.f32 %v561, %v1171
  %v1318 = vmax.f32 %v564, %v1174
  %v1319 = vmax.f32 %v569, %v1179
  %v1320 = vmax.f32 %v572, %v1182
  %v1321 = vmax.f32 %v577, %v1187
  %v1322 = vmax.f32 %v580, %v1190
  %v1323 = vmax.f32 %v585, %v1195
  %v1324 = vmax.f32 %v588, %v1198
  %v1325 = vmax.f32 %v593, %v1203
  %v1326 = vmax.f32 %v596, %v1206
  %v1327 = vmax.f32 %v601, %v1211
  %v1328 = vmax.f32 %v604, %v1214
  %v1329 = vmax.f32 %v609, %v1219
  %v1330 = vmax.f32 %v612, %v1222
  %v1331 = vmax.f32 %v617, %v1227
  %v1332 = vmax.f32 %v620, %v1230
  %v1333 = vmax.f32 %v625, %v1235
  %v1334 = vmax.f32 %v628, %v1238
  %v1335 = vmax.f32 %v633, %v1243
  %v1336 = vmax.f32 %v636, %v1246
  %v1337 = vmax.f32 %v641, %v1251
  %v1338 = vmax.f32 %v644, %v1254
  %v1339 = vmax.f32 %v649, %v1259
  %v1340 = vmax.f32 %v652, %v1262
  %v1341 = vmax.f32 %v657, %v1267
  %v1342 = vmax.f32 %v660, %v1270
  %v1343 = vmax.f32 %v665, %v1275
  %v1344 = vmax.f32 %v668, %v1278
  %s1345 = scalar_lea.vmem %s0, 512
  %v1346 = vld [vmem:[%s1345] sm:$0xf]
  %v1347 = vld [vmem:[%s1345 + $0x4] sm:$0xf]
  %v1348 = vld [vmem:[%s1345 + $0x8] sm:$0xf]
  %v1349 = vld [vmem:[%s1345 + $0xc] sm:$0xf]
  %v1350 = vld [vmem:[%s1345 + $0x10] sm:$0xf]
  %v1351 = vld [vmem:[%s1345 + $0x14] sm:$0xf]
  %v1352 = vld [vmem:[%s1345 + $0x18] sm:$0xf]
  %v1353 = vld [vmem:[%s1345 + $0x1c] sm:$0xf]
  %v1354 = vld [vmem:[%s1345 + $0x20] sm:$0xf]
  %v1355 = vld [vmem:[%s1345 + $0x24] sm:$0xf]
  %v1356 = vld [vmem:[%s1345 + $0x28] sm:$0xf]
  %v1357 = vld [vmem:[%s1345 + $0x2c] sm:$0xf]
  %v1358 = vld [vmem:[%s1345 + $0x30] sm:$0xf]
  %v1359 = vld [vmem:[%s1345 + $0x34] sm:$0xf]
  %v1360 = vld [vmem:[%s1345 + $0x38] sm:$0xf]
  %v1361 = vld [vmem:[%s1345 + $0x3c] sm:$0xf]
  %v1362 = vld [vmem:[%s1345 + $0x40] sm:$0xf]
  %v1363 = vld [vmem:[%s1345 + $0x44] sm:$0xf]
  %v1364 = vld [vmem:[%s1345 + $0x48] sm:$0xf]
  %v1365 = vld [vmem:[%s1345 + $0x4c] sm:$0xf]
  %v1366 = vld [vmem:[%s1345 + $0x50] sm:$0xf]
  %v1367 = vld [vmem:[%s1345 + $0x54] sm:$0xf]
  %v1368 = vld [vmem:[%s1345 + $0x58] sm:$0xf]
  %v1369 = vld [vmem:[%s1345 + $0x5c] sm:$0xf]
  %v1370 = vld [vmem:[%s1345 + $0x60] sm:$0xf]
  %v1371 = vld [vmem:[%s1345 + $0x64] sm:$0xf]
  %v1372 = vld [vmem:[%s1345 + $0x68] sm:$0xf]
  %v1373 = vld [vmem:[%s1345 + $0x6c] sm:$0xf]
  %v1374 = vld [vmem:[%s1345 + $0x70] sm:$0xf]
  %v1375 = vld [vmem:[%s1345 + $0x74] sm:$0xf]
  %v1376 = vld [vmem:[%s1345 + $0x78] sm:$0xf]
  %v1377 = vld [vmem:[%s1345 + $0x7c] sm:$0xf]
  %v1378 = vld [vmem:[%s1345 + $0x80] sm:$0xf]
  %v1379 = vld [vmem:[%s1345 + $0x84] sm:$0xf]
  %v1380 = vld [vmem:[%s1345 + $0x88] sm:$0xf]
  %v1381 = vld [vmem:[%s1345 + $0x8c] sm:$0xf]
  %v1382 = vld [vmem:[%s1345 + $0x90] sm:$0xf]
  %v1383 = vld [vmem:[%s1345 + $0x94] sm:$0xf]
  %v1384 = vld [vmem:[%s1345 + $0x98] sm:$0xf]
  %v1385 = vld [vmem:[%s1345 + $0x9c] sm:$0xf]
  %v1386 = vld [vmem:[%s1345 + $0xa0] sm:$0xf]
  %v1387 = vld [vmem:[%s1345 + $0xa4] sm:$0xf]
  %v1388 = vld [vmem:[%s1345 + $0xa8] sm:$0xf]
  %v1389 = vld [vmem:[%s1345 + $0xac] sm:$0xf]
  %v1390 = vld [vmem:[%s1345 + $0xb0] sm:$0xf]
  %v1391 = vld [vmem:[%s1345 + $0xb4] sm:$0xf]
  %v1392 = vld [vmem:[%s1345 + $0xb8] sm:$0xf]
  %v1393 = vld [vmem:[%s1345 + $0xbc] sm:$0xf]
  %v1394 = vld [vmem:[%s1345 + $0xc0] sm:$0xf]
  %v1395 = vld [vmem:[%s1345 + $0xc4] sm:$0xf]
  %v1396 = vld [vmem:[%s1345 + $0xc8] sm:$0xf]
  %v1397 = vld [vmem:[%s1345 + $0xcc] sm:$0xf]
  %v1398 = vld [vmem:[%s1345 + $0xd0] sm:$0xf]
  %v1399 = vld [vmem:[%s1345 + $0xd4] sm:$0xf]
  %v1400 = vld [vmem:[%s1345 + $0xd8] sm:$0xf]
  %v1401 = vld [vmem:[%s1345 + $0xdc] sm:$0xf]
  %v1402 = vld [vmem:[%s1345 + $0xe0] sm:$0xf]
  %v1403 = vld [vmem:[%s1345 + $0xe4] sm:$0xf]
  %v1404 = vld [vmem:[%s1345 + $0xe8] sm:$0xf]
  %v1405 = vld [vmem:[%s1345 + $0xec] sm:$0xf]
  %v1406 = vld [vmem:[%s1345 + $0xf0] sm:$0xf]
  %v1407 = vld [vmem:[%s1345 + $0xf4] sm:$0xf]
  %v1408 = vld [vmem:[%s1345 + $0xf8] sm:$0xf]
  %v1409 = vld [vmem:[%s1345 + $0xfc] sm:$0xf]
  %v1474 = vunpack.c.l.b16 %v1346
  %v1475 = vunpack.c.l.b16 %v1347
  %v1476 = vunpack.c.l.b16 %v1348
  %v1477 = vunpack.c.l.b16 %v1349
  %v1478 = vunpack.c.l.b16 %v1350
  %v1479 = vunpack.c.l.b16 %v1351
  %v1480 = vunpack.c.l.b16 %v1352
  %v1481 = vunpack.c.l.b16 %v1353
  %v1482 = vunpack.c.l.b16 %v1354
  %v1483 = vunpack.c.l.b16 %v1355
  %v1484 = vunpack.c.l.b16 %v1356
  %v1485 = vunpack.c.l.b16 %v1357
  %v1486 = vunpack.c.l.b16 %v1358
  %v1487 = vunpack.c.l.b16 %v1359
  %v1488 = vunpack.c.l.b16 %v1360
  %v1489 = vunpack.c.l.b16 %v1361
  %v1490 = vunpack.c.l.b16 %v1362
  %v1491 = vunpack.c.l.b16 %v1363
  %v1492 = vunpack.c.l.b16 %v1364
  %v1493 = vunpack.c.l.b16 %v1365
  %v1494 = vunpack.c.l.b16 %v1366
  %v1495 = vunpack.c.l.b16 %v1367
  %v1496 = vunpack.c.l.b16 %v1368
  %v1497 = vunpack.c.l.b16 %v1369
  %v1498 = vunpack.c.l.b16 %v1370
  %v1499 = vunpack.c.l.b16 %v1371
  %v1500 = vunpack.c.l.b16 %v1372
  %v1501 = vunpack.c.l.b16 %v1373
  %v1502 = vunpack.c.l.b16 %v1374
  %v1503 = vunpack.c.l.b16 %v1375
  %v1504 = vunpack.c.l.b16 %v1376
  %v1505 = vunpack.c.l.b16 %v1377
  %v1506 = vunpack.c.l.b16 %v1378
  %v1507 = vunpack.c.l.b16 %v1379
  %v1508 = vunpack.c.l.b16 %v1380
  %v1509 = vunpack.c.l.b16 %v1381
  %v1510 = vunpack.c.l.b16 %v1382
  %v1511 = vunpack.c.l.b16 %v1383
  %v1512 = vunpack.c.l.b16 %v1384
  %v1513 = vunpack.c.l.b16 %v1385
  %v1514 = vunpack.c.l.b16 %v1386
  %v1515 = vunpack.c.l.b16 %v1387
  %v1516 = vunpack.c.l.b16 %v1388
  %v1517 = vunpack.c.l.b16 %v1389
  %v1518 = vunpack.c.l.b16 %v1390
  %v1519 = vunpack.c.l.b16 %v1391
  %v1520 = vunpack.c.l.b16 %v1392
  %v1521 = vunpack.c.l.b16 %v1393
  %v1522 = vunpack.c.l.b16 %v1394
  %v1523 = vunpack.c.l.b16 %v1395
  %v1524 = vunpack.c.l.b16 %v1396
  %v1525 = vunpack.c.l.b16 %v1397
  %v1526 = vunpack.c.l.b16 %v1398
  %v1527 = vunpack.c.l.b16 %v1399
  %v1528 = vunpack.c.l.b16 %v1400
  %v1529 = vunpack.c.l.b16 %v1401
  %v1530 = vunpack.c.l.b16 %v1402
  %v1531 = vunpack.c.l.b16 %v1403
  %v1532 = vunpack.c.l.b16 %v1404
  %v1533 = vunpack.c.l.b16 %v1405
  %v1534 = vunpack.c.l.b16 %v1406
  %v1535 = vunpack.c.l.b16 %v1407
  %v1536 = vunpack.c.l.b16 %v1408
  %v1537 = vunpack.c.l.b16 %v1409
  %v1538 = vpack.c.b16 %v1475, %v1474
  %v1539 = vpack.c.b16 %v1477, %v1476
  %v1540 = vpack.c.b16 %v1479, %v1478
  %v1541 = vpack.c.b16 %v1481, %v1480
  %v1542 = vpack.c.b16 %v1483, %v1482
  %v1543 = vpack.c.b16 %v1485, %v1484
  %v1544 = vpack.c.b16 %v1487, %v1486
  %v1545 = vpack.c.b16 %v1489, %v1488
  %v1546 = vpack.c.b16 %v1491, %v1490
  %v1547 = vpack.c.b16 %v1493, %v1492
  %v1548 = vpack.c.b16 %v1495, %v1494
  %v1549 = vpack.c.b16 %v1497, %v1496
  %v1550 = vpack.c.b16 %v1499, %v1498
  %v1551 = vpack.c.b16 %v1501, %v1500
  %v1552 = vpack.c.b16 %v1503, %v1502
  %v1553 = vpack.c.b16 %v1505, %v1504
  %v1554 = vpack.c.b16 %v1507, %v1506
  %v1555 = vpack.c.b16 %v1509, %v1508
  %v1556 = vpack.c.b16 %v1511, %v1510
  %v1557 = vpack.c.b16 %v1513, %v1512
  %v1558 = vpack.c.b16 %v1515, %v1514
  %v1559 = vpack.c.b16 %v1517, %v1516
  %v1560 = vpack.c.b16 %v1519, %v1518
  %v1561 = vpack.c.b16 %v1521, %v1520
  %v1562 = vpack.c.b16 %v1523, %v1522
  %v1563 = vpack.c.b16 %v1525, %v1524
  %v1564 = vpack.c.b16 %v1527, %v1526
  %v1565 = vpack.c.b16 %v1529, %v1528
  %v1566 = vpack.c.b16 %v1531, %v1530
  %v1567 = vpack.c.b16 %v1533, %v1532
  %v1568 = vpack.c.b16 %v1535, %v1534
  %v1569 = vpack.c.b16 %v1537, %v1536
  %v1571 = vsel %vm278, %v1538, 0
  %v1574 = vsel %vm278, %v1539, 0
  %v1577 = vsel %vm278, %v1540, 0
  %v1580 = vsel %vm278, %v1541, 0
  %v1583 = vsel %vm278, %v1542, 0
  %v1586 = vsel %vm278, %v1543, 0
  %v1589 = vsel %vm278, %v1544, 0
  %v1592 = vsel %vm278, %v1545, 0
  %v1595 = vsel %vm278, %v1546, 0
  %v1598 = vsel %vm278, %v1547, 0
  %v1601 = vsel %vm278, %v1548, 0
  %v1604 = vsel %vm278, %v1549, 0
  %v1607 = vsel %vm278, %v1550, 0
  %v1610 = vsel %vm278, %v1551, 0
  %v1613 = vsel %vm278, %v1552, 0
  %v1616 = vsel %vm278, %v1553, 0
  %v1619 = vsel %vm278, %v1554, 0
  %v1622 = vsel %vm278, %v1555, 0
  %v1625 = vsel %vm278, %v1556, 0
  %v1628 = vsel %vm278, %v1557, 0
  %v1631 = vsel %vm278, %v1558, 0
  %v1634 = vsel %vm278, %v1559, 0
  %v1637 = vsel %vm278, %v1560, 0
  %v1640 = vsel %vm278, %v1561, 0
  %v1643 = vsel %vm278, %v1562, 0
  %v1646 = vsel %vm278, %v1563, 0
  %v1649 = vsel %vm278, %v1564, 0
  %v1652 = vsel %vm278, %v1565, 0
  %v1655 = vsel %vm278, %v1566, 0
  %v1658 = vsel %vm278, %v1567, 0
  %v1661 = vsel %vm278, %v1568, 0
  %v1664 = vsel %vm278, %v1569, 0
  %1666 = vmatprep.subr.bf16.mxu0 0
  %1667 = vmatpush1.bf16.msra.mxu0 %v269
  %1668 = vmatprep.subr.bf16.mxu0 0
  %1669 = vmatpush1.bf16.msra.mxu0 %v270
  %1670 = vmatprep.subr.bf16.mxu0 0
  %1671 = vmatpush1.bf16.msra.mxu0 %v271
  %1672 = vmatprep.subr.bf16.mxu0 0
  %1673 = vmatpush1.bf16.msra.mxu0 %v272
  %1674 = vmatprep.subr.bf16.mxu0 0
  %1675 = vmatpush1.bf16.msra.mxu0 %v380
  %1676 = vmatprep.subr.bf16.mxu0 0
  %1677 = vmatpush1.bf16.msra.mxu0 0
  %1678 = vmatprep.subr.bf16.mxu0 0
  %1679 = vmatpush1.bf16.msra.mxu0 0
  %1680 = vmatprep.subr.bf16.mxu0 0
  %1681 = vmatpush1.bf16.msra.mxu0 0
  %1682 = vmatprep.subr.bf16.mxu0 0
  %1683 = vmatpush1.bf16.msra.mxu0 0
  %1684 = vmatprep.subr.bf16.mxu0 0
  %1685 = vmatpush1.bf16.msra.mxu0 0
  %1686 = vmatprep.subr.bf16.mxu0 0
  %1687 = vmatpush1.bf16.msra.mxu0 0
  %1688 = vmatprep.subr.bf16.mxu0 0
  %1689 = vmatpush1.bf16.msra.mxu0 0
  %1690 = vmatprep.subr.bf16.mxu0 0
  %1691 = vmatpush1.bf16.msra.mxu0 0
  %1692 = vmatprep.subr.bf16.mxu0 0
  %1693 = vmatpush1.bf16.msra.mxu0 0
  %1694 = vmatprep.subr.bf16.mxu0 0
  %1695 = vmatpush1.bf16.msra.mxu0 0
  %1696 = vmatprep.subr.bf16.mxu0 0
  %1697 = vmatpush1.bf16.msra.mxu0 0
  %1698 = vmatprep.mubr.bf16.mxu0 0
  %1699 = vmatmul.mubr.bf16.gmra.mrb[0].mxu0 %v1571
  %v1700 = vpop.f32.mrb[0].mxu0
  %v1701 = vadd.f32 0.0, %v1700
  %v1702 = vpop.f32.mrb[0].mxu0
  %v1703 = vpop.f32.mrb[0].mxu0
  %v1704 = vadd.f32 0.0, %v1703
  %v1705 = vpop.f32.mrb[0].mxu0
  %1706 = vmatprep.mubr.bf16.mxu0 0
  %1707 = vmatmul.mubr.bf16.gmra.mrb[0].mxu0 %v1574
  %v1708 = vpop.f32.mrb[0].mxu0
  %v1709 = vadd.f32 0.0, %v1708
  %v1710 = vpop.f32.mrb[0].mxu0
  %v1711 = vpop.f32.mrb[0].mxu0
  %v1712 = vadd.f32 0.0, %v1711
  %v1713 = vpop.f32.mrb[0].mxu0
  %1714 = vmatprep.mubr.bf16.mxu0 0
  %1715 = vmatmul.mubr.bf16.gmra.mrb[0].mxu0 %v1577
  %v1716 = vpop.f32.mrb[0].mxu0
  %v1717 = vadd.f32 0.0, %v1716
  %v1718 = vpop.f32.mrb[0].mxu0
  %v1719 = vpop.f32.mrb[0].mxu0
  %v1720 = vadd.f32 0.0, %v1719
  %v1721 = vpop.f32.mrb[0].mxu0
  %1722 = vmatprep.mubr.bf16.mxu0 0
  %1723 = vmatmul.mubr.bf16.gmra.mrb[0].mxu0 %v1580
  %v1724 = vpop.f32.mrb[0].mxu0
  %v1725 = vadd.f32 0.0, %v1724
  %v1726 = vpop.f32.mrb[0].mxu0
  %v1727 = vpop.f32.mrb[0].mxu0
  %v1728 = vadd.f32 0.0, %v1727
  %v1729 = vpop.f32.mrb[0].mxu0
  %1730 = vmatprep.mubr.bf16.mxu0 0
  %1731 = vmatmul.mubr.bf16.gmra.mrb[0].mxu0 %v1583
  %v1732 = vpop.f32.mrb[0].mxu0
  %v1733 = vadd.f32 0.0, %v1732
  %v1734 = vpop.f32.mrb[0].mxu0
  %v1735 = vpop.f32.mrb[0].mxu0
  %v1736 = vadd.f32 0.0, %v1735
  %v1737 = vpop.f32.mrb[0].mxu0
  %1738 = vmatprep.mubr.bf16.mxu0 0
  %1739 = vmatmul.mubr.bf16.gmra.mrb[0].mxu0 %v1586
  %v1740 = vpop.f32.mrb[0].mxu0
  %v1741 = vadd.f32 0.0, %v1740
  %v1742 = vpop.f32.mrb[0].mxu0
  %v1743 = vpop.f32.mrb[0].mxu0
  %v1744 = vadd.f32 0.0, %v1743
  %v1745 = vpop.f32.mrb[0].mxu0
  %1746 = vmatprep.mubr.bf16.mxu0 0
  %1747 = vmatmul.mubr.bf16.gmra.mrb[0].mxu0 %v1589
  %v1748 = vpop.f32.mrb[0].mxu0
  %v1749 = vadd.f32 0.0, %v1748
  %v1750 = vpop.f32.mrb[0].mxu0
  %v1751 = vpop.f32.mrb[0].mxu0
  %v1752 = vadd.f32 0.0, %v1751
  %v1753 = vpop.f32.mrb[0].mxu0
  %1754 = vmatprep.mubr.bf16.mxu0 0
  %1755 = vmatmul.mubr.bf16.gmra.mrb[0].mxu0 %v1592
  %v1756 = vpop.f32.mrb[0].mxu0
  %v1757 = vadd.f32 0.0, %v1756
  %v1758 = vpop.f32.mrb[0].mxu0
  %v1759 = vpop.f32.mrb[0].mxu0
  %v1760 = vadd.f32 0.0, %v1759
  %v1761 = vpop.f32.mrb[0].mxu0
  %1762 = vmatprep.mubr.bf16.mxu0 0
  %1763 = vmatmul.mubr.bf16.gmra.mrb[0].mxu0 %v1595
  %v1764 = vpop.f32.mrb[0].mxu0
  %v1765 = vadd.f32 0.0, %v1764
  %v1766 = vpop.f32.mrb[0].mxu0
  %v1767 = vpop.f32.mrb[0].mxu0
  %v1768 = vadd.f32 0.0, %v1767
  %v1769 = vpop.f32.mrb[0].mxu0
  %1770 = vmatprep.mubr.bf16.mxu0 0
  %1771 = vmatmul.mubr.bf16.gmra.mrb[0].mxu0 %v1598
  %v1772 = vpop.f32.mrb[0].mxu0
  %v1773 = vadd.f32 0.0, %v1772
  %v1774 = vpop.f32.mrb[0].mxu0
  %v1775 = vpop.f32.mrb[0].mxu0
  %v1776 = vadd.f32 0.0, %v1775
  %v1777 = vpop.f32.mrb[0].mxu0
  %1778 = vmatprep.mubr.bf16.mxu0 0
  %1779 = vmatmul.mubr.bf16.gmra.mrb[0].mxu0 %v1601
  %v1780 = vpop.f32.mrb[0].mxu0
  %v1781 = vadd.f32 0.0, %v1780
  %v1782 = vpop.f32.mrb[0].mxu0
  %v1783 = vpop.f32.mrb[0].mxu0
  %v1784 = vadd.f32 0.0, %v1783
  %v1785 = vpop.f32.mrb[0].mxu0
  %1786 = vmatprep.mubr.bf16.mxu0 0
  %1787 = vmatmul.mubr.bf16.gmra.mrb[0].mxu0 %v1604
  %v1788 = vpop.f32.mrb[0].mxu0
  %v1789 = vadd.f32 0.0, %v1788
  %v1790 = vpop.f32.mrb[0].mxu0
  %v1791 = vpop.f32.mrb[0].mxu0
  %v1792 = vadd.f32 0.0, %v1791
  %v1793 = vpop.f32.mrb[0].mxu0
  %1794 = vmatprep.mubr.bf16.mxu0 0
  %1795 = vmatmul.mubr.bf16.gmra.mrb[0].mxu0 %v1607
  %v1796 = vpop.f32.mrb[0].mxu0
  %v1797 = vadd.f32 0.0, %v1796
  %v1798 = vpop.f32.mrb[0].mxu0
  %v1799 = vpop.f32.mrb[0].mxu0
  %v1800 = vadd.f32 0.0, %v1799
  %v1801 = vpop.f32.mrb[0].mxu0
  %1802 = vmatprep.mubr.bf16.mxu0 0
  %1803 = vmatmul.mubr.bf16.gmra.mrb[0].mxu0 %v1610
  %v1804 = vpop.f32.mrb[0].mxu0
  %v1805 = vadd.f32 0.0, %v1804
  %v1806 = vpop.f32.mrb[0].mxu0
  %v1807 = vpop.f32.mrb[0].mxu0
  %v1808 = vadd.f32 0.0, %v1807
  %v1809 = vpop.f32.mrb[0].mxu0
  %1810 = vmatprep.mubr.bf16.mxu0 0
  %1811 = vmatmul.mubr.bf16.gmra.mrb[0].mxu0 %v1613
  %v1812 = vpop.f32.mrb[0].mxu0
  %v1813 = vadd.f32 0.0, %v1812
  %v1814 = vpop.f32.mrb[0].mxu0
  %v1815 = vpop.f32.mrb[0].mxu0
  %v1816 = vadd.f32 0.0, %v1815
  %v1817 = vpop.f32.mrb[0].mxu0
  %1818 = vmatprep.mubr.bf16.mxu0 0
  %1819 = vmatmul.mubr.bf16.gmra.mrb[0].mxu0 %v1616
  %v1820 = vpop.f32.mrb[0].mxu0
  %v1821 = vadd.f32 0.0, %v1820
  %v1822 = vpop.f32.mrb[0].mxu0
  %v1823 = vpop.f32.mrb[0].mxu0
  %v1824 = vadd.f32 0.0, %v1823
  %v1825 = vpop.f32.mrb[0].mxu0
  %1826 = vmatprep.mubr.bf16.mxu0 0
  %1827 = vmatmul.mubr.bf16.gmra.mrb[0].mxu0 %v1619
  %v1828 = vpop.f32.mrb[0].mxu0
  %v1829 = vadd.f32 0.0, %v1828
  %v1830 = vpop.f32.mrb[0].mxu0
  %v1831 = vpop.f32.mrb[0].mxu0
  %v1832 = vadd.f32 0.0, %v1831
  %v1833 = vpop.f32.mrb[0].mxu0
  %1834 = vmatprep.mubr.bf16.mxu0 0
  %1835 = vmatmul.mubr.bf16.gmra.mrb[0].mxu0 %v1622
  %v1836 = vpop.f32.mrb[0].mxu0
  %v1837 = vadd.f32 0.0, %v1836
  %v1838 = vpop.f32.mrb[0].mxu0
  %v1839 = vpop.f32.mrb[0].mxu0
  %v1840 = vadd.f32 0.0, %v1839
  %v1841 = vpop.f32.mrb[0].mxu0
  %1842 = vmatprep.mubr.bf16.mxu0 0
  %1843 = vmatmul.mubr.bf16.gmra.mrb[0].mxu0 %v1625
  %v1844 = vpop.f32.mrb[0].mxu0
  %v1845 = vadd.f32 0.0, %v1844
  %v1846 = vpop.f32.mrb[0].mxu0
  %v1847 = vpop.f32.mrb[0].mxu0
  %v1848 = vadd.f32 0.0, %v1847
  %v1849 = vpop.f32.mrb[0].mxu0
  %1850 = vmatprep.mubr.bf16.mxu0 0
  %1851 = vmatmul.mubr.bf16.gmra.mrb[0].mxu0 %v1628
  %v1852 = vpop.f32.mrb[0].mxu0
  %v1853 = vadd.f32 0.0, %v1852
  %v1854 = vpop.f32.mrb[0].mxu0
  %v1855 = vpop.f32.mrb[0].mxu0
  %v1856 = vadd.f32 0.0, %v1855
  %v1857 = vpop.f32.mrb[0].mxu0
  %1858 = vmatprep.mubr.bf16.mxu0 0
  %1859 = vmatmul.mubr.bf16.gmra.mrb[0].mxu0 %v1631
  %v1860 = vpop.f32.mrb[0].mxu0
  %v1861 = vadd.f32 0.0, %v1860
  %v1862 = vpop.f32.mrb[0].mxu0
  %v1863 = vpop.f32.mrb[0].mxu0
  %v1864 = vadd.f32 0.0, %v1863
  %v1865 = vpop.f32.mrb[0].mxu0
  %1866 = vmatprep.mubr.bf16.mxu0 0
  %1867 = vmatmul.mubr.bf16.gmra.mrb[0].mxu0 %v1634
  %v1868 = vpop.f32.mrb[0].mxu0
  %v1869 = vadd.f32 0.0, %v1868
  %v1870 = vpop.f32.mrb[0].mxu0
  %v1871 = vpop.f32.mrb[0].mxu0
  %v1872 = vadd.f32 0.0, %v1871
  %v1873 = vpop.f32.mrb[0].mxu0
  %1874 = vmatprep.mubr.bf16.mxu0 0
  %1875 = vmatmul.mubr.bf16.gmra.mrb[0].mxu0 %v1637
  %v1876 = vpop.f32.mrb[0].mxu0
  %v1877 = vadd.f32 0.0, %v1876
  %v1878 = vpop.f32.mrb[0].mxu0
  %v1879 = vpop.f32.mrb[0].mxu0
  %v1880 = vadd.f32 0.0, %v1879
  %v1881 = vpop.f32.mrb[0].mxu0
  %1882 = vmatprep.mubr.bf16.mxu0 0
  %1883 = vmatmul.mubr.bf16.gmra.mrb[0].mxu0 %v1640
  %v1884 = vpop.f32.mrb[0].mxu0
  %v1885 = vadd.f32 0.0, %v1884
  %v1886 = vpop.f32.mrb[0].mxu0
  %v1887 = vpop.f32.mrb[0].mxu0
  %v1888 = vadd.f32 0.0, %v1887
  %v1889 = vpop.f32.mrb[0].mxu0
  %1890 = vmatprep.mubr.bf16.mxu0 0
  %1891 = vmatmul.mubr.bf16.gmra.mrb[0].mxu0 %v1643
  %v1892 = vpop.f32.mrb[0].mxu0
  %v1893 = vadd.f32 0.0, %v1892
  %v1894 = vpop.f32.mrb[0].mxu0
  %v1895 = vpop.f32.mrb[0].mxu0
  %v1896 = vadd.f32 0.0, %v1895
  %v1897 = vpop.f32.mrb[0].mxu0
  %1898 = vmatprep.mubr.bf16.mxu0 0
  %1899 = vmatmul.mubr.bf16.gmra.mrb[0].mxu0 %v1646
  %v1900 = vpop.f32.mrb[0].mxu0
  %v1901 = vadd.f32 0.0, %v1900
  %v1902 = vpop.f32.mrb[0].mxu0
  %v1903 = vpop.f32.mrb[0].mxu0
  %v1904 = vadd.f32 0.0, %v1903
  %v1905 = vpop.f32.mrb[0].mxu0
  %1906 = vmatprep.mubr.bf16.mxu0 0
  %1907 = vmatmul.mubr.bf16.gmra.mrb[0].mxu0 %v1649
  %v1908 = vpop.f32.mrb[0].mxu0
  %v1909 = vadd.f32 0.0, %v1908
  %v1910 = vpop.f32.mrb[0].mxu0
  %v1911 = vpop.f32.mrb[0].mxu0
  %v1912 = vadd.f32 0.0, %v1911
  %v1913 = vpop.f32.mrb[0].mxu0
  %1914 = vmatprep.mubr.bf16.mxu0 0
  %1915 = vmatmul.mubr.bf16.gmra.mrb[0].mxu0 %v1652
  %v1916 = vpop.f32.mrb[0].mxu0
  %v1917 = vadd.f32 0.0, %v1916
  %v1918 = vpop.f32.mrb[0].mxu0
  %v1919 = vpop.f32.mrb[0].mxu0
  %v1920 = vadd.f32 0.0, %v1919
  %v1921 = vpop.f32.mrb[0].mxu0
  %1922 = vmatprep.mubr.bf16.mxu0 0
  %1923 = vmatmul.mubr.bf16.gmra.mrb[0].mxu0 %v1655
  %v1924 = vpop.f32.mrb[0].mxu0
  %v1925 = vadd.f32 0.0, %v1924
  %v1926 = vpop.f32.mrb[0].mxu0
  %v1927 = vpop.f32.mrb[0].mxu0
  %v1928 = vadd.f32 0.0, %v1927
  %v1929 = vpop.f32.mrb[0].mxu0
  %1930 = vmatprep.mubr.bf16.mxu0 0
  %1931 = vmatmul.mubr.bf16.gmra.mrb[0].mxu0 %v1658
  %v1932 = vpop.f32.mrb[0].mxu0
  %v1933 = vadd.f32 0.0, %v1932
  %v1934 = vpop.f32.mrb[0].mxu0
  %v1935 = vpop.f32.mrb[0].mxu0
  %v1936 = vadd.f32 0.0, %v1935
  %v1937 = vpop.f32.mrb[0].mxu0
  %1938 = vmatprep.mubr.bf16.mxu0 0
  %1939 = vmatmul.mubr.bf16.gmra.mrb[0].mxu0 %v1661
  %v1940 = vpop.f32.mrb[0].mxu0
  %v1941 = vadd.f32 0.0, %v1940
  %v1942 = vpop.f32.mrb[0].mxu0
  %v1943 = vpop.f32.mrb[0].mxu0
  %v1944 = vadd.f32 0.0, %v1943
  %v1945 = vpop.f32.mrb[0].mxu0
  %1946 = vmatprep.mubr.bf16.mxu0 0
  %1947 = vmatmul.mubr.bf16.gmra.mrb[0].mxu0 %v1664
  %v1948 = vpop.f32.mrb[0].mxu0
  %v1949 = vadd.f32 0.0, %v1948
  %v1950 = vpop.f32.mrb[0].mxu0
  %v1951 = vpop.f32.mrb[0].mxu0
  %v1952 = vadd.f32 0.0, %v1951
  %v1953 = vpop.f32.mrb[0].mxu0
  %1954 = vdwg.mxu0
  %v1955 = vmax.f32 %v1281, %v1701
  %v1956 = vmax.f32 %v1282, %v1704
  %v1957 = vmax.f32 %v1283, %v1709
  %v1958 = vmax.f32 %v1284, %v1712
  %v1959 = vmax.f32 %v1285, %v1717
  %v1960 = vmax.f32 %v1286, %v1720
  %v1961 = vmax.f32 %v1287, %v1725
  %v1962 = vmax.f32 %v1288, %v1728
  %v1963 = vmax.f32 %v1289, %v1733
  %v1964 = vmax.f32 %v1290, %v1736
  %v1965 = vmax.f32 %v1291, %v1741
  %v1966 = vmax.f32 %v1292, %v1744
  %v1967 = vmax.f32 %v1293, %v1749
  %v1968 = vmax.f32 %v1294, %v1752
  %v1969 = vmax.f32 %v1295, %v1757
  %v1970 = vmax.f32 %v1296, %v1760
  %v1971 = vmax.f32 %v1297, %v1765
  %v1972 = vmax.f32 %v1298, %v1768
  %v1973 = vmax.f32 %v1299, %v1773
  %v1974 = vmax.f32 %v1300, %v1776
  %v1975 = vmax.f32 %v1301, %v1781
  %v1976 = vmax.f32 %v1302, %v1784
  %v1977 = vmax.f32 %v1303, %v1789
  %v1978 = vmax.f32 %v1304, %v1792
  %v1979 = vmax.f32 %v1305, %v1797
  %v1980 = vmax.f32 %v1306, %v1800
  %v1981 = vmax.f32 %v1307, %v1805
  %v1982 = vmax.f32 %v1308, %v1808
  %v1983 = vmax.f32 %v1309, %v1813
  %v1984 = vmax.f32 %v1310, %v1816
  %v1985 = vmax.f32 %v1311, %v1821
  %v1986 = vmax.f32 %v1312, %v1824
  %v1987 = vmax.f32 %v1313, %v1829
  %v1988 = vmax.f32 %v1314, %v1832
  %v1989 = vmax.f32 %v1315, %v1837
  %v1990 = vmax.f32 %v1316, %v1840
  %v1991 = vmax.f32 %v1317, %v1845
  %v1992 = vmax.f32 %v1318, %v1848
  %v1993 = vmax.f32 %v1319, %v1853
  %v1994 = vmax.f32 %v1320, %v1856
  %v1995 = vmax.f32 %v1321, %v1861
  %v1996 = vmax.f32 %v1322, %v1864
  %v1997 = vmax.f32 %v1323, %v1869
  %v1998 = vmax.f32 %v1324, %v1872
  %v1999 = vmax.f32 %v1325, %v1877
  %v2000 = vmax.f32 %v1326, %v1880
  %v2001 = vmax.f32 %v1327, %v1885
  %v2002 = vmax.f32 %v1328, %v1888
  %v2003 = vmax.f32 %v1329, %v1893
  %v2004 = vmax.f32 %v1330, %v1896
  %v2005 = vmax.f32 %v1331, %v1901
  %v2006 = vmax.f32 %v1332, %v1904
  %v2007 = vmax.f32 %v1333, %v1909
  %v2008 = vmax.f32 %v1334, %v1912
  %v2009 = vmax.f32 %v1335, %v1917
  %v2010 = vmax.f32 %v1336, %v1920
  %v2011 = vmax.f32 %v1337, %v1925
  %v2012 = vmax.f32 %v1338, %v1928
  %v2013 = vmax.f32 %v1339, %v1933
  %v2014 = vmax.f32 %v1340, %v1936
  %v2015 = vmax.f32 %v1341, %v1941
  %v2016 = vmax.f32 %v1342, %v1944
  %v2017 = vmax.f32 %v1343, %v1949
  %v2018 = vmax.f32 %v1344, %v1952
  %s2019 = scalar_lea.vmem %s0, 768
  %v2020 = vld [vmem:[%s2019] sm:$0xf]
  %v2021 = vld [vmem:[%s2019 + $0x4] sm:$0xf]
  %v2022 = vld [vmem:[%s2019 + $0x8] sm:$0xf]
  %v2023 = vld [vmem:[%s2019 + $0xc] sm:$0xf]
  %v2024 = vld [vmem:[%s2019 + $0x10] sm:$0xf]
  %v2025 = vld [vmem:[%s2019 + $0x14] sm:$0xf]
  %v2026 = vld [vmem:[%s2019 + $0x18] sm:$0xf]
  %v2027 = vld [vmem:[%s2019 + $0x1c] sm:$0xf]
  %v2028 = vld [vmem:[%s2019 + $0x20] sm:$0xf]
  %v2029 = vld [vmem:[%s2019 + $0x24] sm:$0xf]
  %v2030 = vld [vmem:[%s2019 + $0x28] sm:$0xf]
  %v2031 = vld [vmem:[%s2019 + $0x2c] sm:$0xf]
  %v2032 = vld [vmem:[%s2019 + $0x30] sm:$0xf]
  %v2033 = vld [vmem:[%s2019 + $0x34] sm:$0xf]
  %v2034 = vld [vmem:[%s2019 + $0x38] sm:$0xf]
  %v2035 = vld [vmem:[%s2019 + $0x3c] sm:$0xf]
  %v2036 = vld [vmem:[%s2019 + $0x40] sm:$0xf]
  %v2037 = vld [vmem:[%s2019 + $0x44] sm:$0xf]
  %v2038 = vld [vmem:[%s2019 + $0x48] sm:$0xf]
  %v2039 = vld [vmem:[%s2019 + $0x4c] sm:$0xf]
  %v2040 = vld [vmem:[%s2019 + $0x50] sm:$0xf]
  %v2041 = vld [vmem:[%s2019 + $0x54] sm:$0xf]
  %v2042 = vld [vmem:[%s2019 + $0x58] sm:$0xf]
  %v2043 = vld [vmem:[%s2019 + $0x5c] sm:$0xf]
  %v2044 = vld [vmem:[%s2019 + $0x60] sm:$0xf]
  %v2045 = vld [vmem:[%s2019 + $0x64] sm:$0xf]
  %v2046 = vld [vmem:[%s2019 + $0x68] sm:$0xf]
  %v2047 = vld [vmem:[%s2019 + $0x6c] sm:$0xf]
  %v2048 = vld [vmem:[%s2019 + $0x70] sm:$0xf]
  %v2049 = vld [vmem:[%s2019 + $0x74] sm:$0xf]
  %v2050 = vld [vmem:[%s2019 + $0x78] sm:$0xf]
  %v2051 = vld [vmem:[%s2019 + $0x7c] sm:$0xf]
  %v2052 = vld [vmem:[%s2019 + $0x80] sm:$0xf]
  %v2053 = vld [vmem:[%s2019 + $0x84] sm:$0xf]
  %v2054 = vld [vmem:[%s2019 + $0x88] sm:$0xf]
  %v2055 = vld [vmem:[%s2019 + $0x8c] sm:$0xf]
  %v2056 = vld [vmem:[%s2019 + $0x90] sm:$0xf]
  %v2057 = vld [vmem:[%s2019 + $0x94] sm:$0xf]
  %v2058 = vld [vmem:[%s2019 + $0x98] sm:$0xf]
  %v2059 = vld [vmem:[%s2019 + $0x9c] sm:$0xf]
  %v2060 = vld [vmem:[%s2019 + $0xa0] sm:$0xf]
  %v2061 = vld [vmem:[%s2019 + $0xa4] sm:$0xf]
  %v2062 = vld [vmem:[%s2019 + $0xa8] sm:$0xf]
  %v2063 = vld [vmem:[%s2019 + $0xac] sm:$0xf]
  %v2064 = vld [vmem:[%s2019 + $0xb0] sm:$0xf]
  %v2065 = vld [vmem:[%s2019 + $0xb4] sm:$0xf]
  %v2066 = vld [vmem:[%s2019 + $0xb8] sm:$0xf]
  %v2067 = vld [vmem:[%s2019 + $0xbc] sm:$0xf]
  %v2068 = vld [vmem:[%s2019 + $0xc0] sm:$0xf]
  %v2069 = vld [vmem:[%s2019 + $0xc4] sm:$0xf]
  %v2070 = vld [vmem:[%s2019 + $0xc8] sm:$0xf]
  %v2071 = vld [vmem:[%s2019 + $0xcc] sm:$0xf]
  %v2072 = vld [vmem:[%s2019 + $0xd0] sm:$0xf]
  %v2073 = vld [vmem:[%s2019 + $0xd4] sm:$0xf]
  %v2074 = vld [vmem:[%s2019 + $0xd8] sm:$0xf]
  %v2075 = vld [vmem:[%s2019 + $0xdc] sm:$0xf]
  %v2076 = vld [vmem:[%s2019 + $0xe0] sm:$0xf]
  %v2077 = vld [vmem:[%s2019 + $0xe4] sm:$0xf]
  %v2078 = vld [vmem:[%s2019 + $0xe8] sm:$0xf]
  %v2079 = vld [vmem:[%s2019 + $0xec] sm:$0xf]
  %v2080 = vld [vmem:[%s2019 + $0xf0] sm:$0xf]
  %v2081 = vld [vmem:[%s2019 + $0xf4] sm:$0xf]
  %v2082 = vld [vmem:[%s2019 + $0xf8] sm:$0xf]
  %v2083 = vld [vmem:[%s2019 + $0xfc] sm:$0xf]
  %v2148 = vunpack.c.l.b16 %v2020
  %v2149 = vunpack.c.l.b16 %v2021
  %v2150 = vunpack.c.l.b16 %v2022
  %v2151 = vunpack.c.l.b16 %v2023
  %v2152 = vunpack.c.l.b16 %v2024
  %v2153 = vunpack.c.l.b16 %v2025
  %v2154 = vunpack.c.l.b16 %v2026
  %v2155 = vunpack.c.l.b16 %v2027
  %v2156 = vunpack.c.l.b16 %v2028
  %v2157 = vunpack.c.l.b16 %v2029
  %v2158 = vunpack.c.l.b16 %v2030
  %v2159 = vunpack.c.l.b16 %v2031
  %v2160 = vunpack.c.l.b16 %v2032
  %v2161 = vunpack.c.l.b16 %v2033
  %v2162 = vunpack.c.l.b16 %v2034
  %v2163 = vunpack.c.l.b16 %v2035
  %v2164 = vunpack.c.l.b16 %v2036
  %v2165 = vunpack.c.l.b16 %v2037
  %v2166 = vunpack.c.l.b16 %v2038
  %v2167 = vunpack.c.l.b16 %v2039
  %v2168 = vunpack.c.l.b16 %v2040
  %v2169 = vunpack.c.l.b16 %v2041
  %v2170 = vunpack.c.l.b16 %v2042
  %v2171 = vunpack.c.l.b16 %v2043
  %v2172 = vunpack.c.l.b16 %v2044
  %v2173 = vunpack.c.l.b16 %v2045
  %v2174 = vunpack.c.l.b16 %v2046
  %v2175 = vunpack.c.l.b16 %v2047
  %v2176 = vunpack.c.l.b16 %v2048
  %v2177 = vunpack.c.l.b16 %v2049
  %v2178 = vunpack.c.l.b16 %v2050
  %v2179 = vunpack.c.l.b16 %v2051
  %v2180 = vunpack.c.l.b16 %v2052
  %v2181 = vunpack.c.l.b16 %v2053
  %v2182 = vunpack.c.l.b16 %v2054
  %v2183 = vunpack.c.l.b16 %v2055
  %v2184 = vunpack.c.l.b16 %v2056
  %v2185 = vunpack.c.l.b16 %v2057
  %v2186 = vunpack.c.l.b16 %v2058
  %v2187 = vunpack.c.l.b16 %v2059
  %v2188 = vunpack.c.l.b16 %v2060
  %v2189 = vunpack.c.l.b16 %v2061
  %v2190 = vunpack.c.l.b16 %v2062
  %v2191 = vunpack.c.l.b16 %v2063
  %v2192 = vunpack.c.l.b16 %v2064
  %v2193 = vunpack.c.l.b16 %v2065
  %v2194 = vunpack.c.l.b16 %v2066
  %v2195 = vunpack.c.l.b16 %v2067
  %v2196 = vunpack.c.l.b16 %v2068
  %v2197 = vunpack.c.l.b16 %v2069
  %v2198 = vunpack.c.l.b16 %v2070
  %v2199 = vunpack.c.l.b16 %v2071
  %v2200 = vunpack.c.l.b16 %v2072
  %v2201 = vunpack.c.l.b16 %v2073
  %v2202 = vunpack.c.l.b16 %v2074
  %v2203 = vunpack.c.l.b16 %v2075
  %v2204 = vunpack.c.l.b16 %v2076
  %v2205 = vunpack.c.l.b16 %v2077
  %v2206 = vunpack.c.l.b16 %v2078
  %v2207 = vunpack.c.l.b16 %v2079
  %v2208 = vunpack.c.l.b16 %v2080
  %v2209 = vunpack.c.l.b16 %v2081
  %v2210 = vunpack.c.l.b16 %v2082
  %v2211 = vunpack.c.l.b16 %v2083
  %v2212 = vpack.c.b16 %v2149, %v2148
  %v2213 = vpack.c.b16 %v2151, %v2150
  %v2214 = vpack.c.b16 %v2153, %v2152
  %v2215 = vpack.c.b16 %v2155, %v2154
  %v2216 = vpack.c.b16 %v2157, %v2156
  %v2217 = vpack.c.b16 %v2159, %v2158
  %v2218 = vpack.c.b16 %v2161, %v2160
  %v2219 = vpack.c.b16 %v2163, %v2162
  %v2220 = vpack.c.b16 %v2165, %v2164
  %v2221 = vpack.c.b16 %v2167, %v2166
  %v2222 = vpack.c.b16 %v2169, %v2168
  %v2223 = vpack.c.b16 %v2171, %v2170
  %v2224 = vpack.c.b16 %v2173, %v2172
  %v2225 = vpack.c.b16 %v2175, %v2174
  %v2226 = vpack.c.b16 %v2177, %v2176
  %v2227 = vpack.c.b16 %v2179, %v2178
  %v2228 = vpack.c.b16 %v2181, %v2180
  %v2229 = vpack.c.b16 %v2183, %v2182
  %v2230 = vpack.c.b16 %v2185, %v2184
  %v2231 = vpack.c.b16 %v2187, %v2186
  %v2232 = vpack.c.b16 %v2189, %v2188
  %v2233 = vpack.c.b16 %v2191, %v2190
  %v2234 = vpack.c.b16 %v2193, %v2192
  %v2235 = vpack.c.b16 %v2195, %v2194
  %v2236 = vpack.c.b16 %v2197, %v2196
  %v2237 = vpack.c.b16 %v2199, %v2198
  %v2238 = vpack.c.b16 %v2201, %v2200
  %v2239 = vpack.c.b16 %v2203, %v2202
  %v2240 = vpack.c.b16 %v2205, %v2204
  %v2241 = vpack.c.b16 %v2207, %v2206
  %v2242 = vpack.c.b16 %v2209, %v2208
  %v2243 = vpack.c.b16 %v2211, %v2210
  %v2245 = vsel %vm278, %v2212, 0
  %v2248 = vsel %vm278, %v2213, 0
  %v2251 = vsel %vm278, %v2214, 0
  %v2254 = vsel %vm278, %v2215, 0
  %v2257 = vsel %vm278, %v2216, 0
  %v2260 = vsel %vm278, %v2217, 0
  %v2263 = vsel %vm278, %v2218, 0
  %v2266 = vsel %vm278, %v2219, 0
  %v2269 = vsel %vm278, %v2220, 0
  %v2272 = vsel %vm278, %v2221, 0
  %v2275 = vsel %vm278, %v2222, 0
  %v2278 = vsel %vm278, %v2223, 0
  %v2281 = vsel %vm278, %v2224, 0
  %v2284 = vsel %vm278, %v2225, 0
  %v2287 = vsel %vm278, %v2226, 0
  %v2290 = vsel %vm278, %v2227, 0
  %v2293 = vsel %vm278, %v2228, 0
  %v2296 = vsel %vm278, %v2229, 0
  %v2299 = vsel %vm278, %v2230, 0
  %v2302 = vsel %vm278, %v2231, 0
  %v2305 = vsel %vm278, %v2232, 0
  %v2308 = vsel %vm278, %v2233, 0
  %v2311 = vsel %vm278, %v2234, 0
  %v2314 = vsel %vm278, %v2235, 0
  %v2317 = vsel %vm278, %v2236, 0
  %v2320 = vsel %vm278, %v2237, 0
  %v2323 = vsel %vm278, %v2238, 0
  %v2326 = vsel %vm278, %v2239, 0
  %v2329 = vsel %vm278, %v2240, 0
  %v2332 = vsel %vm278, %v2241, 0
  %v2335 = vsel %vm278, %v2242, 0
  %v2338 = vsel %vm278, %v2243, 0
  %2340 = vmatprep.subr.bf16.mxu0 0
  %2341 = vmatpush1.bf16.msra.mxu0 %v269
  %2342 = vmatprep.subr.bf16.mxu0 0
  %2343 = vmatpush1.bf16.msra.mxu0 %v270
  %2344 = vmatprep.subr.bf16.mxu0 0
  %2345 = vmatpush1.bf16.msra.mxu0 %v271
  %2346 = vmatprep.subr.bf16.mxu0 0
  %2347 = vmatpush1.bf16.msra.mxu0 %v272
  %2348 = vmatprep.subr.bf16.mxu0 0
  %2349 = vmatpush1.bf16.msra.mxu0 %v380
  %2350 = vmatprep.subr.bf16.mxu0 0
  %2351 = vmatpush1.bf16.msra.mxu0 0
  %2352 = vmatprep.subr.bf16.mxu0 0
  %2353 = vmatpush1.bf16.msra.mxu0 0
  %2354 = vmatprep.subr.bf16.mxu0 0
  %2355 = vmatpush1.bf16.msra.mxu0 0
  %2356 = vmatprep.subr.bf16.mxu0 0
  %2357 = vmatpush1.bf16.msra.mxu0 0
  %2358 = vmatprep.subr.bf16.mxu0 0
  %2359 = vmatpush1.bf16.msra.mxu0 0
  %2360 = vmatprep.subr.bf16.mxu0 0
  %2361 = vmatpush1.bf16.msra.mxu0 0
  %2362 = vmatprep.subr.bf16.mxu0 0
  %2363 = vmatpush1.bf16.msra.mxu0 0
  %2364 = vmatprep.subr.bf16.mxu0 0
  %2365 = vmatpush1.bf16.msra.mxu0 0
  %2366 = vmatprep.subr.bf16.mxu0 0
  %2367 = vmatpush1.bf16.msra.mxu0 0
  %2368 = vmatprep.subr.bf16.mxu0 0
  %2369 = vmatpush1.bf16.msra.mxu0 0
  %2370 = vmatprep.subr.bf16.mxu0 0
  %2371 = vmatpush1.bf16.msra.mxu0 0
  %2372 = vmatprep.mubr.bf16.mxu0 0
  %2373 = vmatmul.mubr.bf16.gmra.mrb[0].mxu0 %v2245
  %v2374 = vpop.f32.mrb[0].mxu0
  %v2375 = vadd.f32 0.0, %v2374
  %v2376 = vpop.f32.mrb[0].mxu0
  %v2377 = vpop.f32.mrb[0].mxu0
  %v2378 = vadd.f32 0.0, %v2377
  %v2379 = vpop.f32.mrb[0].mxu0
  %2380 = vmatprep.mubr.bf16.mxu0 0
  %2381 = vmatmul.mubr.bf16.gmra.mrb[0].mxu0 %v2248
  %v2382 = vpop.f32.mrb[0].mxu0
  %v2383 = vadd.f32 0.0, %v2382
  %v2384 = vpop.f32.mrb[0].mxu0
  %v2385 = vpop.f32.mrb[0].mxu0
  %v2386 = vadd.f32 0.0, %v2385
  %v2387 = vpop.f32.mrb[0].mxu0
  %2388 = vmatprep.mubr.bf16.mxu0 0
  %2389 = vmatmul.mubr.bf16.gmra.mrb[0].mxu0 %v2251
  %v2390 = vpop.f32.mrb[0].mxu0
  %v2391 = vadd.f32 0.0, %v2390
  %v2392 = vpop.f32.mrb[0].mxu0
  %v2393 = vpop.f32.mrb[0].mxu0
  %v2394 = vadd.f32 0.0, %v2393
  %v2395 = vpop.f32.mrb[0].mxu0
  %2396 = vmatprep.mubr.bf16.mxu0 0
  %2397 = vmatmul.mubr.bf16.gmra.mrb[0].mxu0 %v2254
  %v2398 = vpop.f32.mrb[0].mxu0
  %v2399 = vadd.f32 0.0, %v2398
  %v2400 = vpop.f32.mrb[0].mxu0
  %v2401 = vpop.f32.mrb[0].mxu0
  %v2402 = vadd.f32 0.0, %v2401
  %v2403 = vpop.f32.mrb[0].mxu0
  %2404 = vmatprep.mubr.bf16.mxu0 0
  %2405 = vmatmul.mubr.bf16.gmra.mrb[0].mxu0 %v2257
  %v2406 = vpop.f32.mrb[0].mxu0
  %v2407 = vadd.f32 0.0, %v2406
  %v2408 = vpop.f32.mrb[0].mxu0
  %v2409 = vpop.f32.mrb[0].mxu0
  %v2410 = vadd.f32 0.0, %v2409
  %v2411 = vpop.f32.mrb[0].mxu0
  %2412 = vmatprep.mubr.bf16.mxu0 0
  %2413 = vmatmul.mubr.bf16.gmra.mrb[0].mxu0 %v2260
  %v2414 = vpop.f32.mrb[0].mxu0
  %v2415 = vadd.f32 0.0, %v2414
  %v2416 = vpop.f32.mrb[0].mxu0
  %v2417 = vpop.f32.mrb[0].mxu0
  %v2418 = vadd.f32 0.0, %v2417
  %v2419 = vpop.f32.mrb[0].mxu0
  %2420 = vmatprep.mubr.bf16.mxu0 0
  %2421 = vmatmul.mubr.bf16.gmra.mrb[0].mxu0 %v2263
  %v2422 = vpop.f32.mrb[0].mxu0
  %v2423 = vadd.f32 0.0, %v2422
  %v2424 = vpop.f32.mrb[0].mxu0
  %v2425 = vpop.f32.mrb[0].mxu0
  %v2426 = vadd.f32 0.0, %v2425
  %v2427 = vpop.f32.mrb[0].mxu0
  %2428 = vmatprep.mubr.bf16.mxu0 0
  %2429 = vmatmul.mubr.bf16.gmra.mrb[0].mxu0 %v2266
  %v2430 = vpop.f32.mrb[0].mxu0
  %v2431 = vadd.f32 0.0, %v2430
  %v2432 = vpop.f32.mrb[0].mxu0
  %v2433 = vpop.f32.mrb[0].mxu0
  %v2434 = vadd.f32 0.0, %v2433
  %v2435 = vpop.f32.mrb[0].mxu0
  %2436 = vmatprep.mubr.bf16.mxu0 0
  %2437 = vmatmul.mubr.bf16.gmra.mrb[0].mxu0 %v2269
  %v2438 = vpop.f32.mrb[0].mxu0
  %v2439 = vadd.f32 0.0, %v2438
  %v2440 = vpop.f32.mrb[0].mxu0
  %v2441 = vpop.f32.mrb[0].mxu0
  %v2442 = vadd.f32 0.0, %v2441
  %v2443 = vpop.f32.mrb[0].mxu0
  %2444 = vmatprep.mubr.bf16.mxu0 0
  %2445 = vmatmul.mubr.bf16.gmra.mrb[0].mxu0 %v2272
  %v2446 = vpop.f32.mrb[0].mxu0
  %v2447 = vadd.f32 0.0, %v2446
  %v2448 = vpop.f32.mrb[0].mxu0
  %v2449 = vpop.f32.mrb[0].mxu0
  %v2450 = vadd.f32 0.0, %v2449
  %v2451 = vpop.f32.mrb[0].mxu0
  %2452 = vmatprep.mubr.bf16.mxu0 0
  %2453 = vmatmul.mubr.bf16.gmra.mrb[0].mxu0 %v2275
  %v2454 = vpop.f32.mrb[0].mxu0
  %v2455 = vadd.f32 0.0, %v2454
  %v2456 = vpop.f32.mrb[0].mxu0
  %v2457 = vpop.f32.mrb[0].mxu0
  %v2458 = vadd.f32 0.0, %v2457
  %v2459 = vpop.f32.mrb[0].mxu0
  %2460 = vmatprep.mubr.bf16.mxu0 0
  %2461 = vmatmul.mubr.bf16.gmra.mrb[0].mxu0 %v2278
  %v2462 = vpop.f32.mrb[0].mxu0
  %v2463 = vadd.f32 0.0, %v2462
  %v2464 = vpop.f32.mrb[0].mxu0
  %v2465 = vpop.f32.mrb[0].mxu0
  %v2466 = vadd.f32 0.0, %v2465
  %v2467 = vpop.f32.mrb[0].mxu0
  %2468 = vmatprep.mubr.bf16.mxu0 0
  %2469 = vmatmul.mubr.bf16.gmra.mrb[0].mxu0 %v2281
  %v2470 = vpop.f32.mrb[0].mxu0
  %v2471 = vadd.f32 0.0, %v2470
  %v2472 = vpop.f32.mrb[0].mxu0
  %v2473 = vpop.f32.mrb[0].mxu0
  %v2474 = vadd.f32 0.0, %v2473
  %v2475 = vpop.f32.mrb[0].mxu0
  %2476 = vmatprep.mubr.bf16.mxu0 0
  %2477 = vmatmul.mubr.bf16.gmra.mrb[0].mxu0 %v2284
  %v2478 = vpop.f32.mrb[0].mxu0
  %v2479 = vadd.f32 0.0, %v2478
  %v2480 = vpop.f32.mrb[0].mxu0
  %v2481 = vpop.f32.mrb[0].mxu0
  %v2482 = vadd.f32 0.0, %v2481
  %v2483 = vpop.f32.mrb[0].mxu0
  %2484 = vmatprep.mubr.bf16.mxu0 0
  %2485 = vmatmul.mubr.bf16.gmra.mrb[0].mxu0 %v2287
  %v2486 = vpop.f32.mrb[0].mxu0
  %v2487 = vadd.f32 0.0, %v2486
  %v2488 = vpop.f32.mrb[0].mxu0
  %v2489 = vpop.f32.mrb[0].mxu0
  %v2490 = vadd.f32 0.0, %v2489
  %v2491 = vpop.f32.mrb[0].mxu0
  %2492 = vmatprep.mubr.bf16.mxu0 0
  %2493 = vmatmul.mubr.bf16.gmra.mrb[0].mxu0 %v2290
  %v2494 = vpop.f32.mrb[0].mxu0
  %v2495 = vadd.f32 0.0, %v2494
  %v2496 = vpop.f32.mrb[0].mxu0
  %v2497 = vpop.f32.mrb[0].mxu0
  %v2498 = vadd.f32 0.0, %v2497
  %v2499 = vpop.f32.mrb[0].mxu0
  %2500 = vmatprep.mubr.bf16.mxu0 0
  %2501 = vmatmul.mubr.bf16.gmra.mrb[0].mxu0 %v2293
  %v2502 = vpop.f32.mrb[0].mxu0
  %v2503 = vadd.f32 0.0, %v2502
  %v2504 = vpop.f32.mrb[0].mxu0
  %v2505 = vpop.f32.mrb[0].mxu0
  %v2506 = vadd.f32 0.0, %v2505
  %v2507 = vpop.f32.mrb[0].mxu0
  %2508 = vmatprep.mubr.bf16.mxu0 0
  %2509 = vmatmul.mubr.bf16.gmra.mrb[0].mxu0 %v2296
  %v2510 = vpop.f32.mrb[0].mxu0
  %v2511 = vadd.f32 0.0, %v2510
  %v2512 = vpop.f32.mrb[0].mxu0
  %v2513 = vpop.f32.mrb[0].mxu0
  %v2514 = vadd.f32 0.0, %v2513
  %v2515 = vpop.f32.mrb[0].mxu0
  %2516 = vmatprep.mubr.bf16.mxu0 0
  %2517 = vmatmul.mubr.bf16.gmra.mrb[0].mxu0 %v2299
  %v2518 = vpop.f32.mrb[0].mxu0
  %v2519 = vadd.f32 0.0, %v2518
  %v2520 = vpop.f32.mrb[0].mxu0
  %v2521 = vpop.f32.mrb[0].mxu0
  %v2522 = vadd.f32 0.0, %v2521
  %v2523 = vpop.f32.mrb[0].mxu0
  %2524 = vmatprep.mubr.bf16.mxu0 0
  %2525 = vmatmul.mubr.bf16.gmra.mrb[0].mxu0 %v2302
  %v2526 = vpop.f32.mrb[0].mxu0
  %v2527 = vadd.f32 0.0, %v2526
  %v2528 = vpop.f32.mrb[0].mxu0
  %v2529 = vpop.f32.mrb[0].mxu0
  %v2530 = vadd.f32 0.0, %v2529
  %v2531 = vpop.f32.mrb[0].mxu0
  %2532 = vmatprep.mubr.bf16.mxu0 0
  %2533 = vmatmul.mubr.bf16.gmra.mrb[0].mxu0 %v2305
  %v2534 = vpop.f32.mrb[0].mxu0
  %v2535 = vadd.f32 0.0, %v2534
  %v2536 = vpop.f32.mrb[0].mxu0
  %v2537 = vpop.f32.mrb[0].mxu0
  %v2538 = vadd.f32 0.0, %v2537
  %v2539 = vpop.f32.mrb[0].mxu0
  %2540 = vmatprep.mubr.bf16.mxu0 0
  %2541 = vmatmul.mubr.bf16.gmra.mrb[0].mxu0 %v2308
  %v2542 = vpop.f32.mrb[0].mxu0
  %v2543 = vadd.f32 0.0, %v2542
  %v2544 = vpop.f32.mrb[0].mxu0
  %v2545 = vpop.f32.mrb[0].mxu0
  %v2546 = vadd.f32 0.0, %v2545
  %v2547 = vpop.f32.mrb[0].mxu0
  %2548 = vmatprep.mubr.bf16.mxu0 0
  %2549 = vmatmul.mubr.bf16.gmra.mrb[0].mxu0 %v2311
  %v2550 = vpop.f32.mrb[0].mxu0
  %v2551 = vadd.f32 0.0, %v2550
  %v2552 = vpop.f32.mrb[0].mxu0
  %v2553 = vpop.f32.mrb[0].mxu0
  %v2554 = vadd.f32 0.0, %v2553
  %v2555 = vpop.f32.mrb[0].mxu0
  %2556 = vmatprep.mubr.bf16.mxu0 0
  %2557 = vmatmul.mubr.bf16.gmra.mrb[0].mxu0 %v2314
  %v2558 = vpop.f32.mrb[0].mxu0
  %v2559 = vadd.f32 0.0, %v2558
  %v2560 = vpop.f32.mrb[0].mxu0
  %v2561 = vpop.f32.mrb[0].mxu0
  %v2562 = vadd.f32 0.0, %v2561
  %v2563 = vpop.f32.mrb[0].mxu0
  %2564 = vmatprep.mubr.bf16.mxu0 0
  %2565 = vmatmul.mubr.bf16.gmra.mrb[0].mxu0 %v2317
  %v2566 = vpop.f32.mrb[0].mxu0
  %v2567 = vadd.f32 0.0, %v2566
  %v2568 = vpop.f32.mrb[0].mxu0
  %v2569 = vpop.f32.mrb[0].mxu0
  %v2570 = vadd.f32 0.0, %v2569
  %v2571 = vpop.f32.mrb[0].mxu0
  %2572 = vmatprep.mubr.bf16.mxu0 0
  %2573 = vmatmul.mubr.bf16.gmra.mrb[0].mxu0 %v2320
  %v2574 = vpop.f32.mrb[0].mxu0
  %v2575 = vadd.f32 0.0, %v2574
  %v2576 = vpop.f32.mrb[0].mxu0
  %v2577 = vpop.f32.mrb[0].mxu0
  %v2578 = vadd.f32 0.0, %v2577
  %v2579 = vpop.f32.mrb[0].mxu0
  %2580 = vmatprep.mubr.bf16.mxu0 0
  %2581 = vmatmul.mubr.bf16.gmra.mrb[0].mxu0 %v2323
  %v2582 = vpop.f32.mrb[0].mxu0
  %v2583 = vadd.f32 0.0, %v2582
  %v2584 = vpop.f32.mrb[0].mxu0
  %v2585 = vpop.f32.mrb[0].mxu0
  %v2586 = vadd.f32 0.0, %v2585
  %v2587 = vpop.f32.mrb[0].mxu0
  %2588 = vmatprep.mubr.bf16.mxu0 0
  %2589 = vmatmul.mubr.bf16.gmra.mrb[0].mxu0 %v2326
  %v2590 = vpop.f32.mrb[0].mxu0
  %v2591 = vadd.f32 0.0, %v2590
  %v2592 = vpop.f32.mrb[0].mxu0
  %v2593 = vpop.f32.mrb[0].mxu0
  %v2594 = vadd.f32 0.0, %v2593
  %v2595 = vpop.f32.mrb[0].mxu0
  %2596 = vmatprep.mubr.bf16.mxu0 0
  %2597 = vmatmul.mubr.bf16.gmra.mrb[0].mxu0 %v2329
  %v2598 = vpop.f32.mrb[0].mxu0
  %v2599 = vadd.f32 0.0, %v2598
  %v2600 = vpop.f32.mrb[0].mxu0
  %v2601 = vpop.f32.mrb[0].mxu0
  %v2602 = vadd.f32 0.0, %v2601
  %v2603 = vpop.f32.mrb[0].mxu0
  %2604 = vmatprep.mubr.bf16.mxu0 0
  %2605 = vmatmul.mubr.bf16.gmra.mrb[0].mxu0 %v2332
  %v2606 = vpop.f32.mrb[0].mxu0
  %v2607 = vadd.f32 0.0, %v2606
  %v2608 = vpop.f32.mrb[0].mxu0
  %v2609 = vpop.f32.mrb[0].mxu0
  %v2610 = vadd.f32 0.0, %v2609
  %v2611 = vpop.f32.mrb[0].mxu0
  %2612 = vmatprep.mubr.bf16.mxu0 0
  %2613 = vmatmul.mubr.bf16.gmra.mrb[0].mxu0 %v2335
  %v2614 = vpop.f32.mrb[0].mxu0
  %v2615 = vadd.f32 0.0, %v2614
  %v2616 = vpop.f32.mrb[0].mxu0
  %v2617 = vpop.f32.mrb[0].mxu0
  %v2618 = vadd.f32 0.0, %v2617
  %v2619 = vpop.f32.mrb[0].mxu0
  %2620 = vmatprep.mubr.bf16.mxu0 0
  %2621 = vmatmul.mubr.bf16.gmra.mrb[0].mxu0 %v2338
  %v2622 = vpop.f32.mrb[0].mxu0
  %v2623 = vadd.f32 0.0, %v2622
  %v2624 = vpop.f32.mrb[0].mxu0
  %v2625 = vpop.f32.mrb[0].mxu0
  %v2626 = vadd.f32 0.0, %v2625
  %v2627 = vpop.f32.mrb[0].mxu0
  %2628 = vdwg.mxu0
  %v2629 = vmax.f32 %v1955, %v2375
  %v2630 = vmax.f32 %v1956, %v2378
  %v2631 = vmax.f32 %v1957, %v2383
  %v2632 = vmax.f32 %v1958, %v2386
  %v2633 = vmax.f32 %v1959, %v2391
  %v2634 = vmax.f32 %v1960, %v2394
  %v2635 = vmax.f32 %v1961, %v2399
  %v2636 = vmax.f32 %v1962, %v2402
  %v2637 = vmax.f32 %v1963, %v2407
  %v2638 = vmax.f32 %v1964, %v2410
  %v2639 = vmax.f32 %v1965, %v2415
  %v2640 = vmax.f32 %v1966, %v2418
  %v2641 = vmax.f32 %v1967, %v2423
  %v2642 = vmax.f32 %v1968, %v2426
  %v2643 = vmax.f32 %v1969, %v2431
  %v2644 = vmax.f32 %v1970, %v2434
  %v2645 = vmax.f32 %v1971, %v2439
  %v2646 = vmax.f32 %v1972, %v2442
  %v2647 = vmax.f32 %v1973, %v2447
  %v2648 = vmax.f32 %v1974, %v2450
  %v2649 = vmax.f32 %v1975, %v2455
  %v2650 = vmax.f32 %v1976, %v2458
  %v2651 = vmax.f32 %v1977, %v2463
  %v2652 = vmax.f32 %v1978, %v2466
  %v2653 = vmax.f32 %v1979, %v2471
  %v2654 = vmax.f32 %v1980, %v2474
  %v2655 = vmax.f32 %v1981, %v2479
  %v2656 = vmax.f32 %v1982, %v2482
  %v2657 = vmax.f32 %v1983, %v2487
  %v2658 = vmax.f32 %v1984, %v2490
  %v2659 = vmax.f32 %v1985, %v2495
  %v2660 = vmax.f32 %v1986, %v2498
  %v2661 = vmax.f32 %v1987, %v2503
  %v2662 = vmax.f32 %v1988, %v2506
  %v2663 = vmax.f32 %v1989, %v2511
  %v2664 = vmax.f32 %v1990, %v2514
  %v2665 = vmax.f32 %v1991, %v2519
  %v2666 = vmax.f32 %v1992, %v2522
  %v2667 = vmax.f32 %v1993, %v2527
  %v2668 = vmax.f32 %v1994, %v2530
  %v2669 = vmax.f32 %v1995, %v2535
  %v2670 = vmax.f32 %v1996, %v2538
  %v2671 = vmax.f32 %v1997, %v2543
  %v2672 = vmax.f32 %v1998, %v2546
  %v2673 = vmax.f32 %v1999, %v2551
  %v2674 = vmax.f32 %v2000, %v2554
  %v2675 = vmax.f32 %v2001, %v2559
  %v2676 = vmax.f32 %v2002, %v2562
  %v2677 = vmax.f32 %v2003, %v2567
  %v2678 = vmax.f32 %v2004, %v2570
  %v2679 = vmax.f32 %v2005, %v2575
  %v2680 = vmax.f32 %v2006, %v2578
  %v2681 = vmax.f32 %v2007, %v2583
  %v2682 = vmax.f32 %v2008, %v2586
  %v2683 = vmax.f32 %v2009, %v2591
  %v2684 = vmax.f32 %v2010, %v2594
  %v2685 = vmax.f32 %v2011, %v2599
  %v2686 = vmax.f32 %v2012, %v2602
  %v2687 = vmax.f32 %v2013, %v2607
  %v2688 = vmax.f32 %v2014, %v2610
  %v2689 = vmax.f32 %v2015, %v2615
  %v2690 = vmax.f32 %v2016, %v2618
  %v2691 = vmax.f32 %v2017, %v2623
  %v2692 = vmax.f32 %v2018, %v2626
  %v2693 = vld [vmem:[%s2] sm:$0x1]
  %v2695 = vlaneseq
  %v2696 = vshrl.u32 %v2695, 7
  %v2697 = vsub.s32 0, %v2696
  %v2698 = vrot.slane %v2693, %v2697
  %v2700 = vadd.f32 %v2629, %v2698
  %v2701 = vadd.f32 %v2630, %v2698
  %v2702 = vadd.f32 %v2631, %v2698
  %v2703 = vadd.f32 %v2632, %v2698
  %v2704 = vadd.f32 %v2633, %v2698
  %v2705 = vadd.f32 %v2634, %v2698
  %v2706 = vadd.f32 %v2635, %v2698
  %v2707 = vadd.f32 %v2636, %v2698
  %v2708 = vadd.f32 %v2637, %v2698
  %v2709 = vadd.f32 %v2638, %v2698
  %v2710 = vadd.f32 %v2639, %v2698
  %v2711 = vadd.f32 %v2640, %v2698
  %v2712 = vadd.f32 %v2641, %v2698
  %v2713 = vadd.f32 %v2642, %v2698
  %v2714 = vadd.f32 %v2643, %v2698
  %v2715 = vadd.f32 %v2644, %v2698
  %v2716 = vadd.f32 %v2645, %v2698
  %v2717 = vadd.f32 %v2646, %v2698
  %v2718 = vadd.f32 %v2647, %v2698
  %v2719 = vadd.f32 %v2648, %v2698
  %v2720 = vadd.f32 %v2649, %v2698
  %v2721 = vadd.f32 %v2650, %v2698
  %v2722 = vadd.f32 %v2651, %v2698
  %v2723 = vadd.f32 %v2652, %v2698
  %v2724 = vadd.f32 %v2653, %v2698
  %v2725 = vadd.f32 %v2654, %v2698
  %v2726 = vadd.f32 %v2655, %v2698
  %v2727 = vadd.f32 %v2656, %v2698
  %v2728 = vadd.f32 %v2657, %v2698
  %v2729 = vadd.f32 %v2658, %v2698
  %v2730 = vadd.f32 %v2659, %v2698
  %v2731 = vadd.f32 %v2660, %v2698
  %v2732 = vadd.f32 %v2661, %v2698
  %v2733 = vadd.f32 %v2662, %v2698
  %v2734 = vadd.f32 %v2663, %v2698
  %v2735 = vadd.f32 %v2664, %v2698
  %v2736 = vadd.f32 %v2665, %v2698
  %v2737 = vadd.f32 %v2666, %v2698
  %v2738 = vadd.f32 %v2667, %v2698
  %v2739 = vadd.f32 %v2668, %v2698
  %v2740 = vadd.f32 %v2669, %v2698
  %v2741 = vadd.f32 %v2670, %v2698
  %v2742 = vadd.f32 %v2671, %v2698
  %v2743 = vadd.f32 %v2672, %v2698
  %v2744 = vadd.f32 %v2673, %v2698
  %v2745 = vadd.f32 %v2674, %v2698
  %v2746 = vadd.f32 %v2675, %v2698
  %v2747 = vadd.f32 %v2676, %v2698
  %v2748 = vadd.f32 %v2677, %v2698
  %v2749 = vadd.f32 %v2678, %v2698
  %v2750 = vadd.f32 %v2679, %v2698
  %v2751 = vadd.f32 %v2680, %v2698
  %v2752 = vadd.f32 %v2681, %v2698
  %v2753 = vadd.f32 %v2682, %v2698
  %v2754 = vadd.f32 %v2683, %v2698
  %v2755 = vadd.f32 %v2684, %v2698
  %v2756 = vadd.f32 %v2685, %v2698
  %v2757 = vadd.f32 %v2686, %v2698
  %v2758 = vadd.f32 %v2687, %v2698
  %v2759 = vadd.f32 %v2688, %v2698
  %v2760 = vadd.f32 %v2689, %v2698
  %v2761 = vadd.f32 %v2690, %v2698
  %v2762 = vadd.f32 %v2691, %v2698
  %v2763 = vadd.f32 %v2692, %v2698
  %v2764 = vmax.f32 %v2700, 0.0
  %v2765 = vmax.f32 %v2701, 0.0
  %v2766 = vmax.f32 %v2702, 0.0
  %v2767 = vmax.f32 %v2703, 0.0
  %v2768 = vmax.f32 %v2704, 0.0
  %v2769 = vmax.f32 %v2705, 0.0
  %v2770 = vmax.f32 %v2706, 0.0
  %v2771 = vmax.f32 %v2707, 0.0
  %v2772 = vmax.f32 %v2708, 0.0
  %v2773 = vmax.f32 %v2709, 0.0
  %v2774 = vmax.f32 %v2710, 0.0
  %v2775 = vmax.f32 %v2711, 0.0
  %v2776 = vmax.f32 %v2712, 0.0
  %v2777 = vmax.f32 %v2713, 0.0
  %v2778 = vmax.f32 %v2714, 0.0
  %v2779 = vmax.f32 %v2715, 0.0
  %v2780 = vmax.f32 %v2716, 0.0
  %v2781 = vmax.f32 %v2717, 0.0
  %v2782 = vmax.f32 %v2718, 0.0
  %v2783 = vmax.f32 %v2719, 0.0
  %v2784 = vmax.f32 %v2720, 0.0
  %v2785 = vmax.f32 %v2721, 0.0
  %v2786 = vmax.f32 %v2722, 0.0
  %v2787 = vmax.f32 %v2723, 0.0
  %v2788 = vmax.f32 %v2724, 0.0
  %v2789 = vmax.f32 %v2725, 0.0
  %v2790 = vmax.f32 %v2726, 0.0
  %v2791 = vmax.f32 %v2727, 0.0
  %v2792 = vmax.f32 %v2728, 0.0
  %v2793 = vmax.f32 %v2729, 0.0
  %v2794 = vmax.f32 %v2730, 0.0
  %v2795 = vmax.f32 %v2731, 0.0
  %v2796 = vmax.f32 %v2732, 0.0
  %v2797 = vmax.f32 %v2733, 0.0
  %v2798 = vmax.f32 %v2734, 0.0
  %v2799 = vmax.f32 %v2735, 0.0
  %v2800 = vmax.f32 %v2736, 0.0
  %v2801 = vmax.f32 %v2737, 0.0
  %v2802 = vmax.f32 %v2738, 0.0
  %v2803 = vmax.f32 %v2739, 0.0
  %v2804 = vmax.f32 %v2740, 0.0
  %v2805 = vmax.f32 %v2741, 0.0
  %v2806 = vmax.f32 %v2742, 0.0
  %v2807 = vmax.f32 %v2743, 0.0
  %v2808 = vmax.f32 %v2744, 0.0
  %v2809 = vmax.f32 %v2745, 0.0
  %v2810 = vmax.f32 %v2746, 0.0
  %v2811 = vmax.f32 %v2747, 0.0
  %v2812 = vmax.f32 %v2748, 0.0
  %v2813 = vmax.f32 %v2749, 0.0
  %v2814 = vmax.f32 %v2750, 0.0
  %v2815 = vmax.f32 %v2751, 0.0
  %v2816 = vmax.f32 %v2752, 0.0
  %v2817 = vmax.f32 %v2753, 0.0
  %v2818 = vmax.f32 %v2754, 0.0
  %v2819 = vmax.f32 %v2755, 0.0
  %v2820 = vmax.f32 %v2756, 0.0
  %v2821 = vmax.f32 %v2757, 0.0
  %v2822 = vmax.f32 %v2758, 0.0
  %v2823 = vmax.f32 %v2759, 0.0
  %v2824 = vmax.f32 %v2760, 0.0
  %v2825 = vmax.f32 %v2761, 0.0
  %v2826 = vmax.f32 %v2762, 0.0
  %v2827 = vmax.f32 %v2763, 0.0
  %vm2828 = vcmask 244736
  %2829 = vst.msk [vmem:[%s3] sm:$0xff] %vm2828, %v2764
  %2830 = vst.msk [vmem:[%s3 + $0x8] sm:$0xff] %vm2828, %v2765
  %2831 = vst.msk [vmem:[%s3 + $0x10] sm:$0xff] %vm2828, %v2766
  %2832 = vst.msk [vmem:[%s3 + $0x18] sm:$0xff] %vm2828, %v2767
  %2833 = vst.msk [vmem:[%s3 + $0x20] sm:$0xff] %vm2828, %v2768
  %2834 = vst.msk [vmem:[%s3 + $0x28] sm:$0xff] %vm2828, %v2769
  %2835 = vst.msk [vmem:[%s3 + $0x30] sm:$0xff] %vm2828, %v2770
  %2836 = vst.msk [vmem:[%s3 + $0x38] sm:$0xff] %vm2828, %v2771
  %2837 = vst.msk [vmem:[%s3 + $0x40] sm:$0xff] %vm2828, %v2772
  %2838 = vst.msk [vmem:[%s3 + $0x48] sm:$0xff] %vm2828, %v2773
  %2839 = vst.msk [vmem:[%s3 + $0x50] sm:$0xff] %vm2828, %v2774
  %2840 = vst.msk [vmem:[%s3 + $0x58] sm:$0xff] %vm2828, %v2775
  %2841 = vst.msk [vmem:[%s3 + $0x60] sm:$0xff] %vm2828, %v2776
  %2842 = vst.msk [vmem:[%s3 + $0x68] sm:$0xff] %vm2828, %v2777
  %2843 = vst.msk [vmem:[%s3 + $0x70] sm:$0xff] %vm2828, %v2778
  %2844 = vst.msk [vmem:[%s3 + $0x78] sm:$0xff] %vm2828, %v2779
  %2845 = vst.msk [vmem:[%s3 + $0x80] sm:$0xff] %vm2828, %v2780
  %2846 = vst.msk [vmem:[%s3 + $0x88] sm:$0xff] %vm2828, %v2781
  %2847 = vst.msk [vmem:[%s3 + $0x90] sm:$0xff] %vm2828, %v2782
  %2848 = vst.msk [vmem:[%s3 + $0x98] sm:$0xff] %vm2828, %v2783
  %2849 = vst.msk [vmem:[%s3 + $0xa0] sm:$0xff] %vm2828, %v2784
  %2850 = vst.msk [vmem:[%s3 + $0xa8] sm:$0xff] %vm2828, %v2785
  %2851 = vst.msk [vmem:[%s3 + $0xb0] sm:$0xff] %vm2828, %v2786
  %2852 = vst.msk [vmem:[%s3 + $0xb8] sm:$0xff] %vm2828, %v2787
  %2853 = vst.msk [vmem:[%s3 + $0xc0] sm:$0xff] %vm2828, %v2788
  %2854 = vst.msk [vmem:[%s3 + $0xc8] sm:$0xff] %vm2828, %v2789
  %2855 = vst.msk [vmem:[%s3 + $0xd0] sm:$0xff] %vm2828, %v2790
  %2856 = vst.msk [vmem:[%s3 + $0xd8] sm:$0xff] %vm2828, %v2791
  %2857 = vst.msk [vmem:[%s3 + $0xe0] sm:$0xff] %vm2828, %v2792
  %2858 = vst.msk [vmem:[%s3 + $0xe8] sm:$0xff] %vm2828, %v2793
  %2859 = vst.msk [vmem:[%s3 + $0xf0] sm:$0xff] %vm2828, %v2794
  %2860 = vst.msk [vmem:[%s3 + $0xf8] sm:$0xff] %vm2828, %v2795
  %2861 = vst.msk [vmem:[%s3 + $0x100] sm:$0xff] %vm2828, %v2796
  %2862 = vst.msk [vmem:[%s3 + $0x108] sm:$0xff] %vm2828, %v2797
  %2863 = vst.msk [vmem:[%s3 + $0x110] sm:$0xff] %vm2828, %v2798
  %2864 = vst.msk [vmem:[%s3 + $0x118] sm:$0xff] %vm2828, %v2799
  %2865 = vst.msk [vmem:[%s3 + $0x120] sm:$0xff] %vm2828, %v2800
  %2866 = vst.msk [vmem:[%s3 + $0x128] sm:$0xff] %vm2828, %v2801
  %2867 = vst.msk [vmem:[%s3 + $0x130] sm:$0xff] %vm2828, %v2802
  %2868 = vst.msk [vmem:[%s3 + $0x138] sm:$0xff] %vm2828, %v2803
  %2869 = vst.msk [vmem:[%s3 + $0x140] sm:$0xff] %vm2828, %v2804
  %2870 = vst.msk [vmem:[%s3 + $0x148] sm:$0xff] %vm2828, %v2805
  %2871 = vst.msk [vmem:[%s3 + $0x150] sm:$0xff] %vm2828, %v2806
  %2872 = vst.msk [vmem:[%s3 + $0x158] sm:$0xff] %vm2828, %v2807
  %2873 = vst.msk [vmem:[%s3 + $0x160] sm:$0xff] %vm2828, %v2808
  %2874 = vst.msk [vmem:[%s3 + $0x168] sm:$0xff] %vm2828, %v2809
  %2875 = vst.msk [vmem:[%s3 + $0x170] sm:$0xff] %vm2828, %v2810
  %2876 = vst.msk [vmem:[%s3 + $0x178] sm:$0xff] %vm2828, %v2811
  %2877 = vst.msk [vmem:[%s3 + $0x180] sm:$0xff] %vm2828, %v2812
  %2878 = vst.msk [vmem:[%s3 + $0x188] sm:$0xff] %vm2828, %v2813
  %2879 = vst.msk [vmem:[%s3 + $0x190] sm:$0xff] %vm2828, %v2814
  %2880 = vst.msk [vmem:[%s3 + $0x198] sm:$0xff] %vm2828, %v2815
  %2881 = vst.msk [vmem:[%s3 + $0x1a0] sm:$0xff] %vm2828, %v2816
  %2882 = vst.msk [vmem:[%s3 + $0x1a8] sm:$0xff] %vm2828, %v2817
  %2883 = vst.msk [vmem:[%s3 + $0x1b0] sm:$0xff] %vm2828, %v2818
  %2884 = vst.msk [vmem:[%s3 + $0x1b8] sm:$0xff] %vm2828, %v2819
  %2885 = vst.msk [vmem:[%s3 + $0x1c0] sm:$0xff] %vm2828, %v2820
  %2886 = vst.msk [vmem:[%s3 + $0x1c8] sm:$0xff] %vm2828, %v2821
  %2887 = vst.msk [vmem:[%s3 + $0x1d0] sm:$0xff] %vm2828, %v2822
  %2888 = vst.msk [vmem:[%s3 + $0x1d8] sm:$0xff] %vm2828, %v2823
  %2889 = vst.msk [vmem:[%s3 + $0x1e0] sm:$0xff] %vm2828, %v2824
  %2890 = vst.msk [vmem:[%s3 + $0x1e8] sm:$0xff] %vm2828, %v2825
  %2891 = vst.msk [vmem:[%s3 + $0x1f0] sm:$0xff] %vm2828, %v2826
  %2892 = vst.msk [vmem:[%s3 + $0x1f8] sm:$0xff] %vm2828, %v2827
  // Predicated region
  $region14: #{cnn_cifar_forward.4} parent=0 // pred_check
    _
  $region15: #{cnn_cifar_forward.4} parent=0 // pred_check_branch
    %2894 = sbr.rel (0) target = $region17
  $region16: #{cnn_cifar_forward.4} parent=0 // pred_region
    _
  $region17: #{cnn_cifar_forward.4} parent=0 // pred_fallthru
    _
  // Predicated region
  $region18: #{cnn_cifar_forward.4} parent=0 // pred_check
    _
  $region19: #{cnn_cifar_forward.4} parent=0 // pred_check_branch
    %2896 = sbr.rel (0) target = $region21
  $region20: #{cnn_cifar_forward.4} parent=0 // pred_region
    _
  $region21: #{cnn_cifar_forward.4} parent=0 // pred_fallthru
    _

// kernel: cnn_cifar_forward.5
$region0: #{cnn_cifar_forward.5}
  #allocation0 [shape = 'u32[]', space=smem, size = 0x4, offset = 0x4, fixed_abs, tag = 'smem constant byte address 0x4 - core index']
  #allocation1 [shape = 'u32[144,128]{1,0:T(1,128)}', space=vmem, size = 0x12000, scoped, tag = 'internal scratch']
  %s0 = inlined_call_operand.vmem [shape: bf16[4,128,750], index: 0, kind: input, shape index: {}]
  %s1 = inlined_call_operand.vmem [shape: bf16[750,40], index: 1, kind: input, shape index: {}]
  %s2 = inlined_call_operand.vmem [shape: f32[1,40], index: 2, kind: input, shape index: {}]
  %s3 = inlined_call_operand.vmem [shape: f32[128,40], index: 3, kind: output, shape index: {}]
  %s4 = sld [smem:[#allocation0]]
  $region22: #{cnn_cifar_forward.5} parent=0
    _
  %s6 = ssub.s32 1, %s4
  %s7 = scalar_select 0, %s6, %s4
  // Predicated region
  $region2: #{cnn_cifar_forward.5} parent=0 // pred_check
    _
  $region3: #{cnn_cifar_forward.5} parent=0 // pred_check_branch
    %9 = sbr.rel (0) target = $region5
  $region4: #{cnn_cifar_forward.5} parent=0 // pred_region
    _
  $region5: #{cnn_cifar_forward.5} parent=0 // pred_fallthru
    _
  // Predicated region
  $region6: #{cnn_cifar_forward.5} parent=0 // pred_check
    _
  $region7: #{cnn_cifar_forward.5} parent=0 // pred_check_branch
    %11 = sbr.rel (0) target = $region9
  $region8: #{cnn_cifar_forward.5} parent=0 // pred_region
    _
  $region9: #{cnn_cifar_forward.5} parent=0 // pred_fallthru
    _
  // Predicated region
  $region10: #{cnn_cifar_forward.5} parent=0 // pred_check
    _
  $region11: #{cnn_cifar_forward.5} parent=0 // pred_check_branch
    %13 = sbr.rel (0) target = $region13
  $region12: #{cnn_cifar_forward.5} parent=0 // pred_region
    _
  $region13: #{cnn_cifar_forward.5} parent=0 // pred_fallthru
    _
  %v15 = vld [vmem:[%s1] sm:$0xf]
  %v16 = vld [vmem:[%s1 + $0x4] sm:$0xf]
  %v17 = vld [vmem:[%s1 + $0x8] sm:$0xf]
  %v18 = vld [vmem:[%s1 + $0xc] sm:$0xf]
  %v19 = vld [vmem:[%s1 + $0x10] sm:$0xf]
  %v20 = vld [vmem:[%s1 + $0x14] sm:$0xf]
  %v21 = vld [vmem:[%s1 + $0x18] sm:$0xf]
  %v22 = vld [vmem:[%s1 + $0x1c] sm:$0xf]
  %v23 = vld [vmem:[%s1 + $0x20] sm:$0xf]
  %v24 = vld [vmem:[%s1 + $0x24] sm:$0xf]
  %v25 = vld [vmem:[%s1 + $0x28] sm:$0xf]
  %v26 = vld [vmem:[%s1 + $0x2c] sm:$0xf]
  %v27 = vld [vmem:[%s1 + $0x30] sm:$0xf]
  %v28 = vld [vmem:[%s1 + $0x34] sm:$0xf]
  %v29 = vld [vmem:[%s1 + $0x38] sm:$0xf]
  %v30 = vld [vmem:[%s1 + $0x3c] sm:$0xf]
  %v31 = vld [vmem:[%s1 + $0x40] sm:$0xf]
  %v32 = vld [vmem:[%s1 + $0x44] sm:$0xf]
  %v33 = vld [vmem:[%s1 + $0x48] sm:$0xf]
  %v34 = vld [vmem:[%s1 + $0x4c] sm:$0xf]
  %v35 = vld [vmem:[%s1 + $0x50] sm:$0xf]
  %v36 = vld [vmem:[%s1 + $0x54] sm:$0xf]
  %v37 = vld [vmem:[%s1 + $0x58] sm:$0xf]
  %v38 = vld [vmem:[%s1 + $0x5c] sm:$0xf]
  %v39 = vld [vmem:[%s1 + $0x60] sm:$0xf]
  %v40 = vld [vmem:[%s1 + $0x64] sm:$0xf]
  %v41 = vld [vmem:[%s1 + $0x68] sm:$0xf]
  %v42 = vld [vmem:[%s1 + $0x6c] sm:$0xf]
  %v43 = vld [vmem:[%s1 + $0x70] sm:$0xf]
  %v44 = vld [vmem:[%s1 + $0x74] sm:$0xf]
  %v45 = vld [vmem:[%s1 + $0x78] sm:$0xf]
  %v46 = vld [vmem:[%s1 + $0x7c] sm:$0xf]
  %v47 = vld [vmem:[%s1 + $0x80] sm:$0xf]
  %v48 = vld [vmem:[%s1 + $0x84] sm:$0xf]
  %v49 = vld [vmem:[%s1 + $0x88] sm:$0xf]
  %v50 = vld [vmem:[%s1 + $0x8c] sm:$0xf]
  %v51 = vld [vmem:[%s1 + $0x90] sm:$0xf]
  %v52 = vld [vmem:[%s1 + $0x94] sm:$0xf]
  %v53 = vld [vmem:[%s1 + $0x98] sm:$0xf]
  %v54 = vld [vmem:[%s1 + $0x9c] sm:$0xf]
  %v55 = vld [vmem:[%s1 + $0xa0] sm:$0xf]
  %v56 = vld [vmem:[%s1 + $0xa4] sm:$0xf]
  %v57 = vld [vmem:[%s1 + $0xa8] sm:$0xf]
  %v58 = vld [vmem:[%s1 + $0xac] sm:$0xf]
  %v59 = vld [vmem:[%s1 + $0xb0] sm:$0xf]
  %v60 = vld [vmem:[%s1 + $0xb4] sm:$0xf]
  %v61 = vld [vmem:[%s1 + $0xb8] sm:$0xf]
  %v62 = vld [vmem:[%s1 + $0xbc] sm:$0xf]
  %v63 = vld [vmem:[%s1 + $0xc0] sm:$0xf]
  %v64 = vld [vmem:[%s1 + $0xc4] sm:$0xf]
  %v65 = vld [vmem:[%s1 + $0xc8] sm:$0xf]
  %v66 = vld [vmem:[%s1 + $0xcc] sm:$0xf]
  %v67 = vld [vmem:[%s1 + $0xd0] sm:$0xf]
  %v68 = vld [vmem:[%s1 + $0xd4] sm:$0xf]
  %v69 = vld [vmem:[%s1 + $0xd8] sm:$0xf]
  %v70 = vld [vmem:[%s1 + $0xdc] sm:$0xf]
  %v71 = vld [vmem:[%s1 + $0xe0] sm:$0xf]
  %v72 = vld [vmem:[%s1 + $0xe4] sm:$0xf]
  %v73 = vld [vmem:[%s1 + $0xe8] sm:$0xf]
  %v74 = vld [vmem:[%s1 + $0xec] sm:$0xf]
  %v75 = vld [vmem:[%s1 + $0xf0] sm:$0xf]
  %v76 = vld [vmem:[%s1 + $0xf4] sm:$0xf]
  %v77 = vld [vmem:[%s1 + $0xf8] sm:$0xf]
  %v78 = vld [vmem:[%s1 + $0xfc] sm:$0xf]
  %v79 = vld [vmem:[%s1 + $0x100] sm:$0xf]
  %v80 = vld [vmem:[%s1 + $0x104] sm:$0xf]
  %v81 = vld [vmem:[%s1 + $0x108] sm:$0xf]
  %v82 = vld [vmem:[%s1 + $0x10c] sm:$0xf]
  %v83 = vld [vmem:[%s1 + $0x110] sm:$0xf]
  %v84 = vld [vmem:[%s1 + $0x114] sm:$0xf]
  %v85 = vld [vmem:[%s1 + $0x118] sm:$0xf]
  %v86 = vld [vmem:[%s1 + $0x11c] sm:$0xf]
  %v87 = vld [vmem:[%s1 + $0x120] sm:$0xf]
  %v88 = vld [vmem:[%s1 + $0x124] sm:$0xf]
  %v89 = vld [vmem:[%s1 + $0x128] sm:$0xf]
  %v90 = vld [vmem:[%s1 + $0x12c] sm:$0xf]
  %v91 = vld [vmem:[%s1 + $0x130] sm:$0xf]
  %v92 = vld [vmem:[%s1 + $0x134] sm:$0xf]
  %v93 = vld [vmem:[%s1 + $0x138] sm:$0xf]
  %v94 = vld [vmem:[%s1 + $0x13c] sm:$0xf]
  %v95 = vld [vmem:[%s1 + $0x140] sm:$0xf]
  %v96 = vld [vmem:[%s1 + $0x144] sm:$0xf]
  %v97 = vld [vmem:[%s1 + $0x148] sm:$0xf]
  %v98 = vld [vmem:[%s1 + $0x14c] sm:$0xf]
  %v99 = vld [vmem:[%s1 + $0x150] sm:$0xf]
  %v100 = vld [vmem:[%s1 + $0x154] sm:$0xf]
  %v101 = vld [vmem:[%s1 + $0x158] sm:$0xf]
  %v102 = vld [vmem:[%s1 + $0x15c] sm:$0xf]
  %v103 = vld [vmem:[%s1 + $0x160] sm:$0xf]
  %v104 = vld [vmem:[%s1 + $0x164] sm:$0xf]
  %v105 = vld [vmem:[%s1 + $0x168] sm:$0xf]
  %v106 = vld [vmem:[%s1 + $0x16c] sm:$0xf]
  %v107 = vld [vmem:[%s1 + $0x170] sm:$0xf]
  %v108 = vld [vmem:[%s1 + $0x174] sm:$0x7]
  %v109 = vld [vmem:[%s0] sm:$0xff]
  %v110 = vld [vmem:[%s0 + $0x8] sm:$0xff]
  %v111 = vld [vmem:[%s0 + $0x10] sm:$0xff]
  %v112 = vld [vmem:[%s0 + $0x18] sm:$0xff]
  %v113 = vld [vmem:[%s0 + $0x20] sm:$0xff]
  %v114 = vld [vmem:[%s0 + $0x28] sm:$0xff]
  %v115 = vld [vmem:[%s0 + $0x30] sm:$0xff]
  %v116 = vld [vmem:[%s0 + $0x38] sm:$0xff]
  %v117 = vld [vmem:[%s0 + $0x40] sm:$0xff]
  %v118 = vld [vmem:[%s0 + $0x48] sm:$0xff]
  %v119 = vld [vmem:[%s0 + $0x50] sm:$0xff]
  %v120 = vld [vmem:[%s0 + $0x58] sm:$0xff]
  %v121 = vld [vmem:[%s0 + $0x60] sm:$0xff]
  %v122 = vld [vmem:[%s0 + $0x68] sm:$0xff]
  %v123 = vld [vmem:[%s0 + $0x70] sm:$0xff]
  %v124 = vld [vmem:[%s0 + $0x78] sm:$0xff]
  %v125 = vld [vmem:[%s0 + $0x80] sm:$0xff]
  %v126 = vld [vmem:[%s0 + $0x88] sm:$0xff]
  %v127 = vld [vmem:[%s0 + $0x90] sm:$0xff]
  %v128 = vld [vmem:[%s0 + $0x98] sm:$0xff]
  %v129 = vld [vmem:[%s0 + $0xa0] sm:$0xff]
  %v130 = vld [vmem:[%s0 + $0xa8] sm:$0xff]
  %v131 = vld [vmem:[%s0 + $0xb0] sm:$0xff]
  %v132 = vld [vmem:[%s0 + $0xb8] sm:$0xff]
  %v133 = vld [vmem:[%s0 + $0xc0] sm:$0xff]
  %v134 = vld [vmem:[%s0 + $0xc8] sm:$0xff]
  %v135 = vld [vmem:[%s0 + $0xd0] sm:$0xff]
  %v136 = vld [vmem:[%s0 + $0xd8] sm:$0xff]
  %v137 = vld [vmem:[%s0 + $0xe0] sm:$0xff]
  %v138 = vld [vmem:[%s0 + $0xe8] sm:$0xff]
  %v139 = vld [vmem:[%s0 + $0xf0] sm:$0xff]
  %v140 = vld [vmem:[%s0 + $0xf8] sm:$0xff]
  %v141 = vld [vmem:[%s0 + $0x100] sm:$0xff]
  %v142 = vld [vmem:[%s0 + $0x108] sm:$0xff]
  %v143 = vld [vmem:[%s0 + $0x110] sm:$0xff]
  %v144 = vld [vmem:[%s0 + $0x118] sm:$0xff]
  %v145 = vld [vmem:[%s0 + $0x120] sm:$0xff]
  %v146 = vld [vmem:[%s0 + $0x128] sm:$0xff]
  %v147 = vld [vmem:[%s0 + $0x130] sm:$0xff]
  %v148 = vld [vmem:[%s0 + $0x138] sm:$0xff]
  %v149 = vld [vmem:[%s0 + $0x140] sm:$0xff]
  %v150 = vld [vmem:[%s0 + $0x148] sm:$0xff]
  %v151 = vld [vmem:[%s0 + $0x150] sm:$0xff]
  %v152 = vld [vmem:[%s0 + $0x158] sm:$0xff]
  %v153 = vld [vmem:[%s0 + $0x160] sm:$0xff]
  %v154 = vld [vmem:[%s0 + $0x168] sm:$0xff]
  %v155 = vld [vmem:[%s0 + $0x170] sm:$0xff]
  %v156 = vld [vmem:[%s0 + $0x178] sm:$0xff]
  %v205 = vunpack.c.l.b16 %v109
  %v206 = vunpack.c.h.b16 %v109
  %v207 = vunpack.c.l.b16 %v110
  %v208 = vunpack.c.h.b16 %v110
  %v209 = vunpack.c.l.b16 %v111
  %v210 = vunpack.c.h.b16 %v111
  %v211 = vunpack.c.l.b16 %v112
  %v212 = vunpack.c.h.b16 %v112
  %v213 = vunpack.c.l.b16 %v113
  %v214 = vunpack.c.h.b16 %v113
  %v215 = vunpack.c.l.b16 %v114
  %v216 = vunpack.c.h.b16 %v114
  %v217 = vunpack.c.l.b16 %v115
  %v218 = vunpack.c.h.b16 %v115
  %v219 = vunpack.c.l.b16 %v116
  %v220 = vunpack.c.h.b16 %v116
  %v221 = vunpack.c.l.b16 %v117
  %v222 = vunpack.c.h.b16 %v117
  %v223 = vunpack.c.l.b16 %v118
  %v224 = vunpack.c.h.b16 %v118
  %v225 = vunpack.c.l.b16 %v119
  %v226 = vunpack.c.h.b16 %v119
  %v227 = vunpack.c.l.b16 %v120
  %v228 = vunpack.c.h.b16 %v120
  %v229 = vunpack.c.l.b16 %v121
  %v230 = vunpack.c.h.b16 %v121
  %v231 = vunpack.c.l.b16 %v122
  %v232 = vunpack.c.h.b16 %v122
  %v233 = vunpack.c.l.b16 %v123
  %v234 = vunpack.c.h.b16 %v123
  %v235 = vunpack.c.l.b16 %v124
  %v236 = vunpack.c.h.b16 %v124
  %v237 = vunpack.c.l.b16 %v125
  %v238 = vunpack.c.h.b16 %v125
  %v239 = vunpack.c.l.b16 %v126
  %v240 = vunpack.c.h.b16 %v126
  %v241 = vunpack.c.l.b16 %v127
  %v242 = vunpack.c.h.b16 %v127
  %v243 = vunpack.c.l.b16 %v128
  %v244 = vunpack.c.h.b16 %v128
  %v245 = vunpack.c.l.b16 %v129
  %v246 = vunpack.c.h.b16 %v129
  %v247 = vunpack.c.l.b16 %v130
  %v248 = vunpack.c.h.b16 %v130
  %v249 = vunpack.c.l.b16 %v131
  %v250 = vunpack.c.h.b16 %v131
  %v251 = vunpack.c.l.b16 %v132
  %v252 = vunpack.c.h.b16 %v132
  %v253 = vunpack.c.l.b16 %v133
  %v254 = vunpack.c.h.b16 %v133
  %v255 = vunpack.c.l.b16 %v134
  %v256 = vunpack.c.h.b16 %v134
  %v257 = vunpack.c.l.b16 %v135
  %v258 = vunpack.c.h.b16 %v135
  %v259 = vunpack.c.l.b16 %v136
  %v260 = vunpack.c.h.b16 %v136
  %v261 = vunpack.c.l.b16 %v137
  %v262 = vunpack.c.h.b16 %v137
  %v263 = vunpack.c.l.b16 %v138
  %v264 = vunpack.c.h.b16 %v138
  %v265 = vunpack.c.l.b16 %v139
  %v266 = vunpack.c.h.b16 %v139
  %v267 = vunpack.c.l.b16 %v140
  %v268 = vunpack.c.h.b16 %v140
  %v269 = vunpack.c.l.b16 %v141
  %v270 = vunpack.c.h.b16 %v141
  %v271 = vunpack.c.l.b16 %v142
  %v272 = vunpack.c.h.b16 %v142
  %v273 = vunpack.c.l.b16 %v143
  %v274 = vunpack.c.h.b16 %v143
  %v275 = vunpack.c.l.b16 %v144
  %v276 = vunpack.c.h.b16 %v144
  %v277 = vunpack.c.l.b16 %v145
  %v278 = vunpack.c.h.b16 %v145
  %v279 = vunpack.c.l.b16 %v146
  %v280 = vunpack.c.h.b16 %v146
  %v281 = vunpack.c.l.b16 %v147
  %v282 = vunpack.c.h.b16 %v147
  %v283 = vunpack.c.l.b16 %v148
  %v284 = vunpack.c.h.b16 %v148
  %v285 = vunpack.c.l.b16 %v149
  %v286 = vunpack.c.h.b16 %v149
  %v287 = vunpack.c.l.b16 %v150
  %v288 = vunpack.c.h.b16 %v150
  %v289 = vunpack.c.l.b16 %v151
  %v290 = vunpack.c.h.b16 %v151
  %v291 = vunpack.c.l.b16 %v152
  %v292 = vunpack.c.h.b16 %v152
  %v293 = vunpack.c.l.b16 %v153
  %v294 = vunpack.c.h.b16 %v153
  %v295 = vunpack.c.l.b16 %v154
  %v296 = vunpack.c.h.b16 %v154
  %v297 = vunpack.c.l.b16 %v155
  %v298 = vunpack.c.h.b16 %v155
  %v299 = vunpack.c.l.b16 %v156
  %v300 = vunpack.c.h.b16 %v156
  %v301 = vpack.c.b16 %v211, %v205
  %v302 = vpack.c.b16 %v212, %v206
  %v303 = vpack.c.b16 %v213, %v207
  %v304 = vpack.c.b16 %v214, %v208
  %v305 = vpack.c.b16 %v215, %v209
  %v306 = vpack.c.b16 %v216, %v210
  %v307 = vpack.c.b16 %v223, %v217
  %v308 = vpack.c.b16 %v224, %v218
  %v309 = vpack.c.b16 %v225, %v219
  %v310 = vpack.c.b16 %v226, %v220
  %v311 = vpack.c.b16 %v227, %v221
  %v312 = vpack.c.b16 %v228, %v222
  %v313 = vpack.c.b16 %v235, %v229
  %v314 = vpack.c.b16 %v236, %v230
  %v315 = vpack.c.b16 %v237, %v231
  %v316 = vpack.c.b16 %v238, %v232
  %v317 = vpack.c.b16 %v239, %v233
  %v318 = vpack.c.b16 %v240, %v234
  %v319 = vpack.c.b16 %v247, %v241
  %v320 = vpack.c.b16 %v248, %v242
  %v321 = vpack.c.b16 %v249, %v243
  %v322 = vpack.c.b16 %v250, %v244
  %v323 = vpack.c.b16 %v251, %v245
  %v324 = vpack.c.b16 %v252, %v246
  %v325 = vpack.c.b16 %v259, %v253
  %v326 = vpack.c.b16 %v260, %v254
  %v327 = vpack.c.b16 %v261, %v255
  %v328 = vpack.c.b16 %v262, %v256
  %v329 = vpack.c.b16 %v263, %v257
  %v330 = vpack.c.b16 %v264, %v258
  %v331 = vpack.c.b16 %v271, %v265
  %v332 = vpack.c.b16 %v272, %v266
  %v333 = vpack.c.b16 %v273, %v267
  %v334 = vpack.c.b16 %v274, %v268
  %v335 = vpack.c.b16 %v275, %v269
  %v336 = vpack.c.b16 %v276, %v270
  %v337 = vpack.c.b16 %v283, %v277
  %v338 = vpack.c.b16 %v284, %v278
  %v339 = vpack.c.b16 %v285, %v279
  %v340 = vpack.c.b16 %v286, %v280
  %v341 = vpack.c.b16 %v287, %v281
  %v342 = vpack.c.b16 %v288, %v282
  %v343 = vpack.c.b16 %v295, %v289
  %v344 = vpack.c.b16 %v296, %v290
  %v345 = vpack.c.b16 %v297, %v291
  %v346 = vpack.c.b16 %v298, %v292
  %v347 = vpack.c.b16 %v299, %v293
  %v348 = vpack.c.b16 %v300, %v294
  %v483 = vunpack.c.l.b16 %v15
  %v484 = vunpack.c.l.b16 %v16
  %v485 = vunpack.c.l.b16 %v17
  %v486 = vunpack.c.l.b16 %v18
  %v487 = vunpack.c.l.b16 %v19
  %v488 = vunpack.c.l.b16 %v20
  %v489 = vunpack.c.l.b16 %v21
  %v490 = vunpack.c.l.b16 %v22
  %v491 = vunpack.c.l.b16 %v23
  %v492 = vunpack.c.l.b16 %v24
  %v493 = vunpack.c.l.b16 %v25
  %v494 = vunpack.c.l.b16 %v26
  %v495 = vunpack.c.l.b16 %v27
  %v496 = vunpack.c.l.b16 %v28
  %v497 = vunpack.c.l.b16 %v29
  %v498 = vunpack.c.l.b16 %v30
  %v499 = vunpack.c.l.b16 %v31
  %v500 = vunpack.c.l.b16 %v32
  %v501 = vunpack.c.l.b16 %v33
  %v502 = vunpack.c.l.b16 %v34
  %v503 = vunpack.c.l.b16 %v35
  %v504 = vunpack.c.l.b16 %v36
  %v505 = vunpack.c.l.b16 %v37
  %v506 = vunpack.c.l.b16 %v38
  %v507 = vunpack.c.l.b16 %v39
  %v508 = vunpack.c.l.b16 %v40
  %v509 = vunpack.c.l.b16 %v41
  %v510 = vunpack.c.l.b16 %v42
  %v511 = vunpack.c.l.b16 %v43
  %v512 = vunpack.c.l.b16 %v44
  %v513 = vunpack.c.l.b16 %v45
  %v514 = vunpack.c.l.b16 %v46
  %v515 = vunpack.c.l.b16 %v47
  %v516 = vunpack.c.l.b16 %v48
  %v517 = vunpack.c.l.b16 %v49
  %v518 = vunpack.c.l.b16 %v50
  %v519 = vunpack.c.l.b16 %v51
  %v520 = vunpack.c.l.b16 %v52
  %v521 = vunpack.c.l.b16 %v53
  %v522 = vunpack.c.l.b16 %v54
  %v523 = vunpack.c.l.b16 %v55
  %v524 = vunpack.c.l.b16 %v56
  %v525 = vunpack.c.l.b16 %v57
  %v526 = vunpack.c.l.b16 %v58
  %v527 = vunpack.c.l.b16 %v59
  %v528 = vunpack.c.l.b16 %v60
  %v529 = vunpack.c.l.b16 %v61
  %v530 = vunpack.c.l.b16 %v62
  %v531 = vunpack.c.l.b16 %v63
  %v532 = vunpack.c.l.b16 %v64
  %v533 = vunpack.c.l.b16 %v65
  %v534 = vunpack.c.l.b16 %v66
  %v535 = vunpack.c.l.b16 %v67
  %v536 = vunpack.c.l.b16 %v68
  %v537 = vunpack.c.l.b16 %v69
  %v538 = vunpack.c.l.b16 %v70
  %v539 = vunpack.c.l.b16 %v71
  %v540 = vunpack.c.l.b16 %v72
  %v541 = vunpack.c.l.b16 %v73
  %v542 = vunpack.c.l.b16 %v74
  %v543 = vunpack.c.l.b16 %v75
  %v544 = vunpack.c.l.b16 %v76
  %v545 = vunpack.c.l.b16 %v77
  %v546 = vunpack.c.l.b16 %v78
  %v547 = vunpack.c.l.b16 %v79
  %v548 = vunpack.c.l.b16 %v80
  %v549 = vunpack.c.l.b16 %v81
  %v550 = vunpack.c.l.b16 %v82
  %v551 = vunpack.c.l.b16 %v83
  %v552 = vunpack.c.l.b16 %v84
  %v553 = vunpack.c.l.b16 %v85
  %v554 = vunpack.c.l.b16 %v86
  %v555 = vunpack.c.l.b16 %v87
  %v556 = vunpack.c.l.b16 %v88
  %v557 = vunpack.c.l.b16 %v89
  %v558 = vunpack.c.l.b16 %v90
  %v559 = vunpack.c.l.b16 %v91
  %v560 = vunpack.c.l.b16 %v92
  %v561 = vunpack.c.l.b16 %v93
  %v562 = vunpack.c.l.b16 %v94
  %v563 = vunpack.c.l.b16 %v95
  %v564 = vunpack.c.l.b16 %v96
  %v565 = vunpack.c.l.b16 %v97
  %v566 = vunpack.c.l.b16 %v98
  %v567 = vunpack.c.l.b16 %v99
  %v568 = vunpack.c.l.b16 %v100
  %v569 = vunpack.c.l.b16 %v101
  %v570 = vunpack.c.l.b16 %v102
  %v571 = vunpack.c.l.b16 %v103
  %v572 = vunpack.c.l.b16 %v104
  %v573 = vunpack.c.l.b16 %v105
  %v574 = vunpack.c.l.b16 %v106
  %v575 = vunpack.c.l.b16 %v107
  %v576 = vunpack.c.l.b16 %v108
  %v577 = vpack.c.b16 %v484, %v483
  %v578 = vpack.c.b16 %v486, %v485
  %v579 = vpack.c.b16 %v488, %v487
  %v580 = vpack.c.b16 %v490, %v489
  %v581 = vpack.c.b16 %v492, %v491
  %v582 = vpack.c.b16 %v494, %v493
  %v583 = vpack.c.b16 %v496, %v495
  %v584 = vpack.c.b16 %v498, %v497
  %v585 = vpack.c.b16 %v500, %v499
  %v586 = vpack.c.b16 %v502, %v501
  %v587 = vpack.c.b16 %v504, %v503
  %v588 = vpack.c.b16 %v506, %v505
  %v589 = vpack.c.b16 %v508, %v507
  %v590 = vpack.c.b16 %v510, %v509
  %v591 = vpack.c.b16 %v512, %v511
  %v592 = vpack.c.b16 %v514, %v513
  %v593 = vpack.c.b16 %v516, %v515
  %v594 = vpack.c.b16 %v518, %v517
  %v595 = vpack.c.b16 %v520, %v519
  %v596 = vpack.c.b16 %v522, %v521
  %v597 = vpack.c.b16 %v524, %v523
  %v598 = vpack.c.b16 %v526, %v525
  %v599 = vpack.c.b16 %v528, %v527
  %v600 = vpack.c.b16 %v530, %v529
  %v601 = vpack.c.b16 %v532, %v531
  %v602 = vpack.c.b16 %v534, %v533
  %v603 = vpack.c.b16 %v536, %v535
  %v604 = vpack.c.b16 %v538, %v537
  %v605 = vpack.c.b16 %v540, %v539
  %v606 = vpack.c.b16 %v542, %v541
  %v607 = vpack.c.b16 %v544, %v543
  %v608 = vpack.c.b16 %v546, %v545
  %v609 = vpack.c.b16 %v548, %v547
  %v610 = vpack.c.b16 %v550, %v549
  %v611 = vpack.c.b16 %v552, %v551
  %v612 = vpack.c.b16 %v554, %v553
  %v613 = vpack.c.b16 %v556, %v555
  %v614 = vpack.c.b16 %v558, %v557
  %v615 = vpack.c.b16 %v560, %v559
  %v616 = vpack.c.b16 %v562, %v561
  %v617 = vpack.c.b16 %v564, %v563
  %v618 = vpack.c.b16 %v566, %v565
  %v619 = vpack.c.b16 %v568, %v567
  %v620 = vpack.c.b16 %v570, %v569
  %v621 = vpack.c.b16 %v572, %v571
  %v622 = vpack.c.b16 %v574, %v573
  %v623 = vpack.c.b16 %v576, %v575
  %vm670 = vcmask 900096
  %v672 = vsel %vm670, %v306, 0
  %v675 = vsel %vm670, %v312, 0
  %v678 = vsel %vm670, %v318, 0
  %v681 = vsel %vm670, %v324, 0
  %v684 = vsel %vm670, %v330, 0
  %v687 = vsel %vm670, %v336, 0
  %v690 = vsel %vm670, %v342, 0
  %v693 = vsel %vm670, %v348, 0
  %vm695 = vcmask 1046528
  %v697 = vsel %vm695, %v623, 0
  %699 = vmatprep.subr.bf16.mxu0 0
  %700 = vmatpush1.bf16.msra.mxu0 %v577
  %701 = vmatprep.subr.bf16.mxu0 0
  %702 = vmatpush1.bf16.msra.mxu0 %v578
  %703 = vmatprep.subr.bf16.mxu0 0
  %704 = vmatpush1.bf16.msra.mxu0 %v579
  %705 = vmatprep.subr.bf16.mxu0 0
  %706 = vmatpush1.bf16.msra.mxu0 %v580
  %707 = vmatprep.subr.bf16.mxu0 0
  %708 = vmatpush1.bf16.msra.mxu0 %v581
  %709 = vmatprep.subr.bf16.mxu0 0
  %710 = vmatpush1.bf16.msra.mxu0 %v582
  %711 = vmatprep.subr.bf16.mxu0 0
  %712 = vmatpush1.bf16.msra.mxu0 %v583
  %713 = vmatprep.subr.bf16.mxu0 0
  %714 = vmatpush1.bf16.msra.mxu0 %v584
  %715 = vmatprep.subr.bf16.mxu0 0
  %716 = vmatpush1.bf16.msra.mxu0 %v585
  %717 = vmatprep.subr.bf16.mxu0 0
  %718 = vmatpush1.bf16.msra.mxu0 %v586
  %719 = vmatprep.subr.bf16.mxu0 0
  %720 = vmatpush1.bf16.msra.mxu0 %v587
  %721 = vmatprep.subr.bf16.mxu0 0
  %722 = vmatpush1.bf16.msra.mxu0 %v588
  %723 = vmatprep.subr.bf16.mxu0 0
  %724 = vmatpush1.bf16.msra.mxu0 %v589
  %725 = vmatprep.subr.bf16.mxu0 0
  %726 = vmatpush1.bf16.msra.mxu0 %v590
  %727 = vmatprep.subr.bf16.mxu0 0
  %728 = vmatpush1.bf16.msra.mxu0 %v591
  %729 = vmatprep.subr.bf16.mxu0 0
  %730 = vmatpush1.bf16.msra.mxu0 %v592
  %731 = vmatprep.mubr.bf16.mxu0 %v302
  %732 = vmatmul.mubr.bf16.gmra.mrb[0].mxu0 %v301
  %v733 = vpop.f32.mrb[0].mxu0
  %v734 = vadd.f32 0.0, %v733
  %v735 = vpop.f32.mrb[0].mxu0
  %v736 = vpop.f32.mrb[0].mxu0
  %v737 = vadd.f32 0.0, %v736
  %v738 = vpop.f32.mrb[0].mxu0
  %739 = vmatprep.mubr.bf16.mxu0 %v308
  %740 = vmatmul.mubr.bf16.gmra.mrb[0].mxu0 %v307
  %v741 = vpop.f32.mrb[0].mxu0
  %v742 = vadd.f32 0.0, %v741
  %v743 = vpop.f32.mrb[0].mxu0
  %v744 = vpop.f32.mrb[0].mxu0
  %v745 = vadd.f32 0.0, %v744
  %v746 = vpop.f32.mrb[0].mxu0
  %747 = vmatprep.mubr.bf16.mxu0 %v314
  %748 = vmatmul.mubr.bf16.gmra.mrb[0].mxu0 %v313
  %v749 = vpop.f32.mrb[0].mxu0
  %v750 = vadd.f32 0.0, %v749
  %v751 = vpop.f32.mrb[0].mxu0
  %v752 = vpop.f32.mrb[0].mxu0
  %v753 = vadd.f32 0.0, %v752
  %v754 = vpop.f32.mrb[0].mxu0
  %755 = vmatprep.mubr.bf16.mxu0 %v320
  %756 = vmatmul.mubr.bf16.gmra.mrb[0].mxu0 %v319
  %v757 = vpop.f32.mrb[0].mxu0
  %v758 = vadd.f32 0.0, %v757
  %v759 = vpop.f32.mrb[0].mxu0
  %v760 = vpop.f32.mrb[0].mxu0
  %v761 = vadd.f32 0.0, %v760
  %v762 = vpop.f32.mrb[0].mxu0
  %763 = vmatprep.mubr.bf16.mxu0 %v326
  %764 = vmatmul.mubr.bf16.gmra.mrb[0].mxu0 %v325
  %v765 = vpop.f32.mrb[0].mxu0
  %v766 = vadd.f32 0.0, %v765
  %v767 = vpop.f32.mrb[0].mxu0
  %v768 = vpop.f32.mrb[0].mxu0
  %v769 = vadd.f32 0.0, %v768
  %v770 = vpop.f32.mrb[0].mxu0
  %771 = vmatprep.mubr.bf16.mxu0 %v332
  %772 = vmatmul.mubr.bf16.gmra.mrb[0].mxu0 %v331
  %v773 = vpop.f32.mrb[0].mxu0
  %v774 = vadd.f32 0.0, %v773
  %v775 = vpop.f32.mrb[0].mxu0
  %v776 = vpop.f32.mrb[0].mxu0
  %v777 = vadd.f32 0.0, %v776
  %v778 = vpop.f32.mrb[0].mxu0
  %779 = vmatprep.mubr.bf16.mxu0 %v338
  %780 = vmatmul.mubr.bf16.gmra.mrb[0].mxu0 %v337
  %v781 = vpop.f32.mrb[0].mxu0
  %v782 = vadd.f32 0.0, %v781
  %v783 = vpop.f32.mrb[0].mxu0
  %v784 = vpop.f32.mrb[0].mxu0
  %v785 = vadd.f32 0.0, %v784
  %v786 = vpop.f32.mrb[0].mxu0
  %787 = vmatprep.mubr.bf16.mxu0 %v344
  %788 = vmatmul.mubr.bf16.gmra.mrb[0].mxu0 %v343
  %v789 = vpop.f32.mrb[0].mxu0
  %v790 = vadd.f32 0.0, %v789
  %v791 = vpop.f32.mrb[0].mxu0
  %v792 = vpop.f32.mrb[0].mxu0
  %v793 = vadd.f32 0.0, %v792
  %v794 = vpop.f32.mrb[0].mxu0
  %795 = vdwg.mxu0
  %796 = vmatprep.subr.bf16.mxu0 0
  %797 = vmatpush1.bf16.msra.mxu0 %v593
  %798 = vmatprep.subr.bf16.mxu0 0
  %799 = vmatpush1.bf16.msra.mxu0 %v594
  %800 = vmatprep.subr.bf16.mxu0 0
  %801 = vmatpush1.bf16.msra.mxu0 %v595
  %802 = vmatprep.subr.bf16.mxu0 0
  %803 = vmatpush1.bf16.msra.mxu0 %v596
  %804 = vmatprep.subr.bf16.mxu0 0
  %805 = vmatpush1.bf16.msra.mxu0 %v597
  %806 = vmatprep.subr.bf16.mxu0 0
  %807 = vmatpush1.bf16.msra.mxu0 %v598
  %808 = vmatprep.subr.bf16.mxu0 0
  %809 = vmatpush1.bf16.msra.mxu0 %v599
  %810 = vmatprep.subr.bf16.mxu0 0
  %811 = vmatpush1.bf16.msra.mxu0 %v600
  %812 = vmatprep.subr.bf16.mxu0 0
  %813 = vmatpush1.bf16.msra.mxu0 %v601
  %814 = vmatprep.subr.bf16.mxu0 0
  %815 = vmatpush1.bf16.msra.mxu0 %v602
  %816 = vmatprep.subr.bf16.mxu0 0
  %817 = vmatpush1.bf16.msra.mxu0 %v603
  %818 = vmatprep.subr.bf16.mxu0 0
  %819 = vmatpush1.bf16.msra.mxu0 %v604
  %820 = vmatprep.subr.bf16.mxu0 0
  %821 = vmatpush1.bf16.msra.mxu0 %v605
  %822 = vmatprep.subr.bf16.mxu0 0
  %823 = vmatpush1.bf16.msra.mxu0 %v606
  %824 = vmatprep.subr.bf16.mxu0 0
  %825 = vmatpush1.bf16.msra.mxu0 %v607
  %826 = vmatprep.subr.bf16.mxu0 0
  %827 = vmatpush1.bf16.msra.mxu0 %v608
  %828 = vmatprep.mubr.bf16.mxu0 %v304
  %829 = vmatmul.mubr.bf16.gmra.mrb[0].mxu0 %v303
  %v830 = vpop.f32.mrb[0].mxu0
  %v831 = vadd.f32 %v734, %v830
  %v832 = vpop.f32.mrb[0].mxu0
  %v833 = vpop.f32.mrb[0].mxu0
  %v834 = vadd.f32 %v737, %v833
  %v835 = vpop.f32.mrb[0].mxu0
  %836 = vmatprep.mubr.bf16.mxu0 %v310
  %837 = vmatmul.mubr.bf16.gmra.mrb[0].mxu0 %v309
  %v838 = vpop.f32.mrb[0].mxu0
  %v839 = vadd.f32 %v742, %v838
  %v840 = vpop.f32.mrb[0].mxu0
  %v841 = vpop.f32.mrb[0].mxu0
  %v842 = vadd.f32 %v745, %v841
  %v843 = vpop.f32.mrb[0].mxu0
  %844 = vmatprep.mubr.bf16.mxu0 %v316
  %845 = vmatmul.mubr.bf16.gmra.mrb[0].mxu0 %v315
  %v846 = vpop.f32.mrb[0].mxu0
  %v847 = vadd.f32 %v750, %v846
  %v848 = vpop.f32.mrb[0].mxu0
  %v849 = vpop.f32.mrb[0].mxu0
  %v850 = vadd.f32 %v753, %v849
  %v851 = vpop.f32.mrb[0].mxu0
  %852 = vmatprep.mubr.bf16.mxu0 %v322
  %853 = vmatmul.mubr.bf16.gmra.mrb[0].mxu0 %v321
  %v854 = vpop.f32.mrb[0].mxu0
  %v855 = vadd.f32 %v758, %v854
  %v856 = vpop.f32.mrb[0].mxu0
  %v857 = vpop.f32.mrb[0].mxu0
  %v858 = vadd.f32 %v761, %v857
  %v859 = vpop.f32.mrb[0].mxu0
  %860 = vmatprep.mubr.bf16.mxu0 %v328
  %861 = vmatmul.mubr.bf16.gmra.mrb[0].mxu0 %v327
  %v862 = vpop.f32.mrb[0].mxu0
  %v863 = vadd.f32 %v766, %v862
  %v864 = vpop.f32.mrb[0].mxu0
  %v865 = vpop.f32.mrb[0].mxu0
  %v866 = vadd.f32 %v769, %v865
  %v867 = vpop.f32.mrb[0].mxu0
  %868 = vmatprep.mubr.bf16.mxu0 %v334
  %869 = vmatmul.mubr.bf16.gmra.mrb[0].mxu0 %v333
  %v870 = vpop.f32.mrb[0].mxu0
  %v871 = vadd.f32 %v774, %v870
  %v872 = vpop.f32.mrb[0].mxu0
  %v873 = vpop.f32.mrb[0].mxu0
  %v874 = vadd.f32 %v777, %v873
  %v875 = vpop.f32.mrb[0].mxu0
  %876 = vmatprep.mubr.bf16.mxu0 %v340
  %877 = vmatmul.mubr.bf16.gmra.mrb[0].mxu0 %v339
  %v878 = vpop.f32.mrb[0].mxu0
  %v879 = vadd.f32 %v782, %v878
  %v880 = vpop.f32.mrb[0].mxu0
  %v881 = vpop.f32.mrb[0].mxu0
  %v882 = vadd.f32 %v785, %v881
  %v883 = vpop.f32.mrb[0].mxu0
  %884 = vmatprep.mubr.bf16.mxu0 %v346
  %885 = vmatmul.mubr.bf16.gmra.mrb[0].mxu0 %v345
  %v886 = vpop.f32.mrb[0].mxu0
  %v887 = vadd.f32 %v790, %v886
  %v888 = vpop.f32.mrb[0].mxu0
  %v889 = vpop.f32.mrb[0].mxu0
  %v890 = vadd.f32 %v793, %v889
  %v891 = vpop.f32.mrb[0].mxu0
  %892 = vdwg.mxu0
  %893 = vmatprep.subr.bf16.mxu0 0
  %894 = vmatpush1.bf16.msra.mxu0 %v609
  %895 = vmatprep.subr.bf16.mxu0 0
  %896 = vmatpush1.bf16.msra.mxu0 %v610
  %897 = vmatprep.subr.bf16.mxu0 0
  %898 = vmatpush1.bf16.msra.mxu0 %v611
  %899 = vmatprep.subr.bf16.mxu0 0
  %900 = vmatpush1.bf16.msra.mxu0 %v612
  %901 = vmatprep.subr.bf16.mxu0 0
  %902 = vmatpush1.bf16.msra.mxu0 %v613
  %903 = vmatprep.subr.bf16.mxu0 0
  %904 = vmatpush1.bf16.msra.mxu0 %v614
  %905 = vmatprep.subr.bf16.mxu0 0
  %906 = vmatpush1.bf16.msra.mxu0 %v615
  %907 = vmatprep.subr.bf16.mxu0 0
  %908 = vmatpush1.bf16.msra.mxu0 %v616
  %909 = vmatprep.subr.bf16.mxu0 0
  %910 = vmatpush1.bf16.msra.mxu0 %v617
  %911 = vmatprep.subr.bf16.mxu0 0
  %912 = vmatpush1.bf16.msra.mxu0 %v618
  %913 = vmatprep.subr.bf16.mxu0 0
  %914 = vmatpush1.bf16.msra.mxu0 %v619
  %915 = vmatprep.subr.bf16.mxu0 0
  %916 = vmatpush1.bf16.msra.mxu0 %v620
  %917 = vmatprep.subr.bf16.mxu0 0
  %918 = vmatpush1.bf16.msra.mxu0 %v621
  %919 = vmatprep.subr.bf16.mxu0 0
  %920 = vmatpush1.bf16.msra.mxu0 %v622
  %921 = vmatprep.subr.bf16.mxu0 0
  %922 = vmatpush1.bf16.msra.mxu0 %v697
  %923 = vmatprep.subr.bf16.mxu0 0
  %924 = vmatpush1.bf16.msra.mxu0 0
  %925 = vmatprep.mubr.bf16.mxu0 %v672
  %926 = vmatmul.mubr.bf16.gmra.mrb[0].mxu0 %v305
  %v927 = vpop.f32.mrb[0].mxu0
  %v928 = vadd.f32 %v831, %v927
  %v929 = vpop.f32.mrb[0].mxu0
  %v930 = vpop.f32.mrb[0].mxu0
  %v931 = vadd.f32 %v834, %v930
  %v932 = vpop.f32.mrb[0].mxu0
  %933 = vmatprep.mubr.bf16.mxu0 %v675
  %934 = vmatmul.mubr.bf16.gmra.mrb[0].mxu0 %v311
  %v935 = vpop.f32.mrb[0].mxu0
  %v936 = vadd.f32 %v839, %v935
  %v937 = vpop.f32.mrb[0].mxu0
  %v938 = vpop.f32.mrb[0].mxu0
  %v939 = vadd.f32 %v842, %v938
  %v940 = vpop.f32.mrb[0].mxu0
  %941 = vmatprep.mubr.bf16.mxu0 %v678
  %942 = vmatmul.mubr.bf16.gmra.mrb[0].mxu0 %v317
  %v943 = vpop.f32.mrb[0].mxu0
  %v944 = vadd.f32 %v847, %v943
  %v945 = vpop.f32.mrb[0].mxu0
  %v946 = vpop.f32.mrb[0].mxu0
  %v947 = vadd.f32 %v850, %v946
  %v948 = vpop.f32.mrb[0].mxu0
  %949 = vmatprep.mubr.bf16.mxu0 %v681
  %950 = vmatmul.mubr.bf16.gmra.mrb[0].mxu0 %v323
  %v951 = vpop.f32.mrb[0].mxu0
  %v952 = vadd.f32 %v855, %v951
  %v953 = vpop.f32.mrb[0].mxu0
  %v954 = vpop.f32.mrb[0].mxu0
  %v955 = vadd.f32 %v858, %v954
  %v956 = vpop.f32.mrb[0].mxu0
  %957 = vmatprep.mubr.bf16.mxu0 %v684
  %958 = vmatmul.mubr.bf16.gmra.mrb[0].mxu0 %v329
  %v959 = vpop.f32.mrb[0].mxu0
  %v960 = vadd.f32 %v863, %v959
  %v961 = vpop.f32.mrb[0].mxu0
  %v962 = vpop.f32.mrb[0].mxu0
  %v963 = vadd.f32 %v866, %v962
  %v964 = vpop.f32.mrb[0].mxu0
  %965 = vmatprep.mubr.bf16.mxu0 %v687
  %966 = vmatmul.mubr.bf16.gmra.mrb[0].mxu0 %v335
  %v967 = vpop.f32.mrb[0].mxu0
  %v968 = vadd.f32 %v871, %v967
  %v969 = vpop.f32.mrb[0].mxu0
  %v970 = vpop.f32.mrb[0].mxu0
  %v971 = vadd.f32 %v874, %v970
  %v972 = vpop.f32.mrb[0].mxu0
  %973 = vmatprep.mubr.bf16.mxu0 %v690
  %974 = vmatmul.mubr.bf16.gmra.mrb[0].mxu0 %v341
  %v975 = vpop.f32.mrb[0].mxu0
  %v976 = vadd.f32 %v879, %v975
  %v977 = vpop.f32.mrb[0].mxu0
  %v978 = vpop.f32.mrb[0].mxu0
  %v979 = vadd.f32 %v882, %v978
  %v980 = vpop.f32.mrb[0].mxu0
  %981 = vmatprep.mubr.bf16.mxu0 %v693
  %982 = vmatmul.mubr.bf16.gmra.mrb[0].mxu0 %v347
  %v983 = vpop.f32.mrb[0].mxu0
  %v984 = vadd.f32 %v887, %v983
  %v985 = vpop.f32.mrb[0].mxu0
  %v986 = vpop.f32.mrb[0].mxu0
  %v987 = vadd.f32 %v890, %v986
  %v988 = vpop.f32.mrb[0].mxu0
  %989 = vdwg.mxu0
  %s990 = scalar_lea.vmem %s0, 384
  %v991 = vld [vmem:[%s990] sm:$0xff]
  %v992 = vld [vmem:[%s990 + $0x8] sm:$0xff]
  %v993 = vld [vmem:[%s990 + $0x10] sm:$0xff]
  %v994 = vld [vmem:[%s990 + $0x18] sm:$0xff]
  %v995 = vld [vmem:[%s990 + $0x20] sm:$0xff]
  %v996 = vld [vmem:[%s990 + $0x28] sm:$0xff]
  %v997 = vld [vmem:[%s990 + $0x30] sm:$0xff]
  %v998 = vld [vmem:[%s990 + $0x38] sm:$0xff]
  %v999 = vld [vmem:[%s990 + $0x40] sm:$0xff]
  %v1000 = vld [vmem:[%s990 + $0x48] sm:$0xff]
  %v1001 = vld [vmem:[%s990 + $0x50] sm:$0xff]
  %v1002 = vld [vmem:[%s990 + $0x58] sm:$0xff]
  %v1003 = vld [vmem:[%s990 + $0x60] sm:$0xff]
  %v1004 = vld [vmem:[%s990 + $0x68] sm:$0xff]
  %v1005 = vld [vmem:[%s990 + $0x70] sm:$0xff]
  %v1006 = vld [vmem:[%s990 + $0x78] sm:$0xff]
  %v1007 = vld [vmem:[%s990 + $0x80] sm:$0xff]
  %v1008 = vld [vmem:[%s990 + $0x88] sm:$0xff]
  %v1009 = vld [vmem:[%s990 + $0x90] sm:$0xff]
  %v1010 = vld [vmem:[%s990 + $0x98] sm:$0xff]
  %v1011 = vld [vmem:[%s990 + $0xa0] sm:$0xff]
  %v1012 = vld [vmem:[%s990 + $0xa8] sm:$0xff]
  %v1013 = vld [vmem:[%s990 + $0xb0] sm:$0xff]
  %v1014 = vld [vmem:[%s990 + $0xb8] sm:$0xff]
  %v1015 = vld [vmem:[%s990 + $0xc0] sm:$0xff]
  %v1016 = vld [vmem:[%s990 + $0xc8] sm:$0xff]
  %v1017 = vld [vmem:[%s990 + $0xd0] sm:$0xff]
  %v1018 = vld [vmem:[%s990 + $0xd8] sm:$0xff]
  %v1019 = vld [vmem:[%s990 + $0xe0] sm:$0xff]
  %v1020 = vld [vmem:[%s990 + $0xe8] sm:$0xff]
  %v1021 = vld [vmem:[%s990 + $0xf0] sm:$0xff]
  %v1022 = vld [vmem:[%s990 + $0xf8] sm:$0xff]
  %v1023 = vld [vmem:[%s990 + $0x100] sm:$0xff]
  %v1024 = vld [vmem:[%s990 + $0x108] sm:$0xff]
  %v1025 = vld [vmem:[%s990 + $0x110] sm:$0xff]
  %v1026 = vld [vmem:[%s990 + $0x118] sm:$0xff]
  %v1027 = vld [vmem:[%s990 + $0x120] sm:$0xff]
  %v1028 = vld [vmem:[%s990 + $0x128] sm:$0xff]
  %v1029 = vld [vmem:[%s990 + $0x130] sm:$0xff]
  %v1030 = vld [vmem:[%s990 + $0x138] sm:$0xff]
  %v1031 = vld [vmem:[%s990 + $0x140] sm:$0xff]
  %v1032 = vld [vmem:[%s990 + $0x148] sm:$0xff]
  %v1033 = vld [vmem:[%s990 + $0x150] sm:$0xff]
  %v1034 = vld [vmem:[%s990 + $0x158] sm:$0xff]
  %v1035 = vld [vmem:[%s990 + $0x160] sm:$0xff]
  %v1036 = vld [vmem:[%s990 + $0x168] sm:$0xff]
  %v1037 = vld [vmem:[%s990 + $0x170] sm:$0xff]
  %v1038 = vld [vmem:[%s990 + $0x178] sm:$0xff]
  %v1087 = vunpack.c.l.b16 %v991
  %v1088 = vunpack.c.h.b16 %v991
  %v1089 = vunpack.c.l.b16 %v992
  %v1090 = vunpack.c.h.b16 %v992
  %v1091 = vunpack.c.l.b16 %v993
  %v1092 = vunpack.c.h.b16 %v993
  %v1093 = vunpack.c.l.b16 %v994
  %v1094 = vunpack.c.h.b16 %v994
  %v1095 = vunpack.c.l.b16 %v995
  %v1096 = vunpack.c.h.b16 %v995
  %v1097 = vunpack.c.l.b16 %v996
  %v1098 = vunpack.c.h.b16 %v996
  %v1099 = vunpack.c.l.b16 %v997
  %v1100 = vunpack.c.h.b16 %v997
  %v1101 = vunpack.c.l.b16 %v998
  %v1102 = vunpack.c.h.b16 %v998
  %v1103 = vunpack.c.l.b16 %v999
  %v1104 = vunpack.c.h.b16 %v999
  %v1105 = vunpack.c.l.b16 %v1000
  %v1106 = vunpack.c.h.b16 %v1000
  %v1107 = vunpack.c.l.b16 %v1001
  %v1108 = vunpack.c.h.b16 %v1001
  %v1109 = vunpack.c.l.b16 %v1002
  %v1110 = vunpack.c.h.b16 %v1002
  %v1111 = vunpack.c.l.b16 %v1003
  %v1112 = vunpack.c.h.b16 %v1003
  %v1113 = vunpack.c.l.b16 %v1004
  %v1114 = vunpack.c.h.b16 %v1004
  %v1115 = vunpack.c.l.b16 %v1005
  %v1116 = vunpack.c.h.b16 %v1005
  %v1117 = vunpack.c.l.b16 %v1006
  %v1118 = vunpack.c.h.b16 %v1006
  %v1119 = vunpack.c.l.b16 %v1007
  %v1120 = vunpack.c.h.b16 %v1007
  %v1121 = vunpack.c.l.b16 %v1008
  %v1122 = vunpack.c.h.b16 %v1008
  %v1123 = vunpack.c.l.b16 %v1009
  %v1124 = vunpack.c.h.b16 %v1009
  %v1125 = vunpack.c.l.b16 %v1010
  %v1126 = vunpack.c.h.b16 %v1010
  %v1127 = vunpack.c.l.b16 %v1011
  %v1128 = vunpack.c.h.b16 %v1011
  %v1129 = vunpack.c.l.b16 %v1012
  %v1130 = vunpack.c.h.b16 %v1012
  %v1131 = vunpack.c.l.b16 %v1013
  %v1132 = vunpack.c.h.b16 %v1013
  %v1133 = vunpack.c.l.b16 %v1014
  %v1134 = vunpack.c.h.b16 %v1014
  %v1135 = vunpack.c.l.b16 %v1015
  %v1136 = vunpack.c.h.b16 %v1015
  %v1137 = vunpack.c.l.b16 %v1016
  %v1138 = vunpack.c.h.b16 %v1016
  %v1139 = vunpack.c.l.b16 %v1017
  %v1140 = vunpack.c.h.b16 %v1017
  %v1141 = vunpack.c.l.b16 %v1018
  %v1142 = vunpack.c.h.b16 %v1018
  %v1143 = vunpack.c.l.b16 %v1019
  %v1144 = vunpack.c.h.b16 %v1019
  %v1145 = vunpack.c.l.b16 %v1020
  %v1146 = vunpack.c.h.b16 %v1020
  %v1147 = vunpack.c.l.b16 %v1021
  %v1148 = vunpack.c.h.b16 %v1021
  %v1149 = vunpack.c.l.b16 %v1022
  %v1150 = vunpack.c.h.b16 %v1022
  %v1151 = vunpack.c.l.b16 %v1023
  %v1152 = vunpack.c.h.b16 %v1023
  %v1153 = vunpack.c.l.b16 %v1024
  %v1154 = vunpack.c.h.b16 %v1024
  %v1155 = vunpack.c.l.b16 %v1025
  %v1156 = vunpack.c.h.b16 %v1025
  %v1157 = vunpack.c.l.b16 %v1026
  %v1158 = vunpack.c.h.b16 %v1026
  %v1159 = vunpack.c.l.b16 %v1027
  %v1160 = vunpack.c.h.b16 %v1027
  %v1161 = vunpack.c.l.b16 %v1028
  %v1162 = vunpack.c.h.b16 %v1028
  %v1163 = vunpack.c.l.b16 %v1029
  %v1164 = vunpack.c.h.b16 %v1029
  %v1165 = vunpack.c.l.b16 %v1030
  %v1166 = vunpack.c.h.b16 %v1030
  %v1167 = vunpack.c.l.b16 %v1031
  %v1168 = vunpack.c.h.b16 %v1031
  %v1169 = vunpack.c.l.b16 %v1032
  %v1170 = vunpack.c.h.b16 %v1032
  %v1171 = vunpack.c.l.b16 %v1033
  %v1172 = vunpack.c.h.b16 %v1033
  %v1173 = vunpack.c.l.b16 %v1034
  %v1174 = vunpack.c.h.b16 %v1034
  %v1175 = vunpack.c.l.b16 %v1035
  %v1176 = vunpack.c.h.b16 %v1035
  %v1177 = vunpack.c.l.b16 %v1036
  %v1178 = vunpack.c.h.b16 %v1036
  %v1179 = vunpack.c.l.b16 %v1037
  %v1180 = vunpack.c.h.b16 %v1037
  %v1181 = vunpack.c.l.b16 %v1038
  %v1182 = vunpack.c.h.b16 %v1038
  %v1183 = vpack.c.b16 %v1093, %v1087
  %v1184 = vpack.c.b16 %v1094, %v1088
  %v1185 = vpack.c.b16 %v1095, %v1089
  %v1186 = vpack.c.b16 %v1096, %v1090
  %v1187 = vpack.c.b16 %v1097, %v1091
  %v1188 = vpack.c.b16 %v1098, %v1092
  %v1189 = vpack.c.b16 %v1105, %v1099
  %v1190 = vpack.c.b16 %v1106, %v1100
  %v1191 = vpack.c.b16 %v1107, %v1101
  %v1192 = vpack.c.b16 %v1108, %v1102
  %v1193 = vpack.c.b16 %v1109, %v1103
  %v1194 = vpack.c.b16 %v1110, %v1104
  %v1195 = vpack.c.b16 %v1117, %v1111
  %v1196 = vpack.c.b16 %v1118, %v1112
  %v1197 = vpack.c.b16 %v1119, %v1113
  %v1198 = vpack.c.b16 %v1120, %v1114
  %v1199 = vpack.c.b16 %v1121, %v1115
  %v1200 = vpack.c.b16 %v1122, %v1116
  %v1201 = vpack.c.b16 %v1129, %v1123
  %v1202 = vpack.c.b16 %v1130, %v1124
  %v1203 = vpack.c.b16 %v1131, %v1125
  %v1204 = vpack.c.b16 %v1132, %v1126
  %v1205 = vpack.c.b16 %v1133, %v1127
  %v1206 = vpack.c.b16 %v1134, %v1128
  %v1207 = vpack.c.b16 %v1141, %v1135
  %v1208 = vpack.c.b16 %v1142, %v1136
  %v1209 = vpack.c.b16 %v1143, %v1137
  %v1210 = vpack.c.b16 %v1144, %v1138
  %v1211 = vpack.c.b16 %v1145, %v1139
  %v1212 = vpack.c.b16 %v1146, %v1140
  %v1213 = vpack.c.b16 %v1153, %v1147
  %v1214 = vpack.c.b16 %v1154, %v1148
  %v1215 = vpack.c.b16 %v1155, %v1149
  %v1216 = vpack.c.b16 %v1156, %v1150
  %v1217 = vpack.c.b16 %v1157, %v1151
  %v1218 = vpack.c.b16 %v1158, %v1152
  %v1219 = vpack.c.b16 %v1165, %v1159
  %v1220 = vpack.c.b16 %v1166, %v1160
  %v1221 = vpack.c.b16 %v1167, %v1161
  %v1222 = vpack.c.b16 %v1168, %v1162
  %v1223 = vpack.c.b16 %v1169, %v1163
  %v1224 = vpack.c.b16 %v1170, %v1164
  %v1225 = vpack.c.b16 %v1177, %v1171
  %v1226 = vpack.c.b16 %v1178, %v1172
  %v1227 = vpack.c.b16 %v1179, %v1173
  %v1228 = vpack.c.b16 %v1180, %v1174
  %v1229 = vpack.c.b16 %v1181, %v1175
  %v1230 = vpack.c.b16 %v1182, %v1176
  %v1272 = vsel %vm670, %v1188, 0
  %v1275 = vsel %vm670, %v1194, 0
  %v1278 = vsel %vm670, %v1200, 0
  %v1281 = vsel %vm670, %v1206, 0
  %v1284 = vsel %vm670, %v1212, 0
  %v1287 = vsel %vm670, %v1218, 0
  %v1290 = vsel %vm670, %v1224, 0
  %v1293 = vsel %vm670, %v1230, 0
  %1295 = vmatprep.subr.bf16.mxu0 0
  %1296 = vmatpush1.bf16.msra.mxu0 %v577
  %1297 = vmatprep.subr.bf16.mxu0 0
  %1298 = vmatpush1.bf16.msra.mxu0 %v578
  %1299 = vmatprep.subr.bf16.mxu0 0
  %1300 = vmatpush1.bf16.msra.mxu0 %v579
  %1301 = vmatprep.subr.bf16.mxu0 0
  %1302 = vmatpush1.bf16.msra.mxu0 %v580
  %1303 = vmatprep.subr.bf16.mxu0 0
  %1304 = vmatpush1.bf16.msra.mxu0 %v581
  %1305 = vmatprep.subr.bf16.mxu0 0
  %1306 = vmatpush1.bf16.msra.mxu0 %v582
  %1307 = vmatprep.subr.bf16.mxu0 0
  %1308 = vmatpush1.bf16.msra.mxu0 %v583
  %1309 = vmatprep.subr.bf16.mxu0 0
  %1310 = vmatpush1.bf16.msra.mxu0 %v584
  %1311 = vmatprep.subr.bf16.mxu0 0
  %1312 = vmatpush1.bf16.msra.mxu0 %v585
  %1313 = vmatprep.subr.bf16.mxu0 0
  %1314 = vmatpush1.bf16.msra.mxu0 %v586
  %1315 = vmatprep.subr.bf16.mxu0 0
  %1316 = vmatpush1.bf16.msra.mxu0 %v587
  %1317 = vmatprep.subr.bf16.mxu0 0
  %1318 = vmatpush1.bf16.msra.mxu0 %v588
  %1319 = vmatprep.subr.bf16.mxu0 0
  %1320 = vmatpush1.bf16.msra.mxu0 %v589
  %1321 = vmatprep.subr.bf16.mxu0 0
  %1322 = vmatpush1.bf16.msra.mxu0 %v590
  %1323 = vmatprep.subr.bf16.mxu0 0
  %1324 = vmatpush1.bf16.msra.mxu0 %v591
  %1325 = vmatprep.subr.bf16.mxu0 0
  %1326 = vmatpush1.bf16.msra.mxu0 %v592
  %1327 = vmatprep.mubr.bf16.mxu0 %v1184
  %1328 = vmatmul.mubr.bf16.gmra.mrb[0].mxu0 %v1183
  %v1329 = vpop.f32.mrb[0].mxu0
  %v1330 = vadd.f32 0.0, %v1329
  %v1331 = vpop.f32.mrb[0].mxu0
  %v1332 = vpop.f32.mrb[0].mxu0
  %v1333 = vadd.f32 0.0, %v1332
  %v1334 = vpop.f32.mrb[0].mxu0
  %1335 = vmatprep.mubr.bf16.mxu0 %v1190
  %1336 = vmatmul.mubr.bf16.gmra.mrb[0].mxu0 %v1189
  %v1337 = vpop.f32.mrb[0].mxu0
  %v1338 = vadd.f32 0.0, %v1337
  %v1339 = vpop.f32.mrb[0].mxu0
  %v1340 = vpop.f32.mrb[0].mxu0
  %v1341 = vadd.f32 0.0, %v1340
  %v1342 = vpop.f32.mrb[0].mxu0
  %1343 = vmatprep.mubr.bf16.mxu0 %v1196
  %1344 = vmatmul.mubr.bf16.gmra.mrb[0].mxu0 %v1195
  %v1345 = vpop.f32.mrb[0].mxu0
  %v1346 = vadd.f32 0.0, %v1345
  %v1347 = vpop.f32.mrb[0].mxu0
  %v1348 = vpop.f32.mrb[0].mxu0
  %v1349 = vadd.f32 0.0, %v1348
  %v1350 = vpop.f32.mrb[0].mxu0
  %1351 = vmatprep.mubr.bf16.mxu0 %v1202
  %1352 = vmatmul.mubr.bf16.gmra.mrb[0].mxu0 %v1201
  %v1353 = vpop.f32.mrb[0].mxu0
  %v1354 = vadd.f32 0.0, %v1353
  %v1355 = vpop.f32.mrb[0].mxu0
  %v1356 = vpop.f32.mrb[0].mxu0
  %v1357 = vadd.f32 0.0, %v1356
  %v1358 = vpop.f32.mrb[0].mxu0
  %1359 = vmatprep.mubr.bf16.mxu0 %v1208
  %1360 = vmatmul.mubr.bf16.gmra.mrb[0].mxu0 %v1207
  %v1361 = vpop.f32.mrb[0].mxu0
  %v1362 = vadd.f32 0.0, %v1361
  %v1363 = vpop.f32.mrb[0].mxu0
  %v1364 = vpop.f32.mrb[0].mxu0
  %v1365 = vadd.f32 0.0, %v1364
  %v1366 = vpop.f32.mrb[0].mxu0
  %1367 = vmatprep.mubr.bf16.mxu0 %v1214
  %1368 = vmatmul.mubr.bf16.gmra.mrb[0].mxu0 %v1213
  %v1369 = vpop.f32.mrb[0].mxu0
  %v1370 = vadd.f32 0.0, %v1369
  %v1371 = vpop.f32.mrb[0].mxu0
  %v1372 = vpop.f32.mrb[0].mxu0
  %v1373 = vadd.f32 0.0, %v1372
  %v1374 = vpop.f32.mrb[0].mxu0
  %1375 = vmatprep.mubr.bf16.mxu0 %v1220
  %1376 = vmatmul.mubr.bf16.gmra.mrb[0].mxu0 %v1219
  %v1377 = vpop.f32.mrb[0].mxu0
  %v1378 = vadd.f32 0.0, %v1377
  %v1379 = vpop.f32.mrb[0].mxu0
  %v1380 = vpop.f32.mrb[0].mxu0
  %v1381 = vadd.f32 0.0, %v1380
  %v1382 = vpop.f32.mrb[0].mxu0
  %1383 = vmatprep.mubr.bf16.mxu0 %v1226
  %1384 = vmatmul.mubr.bf16.gmra.mrb[0].mxu0 %v1225
  %v1385 = vpop.f32.mrb[0].mxu0
  %v1386 = vadd.f32 0.0, %v1385
  %v1387 = vpop.f32.mrb[0].mxu0
  %v1388 = vpop.f32.mrb[0].mxu0
  %v1389 = vadd.f32 0.0, %v1388
  %v1390 = vpop.f32.mrb[0].mxu0
  %1391 = vdwg.mxu0
  %1392 = vmatprep.subr.bf16.mxu0 0
  %1393 = vmatpush1.bf16.msra.mxu0 %v593
  %1394 = vmatprep.subr.bf16.mxu0 0
  %1395 = vmatpush1.bf16.msra.mxu0 %v594
  %1396 = vmatprep.subr.bf16.mxu0 0
  %1397 = vmatpush1.bf16.msra.mxu0 %v595
  %1398 = vmatprep.subr.bf16.mxu0 0
  %1399 = vmatpush1.bf16.msra.mxu0 %v596
  %1400 = vmatprep.subr.bf16.mxu0 0
  %1401 = vmatpush1.bf16.msra.mxu0 %v597
  %1402 = vmatprep.subr.bf16.mxu0 0
  %1403 = vmatpush1.bf16.msra.mxu0 %v598
  %1404 = vmatprep.subr.bf16.mxu0 0
  %1405 = vmatpush1.bf16.msra.mxu0 %v599
  %1406 = vmatprep.subr.bf16.mxu0 0
  %1407 = vmatpush1.bf16.msra.mxu0 %v600
  %1408 = vmatprep.subr.bf16.mxu0 0
  %1409 = vmatpush1.bf16.msra.mxu0 %v601
  %1410 = vmatprep.subr.bf16.mxu0 0
  %1411 = vmatpush1.bf16.msra.mxu0 %v602
  %1412 = vmatprep.subr.bf16.mxu0 0
  %1413 = vmatpush1.bf16.msra.mxu0 %v603
  %1414 = vmatprep.subr.bf16.mxu0 0
  %1415 = vmatpush1.bf16.msra.mxu0 %v604
  %1416 = vmatprep.subr.bf16.mxu0 0
  %1417 = vmatpush1.bf16.msra.mxu0 %v605
  %1418 = vmatprep.subr.bf16.mxu0 0
  %1419 = vmatpush1.bf16.msra.mxu0 %v606
  %1420 = vmatprep.subr.bf16.mxu0 0
  %1421 = vmatpush1.bf16.msra.mxu0 %v607
  %1422 = vmatprep.subr.bf16.mxu0 0
  %1423 = vmatpush1.bf16.msra.mxu0 %v608
  %1424 = vmatprep.mubr.bf16.mxu0 %v1186
  %1425 = vmatmul.mubr.bf16.gmra.mrb[0].mxu0 %v1185
  %v1426 = vpop.f32.mrb[0].mxu0
  %v1427 = vadd.f32 %v1330, %v1426
  %v1428 = vpop.f32.mrb[0].mxu0
  %v1429 = vpop.f32.mrb[0].mxu0
  %v1430 = vadd.f32 %v1333, %v1429
  %v1431 = vpop.f32.mrb[0].mxu0
  %1432 = vmatprep.mubr.bf16.mxu0 %v1192
  %1433 = vmatmul.mubr.bf16.gmra.mrb[0].mxu0 %v1191
  %v1434 = vpop.f32.mrb[0].mxu0
  %v1435 = vadd.f32 %v1338, %v1434
  %v1436 = vpop.f32.mrb[0].mxu0
  %v1437 = vpop.f32.mrb[0].mxu0
  %v1438 = vadd.f32 %v1341, %v1437
  %v1439 = vpop.f32.mrb[0].mxu0
  %1440 = vmatprep.mubr.bf16.mxu0 %v1198
  %1441 = vmatmul.mubr.bf16.gmra.mrb[0].mxu0 %v1197
  %v1442 = vpop.f32.mrb[0].mxu0
  %v1443 = vadd.f32 %v1346, %v1442
  %v1444 = vpop.f32.mrb[0].mxu0
  %v1445 = vpop.f32.mrb[0].mxu0
  %v1446 = vadd.f32 %v1349, %v1445
  %v1447 = vpop.f32.mrb[0].mxu0
  %1448 = vmatprep.mubr.bf16.mxu0 %v1204
  %1449 = vmatmul.mubr.bf16.gmra.mrb[0].mxu0 %v1203
  %v1450 = vpop.f32.mrb[0].mxu0
  %v1451 = vadd.f32 %v1354, %v1450
  %v1452 = vpop.f32.mrb[0].mxu0
  %v1453 = vpop.f32.mrb[0].mxu0
  %v1454 = vadd.f32 %v1357, %v1453
  %v1455 = vpop.f32.mrb[0].mxu0
  %1456 = vmatprep.mubr.bf16.mxu0 %v1210
  %1457 = vmatmul.mubr.bf16.gmra.mrb[0].mxu0 %v1209
  %v1458 = vpop.f32.mrb[0].mxu0
  %v1459 = vadd.f32 %v1362, %v1458
  %v1460 = vpop.f32.mrb[0].mxu0
  %v1461 = vpop.f32.mrb[0].mxu0
  %v1462 = vadd.f32 %v1365, %v1461
  %v1463 = vpop.f32.mrb[0].mxu0
  %1464 = vmatprep.mubr.bf16.mxu0 %v1216
  %1465 = vmatmul.mubr.bf16.gmra.mrb[0].mxu0 %v1215
  %v1466 = vpop.f32.mrb[0].mxu0
  %v1467 = vadd.f32 %v1370, %v1466
  %v1468 = vpop.f32.mrb[0].mxu0
  %v1469 = vpop.f32.mrb[0].mxu0
  %v1470 = vadd.f32 %v1373, %v1469
  %v1471 = vpop.f32.mrb[0].mxu0
  %1472 = vmatprep.mubr.bf16.mxu0 %v1222
  %1473 = vmatmul.mubr.bf16.gmra.mrb[0].mxu0 %v1221
  %v1474 = vpop.f32.mrb[0].mxu0
  %v1475 = vadd.f32 %v1378, %v1474
  %v1476 = vpop.f32.mrb[0].mxu0
  %v1477 = vpop.f32.mrb[0].mxu0
  %v1478 = vadd.f32 %v1381, %v1477
  %v1479 = vpop.f32.mrb[0].mxu0
  %1480 = vmatprep.mubr.bf16.mxu0 %v1228
  %1481 = vmatmul.mubr.bf16.gmra.mrb[0].mxu0 %v1227
  %v1482 = vpop.f32.mrb[0].mxu0
  %v1483 = vadd.f32 %v1386, %v1482
  %v1484 = vpop.f32.mrb[0].mxu0
  %v1485 = vpop.f32.mrb[0].mxu0
  %v1486 = vadd.f32 %v1389, %v1485
  %v1487 = vpop.f32.mrb[0].mxu0
  %1488 = vdwg.mxu0
  %1489 = vmatprep.subr.bf16.mxu0 0
  %1490 = vmatpush1.bf16.msra.mxu0 %v609
  %1491 = vmatprep.subr.bf16.mxu0 0
  %1492 = vmatpush1.bf16.msra.mxu0 %v610
  %1493 = vmatprep.subr.bf16.mxu0 0
  %1494 = vmatpush1.bf16.msra.mxu0 %v611
  %1495 = vmatprep.subr.bf16.mxu0 0
  %1496 = vmatpush1.bf16.msra.mxu0 %v612
  %1497 = vmatprep.subr.bf16.mxu0 0
  %1498 = vmatpush1.bf16.msra.mxu0 %v613
  %1499 = vmatprep.subr.bf16.mxu0 0
  %1500 = vmatpush1.bf16.msra.mxu0 %v614
  %1501 = vmatprep.subr.bf16.mxu0 0
  %1502 = vmatpush1.bf16.msra.mxu0 %v615
  %1503 = vmatprep.subr.bf16.mxu0 0
  %1504 = vmatpush1.bf16.msra.mxu0 %v616
  %1505 = vmatprep.subr.bf16.mxu0 0
  %1506 = vmatpush1.bf16.msra.mxu0 %v617
  %1507 = vmatprep.subr.bf16.mxu0 0
  %1508 = vmatpush1.bf16.msra.mxu0 %v618
  %1509 = vmatprep.subr.bf16.mxu0 0
  %1510 = vmatpush1.bf16.msra.mxu0 %v619
  %1511 = vmatprep.subr.bf16.mxu0 0
  %1512 = vmatpush1.bf16.msra.mxu0 %v620
  %1513 = vmatprep.subr.bf16.mxu0 0
  %1514 = vmatpush1.bf16.msra.mxu0 %v621
  %1515 = vmatprep.subr.bf16.mxu0 0
  %1516 = vmatpush1.bf16.msra.mxu0 %v622
  %1517 = vmatprep.subr.bf16.mxu0 0
  %1518 = vmatpush1.bf16.msra.mxu0 %v697
  %1519 = vmatprep.subr.bf16.mxu0 0
  %1520 = vmatpush1.bf16.msra.mxu0 0
  %1521 = vmatprep.mubr.bf16.mxu0 %v1272
  %1522 = vmatmul.mubr.bf16.gmra.mrb[0].mxu0 %v1187
  %v1523 = vpop.f32.mrb[0].mxu0
  %v1524 = vadd.f32 %v1427, %v1523
  %v1525 = vpop.f32.mrb[0].mxu0
  %v1526 = vpop.f32.mrb[0].mxu0
  %v1527 = vadd.f32 %v1430, %v1526
  %v1528 = vpop.f32.mrb[0].mxu0
  %1529 = vmatprep.mubr.bf16.mxu0 %v1275
  %1530 = vmatmul.mubr.bf16.gmra.mrb[0].mxu0 %v1193
  %v1531 = vpop.f32.mrb[0].mxu0
  %v1532 = vadd.f32 %v1435, %v1531
  %v1533 = vpop.f32.mrb[0].mxu0
  %v1534 = vpop.f32.mrb[0].mxu0
  %v1535 = vadd.f32 %v1438, %v1534
  %v1536 = vpop.f32.mrb[0].mxu0
  %1537 = vmatprep.mubr.bf16.mxu0 %v1278
  %1538 = vmatmul.mubr.bf16.gmra.mrb[0].mxu0 %v1199
  %v1539 = vpop.f32.mrb[0].mxu0
  %v1540 = vadd.f32 %v1443, %v1539
  %v1541 = vpop.f32.mrb[0].mxu0
  %v1542 = vpop.f32.mrb[0].mxu0
  %v1543 = vadd.f32 %v1446, %v1542
  %v1544 = vpop.f32.mrb[0].mxu0
  %1545 = vmatprep.mubr.bf16.mxu0 %v1281
  %1546 = vmatmul.mubr.bf16.gmra.mrb[0].mxu0 %v1205
  %v1547 = vpop.f32.mrb[0].mxu0
  %v1548 = vadd.f32 %v1451, %v1547
  %v1549 = vpop.f32.mrb[0].mxu0
  %v1550 = vpop.f32.mrb[0].mxu0
  %v1551 = vadd.f32 %v1454, %v1550
  %v1552 = vpop.f32.mrb[0].mxu0
  %1553 = vmatprep.mubr.bf16.mxu0 %v1284
  %1554 = vmatmul.mubr.bf16.gmra.mrb[0].mxu0 %v1211
  %v1555 = vpop.f32.mrb[0].mxu0
  %v1556 = vadd.f32 %v1459, %v1555
  %v1557 = vpop.f32.mrb[0].mxu0
  %v1558 = vpop.f32.mrb[0].mxu0
  %v1559 = vadd.f32 %v1462, %v1558
  %v1560 = vpop.f32.mrb[0].mxu0
  %1561 = vmatprep.mubr.bf16.mxu0 %v1287
  %1562 = vmatmul.mubr.bf16.gmra.mrb[0].mxu0 %v1217
  %v1563 = vpop.f32.mrb[0].mxu0
  %v1564 = vadd.f32 %v1467, %v1563
  %v1565 = vpop.f32.mrb[0].mxu0
  %v1566 = vpop.f32.mrb[0].mxu0
  %v1567 = vadd.f32 %v1470, %v1566
  %v1568 = vpop.f32.mrb[0].mxu0
  %1569 = vmatprep.mubr.bf16.mxu0 %v1290
  %1570 = vmatmul.mubr.bf16.gmra.mrb[0].mxu0 %v1223
  %v1571 = vpop.f32.mrb[0].mxu0
  %v1572 = vadd.f32 %v1475, %v1571
  %v1573 = vpop.f32.mrb[0].mxu0
  %v1574 = vpop.f32.mrb[0].mxu0
  %v1575 = vadd.f32 %v1478, %v1574
  %v1576 = vpop.f32.mrb[0].mxu0
  %1577 = vmatprep.mubr.bf16.mxu0 %v1293
  %1578 = vmatmul.mubr.bf16.gmra.mrb[0].mxu0 %v1229
  %v1579 = vpop.f32.mrb[0].mxu0
  %v1580 = vadd.f32 %v1483, %v1579
  %v1581 = vpop.f32.mrb[0].mxu0
  %v1582 = vpop.f32.mrb[0].mxu0
  %v1583 = vadd.f32 %v1486, %v1582
  %v1584 = vpop.f32.mrb[0].mxu0
  %1585 = vdwg.mxu0
  %v1586 = vmax.f32 %v928, %v1524
  %v1587 = vmax.f32 %v931, %v1527
  %v1588 = vmax.f32 %v936, %v1532
  %v1589 = vmax.f32 %v939, %v1535
  %v1590 = vmax.f32 %v944, %v1540
  %v1591 = vmax.f32 %v947, %v1543
  %v1592 = vmax.f32 %v952, %v1548
  %v1593 = vmax.f32 %v955, %v1551
  %v1594 = vmax.f32 %v960, %v1556
  %v1595 = vmax.f32 %v963, %v1559
  %v1596 = vmax.f32 %v968, %v1564
  %v1597 = vmax.f32 %v971, %v1567
  %v1598 = vmax.f32 %v976, %v1572
  %v1599 = vmax.f32 %v979, %v1575
  %v1600 = vmax.f32 %v984, %v1580
  %v1601 = vmax.f32 %v987, %v1583
  %s1602 = scalar_lea.vmem %s0, 768
  %v1603 = vld [vmem:[%s1602] sm:$0xff]
  %v1604 = vld [vmem:[%s1602 + $0x8] sm:$0xff]
  %v1605 = vld [vmem:[%s1602 + $0x10] sm:$0xff]
  %v1606 = vld [vmem:[%s1602 + $0x18] sm:$0xff]
  %v1607 = vld [vmem:[%s1602 + $0x20] sm:$0xff]
  %v1608 = vld [vmem:[%s1602 + $0x28] sm:$0xff]
  %v1609 = vld [vmem:[%s1602 + $0x30] sm:$0xff]
  %v1610 = vld [vmem:[%s1602 + $0x38] sm:$0xff]
  %v1611 = vld [vmem:[%s1602 + $0x40] sm:$0xff]
  %v1612 = vld [vmem:[%s1602 + $0x48] sm:$0xff]
  %v1613 = vld [vmem:[%s1602 + $0x50] sm:$0xff]
  %v1614 = vld [vmem:[%s1602 + $0x58] sm:$0xff]
  %v1615 = vld [vmem:[%s1602 + $0x60] sm:$0xff]
  %v1616 = vld [vmem:[%s1602 + $0x68] sm:$0xff]
  %v1617 = vld [vmem:[%s1602 + $0x70] sm:$0xff]
  %v1618 = vld [vmem:[%s1602 + $0x78] sm:$0xff]
  %v1619 = vld [vmem:[%s1602 + $0x80] sm:$0xff]
  %v1620 = vld [vmem:[%s1602 + $0x88] sm:$0xff]
  %v1621 = vld [vmem:[%s1602 + $0x90] sm:$0xff]
  %v1622 = vld [vmem:[%s1602 + $0x98] sm:$0xff]
  %v1623 = vld [vmem:[%s1602 + $0xa0] sm:$0xff]
  %v1624 = vld [vmem:[%s1602 + $0xa8] sm:$0xff]
  %v1625 = vld [vmem:[%s1602 + $0xb0] sm:$0xff]
  %v1626 = vld [vmem:[%s1602 + $0xb8] sm:$0xff]
  %v1627 = vld [vmem:[%s1602 + $0xc0] sm:$0xff]
  %v1628 = vld [vmem:[%s1602 + $0xc8] sm:$0xff]
  %v1629 = vld [vmem:[%s1602 + $0xd0] sm:$0xff]
  %v1630 = vld [vmem:[%s1602 + $0xd8] sm:$0xff]
  %v1631 = vld [vmem:[%s1602 + $0xe0] sm:$0xff]
  %v1632 = vld [vmem:[%s1602 + $0xe8] sm:$0xff]
  %v1633 = vld [vmem:[%s1602 + $0xf0] sm:$0xff]
  %v1634 = vld [vmem:[%s1602 + $0xf8] sm:$0xff]
  %v1635 = vld [vmem:[%s1602 + $0x100] sm:$0xff]
  %v1636 = vld [vmem:[%s1602 + $0x108] sm:$0xff]
  %v1637 = vld [vmem:[%s1602 + $0x110] sm:$0xff]
  %v1638 = vld [vmem:[%s1602 + $0x118] sm:$0xff]
  %v1639 = vld [vmem:[%s1602 + $0x120] sm:$0xff]
  %v1640 = vld [vmem:[%s1602 + $0x128] sm:$0xff]
  %v1641 = vld [vmem:[%s1602 + $0x130] sm:$0xff]
  %v1642 = vld [vmem:[%s1602 + $0x138] sm:$0xff]
  %v1643 = vld [vmem:[%s1602 + $0x140] sm:$0xff]
  %v1644 = vld [vmem:[%s1602 + $0x148] sm:$0xff]
  %v1645 = vld [vmem:[%s1602 + $0x150] sm:$0xff]
  %v1646 = vld [vmem:[%s1602 + $0x158] sm:$0xff]
  %v1647 = vld [vmem:[%s1602 + $0x160] sm:$0xff]
  %v1648 = vld [vmem:[%s1602 + $0x168] sm:$0xff]
  %v1649 = vld [vmem:[%s1602 + $0x170] sm:$0xff]
  %v1650 = vld [vmem:[%s1602 + $0x178] sm:$0xff]
  %v1699 = vunpack.c.l.b16 %v1603
  %v1700 = vunpack.c.h.b16 %v1603
  %v1701 = vunpack.c.l.b16 %v1604
  %v1702 = vunpack.c.h.b16 %v1604
  %v1703 = vunpack.c.l.b16 %v1605
  %v1704 = vunpack.c.h.b16 %v1605
  %v1705 = vunpack.c.l.b16 %v1606
  %v1706 = vunpack.c.h.b16 %v1606
  %v1707 = vunpack.c.l.b16 %v1607
  %v1708 = vunpack.c.h.b16 %v1607
  %v1709 = vunpack.c.l.b16 %v1608
  %v1710 = vunpack.c.h.b16 %v1608
  %v1711 = vunpack.c.l.b16 %v1609
  %v1712 = vunpack.c.h.b16 %v1609
  %v1713 = vunpack.c.l.b16 %v1610
  %v1714 = vunpack.c.h.b16 %v1610
  %v1715 = vunpack.c.l.b16 %v1611
  %v1716 = vunpack.c.h.b16 %v1611
  %v1717 = vunpack.c.l.b16 %v1612
  %v1718 = vunpack.c.h.b16 %v1612
  %v1719 = vunpack.c.l.b16 %v1613
  %v1720 = vunpack.c.h.b16 %v1613
  %v1721 = vunpack.c.l.b16 %v1614
  %v1722 = vunpack.c.h.b16 %v1614
  %v1723 = vunpack.c.l.b16 %v1615
  %v1724 = vunpack.c.h.b16 %v1615
  %v1725 = vunpack.c.l.b16 %v1616
  %v1726 = vunpack.c.h.b16 %v1616
  %v1727 = vunpack.c.l.b16 %v1617
  %v1728 = vunpack.c.h.b16 %v1617
  %v1729 = vunpack.c.l.b16 %v1618
  %v1730 = vunpack.c.h.b16 %v1618
  %v1731 = vunpack.c.l.b16 %v1619
  %v1732 = vunpack.c.h.b16 %v1619
  %v1733 = vunpack.c.l.b16 %v1620
  %v1734 = vunpack.c.h.b16 %v1620
  %v1735 = vunpack.c.l.b16 %v1621
  %v1736 = vunpack.c.h.b16 %v1621
  %v1737 = vunpack.c.l.b16 %v1622
  %v1738 = vunpack.c.h.b16 %v1622
  %v1739 = vunpack.c.l.b16 %v1623
  %v1740 = vunpack.c.h.b16 %v1623
  %v1741 = vunpack.c.l.b16 %v1624
  %v1742 = vunpack.c.h.b16 %v1624
  %v1743 = vunpack.c.l.b16 %v1625
  %v1744 = vunpack.c.h.b16 %v1625
  %v1745 = vunpack.c.l.b16 %v1626
  %v1746 = vunpack.c.h.b16 %v1626
  %v1747 = vunpack.c.l.b16 %v1627
  %v1748 = vunpack.c.h.b16 %v1627
  %v1749 = vunpack.c.l.b16 %v1628
  %v1750 = vunpack.c.h.b16 %v1628
  %v1751 = vunpack.c.l.b16 %v1629
  %v1752 = vunpack.c.h.b16 %v1629
  %v1753 = vunpack.c.l.b16 %v1630
  %v1754 = vunpack.c.h.b16 %v1630
  %v1755 = vunpack.c.l.b16 %v1631
  %v1756 = vunpack.c.h.b16 %v1631
  %v1757 = vunpack.c.l.b16 %v1632
  %v1758 = vunpack.c.h.b16 %v1632
  %v1759 = vunpack.c.l.b16 %v1633
  %v1760 = vunpack.c.h.b16 %v1633
  %v1761 = vunpack.c.l.b16 %v1634
  %v1762 = vunpack.c.h.b16 %v1634
  %v1763 = vunpack.c.l.b16 %v1635
  %v1764 = vunpack.c.h.b16 %v1635
  %v1765 = vunpack.c.l.b16 %v1636
  %v1766 = vunpack.c.h.b16 %v1636
  %v1767 = vunpack.c.l.b16 %v1637
  %v1768 = vunpack.c.h.b16 %v1637
  %v1769 = vunpack.c.l.b16 %v1638
  %v1770 = vunpack.c.h.b16 %v1638
  %v1771 = vunpack.c.l.b16 %v1639
  %v1772 = vunpack.c.h.b16 %v1639
  %v1773 = vunpack.c.l.b16 %v1640
  %v1774 = vunpack.c.h.b16 %v1640
  %v1775 = vunpack.c.l.b16 %v1641
  %v1776 = vunpack.c.h.b16 %v1641
  %v1777 = vunpack.c.l.b16 %v1642
  %v1778 = vunpack.c.h.b16 %v1642
  %v1779 = vunpack.c.l.b16 %v1643
  %v1780 = vunpack.c.h.b16 %v1643
  %v1781 = vunpack.c.l.b16 %v1644
  %v1782 = vunpack.c.h.b16 %v1644
  %v1783 = vunpack.c.l.b16 %v1645
  %v1784 = vunpack.c.h.b16 %v1645
  %v1785 = vunpack.c.l.b16 %v1646
  %v1786 = vunpack.c.h.b16 %v1646
  %v1787 = vunpack.c.l.b16 %v1647
  %v1788 = vunpack.c.h.b16 %v1647
  %v1789 = vunpack.c.l.b16 %v1648
  %v1790 = vunpack.c.h.b16 %v1648
  %v1791 = vunpack.c.l.b16 %v1649
  %v1792 = vunpack.c.h.b16 %v1649
  %v1793 = vunpack.c.l.b16 %v1650
  %v1794 = vunpack.c.h.b16 %v1650
  %v1795 = vpack.c.b16 %v1705, %v1699
  %v1796 = vpack.c.b16 %v1706, %v1700
  %v1797 = vpack.c.b16 %v1707, %v1701
  %v1798 = vpack.c.b16 %v1708, %v1702
  %v1799 = vpack.c.b16 %v1709, %v1703
  %v1800 = vpack.c.b16 %v1710, %v1704
  %v1801 = vpack.c.b16 %v1717, %v1711
  %v1802 = vpack.c.b16 %v1718, %v1712
  %v1803 = vpack.c.b16 %v1719, %v1713
  %v1804 = vpack.c.b16 %v1720, %v1714
  %v1805 = vpack.c.b16 %v1721, %v1715
  %v1806 = vpack.c.b16 %v1722, %v1716
  %v1807 = vpack.c.b16 %v1729, %v1723
  %v1808 = vpack.c.b16 %v1730, %v1724
  %v1809 = vpack.c.b16 %v1731, %v1725
  %v1810 = vpack.c.b16 %v1732, %v1726
  %v1811 = vpack.c.b16 %v1733, %v1727
  %v1812 = vpack.c.b16 %v1734, %v1728
  %v1813 = vpack.c.b16 %v1741, %v1735
  %v1814 = vpack.c.b16 %v1742, %v1736
  %v1815 = vpack.c.b16 %v1743, %v1737
  %v1816 = vpack.c.b16 %v1744, %v1738
  %v1817 = vpack.c.b16 %v1745, %v1739
  %v1818 = vpack.c.b16 %v1746, %v1740
  %v1819 = vpack.c.b16 %v1753, %v1747
  %v1820 = vpack.c.b16 %v1754, %v1748
  %v1821 = vpack.c.b16 %v1755, %v1749
  %v1822 = vpack.c.b16 %v1756, %v1750
  %v1823 = vpack.c.b16 %v1757, %v1751
  %v1824 = vpack.c.b16 %v1758, %v1752
  %v1825 = vpack.c.b16 %v1765, %v1759
  %v1826 = vpack.c.b16 %v1766, %v1760
  %v1827 = vpack.c.b16 %v1767, %v1761
  %v1828 = vpack.c.b16 %v1768, %v1762
  %v1829 = vpack.c.b16 %v1769, %v1763
  %v1830 = vpack.c.b16 %v1770, %v1764
  %v1831 = vpack.c.b16 %v1777, %v1771
  %v1832 = vpack.c.b16 %v1778, %v1772
  %v1833 = vpack.c.b16 %v1779, %v1773
  %v1834 = vpack.c.b16 %v1780, %v1774
  %v1835 = vpack.c.b16 %v1781, %v1775
  %v1836 = vpack.c.b16 %v1782, %v1776
  %v1837 = vpack.c.b16 %v1789, %v1783
  %v1838 = vpack.c.b16 %v1790, %v1784
  %v1839 = vpack.c.b16 %v1791, %v1785
  %v1840 = vpack.c.b16 %v1792, %v1786
  %v1841 = vpack.c.b16 %v1793, %v1787
  %v1842 = vpack.c.b16 %v1794, %v1788
  %v1884 = vsel %vm670, %v1800, 0
  %v1887 = vsel %vm670, %v1806, 0
  %v1890 = vsel %vm670, %v1812, 0
  %v1893 = vsel %vm670, %v1818, 0
  %v1896 = vsel %vm670, %v1824, 0
  %v1899 = vsel %vm670, %v1830, 0
  %v1902 = vsel %vm670, %v1836, 0
  %v1905 = vsel %vm670, %v1842, 0
  %1907 = vmatprep.subr.bf16.mxu0 0
  %1908 = vmatpush1.bf16.msra.mxu0 %v577
  %1909 = vmatprep.subr.bf16.mxu0 0
  %1910 = vmatpush1.bf16.msra.mxu0 %v578
  %1911 = vmatprep.subr.bf16.mxu0 0
  %1912 = vmatpush1.bf16.msra.mxu0 %v579
  %1913 = vmatprep.subr.bf16.mxu0 0
  %1914 = vmatpush1.bf16.msra.mxu0 %v580
  %1915 = vmatprep.subr.bf16.mxu0 0
  %1916 = vmatpush1.bf16.msra.mxu0 %v581
  %1917 = vmatprep.subr.bf16.mxu0 0
  %1918 = vmatpush1.bf16.msra.mxu0 %v582
  %1919 = vmatprep.subr.bf16.mxu0 0
  %1920 = vmatpush1.bf16.msra.mxu0 %v583
  %1921 = vmatprep.subr.bf16.mxu0 0
  %1922 = vmatpush1.bf16.msra.mxu0 %v584
  %1923 = vmatprep.subr.bf16.mxu0 0
  %1924 = vmatpush1.bf16.msra.mxu0 %v585
  %1925 = vmatprep.subr.bf16.mxu0 0
  %1926 = vmatpush1.bf16.msra.mxu0 %v586
  %1927 = vmatprep.subr.bf16.mxu0 0
  %1928 = vmatpush1.bf16.msra.mxu0 %v587
  %1929 = vmatprep.subr.bf16.mxu0 0
  %1930 = vmatpush1.bf16.msra.mxu0 %v588
  %1931 = vmatprep.subr.bf16.mxu0 0
  %1932 = vmatpush1.bf16.msra.mxu0 %v589
  %1933 = vmatprep.subr.bf16.mxu0 0
  %1934 = vmatpush1.bf16.msra.mxu0 %v590
  %1935 = vmatprep.subr.bf16.mxu0 0
  %1936 = vmatpush1.bf16.msra.mxu0 %v591
  %1937 = vmatprep.subr.bf16.mxu0 0
  %1938 = vmatpush1.bf16.msra.mxu0 %v592
  %1939 = vmatprep.mubr.bf16.mxu0 %v1796
  %1940 = vmatmul.mubr.bf16.gmra.mrb[0].mxu0 %v1795
  %v1941 = vpop.f32.mrb[0].mxu0
  %v1942 = vadd.f32 0.0, %v1941
  %v1943 = vpop.f32.mrb[0].mxu0
  %v1944 = vpop.f32.mrb[0].mxu0
  %v1945 = vadd.f32 0.0, %v1944
  %v1946 = vpop.f32.mrb[0].mxu0
  %1947 = vmatprep.mubr.bf16.mxu0 %v1802
  %1948 = vmatmul.mubr.bf16.gmra.mrb[0].mxu0 %v1801
  %v1949 = vpop.f32.mrb[0].mxu0
  %v1950 = vadd.f32 0.0, %v1949
  %v1951 = vpop.f32.mrb[0].mxu0
  %v1952 = vpop.f32.mrb[0].mxu0
  %v1953 = vadd.f32 0.0, %v1952
  %v1954 = vpop.f32.mrb[0].mxu0
  %1955 = vmatprep.mubr.bf16.mxu0 %v1808
  %1956 = vmatmul.mubr.bf16.gmra.mrb[0].mxu0 %v1807
  %v1957 = vpop.f32.mrb[0].mxu0
  %v1958 = vadd.f32 0.0, %v1957
  %v1959 = vpop.f32.mrb[0].mxu0
  %v1960 = vpop.f32.mrb[0].mxu0
  %v1961 = vadd.f32 0.0, %v1960
  %v1962 = vpop.f32.mrb[0].mxu0
  %1963 = vmatprep.mubr.bf16.mxu0 %v1814
  %1964 = vmatmul.mubr.bf16.gmra.mrb[0].mxu0 %v1813
  %v1965 = vpop.f32.mrb[0].mxu0
  %v1966 = vadd.f32 0.0, %v1965
  %v1967 = vpop.f32.mrb[0].mxu0
  %v1968 = vpop.f32.mrb[0].mxu0
  %v1969 = vadd.f32 0.0, %v1968
  %v1970 = vpop.f32.mrb[0].mxu0
  %1971 = vmatprep.mubr.bf16.mxu0 %v1820
  %1972 = vmatmul.mubr.bf16.gmra.mrb[0].mxu0 %v1819
  %v1973 = vpop.f32.mrb[0].mxu0
  %v1974 = vadd.f32 0.0, %v1973
  %v1975 = vpop.f32.mrb[0].mxu0
  %v1976 = vpop.f32.mrb[0].mxu0
  %v1977 = vadd.f32 0.0, %v1976
  %v1978 = vpop.f32.mrb[0].mxu0
  %1979 = vmatprep.mubr.bf16.mxu0 %v1826
  %1980 = vmatmul.mubr.bf16.gmra.mrb[0].mxu0 %v1825
  %v1981 = vpop.f32.mrb[0].mxu0
  %v1982 = vadd.f32 0.0, %v1981
  %v1983 = vpop.f32.mrb[0].mxu0
  %v1984 = vpop.f32.mrb[0].mxu0
  %v1985 = vadd.f32 0.0, %v1984
  %v1986 = vpop.f32.mrb[0].mxu0
  %1987 = vmatprep.mubr.bf16.mxu0 %v1832
  %1988 = vmatmul.mubr.bf16.gmra.mrb[0].mxu0 %v1831
  %v1989 = vpop.f32.mrb[0].mxu0
  %v1990 = vadd.f32 0.0, %v1989
  %v1991 = vpop.f32.mrb[0].mxu0
  %v1992 = vpop.f32.mrb[0].mxu0
  %v1993 = vadd.f32 0.0, %v1992
  %v1994 = vpop.f32.mrb[0].mxu0
  %1995 = vmatprep.mubr.bf16.mxu0 %v1838
  %1996 = vmatmul.mubr.bf16.gmra.mrb[0].mxu0 %v1837
  %v1997 = vpop.f32.mrb[0].mxu0
  %v1998 = vadd.f32 0.0, %v1997
  %v1999 = vpop.f32.mrb[0].mxu0
  %v2000 = vpop.f32.mrb[0].mxu0
  %v2001 = vadd.f32 0.0, %v2000
  %v2002 = vpop.f32.mrb[0].mxu0
  %2003 = vdwg.mxu0
  %2004 = vmatprep.subr.bf16.mxu0 0
  %2005 = vmatpush1.bf16.msra.mxu0 %v593
  %2006 = vmatprep.subr.bf16.mxu0 0
  %2007 = vmatpush1.bf16.msra.mxu0 %v594
  %2008 = vmatprep.subr.bf16.mxu0 0
  %2009 = vmatpush1.bf16.msra.mxu0 %v595
  %2010 = vmatprep.subr.bf16.mxu0 0
  %2011 = vmatpush1.bf16.msra.mxu0 %v596
  %2012 = vmatprep.subr.bf16.mxu0 0
  %2013 = vmatpush1.bf16.msra.mxu0 %v597
  %2014 = vmatprep.subr.bf16.mxu0 0
  %2015 = vmatpush1.bf16.msra.mxu0 %v598
  %2016 = vmatprep.subr.bf16.mxu0 0
  %2017 = vmatpush1.bf16.msra.mxu0 %v599
  %2018 = vmatprep.subr.bf16.mxu0 0
  %2019 = vmatpush1.bf16.msra.mxu0 %v600
  %2020 = vmatprep.subr.bf16.mxu0 0
  %2021 = vmatpush1.bf16.msra.mxu0 %v601
  %2022 = vmatprep.subr.bf16.mxu0 0
  %2023 = vmatpush1.bf16.msra.mxu0 %v602
  %2024 = vmatprep.subr.bf16.mxu0 0
  %2025 = vmatpush1.bf16.msra.mxu0 %v603
  %2026 = vmatprep.subr.bf16.mxu0 0
  %2027 = vmatpush1.bf16.msra.mxu0 %v604
  %2028 = vmatprep.subr.bf16.mxu0 0
  %2029 = vmatpush1.bf16.msra.mxu0 %v605
  %2030 = vmatprep.subr.bf16.mxu0 0
  %2031 = vmatpush1.bf16.msra.mxu0 %v606
  %2032 = vmatprep.subr.bf16.mxu0 0
  %2033 = vmatpush1.bf16.msra.mxu0 %v607
  %2034 = vmatprep.subr.bf16.mxu0 0
  %2035 = vmatpush1.bf16.msra.mxu0 %v608
  %2036 = vmatprep.mubr.bf16.mxu0 %v1798
  %2037 = vmatmul.mubr.bf16.gmra.mrb[0].mxu0 %v1797
  %v2038 = vpop.f32.mrb[0].mxu0
  %v2039 = vadd.f32 %v1942, %v2038
  %v2040 = vpop.f32.mrb[0].mxu0
  %v2041 = vpop.f32.mrb[0].mxu0
  %v2042 = vadd.f32 %v1945, %v2041
  %v2043 = vpop.f32.mrb[0].mxu0
  %2044 = vmatprep.mubr.bf16.mxu0 %v1804
  %2045 = vmatmul.mubr.bf16.gmra.mrb[0].mxu0 %v1803
  %v2046 = vpop.f32.mrb[0].mxu0
  %v2047 = vadd.f32 %v1950, %v2046
  %v2048 = vpop.f32.mrb[0].mxu0
  %v2049 = vpop.f32.mrb[0].mxu0
  %v2050 = vadd.f32 %v1953, %v2049
  %v2051 = vpop.f32.mrb[0].mxu0
  %2052 = vmatprep.mubr.bf16.mxu0 %v1810
  %2053 = vmatmul.mubr.bf16.gmra.mrb[0].mxu0 %v1809
  %v2054 = vpop.f32.mrb[0].mxu0
  %v2055 = vadd.f32 %v1958, %v2054
  %v2056 = vpop.f32.mrb[0].mxu0
  %v2057 = vpop.f32.mrb[0].mxu0
  %v2058 = vadd.f32 %v1961, %v2057
  %v2059 = vpop.f32.mrb[0].mxu0
  %2060 = vmatprep.mubr.bf16.mxu0 %v1816
  %2061 = vmatmul.mubr.bf16.gmra.mrb[0].mxu0 %v1815
  %v2062 = vpop.f32.mrb[0].mxu0
  %v2063 = vadd.f32 %v1966, %v2062
  %v2064 = vpop.f32.mrb[0].mxu0
  %v2065 = vpop.f32.mrb[0].mxu0
  %v2066 = vadd.f32 %v1969, %v2065
  %v2067 = vpop.f32.mrb[0].mxu0
  %2068 = vmatprep.mubr.bf16.mxu0 %v1822
  %2069 = vmatmul.mubr.bf16.gmra.mrb[0].mxu0 %v1821
  %v2070 = vpop.f32.mrb[0].mxu0
  %v2071 = vadd.f32 %v1974, %v2070
  %v2072 = vpop.f32.mrb[0].mxu0
  %v2073 = vpop.f32.mrb[0].mxu0
  %v2074 = vadd.f32 %v1977, %v2073
  %v2075 = vpop.f32.mrb[0].mxu0
  %2076 = vmatprep.mubr.bf16.mxu0 %v1828
  %2077 = vmatmul.mubr.bf16.gmra.mrb[0].mxu0 %v1827
  %v2078 = vpop.f32.mrb[0].mxu0
  %v2079 = vadd.f32 %v1982, %v2078
  %v2080 = vpop.f32.mrb[0].mxu0
  %v2081 = vpop.f32.mrb[0].mxu0
  %v2082 = vadd.f32 %v1985, %v2081
  %v2083 = vpop.f32.mrb[0].mxu0
  %2084 = vmatprep.mubr.bf16.mxu0 %v1834
  %2085 = vmatmul.mubr.bf16.gmra.mrb[0].mxu0 %v1833
  %v2086 = vpop.f32.mrb[0].mxu0
  %v2087 = vadd.f32 %v1990, %v2086
  %v2088 = vpop.f32.mrb[0].mxu0
  %v2089 = vpop.f32.mrb[0].mxu0
  %v2090 = vadd.f32 %v1993, %v2089
  %v2091 = vpop.f32.mrb[0].mxu0
  %2092 = vmatprep.mubr.bf16.mxu0 %v1840
  %2093 = vmatmul.mubr.bf16.gmra.mrb[0].mxu0 %v1839
  %v2094 = vpop.f32.mrb[0].mxu0
  %v2095 = vadd.f32 %v1998, %v2094
  %v2096 = vpop.f32.mrb[0].mxu0
  %v2097 = vpop.f32.mrb[0].mxu0
  %v2098 = vadd.f32 %v2001, %v2097
  %v2099 = vpop.f32.mrb[0].mxu0
  %2100 = vdwg.mxu0
  %2101 = vmatprep.subr.bf16.mxu0 0
  %2102 = vmatpush1.bf16.msra.mxu0 %v609
  %2103 = vmatprep.subr.bf16.mxu0 0
  %2104 = vmatpush1.bf16.msra.mxu0 %v610
  %2105 = vmatprep.subr.bf16.mxu0 0
  %2106 = vmatpush1.bf16.msra.mxu0 %v611
  %2107 = vmatprep.subr.bf16.mxu0 0
  %2108 = vmatpush1.bf16.msra.mxu0 %v612
  %2109 = vmatprep.subr.bf16.mxu0 0
  %2110 = vmatpush1.bf16.msra.mxu0 %v613
  %2111 = vmatprep.subr.bf16.mxu0 0
  %2112 = vmatpush1.bf16.msra.mxu0 %v614
  %2113 = vmatprep.subr.bf16.mxu0 0
  %2114 = vmatpush1.bf16.msra.mxu0 %v615
  %2115 = vmatprep.subr.bf16.mxu0 0
  %2116 = vmatpush1.bf16.msra.mxu0 %v616
  %2117 = vmatprep.subr.bf16.mxu0 0
  %2118 = vmatpush1.bf16.msra.mxu0 %v617
  %2119 = vmatprep.subr.bf16.mxu0 0
  %2120 = vmatpush1.bf16.msra.mxu0 %v618
  %2121 = vmatprep.subr.bf16.mxu0 0
  %2122 = vmatpush1.bf16.msra.mxu0 %v619
  %2123 = vmatprep.subr.bf16.mxu0 0
  %2124 = vmatpush1.bf16.msra.mxu0 %v620
  %2125 = vmatprep.subr.bf16.mxu0 0
  %2126 = vmatpush1.bf16.msra.mxu0 %v621
  %2127 = vmatprep.subr.bf16.mxu0 0
  %2128 = vmatpush1.bf16.msra.mxu0 %v622
  %2129 = vmatprep.subr.bf16.mxu0 0
  %2130 = vmatpush1.bf16.msra.mxu0 %v697
  %2131 = vmatprep.subr.bf16.mxu0 0
  %2132 = vmatpush1.bf16.msra.mxu0 0
  %2133 = vmatprep.mubr.bf16.mxu0 %v1884
  %2134 = vmatmul.mubr.bf16.gmra.mrb[0].mxu0 %v1799
  %v2135 = vpop.f32.mrb[0].mxu0
  %v2136 = vadd.f32 %v2039, %v2135
  %v2137 = vpop.f32.mrb[0].mxu0
  %v2138 = vpop.f32.mrb[0].mxu0
  %v2139 = vadd.f32 %v2042, %v2138
  %v2140 = vpop.f32.mrb[0].mxu0
  %2141 = vmatprep.mubr.bf16.mxu0 %v1887
  %2142 = vmatmul.mubr.bf16.gmra.mrb[0].mxu0 %v1805
  %v2143 = vpop.f32.mrb[0].mxu0
  %v2144 = vadd.f32 %v2047, %v2143
  %v2145 = vpop.f32.mrb[0].mxu0
  %v2146 = vpop.f32.mrb[0].mxu0
  %v2147 = vadd.f32 %v2050, %v2146
  %v2148 = vpop.f32.mrb[0].mxu0
  %2149 = vmatprep.mubr.bf16.mxu0 %v1890
  %2150 = vmatmul.mubr.bf16.gmra.mrb[0].mxu0 %v1811
  %v2151 = vpop.f32.mrb[0].mxu0
  %v2152 = vadd.f32 %v2055, %v2151
  %v2153 = vpop.f32.mrb[0].mxu0
  %v2154 = vpop.f32.mrb[0].mxu0
  %v2155 = vadd.f32 %v2058, %v2154
  %v2156 = vpop.f32.mrb[0].mxu0
  %2157 = vmatprep.mubr.bf16.mxu0 %v1893
  %2158 = vmatmul.mubr.bf16.gmra.mrb[0].mxu0 %v1817
  %v2159 = vpop.f32.mrb[0].mxu0
  %v2160 = vadd.f32 %v2063, %v2159
  %v2161 = vpop.f32.mrb[0].mxu0
  %v2162 = vpop.f32.mrb[0].mxu0
  %v2163 = vadd.f32 %v2066, %v2162
  %v2164 = vpop.f32.mrb[0].mxu0
  %2165 = vmatprep.mubr.bf16.mxu0 %v1896
  %2166 = vmatmul.mubr.bf16.gmra.mrb[0].mxu0 %v1823
  %v2167 = vpop.f32.mrb[0].mxu0
  %v2168 = vadd.f32 %v2071, %v2167
  %v2169 = vpop.f32.mrb[0].mxu0
  %v2170 = vpop.f32.mrb[0].mxu0
  %v2171 = vadd.f32 %v2074, %v2170
  %v2172 = vpop.f32.mrb[0].mxu0
  %2173 = vmatprep.mubr.bf16.mxu0 %v1899
  %2174 = vmatmul.mubr.bf16.gmra.mrb[0].mxu0 %v1829
  %v2175 = vpop.f32.mrb[0].mxu0
  %v2176 = vadd.f32 %v2079, %v2175
  %v2177 = vpop.f32.mrb[0].mxu0
  %v2178 = vpop.f32.mrb[0].mxu0
  %v2179 = vadd.f32 %v2082, %v2178
  %v2180 = vpop.f32.mrb[0].mxu0
  %2181 = vmatprep.mubr.bf16.mxu0 %v1902
  %2182 = vmatmul.mubr.bf16.gmra.mrb[0].mxu0 %v1835
  %v2183 = vpop.f32.mrb[0].mxu0
  %v2184 = vadd.f32 %v2087, %v2183
  %v2185 = vpop.f32.mrb[0].mxu0
  %v2186 = vpop.f32.mrb[0].mxu0
  %v2187 = vadd.f32 %v2090, %v2186
  %v2188 = vpop.f32.mrb[0].mxu0
  %2189 = vmatprep.mubr.bf16.mxu0 %v1905
  %2190 = vmatmul.mubr.bf16.gmra.mrb[0].mxu0 %v1841
  %v2191 = vpop.f32.mrb[0].mxu0
  %v2192 = vadd.f32 %v2095, %v2191
  %v2193 = vpop.f32.mrb[0].mxu0
  %v2194 = vpop.f32.mrb[0].mxu0
  %v2195 = vadd.f32 %v2098, %v2194
  %v2196 = vpop.f32.mrb[0].mxu0
  %2197 = vdwg.mxu0
  %v2198 = vmax.f32 %v1586, %v2136
  %v2199 = vmax.f32 %v1587, %v2139
  %v2200 = vmax.f32 %v1588, %v2144
  %v2201 = vmax.f32 %v1589, %v2147
  %v2202 = vmax.f32 %v1590, %v2152
  %v2203 = vmax.f32 %v1591, %v2155
  %v2204 = vmax.f32 %v1592, %v2160
  %v2205 = vmax.f32 %v1593, %v2163
  %v2206 = vmax.f32 %v1594, %v2168
  %v2207 = vmax.f32 %v1595, %v2171
  %v2208 = vmax.f32 %v1596, %v2176
  %v2209 = vmax.f32 %v1597, %v2179
  %v2210 = vmax.f32 %v1598, %v2184
  %v2211 = vmax.f32 %v1599, %v2187
  %v2212 = vmax.f32 %v1600, %v2192
  %v2213 = vmax.f32 %v1601, %v2195
  %s2214 = scalar_lea.vmem %s0, 1152
  %v2215 = vld [vmem:[%s2214] sm:$0xff]
  %v2216 = vld [vmem:[%s2214 + $0x8] sm:$0xff]
  %v2217 = vld [vmem:[%s2214 + $0x10] sm:$0xff]
  %v2218 = vld [vmem:[%s2214 + $0x18] sm:$0xff]
  %v2219 = vld [vmem:[%s2214 + $0x20] sm:$0xff]
  %v2220 = vld [vmem:[%s2214 + $0x28] sm:$0xff]
  %v2221 = vld [vmem:[%s2214 + $0x30] sm:$0xff]
  %v2222 = vld [vmem:[%s2214 + $0x38] sm:$0xff]
  %v2223 = vld [vmem:[%s2214 + $0x40] sm:$0xff]
  %v2224 = vld [vmem:[%s2214 + $0x48] sm:$0xff]
  %v2225 = vld [vmem:[%s2214 + $0x50] sm:$0xff]
  %v2226 = vld [vmem:[%s2214 + $0x58] sm:$0xff]
  %v2227 = vld [vmem:[%s2214 + $0x60] sm:$0xff]
  %v2228 = vld [vmem:[%s2214 + $0x68] sm:$0xff]
  %v2229 = vld [vmem:[%s2214 + $0x70] sm:$0xff]
  %v2230 = vld [vmem:[%s2214 + $0x78] sm:$0xff]
  %v2231 = vld [vmem:[%s2214 + $0x80] sm:$0xff]
  %v2232 = vld [vmem:[%s2214 + $0x88] sm:$0xff]
  %v2233 = vld [vmem:[%s2214 + $0x90] sm:$0xff]
  %v2234 = vld [vmem:[%s2214 + $0x98] sm:$0xff]
  %v2235 = vld [vmem:[%s2214 + $0xa0] sm:$0xff]
  %v2236 = vld [vmem:[%s2214 + $0xa8] sm:$0xff]
  %v2237 = vld [vmem:[%s2214 + $0xb0] sm:$0xff]
  %v2238 = vld [vmem:[%s2214 + $0xb8] sm:$0xff]
  %v2239 = vld [vmem:[%s2214 + $0xc0] sm:$0xff]
  %v2240 = vld [vmem:[%s2214 + $0xc8] sm:$0xff]
  %v2241 = vld [vmem:[%s2214 + $0xd0] sm:$0xff]
  %v2242 = vld [vmem:[%s2214 + $0xd8] sm:$0xff]
  %v2243 = vld [vmem:[%s2214 + $0xe0] sm:$0xff]
  %v2244 = vld [vmem:[%s2214 + $0xe8] sm:$0xff]
  %v2245 = vld [vmem:[%s2214 + $0xf0] sm:$0xff]
  %v2246 = vld [vmem:[%s2214 + $0xf8] sm:$0xff]
  %v2247 = vld [vmem:[%s2214 + $0x100] sm:$0xff]
  %v2248 = vld [vmem:[%s2214 + $0x108] sm:$0xff]
  %v2249 = vld [vmem:[%s2214 + $0x110] sm:$0xff]
  %v2250 = vld [vmem:[%s2214 + $0x118] sm:$0xff]
  %v2251 = vld [vmem:[%s2214 + $0x120] sm:$0xff]
  %v2252 = vld [vmem:[%s2214 + $0x128] sm:$0xff]
  %v2253 = vld [vmem:[%s2214 + $0x130] sm:$0xff]
  %v2254 = vld [vmem:[%s2214 + $0x138] sm:$0xff]
  %v2255 = vld [vmem:[%s2214 + $0x140] sm:$0xff]
  %v2256 = vld [vmem:[%s2214 + $0x148] sm:$0xff]
  %v2257 = vld [vmem:[%s2214 + $0x150] sm:$0xff]
  %v2258 = vld [vmem:[%s2214 + $0x158] sm:$0xff]
  %v2259 = vld [vmem:[%s2214 + $0x160] sm:$0xff]
  %v2260 = vld [vmem:[%s2214 + $0x168] sm:$0xff]
  %v2261 = vld [vmem:[%s2214 + $0x170] sm:$0xff]
  %v2262 = vld [vmem:[%s2214 + $0x178] sm:$0xff]
  %v2311 = vunpack.c.l.b16 %v2215
  %v2312 = vunpack.c.h.b16 %v2215
  %v2313 = vunpack.c.l.b16 %v2216
  %v2314 = vunpack.c.h.b16 %v2216
  %v2315 = vunpack.c.l.b16 %v2217
  %v2316 = vunpack.c.h.b16 %v2217
  %v2317 = vunpack.c.l.b16 %v2218
  %v2318 = vunpack.c.h.b16 %v2218
  %v2319 = vunpack.c.l.b16 %v2219
  %v2320 = vunpack.c.h.b16 %v2219
  %v2321 = vunpack.c.l.b16 %v2220
  %v2322 = vunpack.c.h.b16 %v2220
  %v2323 = vunpack.c.l.b16 %v2221
  %v2324 = vunpack.c.h.b16 %v2221
  %v2325 = vunpack.c.l.b16 %v2222
  %v2326 = vunpack.c.h.b16 %v2222
  %v2327 = vunpack.c.l.b16 %v2223
  %v2328 = vunpack.c.h.b16 %v2223
  %v2329 = vunpack.c.l.b16 %v2224
  %v2330 = vunpack.c.h.b16 %v2224
  %v2331 = vunpack.c.l.b16 %v2225
  %v2332 = vunpack.c.h.b16 %v2225
  %v2333 = vunpack.c.l.b16 %v2226
  %v2334 = vunpack.c.h.b16 %v2226
  %v2335 = vunpack.c.l.b16 %v2227
  %v2336 = vunpack.c.h.b16 %v2227
  %v2337 = vunpack.c.l.b16 %v2228
  %v2338 = vunpack.c.h.b16 %v2228
  %v2339 = vunpack.c.l.b16 %v2229
  %v2340 = vunpack.c.h.b16 %v2229
  %v2341 = vunpack.c.l.b16 %v2230
  %v2342 = vunpack.c.h.b16 %v2230
  %v2343 = vunpack.c.l.b16 %v2231
  %v2344 = vunpack.c.h.b16 %v2231
  %v2345 = vunpack.c.l.b16 %v2232
  %v2346 = vunpack.c.h.b16 %v2232
  %v2347 = vunpack.c.l.b16 %v2233
  %v2348 = vunpack.c.h.b16 %v2233
  %v2349 = vunpack.c.l.b16 %v2234
  %v2350 = vunpack.c.h.b16 %v2234
  %v2351 = vunpack.c.l.b16 %v2235
  %v2352 = vunpack.c.h.b16 %v2235
  %v2353 = vunpack.c.l.b16 %v2236
  %v2354 = vunpack.c.h.b16 %v2236
  %v2355 = vunpack.c.l.b16 %v2237
  %v2356 = vunpack.c.h.b16 %v2237
  %v2357 = vunpack.c.l.b16 %v2238
  %v2358 = vunpack.c.h.b16 %v2238
  %v2359 = vunpack.c.l.b16 %v2239
  %v2360 = vunpack.c.h.b16 %v2239
  %v2361 = vunpack.c.l.b16 %v2240
  %v2362 = vunpack.c.h.b16 %v2240
  %v2363 = vunpack.c.l.b16 %v2241
  %v2364 = vunpack.c.h.b16 %v2241
  %v2365 = vunpack.c.l.b16 %v2242
  %v2366 = vunpack.c.h.b16 %v2242
  %v2367 = vunpack.c.l.b16 %v2243
  %v2368 = vunpack.c.h.b16 %v2243
  %v2369 = vunpack.c.l.b16 %v2244
  %v2370 = vunpack.c.h.b16 %v2244
  %v2371 = vunpack.c.l.b16 %v2245
  %v2372 = vunpack.c.h.b16 %v2245
  %v2373 = vunpack.c.l.b16 %v2246
  %v2374 = vunpack.c.h.b16 %v2246
  %v2375 = vunpack.c.l.b16 %v2247
  %v2376 = vunpack.c.h.b16 %v2247
  %v2377 = vunpack.c.l.b16 %v2248
  %v2378 = vunpack.c.h.b16 %v2248
  %v2379 = vunpack.c.l.b16 %v2249
  %v2380 = vunpack.c.h.b16 %v2249
  %v2381 = vunpack.c.l.b16 %v2250
  %v2382 = vunpack.c.h.b16 %v2250
  %v2383 = vunpack.c.l.b16 %v2251
  %v2384 = vunpack.c.h.b16 %v2251
  %v2385 = vunpack.c.l.b16 %v2252
  %v2386 = vunpack.c.h.b16 %v2252
  %v2387 = vunpack.c.l.b16 %v2253
  %v2388 = vunpack.c.h.b16 %v2253
  %v2389 = vunpack.c.l.b16 %v2254
  %v2390 = vunpack.c.h.b16 %v2254
  %v2391 = vunpack.c.l.b16 %v2255
  %v2392 = vunpack.c.h.b16 %v2255
  %v2393 = vunpack.c.l.b16 %v2256
  %v2394 = vunpack.c.h.b16 %v2256
  %v2395 = vunpack.c.l.b16 %v2257
  %v2396 = vunpack.c.h.b16 %v2257
  %v2397 = vunpack.c.l.b16 %v2258
  %v2398 = vunpack.c.h.b16 %v2258
  %v2399 = vunpack.c.l.b16 %v2259
  %v2400 = vunpack.c.h.b16 %v2259
  %v2401 = vunpack.c.l.b16 %v2260
  %v2402 = vunpack.c.h.b16 %v2260
  %v2403 = vunpack.c.l.b16 %v2261
  %v2404 = vunpack.c.h.b16 %v2261
  %v2405 = vunpack.c.l.b16 %v2262
  %v2406 = vunpack.c.h.b16 %v2262
  %v2407 = vpack.c.b16 %v2317, %v2311
  %v2408 = vpack.c.b16 %v2318, %v2312
  %v2409 = vpack.c.b16 %v2319, %v2313
  %v2410 = vpack.c.b16 %v2320, %v2314
  %v2411 = vpack.c.b16 %v2321, %v2315
  %v2412 = vpack.c.b16 %v2322, %v2316
  %v2413 = vpack.c.b16 %v2329, %v2323
  %v2414 = vpack.c.b16 %v2330, %v2324
  %v2415 = vpack.c.b16 %v2331, %v2325
  %v2416 = vpack.c.b16 %v2332, %v2326
  %v2417 = vpack.c.b16 %v2333, %v2327
  %v2418 = vpack.c.b16 %v2334, %v2328
  %v2419 = vpack.c.b16 %v2341, %v2335
  %v2420 = vpack.c.b16 %v2342, %v2336
  %v2421 = vpack.c.b16 %v2343, %v2337
  %v2422 = vpack.c.b16 %v2344, %v2338
  %v2423 = vpack.c.b16 %v2345, %v2339
  %v2424 = vpack.c.b16 %v2346, %v2340
  %v2425 = vpack.c.b16 %v2353, %v2347
  %v2426 = vpack.c.b16 %v2354, %v2348
  %v2427 = vpack.c.b16 %v2355, %v2349
  %v2428 = vpack.c.b16 %v2356, %v2350
  %v2429 = vpack.c.b16 %v2357, %v2351
  %v2430 = vpack.c.b16 %v2358, %v2352
  %v2431 = vpack.c.b16 %v2365, %v2359
  %v2432 = vpack.c.b16 %v2366, %v2360
  %v2433 = vpack.c.b16 %v2367, %v2361
  %v2434 = vpack.c.b16 %v2368, %v2362
  %v2435 = vpack.c.b16 %v2369, %v2363
  %v2436 = vpack.c.b16 %v2370, %v2364
  %v2437 = vpack.c.b16 %v2377, %v2371
  %v2438 = vpack.c.b16 %v2378, %v2372
  %v2439 = vpack.c.b16 %v2379, %v2373
  %v2440 = vpack.c.b16 %v2380, %v2374
  %v2441 = vpack.c.b16 %v2381, %v2375
  %v2442 = vpack.c.b16 %v2382, %v2376
  %v2443 = vpack.c.b16 %v2389, %v2383
  %v2444 = vpack.c.b16 %v2390, %v2384
  %v2445 = vpack.c.b16 %v2391, %v2385
  %v2446 = vpack.c.b16 %v2392, %v2386
  %v2447 = vpack.c.b16 %v2393, %v2387
  %v2448 = vpack.c.b16 %v2394, %v2388
  %v2449 = vpack.c.b16 %v2401, %v2395
  %v2450 = vpack.c.b16 %v2402, %v2396
  %v2451 = vpack.c.b16 %v2403, %v2397
  %v2452 = vpack.c.b16 %v2404, %v2398
  %v2453 = vpack.c.b16 %v2405, %v2399
  %v2454 = vpack.c.b16 %v2406, %v2400
  %v2496 = vsel %vm670, %v2412, 0
  %v2499 = vsel %vm670, %v2418, 0
  %v2502 = vsel %vm670, %v2424, 0
  %v2505 = vsel %vm670, %v2430, 0
  %v2508 = vsel %vm670, %v2436, 0
  %v2511 = vsel %vm670, %v2442, 0
  %v2514 = vsel %vm670, %v2448, 0
  %v2517 = vsel %vm670, %v2454, 0
  %2519 = vmatprep.subr.bf16.mxu0 0
  %2520 = vmatpush1.bf16.msra.mxu0 %v577
  %2521 = vmatprep.subr.bf16.mxu0 0
  %2522 = vmatpush1.bf16.msra.mxu0 %v578
  %2523 = vmatprep.subr.bf16.mxu0 0
  %2524 = vmatpush1.bf16.msra.mxu0 %v579
  %2525 = vmatprep.subr.bf16.mxu0 0
  %2526 = vmatpush1.bf16.msra.mxu0 %v580
  %2527 = vmatprep.subr.bf16.mxu0 0
  %2528 = vmatpush1.bf16.msra.mxu0 %v581
  %2529 = vmatprep.subr.bf16.mxu0 0
  %2530 = vmatpush1.bf16.msra.mxu0 %v582
  %2531 = vmatprep.subr.bf16.mxu0 0
  %2532 = vmatpush1.bf16.msra.mxu0 %v583
  %2533 = vmatprep.subr.bf16.mxu0 0
  %2534 = vmatpush1.bf16.msra.mxu0 %v584
  %2535 = vmatprep.subr.bf16.mxu0 0
  %2536 = vmatpush1.bf16.msra.mxu0 %v585
  %2537 = vmatprep.subr.bf16.mxu0 0
  %2538 = vmatpush1.bf16.msra.mxu0 %v586
  %2539 = vmatprep.subr.bf16.mxu0 0
  %2540 = vmatpush1.bf16.msra.mxu0 %v587
  %2541 = vmatprep.subr.bf16.mxu0 0
  %2542 = vmatpush1.bf16.msra.mxu0 %v588
  %2543 = vmatprep.subr.bf16.mxu0 0
  %2544 = vmatpush1.bf16.msra.mxu0 %v589
  %2545 = vmatprep.subr.bf16.mxu0 0
  %2546 = vmatpush1.bf16.msra.mxu0 %v590
  %2547 = vmatprep.subr.bf16.mxu0 0
  %2548 = vmatpush1.bf16.msra.mxu0 %v591
  %2549 = vmatprep.subr.bf16.mxu0 0
  %2550 = vmatpush1.bf16.msra.mxu0 %v592
  %2551 = vmatprep.mubr.bf16.mxu0 %v2408
  %2552 = vmatmul.mubr.bf16.gmra.mrb[0].mxu0 %v2407
  %v2553 = vpop.f32.mrb[0].mxu0
  %v2554 = vadd.f32 0.0, %v2553
  %v2555 = vpop.f32.mrb[0].mxu0
  %v2556 = vpop.f32.mrb[0].mxu0
  %v2557 = vadd.f32 0.0, %v2556
  %v2558 = vpop.f32.mrb[0].mxu0
  %2559 = vmatprep.mubr.bf16.mxu0 %v2414
  %2560 = vmatmul.mubr.bf16.gmra.mrb[0].mxu0 %v2413
  %v2561 = vpop.f32.mrb[0].mxu0
  %v2562 = vadd.f32 0.0, %v2561
  %v2563 = vpop.f32.mrb[0].mxu0
  %v2564 = vpop.f32.mrb[0].mxu0
  %v2565 = vadd.f32 0.0, %v2564
  %v2566 = vpop.f32.mrb[0].mxu0
  %2567 = vmatprep.mubr.bf16.mxu0 %v2420
  %2568 = vmatmul.mubr.bf16.gmra.mrb[0].mxu0 %v2419
  %v2569 = vpop.f32.mrb[0].mxu0
  %v2570 = vadd.f32 0.0, %v2569
  %v2571 = vpop.f32.mrb[0].mxu0
  %v2572 = vpop.f32.mrb[0].mxu0
  %v2573 = vadd.f32 0.0, %v2572
  %v2574 = vpop.f32.mrb[0].mxu0
  %2575 = vmatprep.mubr.bf16.mxu0 %v2426
  %2576 = vmatmul.mubr.bf16.gmra.mrb[0].mxu0 %v2425
  %v2577 = vpop.f32.mrb[0].mxu0
  %v2578 = vadd.f32 0.0, %v2577
  %v2579 = vpop.f32.mrb[0].mxu0
  %v2580 = vpop.f32.mrb[0].mxu0
  %v2581 = vadd.f32 0.0, %v2580
  %v2582 = vpop.f32.mrb[0].mxu0
  %2583 = vmatprep.mubr.bf16.mxu0 %v2432
  %2584 = vmatmul.mubr.bf16.gmra.mrb[0].mxu0 %v2431
  %v2585 = vpop.f32.mrb[0].mxu0
  %v2586 = vadd.f32 0.0, %v2585
  %v2587 = vpop.f32.mrb[0].mxu0
  %v2588 = vpop.f32.mrb[0].mxu0
  %v2589 = vadd.f32 0.0, %v2588
  %v2590 = vpop.f32.mrb[0].mxu0
  %2591 = vmatprep.mubr.bf16.mxu0 %v2438
  %2592 = vmatmul.mubr.bf16.gmra.mrb[0].mxu0 %v2437
  %v2593 = vpop.f32.mrb[0].mxu0
  %v2594 = vadd.f32 0.0, %v2593
  %v2595 = vpop.f32.mrb[0].mxu0
  %v2596 = vpop.f32.mrb[0].mxu0
  %v2597 = vadd.f32 0.0, %v2596
  %v2598 = vpop.f32.mrb[0].mxu0
  %2599 = vmatprep.mubr.bf16.mxu0 %v2444
  %2600 = vmatmul.mubr.bf16.gmra.mrb[0].mxu0 %v2443
  %v2601 = vpop.f32.mrb[0].mxu0
  %v2602 = vadd.f32 0.0, %v2601
  %v2603 = vpop.f32.mrb[0].mxu0
  %v2604 = vpop.f32.mrb[0].mxu0
  %v2605 = vadd.f32 0.0, %v2604
  %v2606 = vpop.f32.mrb[0].mxu0
  %2607 = vmatprep.mubr.bf16.mxu0 %v2450
  %2608 = vmatmul.mubr.bf16.gmra.mrb[0].mxu0 %v2449
  %v2609 = vpop.f32.mrb[0].mxu0
  %v2610 = vadd.f32 0.0, %v2609
  %v2611 = vpop.f32.mrb[0].mxu0
  %v2612 = vpop.f32.mrb[0].mxu0
  %v2613 = vadd.f32 0.0, %v2612
  %v2614 = vpop.f32.mrb[0].mxu0
  %2615 = vdwg.mxu0
  %2616 = vmatprep.subr.bf16.mxu0 0
  %2617 = vmatpush1.bf16.msra.mxu0 %v593
  %2618 = vmatprep.subr.bf16.mxu0 0
  %2619 = vmatpush1.bf16.msra.mxu0 %v594
  %2620 = vmatprep.subr.bf16.mxu0 0
  %2621 = vmatpush1.bf16.msra.mxu0 %v595
  %2622 = vmatprep.subr.bf16.mxu0 0
  %2623 = vmatpush1.bf16.msra.mxu0 %v596
  %2624 = vmatprep.subr.bf16.mxu0 0
  %2625 = vmatpush1.bf16.msra.mxu0 %v597
  %2626 = vmatprep.subr.bf16.mxu0 0
  %2627 = vmatpush1.bf16.msra.mxu0 %v598
  %2628 = vmatprep.subr.bf16.mxu0 0
  %2629 = vmatpush1.bf16.msra.mxu0 %v599
  %2630 = vmatprep.subr.bf16.mxu0 0
  %2631 = vmatpush1.bf16.msra.mxu0 %v600
  %2632 = vmatprep.subr.bf16.mxu0 0
  %2633 = vmatpush1.bf16.msra.mxu0 %v601
  %2634 = vmatprep.subr.bf16.mxu0 0
  %2635 = vmatpush1.bf16.msra.mxu0 %v602
  %2636 = vmatprep.subr.bf16.mxu0 0
  %2637 = vmatpush1.bf16.msra.mxu0 %v603
  %2638 = vmatprep.subr.bf16.mxu0 0
  %2639 = vmatpush1.bf16.msra.mxu0 %v604
  %2640 = vmatprep.subr.bf16.mxu0 0
  %2641 = vmatpush1.bf16.msra.mxu0 %v605
  %2642 = vmatprep.subr.bf16.mxu0 0
  %2643 = vmatpush1.bf16.msra.mxu0 %v606
  %2644 = vmatprep.subr.bf16.mxu0 0
  %2645 = vmatpush1.bf16.msra.mxu0 %v607
  %2646 = vmatprep.subr.bf16.mxu0 0
  %2647 = vmatpush1.bf16.msra.mxu0 %v608
  %2648 = vmatprep.mubr.bf16.mxu0 %v2410
  %2649 = vmatmul.mubr.bf16.gmra.mrb[0].mxu0 %v2409
  %v2650 = vpop.f32.mrb[0].mxu0
  %v2651 = vadd.f32 %v2554, %v2650
  %v2652 = vpop.f32.mrb[0].mxu0
  %v2653 = vpop.f32.mrb[0].mxu0
  %v2654 = vadd.f32 %v2557, %v2653
  %v2655 = vpop.f32.mrb[0].mxu0
  %2656 = vmatprep.mubr.bf16.mxu0 %v2416
  %2657 = vmatmul.mubr.bf16.gmra.mrb[0].mxu0 %v2415
  %v2658 = vpop.f32.mrb[0].mxu0
  %v2659 = vadd.f32 %v2562, %v2658
  %v2660 = vpop.f32.mrb[0].mxu0
  %v2661 = vpop.f32.mrb[0].mxu0
  %v2662 = vadd.f32 %v2565, %v2661
  %v2663 = vpop.f32.mrb[0].mxu0
  %2664 = vmatprep.mubr.bf16.mxu0 %v2422
  %2665 = vmatmul.mubr.bf16.gmra.mrb[0].mxu0 %v2421
  %v2666 = vpop.f32.mrb[0].mxu0
  %v2667 = vadd.f32 %v2570, %v2666
  %v2668 = vpop.f32.mrb[0].mxu0
  %v2669 = vpop.f32.mrb[0].mxu0
  %v2670 = vadd.f32 %v2573, %v2669
  %v2671 = vpop.f32.mrb[0].mxu0
  %2672 = vmatprep.mubr.bf16.mxu0 %v2428
  %2673 = vmatmul.mubr.bf16.gmra.mrb[0].mxu0 %v2427
  %v2674 = vpop.f32.mrb[0].mxu0
  %v2675 = vadd.f32 %v2578, %v2674
  %v2676 = vpop.f32.mrb[0].mxu0
  %v2677 = vpop.f32.mrb[0].mxu0
  %v2678 = vadd.f32 %v2581, %v2677
  %v2679 = vpop.f32.mrb[0].mxu0
  %2680 = vmatprep.mubr.bf16.mxu0 %v2434
  %2681 = vmatmul.mubr.bf16.gmra.mrb[0].mxu0 %v2433
  %v2682 = vpop.f32.mrb[0].mxu0
  %v2683 = vadd.f32 %v2586, %v2682
  %v2684 = vpop.f32.mrb[0].mxu0
  %v2685 = vpop.f32.mrb[0].mxu0
  %v2686 = vadd.f32 %v2589, %v2685
  %v2687 = vpop.f32.mrb[0].mxu0
  %2688 = vmatprep.mubr.bf16.mxu0 %v2440
  %2689 = vmatmul.mubr.bf16.gmra.mrb[0].mxu0 %v2439
  %v2690 = vpop.f32.mrb[0].mxu0
  %v2691 = vadd.f32 %v2594, %v2690
  %v2692 = vpop.f32.mrb[0].mxu0
  %v2693 = vpop.f32.mrb[0].mxu0
  %v2694 = vadd.f32 %v2597, %v2693
  %v2695 = vpop.f32.mrb[0].mxu0
  %2696 = vmatprep.mubr.bf16.mxu0 %v2446
  %2697 = vmatmul.mubr.bf16.gmra.mrb[0].mxu0 %v2445
  %v2698 = vpop.f32.mrb[0].mxu0
  %v2699 = vadd.f32 %v2602, %v2698
  %v2700 = vpop.f32.mrb[0].mxu0
  %v2701 = vpop.f32.mrb[0].mxu0
  %v2702 = vadd.f32 %v2605, %v2701
  %v2703 = vpop.f32.mrb[0].mxu0
  %2704 = vmatprep.mubr.bf16.mxu0 %v2452
  %2705 = vmatmul.mubr.bf16.gmra.mrb[0].mxu0 %v2451
  %v2706 = vpop.f32.mrb[0].mxu0
  %v2707 = vadd.f32 %v2610, %v2706
  %v2708 = vpop.f32.mrb[0].mxu0
  %v2709 = vpop.f32.mrb[0].mxu0
  %v2710 = vadd.f32 %v2613, %v2709
  %v2711 = vpop.f32.mrb[0].mxu0
  %2712 = vdwg.mxu0
  %2713 = vmatprep.subr.bf16.mxu0 0
  %2714 = vmatpush1.bf16.msra.mxu0 %v609
  %2715 = vmatprep.subr.bf16.mxu0 0
  %2716 = vmatpush1.bf16.msra.mxu0 %v610
  %2717 = vmatprep.subr.bf16.mxu0 0
  %2718 = vmatpush1.bf16.msra.mxu0 %v611
  %2719 = vmatprep.subr.bf16.mxu0 0
  %2720 = vmatpush1.bf16.msra.mxu0 %v612
  %2721 = vmatprep.subr.bf16.mxu0 0
  %2722 = vmatpush1.bf16.msra.mxu0 %v613
  %2723 = vmatprep.subr.bf16.mxu0 0
  %2724 = vmatpush1.bf16.msra.mxu0 %v614
  %2725 = vmatprep.subr.bf16.mxu0 0
  %2726 = vmatpush1.bf16.msra.mxu0 %v615
  %2727 = vmatprep.subr.bf16.mxu0 0
  %2728 = vmatpush1.bf16.msra.mxu0 %v616
  %2729 = vmatprep.subr.bf16.mxu0 0
  %2730 = vmatpush1.bf16.msra.mxu0 %v617
  %2731 = vmatprep.subr.bf16.mxu0 0
  %2732 = vmatpush1.bf16.msra.mxu0 %v618
  %2733 = vmatprep.subr.bf16.mxu0 0
  %2734 = vmatpush1.bf16.msra.mxu0 %v619
  %2735 = vmatprep.subr.bf16.mxu0 0
  %2736 = vmatpush1.bf16.msra.mxu0 %v620
  %2737 = vmatprep.subr.bf16.mxu0 0
  %2738 = vmatpush1.bf16.msra.mxu0 %v621
  %2739 = vmatprep.subr.bf16.mxu0 0
  %2740 = vmatpush1.bf16.msra.mxu0 %v622
  %2741 = vmatprep.subr.bf16.mxu0 0
  %2742 = vmatpush1.bf16.msra.mxu0 %v697
  %2743 = vmatprep.subr.bf16.mxu0 0
  %2744 = vmatpush1.bf16.msra.mxu0 0
  %2745 = vmatprep.mubr.bf16.mxu0 %v2496
  %2746 = vmatmul.mubr.bf16.gmra.mrb[0].mxu0 %v2411
  %v2747 = vpop.f32.mrb[0].mxu0
  %v2748 = vadd.f32 %v2651, %v2747
  %v2749 = vpop.f32.mrb[0].mxu0
  %v2750 = vpop.f32.mrb[0].mxu0
  %v2751 = vadd.f32 %v2654, %v2750
  %v2752 = vpop.f32.mrb[0].mxu0
  %2753 = vmatprep.mubr.bf16.mxu0 %v2499
  %2754 = vmatmul.mubr.bf16.gmra.mrb[0].mxu0 %v2417
  %v2755 = vpop.f32.mrb[0].mxu0
  %v2756 = vadd.f32 %v2659, %v2755
  %v2757 = vpop.f32.mrb[0].mxu0
  %v2758 = vpop.f32.mrb[0].mxu0
  %v2759 = vadd.f32 %v2662, %v2758
  %v2760 = vpop.f32.mrb[0].mxu0
  %2761 = vmatprep.mubr.bf16.mxu0 %v2502
  %2762 = vmatmul.mubr.bf16.gmra.mrb[0].mxu0 %v2423
  %v2763 = vpop.f32.mrb[0].mxu0
  %v2764 = vadd.f32 %v2667, %v2763
  %v2765 = vpop.f32.mrb[0].mxu0
  %v2766 = vpop.f32.mrb[0].mxu0
  %v2767 = vadd.f32 %v2670, %v2766
  %v2768 = vpop.f32.mrb[0].mxu0
  %2769 = vmatprep.mubr.bf16.mxu0 %v2505
  %2770 = vmatmul.mubr.bf16.gmra.mrb[0].mxu0 %v2429
  %v2771 = vpop.f32.mrb[0].mxu0
  %v2772 = vadd.f32 %v2675, %v2771
  %v2773 = vpop.f32.mrb[0].mxu0
  %v2774 = vpop.f32.mrb[0].mxu0
  %v2775 = vadd.f32 %v2678, %v2774
  %v2776 = vpop.f32.mrb[0].mxu0
  %2777 = vmatprep.mubr.bf16.mxu0 %v2508
  %2778 = vmatmul.mubr.bf16.gmra.mrb[0].mxu0 %v2435
  %v2779 = vpop.f32.mrb[0].mxu0
  %v2780 = vadd.f32 %v2683, %v2779
  %v2781 = vpop.f32.mrb[0].mxu0
  %v2782 = vpop.f32.mrb[0].mxu0
  %v2783 = vadd.f32 %v2686, %v2782
  %v2784 = vpop.f32.mrb[0].mxu0
  %2785 = vmatprep.mubr.bf16.mxu0 %v2511
  %2786 = vmatmul.mubr.bf16.gmra.mrb[0].mxu0 %v2441
  %v2787 = vpop.f32.mrb[0].mxu0
  %v2788 = vadd.f32 %v2691, %v2787
  %v2789 = vpop.f32.mrb[0].mxu0
  %v2790 = vpop.f32.mrb[0].mxu0
  %v2791 = vadd.f32 %v2694, %v2790
  %v2792 = vpop.f32.mrb[0].mxu0
  %2793 = vmatprep.mubr.bf16.mxu0 %v2514
  %2794 = vmatmul.mubr.bf16.gmra.mrb[0].mxu0 %v2447
  %v2795 = vpop.f32.mrb[0].mxu0
  %v2796 = vadd.f32 %v2699, %v2795
  %v2797 = vpop.f32.mrb[0].mxu0
  %v2798 = vpop.f32.mrb[0].mxu0
  %v2799 = vadd.f32 %v2702, %v2798
  %v2800 = vpop.f32.mrb[0].mxu0
  %2801 = vmatprep.mubr.bf16.mxu0 %v2517
  %2802 = vmatmul.mubr.bf16.gmra.mrb[0].mxu0 %v2453
  %v2803 = vpop.f32.mrb[0].mxu0
  %v2804 = vadd.f32 %v2707, %v2803
  %v2805 = vpop.f32.mrb[0].mxu0
  %v2806 = vpop.f32.mrb[0].mxu0
  %v2807 = vadd.f32 %v2710, %v2806
  %v2808 = vpop.f32.mrb[0].mxu0
  %2809 = vdwg.mxu0
  %v2810 = vmax.f32 %v2198, %v2748
  %v2811 = vmax.f32 %v2199, %v2751
  %v2812 = vmax.f32 %v2200, %v2756
  %v2813 = vmax.f32 %v2201, %v2759
  %v2814 = vmax.f32 %v2202, %v2764
  %v2815 = vmax.f32 %v2203, %v2767
  %v2816 = vmax.f32 %v2204, %v2772
  %v2817 = vmax.f32 %v2205, %v2775
  %v2818 = vmax.f32 %v2206, %v2780
  %v2819 = vmax.f32 %v2207, %v2783
  %v2820 = vmax.f32 %v2208, %v2788
  %v2821 = vmax.f32 %v2209, %v2791
  %v2822 = vmax.f32 %v2210, %v2796
  %v2823 = vmax.f32 %v2211, %v2799
  %v2824 = vmax.f32 %v2212, %v2804
  %v2825 = vmax.f32 %v2213, %v2807
  %v2826 = vld [vmem:[%s2] sm:$0x1]
  %v2828 = vlaneseq
  %v2829 = vshrl.u32 %v2828, 7
  %v2830 = vsub.s32 0, %v2829
  %v2831 = vrot.slane %v2826, %v2830
  %v2833 = vadd.f32 %v2810, %v2831
  %v2834 = vadd.f32 %v2811, %v2831
  %v2835 = vadd.f32 %v2812, %v2831
  %v2836 = vadd.f32 %v2813, %v2831
  %v2837 = vadd.f32 %v2814, %v2831
  %v2838 = vadd.f32 %v2815, %v2831
  %v2839 = vadd.f32 %v2816, %v2831
  %v2840 = vadd.f32 %v2817, %v2831
  %v2841 = vadd.f32 %v2818, %v2831
  %v2842 = vadd.f32 %v2819, %v2831
  %v2843 = vadd.f32 %v2820, %v2831
  %v2844 = vadd.f32 %v2821, %v2831
  %v2845 = vadd.f32 %v2822, %v2831
  %v2846 = vadd.f32 %v2823, %v2831
  %v2847 = vadd.f32 %v2824, %v2831
  %v2848 = vadd.f32 %v2825, %v2831
  %v2849 = vmax.f32 %v2833, 0.0
  %v2850 = vmax.f32 %v2834, 0.0
  %v2851 = vmax.f32 %v2835, 0.0
  %v2852 = vmax.f32 %v2836, 0.0
  %v2853 = vmax.f32 %v2837, 0.0
  %v2854 = vmax.f32 %v2838, 0.0
  %v2855 = vmax.f32 %v2839, 0.0
  %v2856 = vmax.f32 %v2840, 0.0
  %v2857 = vmax.f32 %v2841, 0.0
  %v2858 = vmax.f32 %v2842, 0.0
  %v2859 = vmax.f32 %v2843, 0.0
  %v2860 = vmax.f32 %v2844, 0.0
  %v2861 = vmax.f32 %v2845, 0.0
  %v2862 = vmax.f32 %v2846, 0.0
  %v2863 = vmax.f32 %v2847, 0.0
  %v2864 = vmax.f32 %v2848, 0.0
  %vm2865 = vcmask 326656
  %2866 = vst.msk [vmem:[%s3] sm:$0xff] %vm2865, %v2849
  %2867 = vst.msk [vmem:[%s3 + $0x8] sm:$0xff] %vm2865, %v2850
  %2868 = vst.msk [vmem:[%s3 + $0x10] sm:$0xff] %vm2865, %v2851
  %2869 = vst.msk [vmem:[%s3 + $0x18] sm:$0xff] %vm2865, %v2852
  %2870 = vst.msk [vmem:[%s3 + $0x20] sm:$0xff] %vm2865, %v2853
  %2871 = vst.msk [vmem:[%s3 + $0x28] sm:$0xff] %vm2865, %v2854
  %2872 = vst.msk [vmem:[%s3 + $0x30] sm:$0xff] %vm2865, %v2855
  %2873 = vst.msk [vmem:[%s3 + $0x38] sm:$0xff] %vm2865, %v2856
  %2874 = vst.msk [vmem:[%s3 + $0x40] sm:$0xff] %vm2865, %v2857
  %2875 = vst.msk [vmem:[%s3 + $0x48] sm:$0xff] %vm2865, %v2858
  %2876 = vst.msk [vmem:[%s3 + $0x50] sm:$0xff] %vm2865, %v2859
  %2877 = vst.msk [vmem:[%s3 + $0x58] sm:$0xff] %vm2865, %v2860
  %2878 = vst.msk [vmem:[%s3 + $0x60] sm:$0xff] %vm2865, %v2861
  %2879 = vst.msk [vmem:[%s3 + $0x68] sm:$0xff] %vm2865, %v2862
  %2880 = vst.msk [vmem:[%s3 + $0x70] sm:$0xff] %vm2865, %v2863
  %2881 = vst.msk [vmem:[%s3 + $0x78] sm:$0xff] %vm2865, %v2864
  // Predicated region
  $region14: #{cnn_cifar_forward.5} parent=0 // pred_check
    _
  $region15: #{cnn_cifar_forward.5} parent=0 // pred_check_branch
    %2883 = sbr.rel (0) target = $region17
  $region16: #{cnn_cifar_forward.5} parent=0 // pred_region
    _
  $region17: #{cnn_cifar_forward.5} parent=0 // pred_fallthru
    _
  // Predicated region
  $region18: #{cnn_cifar_forward.5} parent=0 // pred_check
    _
  $region19: #{cnn_cifar_forward.5} parent=0 // pred_check_branch
    %2885 = sbr.rel (0) target = $region21
  $region20: #{cnn_cifar_forward.5} parent=0 // pred_region
    _
  $region21: #{cnn_cifar_forward.5} parent=0 // pred_fallthru
    _

// kernel: cnn_cifar_forward.6
$region0: #{cnn_cifar_forward.6}
  #allocation0 [shape = 'u32[]', space=smem, size = 0x4, offset = 0x4, fixed_abs, tag = 'smem constant byte address 0x4 - core index']
  #allocation1 [shape = 'u32[144,128]{1,0:T(1,128)}', space=vmem, size = 0x12000, scoped, tag = 'internal scratch']
  %s0 = inlined_call_operand.vmem [shape: bf16[4,8,640], index: 0, kind: input, shape index: {}]
  %s1 = inlined_call_operand.vmem [shape: bf16[640,80], index: 1, kind: input, shape index: {}]
  %s2 = inlined_call_operand.vmem [shape: f32[1,80], index: 2, kind: input, shape index: {}]
  %s3 = inlined_call_operand.vmem [shape: f32[8,80], index: 3, kind: output, shape index: {}]
  %s4 = sld [smem:[#allocation0]]
  $region22: #{cnn_cifar_forward.6} parent=0
    _
  %s6 = ssub.s32 1, %s4
  %s7 = scalar_select 0, %s6, %s4
  // Predicated region
  $region2: #{cnn_cifar_forward.6} parent=0 // pred_check
    _
  $region3: #{cnn_cifar_forward.6} parent=0 // pred_check_branch
    %9 = sbr.rel (0) target = $region5
  $region4: #{cnn_cifar_forward.6} parent=0 // pred_region
    _
  $region5: #{cnn_cifar_forward.6} parent=0 // pred_fallthru
    _
  // Predicated region
  $region6: #{cnn_cifar_forward.6} parent=0 // pred_check
    _
  $region7: #{cnn_cifar_forward.6} parent=0 // pred_check_branch
    %11 = sbr.rel (0) target = $region9
  $region8: #{cnn_cifar_forward.6} parent=0 // pred_region
    _
  $region9: #{cnn_cifar_forward.6} parent=0 // pred_fallthru
    _
  // Predicated region
  $region10: #{cnn_cifar_forward.6} parent=0 // pred_check
    _
  $region11: #{cnn_cifar_forward.6} parent=0 // pred_check_branch
    %13 = sbr.rel (0) target = $region13
  $region12: #{cnn_cifar_forward.6} parent=0 // pred_region
    _
  $region13: #{cnn_cifar_forward.6} parent=0 // pred_fallthru
    _
  %v15 = vld [vmem:[%s1] sm:$0xf]
  %v16 = vld [vmem:[%s1 + $0x4] sm:$0xf]
  %v17 = vld [vmem:[%s1 + $0x8] sm:$0xf]
  %v18 = vld [vmem:[%s1 + $0xc] sm:$0xf]
  %v19 = vld [vmem:[%s1 + $0x10] sm:$0xf]
  %v20 = vld [vmem:[%s1 + $0x14] sm:$0xf]
  %v21 = vld [vmem:[%s1 + $0x18] sm:$0xf]
  %v22 = vld [vmem:[%s1 + $0x1c] sm:$0xf]
  %v23 = vld [vmem:[%s1 + $0x20] sm:$0xf]
  %v24 = vld [vmem:[%s1 + $0x24] sm:$0xf]
  %v25 = vld [vmem:[%s1 + $0x28] sm:$0xf]
  %v26 = vld [vmem:[%s1 + $0x2c] sm:$0xf]
  %v27 = vld [vmem:[%s1 + $0x30] sm:$0xf]
  %v28 = vld [vmem:[%s1 + $0x34] sm:$0xf]
  %v29 = vld [vmem:[%s1 + $0x38] sm:$0xf]
  %v30 = vld [vmem:[%s1 + $0x3c] sm:$0xf]
  %v31 = vld [vmem:[%s1 + $0x40] sm:$0xf]
  %v32 = vld [vmem:[%s1 + $0x44] sm:$0xf]
  %v33 = vld [vmem:[%s1 + $0x48] sm:$0xf]
  %v34 = vld [vmem:[%s1 + $0x4c] sm:$0xf]
  %v35 = vld [vmem:[%s1 + $0x50] sm:$0xf]
  %v36 = vld [vmem:[%s1 + $0x54] sm:$0xf]
  %v37 = vld [vmem:[%s1 + $0x58] sm:$0xf]
  %v38 = vld [vmem:[%s1 + $0x5c] sm:$0xf]
  %v39 = vld [vmem:[%s1 + $0x60] sm:$0xf]
  %v40 = vld [vmem:[%s1 + $0x64] sm:$0xf]
  %v41 = vld [vmem:[%s1 + $0x68] sm:$0xf]
  %v42 = vld [vmem:[%s1 + $0x6c] sm:$0xf]
  %v43 = vld [vmem:[%s1 + $0x70] sm:$0xf]
  %v44 = vld [vmem:[%s1 + $0x74] sm:$0xf]
  %v45 = vld [vmem:[%s1 + $0x78] sm:$0xf]
  %v46 = vld [vmem:[%s1 + $0x7c] sm:$0xf]
  %v47 = vld [vmem:[%s1 + $0x80] sm:$0xf]
  %v48 = vld [vmem:[%s1 + $0x84] sm:$0xf]
  %v49 = vld [vmem:[%s1 + $0x88] sm:$0xf]
  %v50 = vld [vmem:[%s1 + $0x8c] sm:$0xf]
  %v51 = vld [vmem:[%s1 + $0x90] sm:$0xf]
  %v52 = vld [vmem:[%s1 + $0x94] sm:$0xf]
  %v53 = vld [vmem:[%s1 + $0x98] sm:$0xf]
  %v54 = vld [vmem:[%s1 + $0x9c] sm:$0xf]
  %v55 = vld [vmem:[%s1 + $0xa0] sm:$0xf]
  %v56 = vld [vmem:[%s1 + $0xa4] sm:$0xf]
  %v57 = vld [vmem:[%s1 + $0xa8] sm:$0xf]
  %v58 = vld [vmem:[%s1 + $0xac] sm:$0xf]
  %v59 = vld [vmem:[%s1 + $0xb0] sm:$0xf]
  %v60 = vld [vmem:[%s1 + $0xb4] sm:$0xf]
  %v61 = vld [vmem:[%s1 + $0xb8] sm:$0xf]
  %v62 = vld [vmem:[%s1 + $0xbc] sm:$0xf]
  %v63 = vld [vmem:[%s1 + $0xc0] sm:$0xf]
  %v64 = vld [vmem:[%s1 + $0xc4] sm:$0xf]
  %v65 = vld [vmem:[%s1 + $0xc8] sm:$0xf]
  %v66 = vld [vmem:[%s1 + $0xcc] sm:$0xf]
  %v67 = vld [vmem:[%s1 + $0xd0] sm:$0xf]
  %v68 = vld [vmem:[%s1 + $0xd4] sm:$0xf]
  %v69 = vld [vmem:[%s1 + $0xd8] sm:$0xf]
  %v70 = vld [vmem:[%s1 + $0xdc] sm:$0xf]
  %v71 = vld [vmem:[%s1 + $0xe0] sm:$0xf]
  %v72 = vld [vmem:[%s1 + $0xe4] sm:$0xf]
  %v73 = vld [vmem:[%s1 + $0xe8] sm:$0xf]
  %v74 = vld [vmem:[%s1 + $0xec] sm:$0xf]
  %v75 = vld [vmem:[%s1 + $0xf0] sm:$0xf]
  %v76 = vld [vmem:[%s1 + $0xf4] sm:$0xf]
  %v77 = vld [vmem:[%s1 + $0xf8] sm:$0xf]
  %v78 = vld [vmem:[%s1 + $0xfc] sm:$0xf]
  %v79 = vld [vmem:[%s1 + $0x100] sm:$0xf]
  %v80 = vld [vmem:[%s1 + $0x104] sm:$0xf]
  %v81 = vld [vmem:[%s1 + $0x108] sm:$0xf]
  %v82 = vld [vmem:[%s1 + $0x10c] sm:$0xf]
  %v83 = vld [vmem:[%s1 + $0x110] sm:$0xf]
  %v84 = vld [vmem:[%s1 + $0x114] sm:$0xf]
  %v85 = vld [vmem:[%s1 + $0x118] sm:$0xf]
  %v86 = vld [vmem:[%s1 + $0x11c] sm:$0xf]
  %v87 = vld [vmem:[%s1 + $0x120] sm:$0xf]
  %v88 = vld [vmem:[%s1 + $0x124] sm:$0xf]
  %v89 = vld [vmem:[%s1 + $0x128] sm:$0xf]
  %v90 = vld [vmem:[%s1 + $0x12c] sm:$0xf]
  %v91 = vld [vmem:[%s1 + $0x130] sm:$0xf]
  %v92 = vld [vmem:[%s1 + $0x134] sm:$0xf]
  %v93 = vld [vmem:[%s1 + $0x138] sm:$0xf]
  %v94 = vld [vmem:[%s1 + $0x13c] sm:$0xf]
  %v95 = vld [vmem:[%s0] sm:$0xff]
  %v96 = vld [vmem:[%s0 + $0x8] sm:$0xff]
  %v97 = vld [vmem:[%s0 + $0x10] sm:$0xf]
  %v101 = vunpack.c.l.b16 %v95
  %v102 = vunpack.c.h.b16 %v95
  %v103 = vunpack.c.l.b16 %v96
  %v104 = vunpack.c.h.b16 %v96
  %v105 = vunpack.c.l.b16 %v97
  %v106 = vpack.c.b16 %v101, %v101
  %v107 = vpack.c.b16 %v102, %v102
  %v108 = vpack.c.b16 %v103, %v103
  %v109 = vpack.c.b16 %v104, %v104
  %v110 = vpack.c.b16 %v105, %v105
  %v196 = vunpack.c.l.b16 %v15
  %v197 = vunpack.c.l.b16 %v16
  %v198 = vunpack.c.l.b16 %v17
  %v199 = vunpack.c.l.b16 %v18
  %v200 = vunpack.c.l.b16 %v19
  %v201 = vunpack.c.l.b16 %v20
  %v202 = vunpack.c.l.b16 %v21
  %v203 = vunpack.c.l.b16 %v22
  %v204 = vunpack.c.l.b16 %v23
  %v205 = vunpack.c.l.b16 %v24
  %v206 = vunpack.c.l.b16 %v25
  %v207 = vunpack.c.l.b16 %v26
  %v208 = vunpack.c.l.b16 %v27
  %v209 = vunpack.c.l.b16 %v28
  %v210 = vunpack.c.l.b16 %v29
  %v211 = vunpack.c.l.b16 %v30
  %v212 = vunpack.c.l.b16 %v31
  %v213 = vunpack.c.l.b16 %v32
  %v214 = vunpack.c.l.b16 %v33
  %v215 = vunpack.c.l.b16 %v34
  %v216 = vunpack.c.l.b16 %v35
  %v217 = vunpack.c.l.b16 %v36
  %v218 = vunpack.c.l.b16 %v37
  %v219 = vunpack.c.l.b16 %v38
  %v220 = vunpack.c.l.b16 %v39
  %v221 = vunpack.c.l.b16 %v40
  %v222 = vunpack.c.l.b16 %v41
  %v223 = vunpack.c.l.b16 %v42
  %v224 = vunpack.c.l.b16 %v43
  %v225 = vunpack.c.l.b16 %v44
  %v226 = vunpack.c.l.b16 %v45
  %v227 = vunpack.c.l.b16 %v46
  %v228 = vunpack.c.l.b16 %v47
  %v229 = vunpack.c.l.b16 %v48
  %v230 = vunpack.c.l.b16 %v49
  %v231 = vunpack.c.l.b16 %v50
  %v232 = vunpack.c.l.b16 %v51
  %v233 = vunpack.c.l.b16 %v52
  %v234 = vunpack.c.l.b16 %v53
  %v235 = vunpack.c.l.b16 %v54
  %v236 = vunpack.c.l.b16 %v55
  %v237 = vunpack.c.l.b16 %v56
  %v238 = vunpack.c.l.b16 %v57
  %v239 = vunpack.c.l.b16 %v58
  %v240 = vunpack.c.l.b16 %v59
  %v241 = vunpack.c.l.b16 %v60
  %v242 = vunpack.c.l.b16 %v61
  %v243 = vunpack.c.l.b16 %v62
  %v244 = vunpack.c.l.b16 %v63
  %v245 = vunpack.c.l.b16 %v64
  %v246 = vunpack.c.l.b16 %v65
  %v247 = vunpack.c.l.b16 %v66
  %v248 = vunpack.c.l.b16 %v67
  %v249 = vunpack.c.l.b16 %v68
  %v250 = vunpack.c.l.b16 %v69
  %v251 = vunpack.c.l.b16 %v70
  %v252 = vunpack.c.l.b16 %v71
  %v253 = vunpack.c.l.b16 %v72
  %v254 = vunpack.c.l.b16 %v73
  %v255 = vunpack.c.l.b16 %v74
  %v256 = vunpack.c.l.b16 %v75
  %v257 = vunpack.c.l.b16 %v76
  %v258 = vunpack.c.l.b16 %v77
  %v259 = vunpack.c.l.b16 %v78
  %v260 = vunpack.c.l.b16 %v79
  %v261 = vunpack.c.l.b16 %v80
  %v262 = vunpack.c.l.b16 %v81
  %v263 = vunpack.c.l.b16 %v82
  %v264 = vunpack.c.l.b16 %v83
  %v265 = vunpack.c.l.b16 %v84
  %v266 = vunpack.c.l.b16 %v85
  %v267 = vunpack.c.l.b16 %v86
  %v268 = vunpack.c.l.b16 %v87
  %v269 = vunpack.c.l.b16 %v88
  %v270 = vunpack.c.l.b16 %v89
  %v271 = vunpack.c.l.b16 %v90
  %v272 = vunpack.c.l.b16 %v91
  %v273 = vunpack.c.l.b16 %v92
  %v274 = vunpack.c.l.b16 %v93
  %v275 = vunpack.c.l.b16 %v94
  %v276 = vpack.c.b16 %v197, %v196
  %v277 = vpack.c.b16 %v199, %v198
  %v278 = vpack.c.b16 %v201, %v200
  %v279 = vpack.c.b16 %v203, %v202
  %v280 = vpack.c.b16 %v205, %v204
  %v281 = vpack.c.b16 %v207, %v206
  %v282 = vpack.c.b16 %v209, %v208
  %v283 = vpack.c.b16 %v211, %v210
  %v284 = vpack.c.b16 %v213, %v212
  %v285 = vpack.c.b16 %v215, %v214
  %v286 = vpack.c.b16 %v217, %v216
  %v287 = vpack.c.b16 %v219, %v218
  %v288 = vpack.c.b16 %v221, %v220
  %v289 = vpack.c.b16 %v223, %v222
  %v290 = vpack.c.b16 %v225, %v224
  %v291 = vpack.c.b16 %v227, %v226
  %v292 = vpack.c.b16 %v229, %v228
  %v293 = vpack.c.b16 %v231, %v230
  %v294 = vpack.c.b16 %v233, %v232
  %v295 = vpack.c.b16 %v235, %v234
  %v296 = vpack.c.b16 %v237, %v236
  %v297 = vpack.c.b16 %v239, %v238
  %v298 = vpack.c.b16 %v241, %v240
  %v299 = vpack.c.b16 %v243, %v242
  %v300 = vpack.c.b16 %v245, %v244
  %v301 = vpack.c.b16 %v247, %v246
  %v302 = vpack.c.b16 %v249, %v248
  %v303 = vpack.c.b16 %v251, %v250
  %v304 = vpack.c.b16 %v253, %v252
  %v305 = vpack.c.b16 %v255, %v254
  %v306 = vpack.c.b16 %v257, %v256
  %v307 = vpack.c.b16 %v259, %v258
  %v308 = vpack.c.b16 %v261, %v260
  %v309 = vpack.c.b16 %v263, %v262
  %v310 = vpack.c.b16 %v265, %v264
  %v311 = vpack.c.b16 %v267, %v266
  %v312 = vpack.c.b16 %v269, %v268
  %v313 = vpack.c.b16 %v271, %v270
  %v314 = vpack.c.b16 %v273, %v272
  %v315 = vpack.c.b16 %v275, %v274
  %356 = vmatprep.subr.bf16.mxu0 0
  %357 = vmatpush1.bf16.msra.mxu0 %v276
  %358 = vmatprep.subr.bf16.mxu0 0
  %359 = vmatpush1.bf16.msra.mxu0 %v277
  %360 = vmatprep.subr.bf16.mxu0 0
  %361 = vmatpush1.bf16.msra.mxu0 %v278
  %362 = vmatprep.subr.bf16.mxu0 0
  %363 = vmatpush1.bf16.msra.mxu0 %v279
  %364 = vmatprep.subr.bf16.mxu0 0
  %365 = vmatpush1.bf16.msra.mxu0 %v280
  %366 = vmatprep.subr.bf16.mxu0 0
  %367 = vmatpush1.bf16.msra.mxu0 %v281
  %368 = vmatprep.subr.bf16.mxu0 0
  %369 = vmatpush1.bf16.msra.mxu0 %v282
  %370 = vmatprep.subr.bf16.mxu0 0
  %371 = vmatpush1.bf16.msra.mxu0 %v283
  %372 = vmatprep.subr.bf16.mxu0 0
  %373 = vmatpush1.bf16.msra.mxu0 %v284
  %374 = vmatprep.subr.bf16.mxu0 0
  %375 = vmatpush1.bf16.msra.mxu0 %v285
  %376 = vmatprep.subr.bf16.mxu0 0
  %377 = vmatpush1.bf16.msra.mxu0 %v286
  %378 = vmatprep.subr.bf16.mxu0 0
  %379 = vmatpush1.bf16.msra.mxu0 %v287
  %380 = vmatprep.subr.bf16.mxu0 0
  %381 = vmatpush1.bf16.msra.mxu0 %v288
  %382 = vmatprep.subr.bf16.mxu0 0
  %383 = vmatpush1.bf16.msra.mxu0 %v289
  %384 = vmatprep.subr.bf16.mxu0 0
  %385 = vmatpush1.bf16.msra.mxu0 %v290
  %386 = vmatprep.subr.bf16.mxu0 0
  %387 = vmatpush1.bf16.msra.mxu0 %v291
  %388 = vmatprep.mubr.bf16.mxu0 %v107
  %389 = vmatmul.mubr.bf16.gmra.mrb[0].mxu0 %v106
  %v390 = vpop.f32.mrb[0].mxu0
  %v391 = vadd.f32 0.0, %v390
  %v392 = vpop.f32.mrb[0].mxu0
  %v393 = vpop.f32.mrb[0].mxu0
  %v394 = vpop.f32.mrb[0].mxu0
  %395 = vdwg.mxu0
  %396 = vmatprep.subr.bf16.mxu0 0
  %397 = vmatpush1.bf16.msra.mxu0 %v292
  %398 = vmatprep.subr.bf16.mxu0 0
  %399 = vmatpush1.bf16.msra.mxu0 %v293
  %400 = vmatprep.subr.bf16.mxu0 0
  %401 = vmatpush1.bf16.msra.mxu0 %v294
  %402 = vmatprep.subr.bf16.mxu0 0
  %403 = vmatpush1.bf16.msra.mxu0 %v295
  %404 = vmatprep.subr.bf16.mxu0 0
  %405 = vmatpush1.bf16.msra.mxu0 %v296
  %406 = vmatprep.subr.bf16.mxu0 0
  %407 = vmatpush1.bf16.msra.mxu0 %v297
  %408 = vmatprep.subr.bf16.mxu0 0
  %409 = vmatpush1.bf16.msra.mxu0 %v298
  %410 = vmatprep.subr.bf16.mxu0 0
  %411 = vmatpush1.bf16.msra.mxu0 %v299
  %412 = vmatprep.subr.bf16.mxu0 0
  %413 = vmatpush1.bf16.msra.mxu0 %v300
  %414 = vmatprep.subr.bf16.mxu0 0
  %415 = vmatpush1.bf16.msra.mxu0 %v301
  %416 = vmatprep.subr.bf16.mxu0 0
  %417 = vmatpush1.bf16.msra.mxu0 %v302
  %418 = vmatprep.subr.bf16.mxu0 0
  %419 = vmatpush1.bf16.msra.mxu0 %v303
  %420 = vmatprep.subr.bf16.mxu0 0
  %421 = vmatpush1.bf16.msra.mxu0 %v304
  %422 = vmatprep.subr.bf16.mxu0 0
  %423 = vmatpush1.bf16.msra.mxu0 %v305
  %424 = vmatprep.subr.bf16.mxu0 0
  %425 = vmatpush1.bf16.msra.mxu0 %v306
  %426 = vmatprep.subr.bf16.mxu0 0
  %427 = vmatpush1.bf16.msra.mxu0 %v307
  %428 = vmatprep.mubr.bf16.mxu0 %v109
  %429 = vmatmul.mubr.bf16.gmra.mrb[0].mxu0 %v108
  %v430 = vpop.f32.mrb[0].mxu0
  %v431 = vadd.f32 %v391, %v430
  %v432 = vpop.f32.mrb[0].mxu0
  %v433 = vpop.f32.mrb[0].mxu0
  %v434 = vpop.f32.mrb[0].mxu0
  %435 = vdwg.mxu0
  %436 = vmatprep.subr.bf16.mxu0 0
  %437 = vmatpush1.bf16.msra.mxu0 %v308
  %438 = vmatprep.subr.bf16.mxu0 0
  %439 = vmatpush1.bf16.msra.mxu0 %v309
  %440 = vmatprep.subr.bf16.mxu0 0
  %441 = vmatpush1.bf16.msra.mxu0 %v310
  %442 = vmatprep.subr.bf16.mxu0 0
  %443 = vmatpush1.bf16.msra.mxu0 %v311
  %444 = vmatprep.subr.bf16.mxu0 0
  %445 = vmatpush1.bf16.msra.mxu0 %v312
  %446 = vmatprep.subr.bf16.mxu0 0
  %447 = vmatpush1.bf16.msra.mxu0 %v313
  %448 = vmatprep.subr.bf16.mxu0 0
  %449 = vmatpush1.bf16.msra.mxu0 %v314
  %450 = vmatprep.subr.bf16.mxu0 0
  %451 = vmatpush1.bf16.msra.mxu0 %v315
  %452 = vmatprep.subr.bf16.mxu0 0
  %453 = vmatpush1.bf16.msra.mxu0 0
  %454 = vmatprep.subr.bf16.mxu0 0
  %455 = vmatpush1.bf16.msra.mxu0 0
  %456 = vmatprep.subr.bf16.mxu0 0
  %457 = vmatpush1.bf16.msra.mxu0 0
  %458 = vmatprep.subr.bf16.mxu0 0
  %459 = vmatpush1.bf16.msra.mxu0 0
  %460 = vmatprep.subr.bf16.mxu0 0
  %461 = vmatpush1.bf16.msra.mxu0 0
  %462 = vmatprep.subr.bf16.mxu0 0
  %463 = vmatpush1.bf16.msra.mxu0 0
  %464 = vmatprep.subr.bf16.mxu0 0
  %465 = vmatpush1.bf16.msra.mxu0 0
  %466 = vmatprep.subr.bf16.mxu0 0
  %467 = vmatpush1.bf16.msra.mxu0 0
  %468 = vmatprep.mubr.bf16.mxu0 0
  %469 = vmatmul.mubr.bf16.gmra.mrb[0].mxu0 %v110
  %v470 = vpop.f32.mrb[0].mxu0
  %v471 = vadd.f32 %v431, %v470
  %v472 = vpop.f32.mrb[0].mxu0
  %v473 = vpop.f32.mrb[0].mxu0
  %v474 = vpop.f32.mrb[0].mxu0
  %475 = vdwg.mxu0
  %s476 = scalar_lea.vmem %s0, 20
  %v477 = vld [vmem:[%s476] sm:$0xff]
  %v478 = vld [vmem:[%s476 + $0x8] sm:$0xff]
  %v479 = vld [vmem:[%s476 + $0x10] sm:$0xf]
  %v483 = vunpack.c.l.b16 %v477
  %v484 = vunpack.c.h.b16 %v477
  %v485 = vunpack.c.l.b16 %v478
  %v486 = vunpack.c.h.b16 %v478
  %v487 = vunpack.c.l.b16 %v479
  %v488 = vpack.c.b16 %v483, %v483
  %v489 = vpack.c.b16 %v484, %v484
  %v490 = vpack.c.b16 %v485, %v485
  %v491 = vpack.c.b16 %v486, %v486
  %v492 = vpack.c.b16 %v487, %v487
  %498 = vmatprep.subr.bf16.mxu0 0
  %499 = vmatpush1.bf16.msra.mxu0 %v276
  %500 = vmatprep.subr.bf16.mxu0 0
  %501 = vmatpush1.bf16.msra.mxu0 %v277
  %502 = vmatprep.subr.bf16.mxu0 0
  %503 = vmatpush1.bf16.msra.mxu0 %v278
  %504 = vmatprep.subr.bf16.mxu0 0
  %505 = vmatpush1.bf16.msra.mxu0 %v279
  %506 = vmatprep.subr.bf16.mxu0 0
  %507 = vmatpush1.bf16.msra.mxu0 %v280
  %508 = vmatprep.subr.bf16.mxu0 0
  %509 = vmatpush1.bf16.msra.mxu0 %v281
  %510 = vmatprep.subr.bf16.mxu0 0
  %511 = vmatpush1.bf16.msra.mxu0 %v282
  %512 = vmatprep.subr.bf16.mxu0 0
  %513 = vmatpush1.bf16.msra.mxu0 %v283
  %514 = vmatprep.subr.bf16.mxu0 0
  %515 = vmatpush1.bf16.msra.mxu0 %v284
  %516 = vmatprep.subr.bf16.mxu0 0
  %517 = vmatpush1.bf16.msra.mxu0 %v285
  %518 = vmatprep.subr.bf16.mxu0 0
  %519 = vmatpush1.bf16.msra.mxu0 %v286
  %520 = vmatprep.subr.bf16.mxu0 0
  %521 = vmatpush1.bf16.msra.mxu0 %v287
  %522 = vmatprep.subr.bf16.mxu0 0
  %523 = vmatpush1.bf16.msra.mxu0 %v288
  %524 = vmatprep.subr.bf16.mxu0 0
  %525 = vmatpush1.bf16.msra.mxu0 %v289
  %526 = vmatprep.subr.bf16.mxu0 0
  %527 = vmatpush1.bf16.msra.mxu0 %v290
  %528 = vmatprep.subr.bf16.mxu0 0
  %529 = vmatpush1.bf16.msra.mxu0 %v291
  %530 = vmatprep.mubr.bf16.mxu0 %v489
  %531 = vmatmul.mubr.bf16.gmra.mrb[0].mxu0 %v488
  %v532 = vpop.f32.mrb[0].mxu0
  %v533 = vadd.f32 0.0, %v532
  %v534 = vpop.f32.mrb[0].mxu0
  %v535 = vpop.f32.mrb[0].mxu0
  %v536 = vpop.f32.mrb[0].mxu0
  %537 = vdwg.mxu0
  %538 = vmatprep.subr.bf16.mxu0 0
  %539 = vmatpush1.bf16.msra.mxu0 %v292
  %540 = vmatprep.subr.bf16.mxu0 0
  %541 = vmatpush1.bf16.msra.mxu0 %v293
  %542 = vmatprep.subr.bf16.mxu0 0
  %543 = vmatpush1.bf16.msra.mxu0 %v294
  %544 = vmatprep.subr.bf16.mxu0 0
  %545 = vmatpush1.bf16.msra.mxu0 %v295
  %546 = vmatprep.subr.bf16.mxu0 0
  %547 = vmatpush1.bf16.msra.mxu0 %v296
  %548 = vmatprep.subr.bf16.mxu0 0
  %549 = vmatpush1.bf16.msra.mxu0 %v297
  %550 = vmatprep.subr.bf16.mxu0 0
  %551 = vmatpush1.bf16.msra.mxu0 %v298
  %552 = vmatprep.subr.bf16.mxu0 0
  %553 = vmatpush1.bf16.msra.mxu0 %v299
  %554 = vmatprep.subr.bf16.mxu0 0
  %555 = vmatpush1.bf16.msra.mxu0 %v300
  %556 = vmatprep.subr.bf16.mxu0 0
  %557 = vmatpush1.bf16.msra.mxu0 %v301
  %558 = vmatprep.subr.bf16.mxu0 0
  %559 = vmatpush1.bf16.msra.mxu0 %v302
  %560 = vmatprep.subr.bf16.mxu0 0
  %561 = vmatpush1.bf16.msra.mxu0 %v303
  %562 = vmatprep.subr.bf16.mxu0 0
  %563 = vmatpush1.bf16.msra.mxu0 %v304
  %564 = vmatprep.subr.bf16.mxu0 0
  %565 = vmatpush1.bf16.msra.mxu0 %v305
  %566 = vmatprep.subr.bf16.mxu0 0
  %567 = vmatpush1.bf16.msra.mxu0 %v306
  %568 = vmatprep.subr.bf16.mxu0 0
  %569 = vmatpush1.bf16.msra.mxu0 %v307
  %570 = vmatprep.mubr.bf16.mxu0 %v491
  %571 = vmatmul.mubr.bf16.gmra.mrb[0].mxu0 %v490
  %v572 = vpop.f32.mrb[0].mxu0
  %v573 = vadd.f32 %v533, %v572
  %v574 = vpop.f32.mrb[0].mxu0
  %v575 = vpop.f32.mrb[0].mxu0
  %v576 = vpop.f32.mrb[0].mxu0
  %577 = vdwg.mxu0
  %578 = vmatprep.subr.bf16.mxu0 0
  %579 = vmatpush1.bf16.msra.mxu0 %v308
  %580 = vmatprep.subr.bf16.mxu0 0
  %581 = vmatpush1.bf16.msra.mxu0 %v309
  %582 = vmatprep.subr.bf16.mxu0 0
  %583 = vmatpush1.bf16.msra.mxu0 %v310
  %584 = vmatprep.subr.bf16.mxu0 0
  %585 = vmatpush1.bf16.msra.mxu0 %v311
  %586 = vmatprep.subr.bf16.mxu0 0
  %587 = vmatpush1.bf16.msra.mxu0 %v312
  %588 = vmatprep.subr.bf16.mxu0 0
  %589 = vmatpush1.bf16.msra.mxu0 %v313
  %590 = vmatprep.subr.bf16.mxu0 0
  %591 = vmatpush1.bf16.msra.mxu0 %v314
  %592 = vmatprep.subr.bf16.mxu0 0
  %593 = vmatpush1.bf16.msra.mxu0 %v315
  %594 = vmatprep.subr.bf16.mxu0 0
  %595 = vmatpush1.bf16.msra.mxu0 0
  %596 = vmatprep.subr.bf16.mxu0 0
  %597 = vmatpush1.bf16.msra.mxu0 0
  %598 = vmatprep.subr.bf16.mxu0 0
  %599 = vmatpush1.bf16.msra.mxu0 0
  %600 = vmatprep.subr.bf16.mxu0 0
  %601 = vmatpush1.bf16.msra.mxu0 0
  %602 = vmatprep.subr.bf16.mxu0 0
  %603 = vmatpush1.bf16.msra.mxu0 0
  %604 = vmatprep.subr.bf16.mxu0 0
  %605 = vmatpush1.bf16.msra.mxu0 0
  %606 = vmatprep.subr.bf16.mxu0 0
  %607 = vmatpush1.bf16.msra.mxu0 0
  %608 = vmatprep.subr.bf16.mxu0 0
  %609 = vmatpush1.bf16.msra.mxu0 0
  %610 = vmatprep.mubr.bf16.mxu0 0
  %611 = vmatmul.mubr.bf16.gmra.mrb[0].mxu0 %v492
  %v612 = vpop.f32.mrb[0].mxu0
  %v613 = vadd.f32 %v573, %v612
  %v614 = vpop.f32.mrb[0].mxu0
  %v615 = vpop.f32.mrb[0].mxu0
  %v616 = vpop.f32.mrb[0].mxu0
  %617 = vdwg.mxu0
  %v618 = vmax.f32 %v471, %v613
  %s619 = scalar_lea.vmem %s0, 40
  %v620 = vld [vmem:[%s619] sm:$0xff]
  %v621 = vld [vmem:[%s619 + $0x8] sm:$0xff]
  %v622 = vld [vmem:[%s619 + $0x10] sm:$0xf]
  %v626 = vunpack.c.l.b16 %v620
  %v627 = vunpack.c.h.b16 %v620
  %v628 = vunpack.c.l.b16 %v621
  %v629 = vunpack.c.h.b16 %v621
  %v630 = vunpack.c.l.b16 %v622
  %v631 = vpack.c.b16 %v626, %v626
  %v632 = vpack.c.b16 %v627, %v627
  %v633 = vpack.c.b16 %v628, %v628
  %v634 = vpack.c.b16 %v629, %v629
  %v635 = vpack.c.b16 %v630, %v630
  %641 = vmatprep.subr.bf16.mxu0 0
  %642 = vmatpush1.bf16.msra.mxu0 %v276
  %643 = vmatprep.subr.bf16.mxu0 0
  %644 = vmatpush1.bf16.msra.mxu0 %v277
  %645 = vmatprep.subr.bf16.mxu0 0
  %646 = vmatpush1.bf16.msra.mxu0 %v278
  %647 = vmatprep.subr.bf16.mxu0 0
  %648 = vmatpush1.bf16.msra.mxu0 %v279
  %649 = vmatprep.subr.bf16.mxu0 0
  %650 = vmatpush1.bf16.msra.mxu0 %v280
  %651 = vmatprep.subr.bf16.mxu0 0
  %652 = vmatpush1.bf16.msra.mxu0 %v281
  %653 = vmatprep.subr.bf16.mxu0 0
  %654 = vmatpush1.bf16.msra.mxu0 %v282
  %655 = vmatprep.subr.bf16.mxu0 0
  %656 = vmatpush1.bf16.msra.mxu0 %v283
  %657 = vmatprep.subr.bf16.mxu0 0
  %658 = vmatpush1.bf16.msra.mxu0 %v284
  %659 = vmatprep.subr.bf16.mxu0 0
  %660 = vmatpush1.bf16.msra.mxu0 %v285
  %661 = vmatprep.subr.bf16.mxu0 0
  %662 = vmatpush1.bf16.msra.mxu0 %v286
  %663 = vmatprep.subr.bf16.mxu0 0
  %664 = vmatpush1.bf16.msra.mxu0 %v287
  %665 = vmatprep.subr.bf16.mxu0 0
  %666 = vmatpush1.bf16.msra.mxu0 %v288
  %667 = vmatprep.subr.bf16.mxu0 0
  %668 = vmatpush1.bf16.msra.mxu0 %v289
  %669 = vmatprep.subr.bf16.mxu0 0
  %670 = vmatpush1.bf16.msra.mxu0 %v290
  %671 = vmatprep.subr.bf16.mxu0 0
  %672 = vmatpush1.bf16.msra.mxu0 %v291
  %673 = vmatprep.mubr.bf16.mxu0 %v632
  %674 = vmatmul.mubr.bf16.gmra.mrb[0].mxu0 %v631
  %v675 = vpop.f32.mrb[0].mxu0
  %v676 = vadd.f32 0.0, %v675
  %v677 = vpop.f32.mrb[0].mxu0
  %v678 = vpop.f32.mrb[0].mxu0
  %v679 = vpop.f32.mrb[0].mxu0
  %680 = vdwg.mxu0
  %681 = vmatprep.subr.bf16.mxu0 0
  %682 = vmatpush1.bf16.msra.mxu0 %v292
  %683 = vmatprep.subr.bf16.mxu0 0
  %684 = vmatpush1.bf16.msra.mxu0 %v293
  %685 = vmatprep.subr.bf16.mxu0 0
  %686 = vmatpush1.bf16.msra.mxu0 %v294
  %687 = vmatprep.subr.bf16.mxu0 0
  %688 = vmatpush1.bf16.msra.mxu0 %v295
  %689 = vmatprep.subr.bf16.mxu0 0
  %690 = vmatpush1.bf16.msra.mxu0 %v296
  %691 = vmatprep.subr.bf16.mxu0 0
  %692 = vmatpush1.bf16.msra.mxu0 %v297
  %693 = vmatprep.subr.bf16.mxu0 0
  %694 = vmatpush1.bf16.msra.mxu0 %v298
  %695 = vmatprep.subr.bf16.mxu0 0
  %696 = vmatpush1.bf16.msra.mxu0 %v299
  %697 = vmatprep.subr.bf16.mxu0 0
  %698 = vmatpush1.bf16.msra.mxu0 %v300
  %699 = vmatprep.subr.bf16.mxu0 0
  %700 = vmatpush1.bf16.msra.mxu0 %v301
  %701 = vmatprep.subr.bf16.mxu0 0
  %702 = vmatpush1.bf16.msra.mxu0 %v302
  %703 = vmatprep.subr.bf16.mxu0 0
  %704 = vmatpush1.bf16.msra.mxu0 %v303
  %705 = vmatprep.subr.bf16.mxu0 0
  %706 = vmatpush1.bf16.msra.mxu0 %v304
  %707 = vmatprep.subr.bf16.mxu0 0
  %708 = vmatpush1.bf16.msra.mxu0 %v305
  %709 = vmatprep.subr.bf16.mxu0 0
  %710 = vmatpush1.bf16.msra.mxu0 %v306
  %711 = vmatprep.subr.bf16.mxu0 0
  %712 = vmatpush1.bf16.msra.mxu0 %v307
  %713 = vmatprep.mubr.bf16.mxu0 %v634
  %714 = vmatmul.mubr.bf16.gmra.mrb[0].mxu0 %v633
  %v715 = vpop.f32.mrb[0].mxu0
  %v716 = vadd.f32 %v676, %v715
  %v717 = vpop.f32.mrb[0].mxu0
  %v718 = vpop.f32.mrb[0].mxu0
  %v719 = vpop.f32.mrb[0].mxu0
  %720 = vdwg.mxu0
  %721 = vmatprep.subr.bf16.mxu0 0
  %722 = vmatpush1.bf16.msra.mxu0 %v308
  %723 = vmatprep.subr.bf16.mxu0 0
  %724 = vmatpush1.bf16.msra.mxu0 %v309
  %725 = vmatprep.subr.bf16.mxu0 0
  %726 = vmatpush1.bf16.msra.mxu0 %v310
  %727 = vmatprep.subr.bf16.mxu0 0
  %728 = vmatpush1.bf16.msra.mxu0 %v311
  %729 = vmatprep.subr.bf16.mxu0 0
  %730 = vmatpush1.bf16.msra.mxu0 %v312
  %731 = vmatprep.subr.bf16.mxu0 0
  %732 = vmatpush1.bf16.msra.mxu0 %v313
  %733 = vmatprep.subr.bf16.mxu0 0
  %734 = vmatpush1.bf16.msra.mxu0 %v314
  %735 = vmatprep.subr.bf16.mxu0 0
  %736 = vmatpush1.bf16.msra.mxu0 %v315
  %737 = vmatprep.subr.bf16.mxu0 0
  %738 = vmatpush1.bf16.msra.mxu0 0
  %739 = vmatprep.subr.bf16.mxu0 0
  %740 = vmatpush1.bf16.msra.mxu0 0
  %741 = vmatprep.subr.bf16.mxu0 0
  %742 = vmatpush1.bf16.msra.mxu0 0
  %743 = vmatprep.subr.bf16.mxu0 0
  %744 = vmatpush1.bf16.msra.mxu0 0
  %745 = vmatprep.subr.bf16.mxu0 0
  %746 = vmatpush1.bf16.msra.mxu0 0
  %747 = vmatprep.subr.bf16.mxu0 0
  %748 = vmatpush1.bf16.msra.mxu0 0
  %749 = vmatprep.subr.bf16.mxu0 0
  %750 = vmatpush1.bf16.msra.mxu0 0
  %751 = vmatprep.subr.bf16.mxu0 0
  %752 = vmatpush1.bf16.msra.mxu0 0
  %753 = vmatprep.mubr.bf16.mxu0 0
  %754 = vmatmul.mubr.bf16.gmra.mrb[0].mxu0 %v635
  %v755 = vpop.f32.mrb[0].mxu0
  %v756 = vadd.f32 %v716, %v755
  %v757 = vpop.f32.mrb[0].mxu0
  %v758 = vpop.f32.mrb[0].mxu0
  %v759 = vpop.f32.mrb[0].mxu0
  %760 = vdwg.mxu0
  %v761 = vmax.f32 %v618, %v756
  %s762 = scalar_lea.vmem %s0, 60
  %v763 = vld [vmem:[%s762] sm:$0xff]
  %v764 = vld [vmem:[%s762 + $0x8] sm:$0xff]
  %v765 = vld [vmem:[%s762 + $0x10] sm:$0xf]
  %v769 = vunpack.c.l.b16 %v763
  %v770 = vunpack.c.h.b16 %v763
  %v771 = vunpack.c.l.b16 %v764
  %v772 = vunpack.c.h.b16 %v764
  %v773 = vunpack.c.l.b16 %v765
  %v774 = vpack.c.b16 %v769, %v769
  %v775 = vpack.c.b16 %v770, %v770
  %v776 = vpack.c.b16 %v771, %v771
  %v777 = vpack.c.b16 %v772, %v772
  %v778 = vpack.c.b16 %v773, %v773
  %784 = vmatprep.subr.bf16.mxu0 0
  %785 = vmatpush1.bf16.msra.mxu0 %v276
  %786 = vmatprep.subr.bf16.mxu0 0
  %787 = vmatpush1.bf16.msra.mxu0 %v277
  %788 = vmatprep.subr.bf16.mxu0 0
  %789 = vmatpush1.bf16.msra.mxu0 %v278
  %790 = vmatprep.subr.bf16.mxu0 0
  %791 = vmatpush1.bf16.msra.mxu0 %v279
  %792 = vmatprep.subr.bf16.mxu0 0
  %793 = vmatpush1.bf16.msra.mxu0 %v280
  %794 = vmatprep.subr.bf16.mxu0 0
  %795 = vmatpush1.bf16.msra.mxu0 %v281
  %796 = vmatprep.subr.bf16.mxu0 0
  %797 = vmatpush1.bf16.msra.mxu0 %v282
  %798 = vmatprep.subr.bf16.mxu0 0
  %799 = vmatpush1.bf16.msra.mxu0 %v283
  %800 = vmatprep.subr.bf16.mxu0 0
  %801 = vmatpush1.bf16.msra.mxu0 %v284
  %802 = vmatprep.subr.bf16.mxu0 0
  %803 = vmatpush1.bf16.msra.mxu0 %v285
  %804 = vmatprep.subr.bf16.mxu0 0
  %805 = vmatpush1.bf16.msra.mxu0 %v286
  %806 = vmatprep.subr.bf16.mxu0 0
  %807 = vmatpush1.bf16.msra.mxu0 %v287
  %808 = vmatprep.subr.bf16.mxu0 0
  %809 = vmatpush1.bf16.msra.mxu0 %v288
  %810 = vmatprep.subr.bf16.mxu0 0
  %811 = vmatpush1.bf16.msra.mxu0 %v289
  %812 = vmatprep.subr.bf16.mxu0 0
  %813 = vmatpush1.bf16.msra.mxu0 %v290
  %814 = vmatprep.subr.bf16.mxu0 0
  %815 = vmatpush1.bf16.msra.mxu0 %v291
  %816 = vmatprep.mubr.bf16.mxu0 %v775
  %817 = vmatmul.mubr.bf16.gmra.mrb[0].mxu0 %v774
  %v818 = vpop.f32.mrb[0].mxu0
  %v819 = vadd.f32 0.0, %v818
  %v820 = vpop.f32.mrb[0].mxu0
  %v821 = vpop.f32.mrb[0].mxu0
  %v822 = vpop.f32.mrb[0].mxu0
  %823 = vdwg.mxu0
  %824 = vmatprep.subr.bf16.mxu0 0
  %825 = vmatpush1.bf16.msra.mxu0 %v292
  %826 = vmatprep.subr.bf16.mxu0 0
  %827 = vmatpush1.bf16.msra.mxu0 %v293
  %828 = vmatprep.subr.bf16.mxu0 0
  %829 = vmatpush1.bf16.msra.mxu0 %v294
  %830 = vmatprep.subr.bf16.mxu0 0
  %831 = vmatpush1.bf16.msra.mxu0 %v295
  %832 = vmatprep.subr.bf16.mxu0 0
  %833 = vmatpush1.bf16.msra.mxu0 %v296
  %834 = vmatprep.subr.bf16.mxu0 0
  %835 = vmatpush1.bf16.msra.mxu0 %v297
  %836 = vmatprep.subr.bf16.mxu0 0
  %837 = vmatpush1.bf16.msra.mxu0 %v298
  %838 = vmatprep.subr.bf16.mxu0 0
  %839 = vmatpush1.bf16.msra.mxu0 %v299
  %840 = vmatprep.subr.bf16.mxu0 0
  %841 = vmatpush1.bf16.msra.mxu0 %v300
  %842 = vmatprep.subr.bf16.mxu0 0
  %843 = vmatpush1.bf16.msra.mxu0 %v301
  %844 = vmatprep.subr.bf16.mxu0 0
  %845 = vmatpush1.bf16.msra.mxu0 %v302
  %846 = vmatprep.subr.bf16.mxu0 0
  %847 = vmatpush1.bf16.msra.mxu0 %v303
  %848 = vmatprep.subr.bf16.mxu0 0
  %849 = vmatpush1.bf16.msra.mxu0 %v304
  %850 = vmatprep.subr.bf16.mxu0 0
  %851 = vmatpush1.bf16.msra.mxu0 %v305
  %852 = vmatprep.subr.bf16.mxu0 0
  %853 = vmatpush1.bf16.msra.mxu0 %v306
  %854 = vmatprep.subr.bf16.mxu0 0
  %855 = vmatpush1.bf16.msra.mxu0 %v307
  %856 = vmatprep.mubr.bf16.mxu0 %v777
  %857 = vmatmul.mubr.bf16.gmra.mrb[0].mxu0 %v776
  %v858 = vpop.f32.mrb[0].mxu0
  %v859 = vadd.f32 %v819, %v858
  %v860 = vpop.f32.mrb[0].mxu0
  %v861 = vpop.f32.mrb[0].mxu0
  %v862 = vpop.f32.mrb[0].mxu0
  %863 = vdwg.mxu0
  %864 = vmatprep.subr.bf16.mxu0 0
  %865 = vmatpush1.bf16.msra.mxu0 %v308
  %866 = vmatprep.subr.bf16.mxu0 0
  %867 = vmatpush1.bf16.msra.mxu0 %v309
  %868 = vmatprep.subr.bf16.mxu0 0
  %869 = vmatpush1.bf16.msra.mxu0 %v310
  %870 = vmatprep.subr.bf16.mxu0 0
  %871 = vmatpush1.bf16.msra.mxu0 %v311
  %872 = vmatprep.subr.bf16.mxu0 0
  %873 = vmatpush1.bf16.msra.mxu0 %v312
  %874 = vmatprep.subr.bf16.mxu0 0
  %875 = vmatpush1.bf16.msra.mxu0 %v313
  %876 = vmatprep.subr.bf16.mxu0 0
  %877 = vmatpush1.bf16.msra.mxu0 %v314
  %878 = vmatprep.subr.bf16.mxu0 0
  %879 = vmatpush1.bf16.msra.mxu0 %v315
  %880 = vmatprep.subr.bf16.mxu0 0
  %881 = vmatpush1.bf16.msra.mxu0 0
  %882 = vmatprep.subr.bf16.mxu0 0
  %883 = vmatpush1.bf16.msra.mxu0 0
  %884 = vmatprep.subr.bf16.mxu0 0
  %885 = vmatpush1.bf16.msra.mxu0 0
  %886 = vmatprep.subr.bf16.mxu0 0
  %887 = vmatpush1.bf16.msra.mxu0 0
  %888 = vmatprep.subr.bf16.mxu0 0
  %889 = vmatpush1.bf16.msra.mxu0 0
  %890 = vmatprep.subr.bf16.mxu0 0
  %891 = vmatpush1.bf16.msra.mxu0 0
  %892 = vmatprep.subr.bf16.mxu0 0
  %893 = vmatpush1.bf16.msra.mxu0 0
  %894 = vmatprep.subr.bf16.mxu0 0
  %895 = vmatpush1.bf16.msra.mxu0 0
  %896 = vmatprep.mubr.bf16.mxu0 0
  %897 = vmatmul.mubr.bf16.gmra.mrb[0].mxu0 %v778
  %v898 = vpop.f32.mrb[0].mxu0
  %v899 = vadd.f32 %v859, %v898
  %v900 = vpop.f32.mrb[0].mxu0
  %v901 = vpop.f32.mrb[0].mxu0
  %v902 = vpop.f32.mrb[0].mxu0
  %903 = vdwg.mxu0
  %v904 = vmax.f32 %v761, %v899
  %v905 = vld [vmem:[%s2] sm:$0x1]
  %v907 = vlaneseq
  %v908 = vshrl.u32 %v907, 7
  %v909 = vsub.s32 0, %v908
  %v910 = vrot.slane %v905, %v909
  %v912 = vadd.f32 %v904, %v910
  %v913 = vmax.f32 %v912, 0.0
  %vm914 = vcmask 654336
  %915 = vst.msk [vmem:[%s3] sm:$0xff] %vm914, %v913
  // Predicated region
  $region14: #{cnn_cifar_forward.6} parent=0 // pred_check
    _
  $region15: #{cnn_cifar_forward.6} parent=0 // pred_check_branch
    %917 = sbr.rel (0) target = $region17
  $region16: #{cnn_cifar_forward.6} parent=0 // pred_region
    _
  $region17: #{cnn_cifar_forward.6} parent=0 // pred_fallthru
    _
  // Predicated region
  $region18: #{cnn_cifar_forward.6} parent=0 // pred_check
    _
  $region19: #{cnn_cifar_forward.6} parent=0 // pred_check_branch
    %919 = sbr.rel (0) target = $region21
  $region20: #{cnn_cifar_forward.6} parent=0 // pred_region
    _
  $region21: #{cnn_cifar_forward.6} parent=0 // pred_fallthru
    _

// kernel: cnn_cifar_forward.7
$region0: #{cnn_cifar_forward.7}
  #allocation0 [shape = 'u32[]', space=smem, size = 0x4, offset = 0x4, fixed_abs, tag = 'smem constant byte address 0x4 - core index']
  #allocation1 [shape = 'u32[144,128]{1,0:T(1,128)}', space=vmem, size = 0x12000, scoped, tag = 'internal scratch']
  %s0 = inlined_call_operand.vmem [shape: bf16[2,320], index: 0, kind: input, shape index: {}]
  %s1 = inlined_call_operand.vmem [shape: bf16[320,100], index: 1, kind: input, shape index: {}]
  %s2 = inlined_call_operand.vmem [shape: f32[1,100], index: 2, kind: input, shape index: {}]
  %s3 = inlined_call_operand.vmem [shape: bf16[100,10], index: 3, kind: input, shape index: {}]
  %s4 = inlined_call_operand.vmem [shape: f32[1,10], index: 4, kind: input, shape index: {}]
  %s5 = inlined_call_operand.hbm [shape: f32[2,10], index: 5, kind: output, shape index: {}]
  %s6 = sld [smem:[#allocation0]]
  $region30: #{cnn_cifar_forward.7} parent=0
    _
  %s8 = ssub.s32 1, %s6
  %s9 = scalar_select 0, %s8, %s6
  $region1: #{cnn_cifar_forward.7} parent=0
    #allocation2 [shape = 'u8[1024]{0}', space=vmem, size = 0x400, scoped, tag = 'output window, operand 0, single buffered']
    #allocation3 [shape = 's32[1]{0}', space=sflag, size = 0x4, scoped, tag = 'scoped memory for cnn_cifar_forward.7']
    %10 = vsyncpa [#allocation3], 0
    // Predicated region
    $region2: #{cnn_cifar_forward.7} parent=1 // pred_check
      _
    $region3: #{cnn_cifar_forward.7} parent=1 // pred_check_branch
      %12 = sbr.rel (0) target = $region5
    $region4: #{cnn_cifar_forward.7} parent=1 // pred_region
      _
    $region5: #{cnn_cifar_forward.7} parent=1 // pred_fallthru
      _
    // Predicated region
    $region6: #{cnn_cifar_forward.7} parent=1 // pred_check
      _
    $region7: #{cnn_cifar_forward.7} parent=1 // pred_check_branch
      %14 = sbr.rel (0) target = $region9
    $region8: #{cnn_cifar_forward.7} parent=1 // pred_region
      _
    $region9: #{cnn_cifar_forward.7} parent=1 // pred_fallthru
      _
    // Predicated region
    $region10: #{cnn_cifar_forward.7} parent=1 // pred_check
      _
    $region11: #{cnn_cifar_forward.7} parent=1 // pred_check_branch
      %16 = sbr.rel (0) target = $region13
    $region12: #{cnn_cifar_forward.7} parent=1 // pred_region
      _
    $region13: #{cnn_cifar_forward.7} parent=1 // pred_fallthru
      _
    // Predicated region
    $region14: #{cnn_cifar_forward.7} parent=1 // pred_check
      _
    $region15: #{cnn_cifar_forward.7} parent=1 // pred_check_branch
      %18 = sbr.rel (0) target = $region17
    $region16: #{cnn_cifar_forward.7} parent=1 // pred_region
      _
    $region17: #{cnn_cifar_forward.7} parent=1 // pred_fallthru
      _
    // Predicated region
    $region18: #{cnn_cifar_forward.7} parent=1 // pred_check
      _
    $region19: #{cnn_cifar_forward.7} parent=1 // pred_check_branch
      %20 = sbr.rel (0) target = $region21
    $region20: #{cnn_cifar_forward.7} parent=1 // pred_region
      _
    $region21: #{cnn_cifar_forward.7} parent=1 // pred_fallthru
      _
    %v22 = vld [vmem:[%s0] sm:$0x7]
    %v23 = vld [vmem:[%s1] sm:$0xf]
    %v24 = vld [vmem:[%s1 + $0x4] sm:$0xf]
    %v25 = vld [vmem:[%s1 + $0x8] sm:$0xf]
    %v26 = vld [vmem:[%s1 + $0xc] sm:$0xf]
    %v27 = vld [vmem:[%s1 + $0x10] sm:$0xf]
    %v28 = vld [vmem:[%s1 + $0x14] sm:$0xf]
    %v29 = vld [vmem:[%s1 + $0x18] sm:$0xf]
    %v30 = vld [vmem:[%s1 + $0x1c] sm:$0xf]
    %v31 = vld [vmem:[%s1 + $0x20] sm:$0xf]
    %v32 = vld [vmem:[%s1 + $0x24] sm:$0xf]
    %v33 = vld [vmem:[%s1 + $0x28] sm:$0xf]
    %v34 = vld [vmem:[%s1 + $0x2c] sm:$0xf]
    %v35 = vld [vmem:[%s1 + $0x30] sm:$0xf]
    %v36 = vld [vmem:[%s1 + $0x34] sm:$0xf]
    %v37 = vld [vmem:[%s1 + $0x38] sm:$0xf]
    %v38 = vld [vmem:[%s1 + $0x3c] sm:$0xf]
    %v39 = vld [vmem:[%s1 + $0x40] sm:$0xf]
    %v40 = vld [vmem:[%s1 + $0x44] sm:$0xf]
    %v41 = vld [vmem:[%s1 + $0x48] sm:$0xf]
    %v42 = vld [vmem:[%s1 + $0x4c] sm:$0xf]
    %v43 = vld [vmem:[%s1 + $0x50] sm:$0xf]
    %v44 = vld [vmem:[%s1 + $0x54] sm:$0xf]
    %v45 = vld [vmem:[%s1 + $0x58] sm:$0xf]
    %v46 = vld [vmem:[%s1 + $0x5c] sm:$0xf]
    %v47 = vld [vmem:[%s1 + $0x60] sm:$0xf]
    %v48 = vld [vmem:[%s1 + $0x64] sm:$0xf]
    %v49 = vld [vmem:[%s1 + $0x68] sm:$0xf]
    %v50 = vld [vmem:[%s1 + $0x6c] sm:$0xf]
    %v51 = vld [vmem:[%s1 + $0x70] sm:$0xf]
    %v52 = vld [vmem:[%s1 + $0x74] sm:$0xf]
    %v53 = vld [vmem:[%s1 + $0x78] sm:$0xf]
    %v54 = vld [vmem:[%s1 + $0x7c] sm:$0xf]
    %v55 = vld [vmem:[%s1 + $0x80] sm:$0xf]
    %v56 = vld [vmem:[%s1 + $0x84] sm:$0xf]
    %v57 = vld [vmem:[%s1 + $0x88] sm:$0xf]
    %v58 = vld [vmem:[%s1 + $0x8c] sm:$0xf]
    %v59 = vld [vmem:[%s1 + $0x90] sm:$0xf]
    %v60 = vld [vmem:[%s1 + $0x94] sm:$0xf]
    %v61 = vld [vmem:[%s1 + $0x98] sm:$0xf]
    %v62 = vld [vmem:[%s1 + $0x9c] sm:$0xf]
    %v63 = vld [vmem:[%s2] sm:$0x1]
    %v65 = vlaneseq
    %v66 = vshrl.u32 %v65, 7
    %v67 = vsub.s32 0, %v66
    %v68 = vrot.slane %v63, %v67
    %v72 = vunpack.c.l.s4 1966171168
    %v73 = vunpack.c.0.s8 %v72
    %v74 = vlaneseq
    %v75 = vshrl.u32 %v74, 7
    %v76 = vsub.s32 %v73, %v75
    %v77 = vrot.slane %v22, %v76
    %v78 = vcombine.high %v77, %v77
    %v80 = vunpack.c.l.s4 1966171168
    %v81 = vunpack.c.0.s8 %v80
    %v82 = vlaneseq
    %v83 = vshrl.u32 %v82, 7
    %v84 = vsub.s32 %v81, %v83
    %v85 = vrot.slane %v77, %v84
    %v87 = vunpack.c.l.s4 1966171168
    %v88 = vunpack.c.0.s8 %v87
    %v89 = vlaneseq
    %v90 = vshrl.u32 %v89, 7
    %v91 = vsub.s32 %v88, %v90
    %v92 = vrot.slane %v78, %v91
    %v93 = vcombine.high %v85, %v85
    %v136 = vunpack.c.l.b16 %v23
    %v137 = vunpack.c.l.b16 %v24
    %v138 = vunpack.c.l.b16 %v25
    %v139 = vunpack.c.l.b16 %v26
    %v140 = vunpack.c.l.b16 %v27
    %v141 = vunpack.c.l.b16 %v28
    %v142 = vunpack.c.l.b16 %v29
    %v143 = vunpack.c.l.b16 %v30
    %v144 = vunpack.c.l.b16 %v31
    %v145 = vunpack.c.l.b16 %v32
    %v146 = vunpack.c.l.b16 %v33
    %v147 = vunpack.c.l.b16 %v34
    %v148 = vunpack.c.l.b16 %v35
    %v149 = vunpack.c.l.b16 %v36
    %v150 = vunpack.c.l.b16 %v37
    %v151 = vunpack.c.l.b16 %v38
    %v152 = vunpack.c.l.b16 %v39
    %v153 = vunpack.c.l.b16 %v40
    %v154 = vunpack.c.l.b16 %v41
    %v155 = vunpack.c.l.b16 %v42
    %v156 = vunpack.c.l.b16 %v43
    %v157 = vunpack.c.l.b16 %v44
    %v158 = vunpack.c.l.b16 %v45
    %v159 = vunpack.c.l.b16 %v46
    %v160 = vunpack.c.l.b16 %v47
    %v161 = vunpack.c.l.b16 %v48
    %v162 = vunpack.c.l.b16 %v49
    %v163 = vunpack.c.l.b16 %v50
    %v164 = vunpack.c.l.b16 %v51
    %v165 = vunpack.c.l.b16 %v52
    %v166 = vunpack.c.l.b16 %v53
    %v167 = vunpack.c.l.b16 %v54
    %v168 = vunpack.c.l.b16 %v55
    %v169 = vunpack.c.l.b16 %v56
    %v170 = vunpack.c.l.b16 %v57
    %v171 = vunpack.c.l.b16 %v58
    %v172 = vunpack.c.l.b16 %v59
    %v173 = vunpack.c.l.b16 %v60
    %v174 = vunpack.c.l.b16 %v61
    %v175 = vunpack.c.l.b16 %v62
    %v176 = vpack.c.b16 %v137, %v136
    %v177 = vpack.c.b16 %v139, %v138
    %v178 = vpack.c.b16 %v141, %v140
    %v179 = vpack.c.b16 %v143, %v142
    %v180 = vpack.c.b16 %v145, %v144
    %v181 = vpack.c.b16 %v147, %v146
    %v182 = vpack.c.b16 %v149, %v148
    %v183 = vpack.c.b16 %v151, %v150
    %v184 = vpack.c.b16 %v153, %v152
    %v185 = vpack.c.b16 %v155, %v154
    %v186 = vpack.c.b16 %v157, %v156
    %v187 = vpack.c.b16 %v159, %v158
    %v188 = vpack.c.b16 %v161, %v160
    %v189 = vpack.c.b16 %v163, %v162
    %v190 = vpack.c.b16 %v165, %v164
    %v191 = vpack.c.b16 %v167, %v166
    %v192 = vpack.c.b16 %v169, %v168
    %v193 = vpack.c.b16 %v171, %v170
    %v194 = vpack.c.b16 %v173, %v172
    %v195 = vpack.c.b16 %v175, %v174
    %vm216 = vcmask 523264
    %v218 = vsel %vm216, %v93, 0
    %220 = vmatprep.subr.bf16.mxu0 0
    %221 = vmatpush1.bf16.msra.mxu0 %v176
    %222 = vmatprep.subr.bf16.mxu0 0
    %223 = vmatpush1.bf16.msra.mxu0 %v177
    %224 = vmatprep.subr.bf16.mxu0 0
    %225 = vmatpush1.bf16.msra.mxu0 %v178
    %226 = vmatprep.subr.bf16.mxu0 0
    %227 = vmatpush1.bf16.msra.mxu0 %v179
    %228 = vmatprep.subr.bf16.mxu0 0
    %229 = vmatpush1.bf16.msra.mxu0 %v180
    %230 = vmatprep.subr.bf16.mxu0 0
    %231 = vmatpush1.bf16.msra.mxu0 %v181
    %232 = vmatprep.subr.bf16.mxu0 0
    %233 = vmatpush1.bf16.msra.mxu0 %v182
    %234 = vmatprep.subr.bf16.mxu0 0
    %235 = vmatpush1.bf16.msra.mxu0 %v183
    %236 = vmatprep.subr.bf16.mxu0 0
    %237 = vmatpush1.bf16.msra.mxu0 %v184
    %238 = vmatprep.subr.bf16.mxu0 0
    %239 = vmatpush1.bf16.msra.mxu0 %v185
    %240 = vmatprep.subr.bf16.mxu0 0
    %241 = vmatpush1.bf16.msra.mxu0 %v186
    %242 = vmatprep.subr.bf16.mxu0 0
    %243 = vmatpush1.bf16.msra.mxu0 %v187
    %244 = vmatprep.subr.bf16.mxu0 0
    %245 = vmatpush1.bf16.msra.mxu0 %v188
    %246 = vmatprep.subr.bf16.mxu0 0
    %247 = vmatpush1.bf16.msra.mxu0 %v189
    %248 = vmatprep.subr.bf16.mxu0 0
    %249 = vmatpush1.bf16.msra.mxu0 %v190
    %250 = vmatprep.subr.bf16.mxu0 0
    %251 = vmatpush1.bf16.msra.mxu0 %v191
    %252 = vmatprep.mubr.bf16.mxu0 %v92
    %253 = vmatmul.mubr.bf16.gmra.mrb[0].mxu0 %v85
    %v254 = vpop.f32.mrb[0].mxu0
    %v255 = vadd.f32 %v68, %v254
    %v256 = vpop.f32.mrb[0].mxu0
    %v257 = vpop.f32.mrb[0].mxu0
    %v258 = vpop.f32.mrb[0].mxu0
    %259 = vdwg.mxu0
    %260 = vmatprep.subr.bf16.mxu0 0
    %261 = vmatpush1.bf16.msra.mxu0 %v192
    %262 = vmatprep.subr.bf16.mxu0 0
    %263 = vmatpush1.bf16.msra.mxu0 %v193
    %264 = vmatprep.subr.bf16.mxu0 0
    %265 = vmatpush1.bf16.msra.mxu0 %v194
    %266 = vmatprep.subr.bf16.mxu0 0
    %267 = vmatpush1.bf16.msra.mxu0 %v195
    %268 = vmatprep.subr.bf16.mxu0 0
    %269 = vmatpush1.bf16.msra.mxu0 0
    %270 = vmatprep.subr.bf16.mxu0 0
    %271 = vmatpush1.bf16.msra.mxu0 0
    %272 = vmatprep.subr.bf16.mxu0 0
    %273 = vmatpush1.bf16.msra.mxu0 0
    %274 = vmatprep.subr.bf16.mxu0 0
    %275 = vmatpush1.bf16.msra.mxu0 0
    %276 = vmatprep.subr.bf16.mxu0 0
    %277 = vmatpush1.bf16.msra.mxu0 0
    %278 = vmatprep.subr.bf16.mxu0 0
    %279 = vmatpush1.bf16.msra.mxu0 0
    %280 = vmatprep.subr.bf16.mxu0 0
    %281 = vmatpush1.bf16.msra.mxu0 0
    %282 = vmatprep.subr.bf16.mxu0 0
    %283 = vmatpush1.bf16.msra.mxu0 0
    %284 = vmatprep.subr.bf16.mxu0 0
    %285 = vmatpush1.bf16.msra.mxu0 0
    %286 = vmatprep.subr.bf16.mxu0 0
    %287 = vmatpush1.bf16.msra.mxu0 0
    %288 = vmatprep.subr.bf16.mxu0 0
    %289 = vmatpush1.bf16.msra.mxu0 0
    %290 = vmatprep.subr.bf16.mxu0 0
    %291 = vmatpush1.bf16.msra.mxu0 0
    %292 = vmatprep.mubr.bf16.mxu0 0
    %293 = vmatmul.mubr.bf16.gmra.mrb[0].mxu0 %v218
    %v294 = vpop.f32.mrb[0].mxu0
    %v295 = vadd.f32 %v255, %v294
    %v296 = vpop.f32.mrb[0].mxu0
    %v297 = vpop.f32.mrb[0].mxu0
    %v298 = vpop.f32.mrb[0].mxu0
    %299 = vdwg.mxu0
    %v300 = vpack.c.bf16 %v295, %v295
    %v301 = vld [vmem:[%s3] sm:$0xf]
    %v302 = vld [vmem:[%s3 + $0x4] sm:$0xf]
    %v303 = vld [vmem:[%s3 + $0x8] sm:$0xf]
    %v304 = vld [vmem:[%s3 + $0xc] sm:$0xf]
    %v305 = vld [vmem:[%s3 + $0x10] sm:$0xf]
    %v306 = vld [vmem:[%s3 + $0x14] sm:$0xf]
    %v307 = vld [vmem:[%s3 + $0x18] sm:$0xf]
    %v308 = vld [vmem:[%s3 + $0x1c] sm:$0xf]
    %v309 = vld [vmem:[%s3 + $0x20] sm:$0xf]
    %v310 = vld [vmem:[%s3 + $0x24] sm:$0xf]
    %v311 = vld [vmem:[%s3 + $0x28] sm:$0xf]
    %v312 = vld [vmem:[%s3 + $0x2c] sm:$0xf]
    %v313 = vld [vmem:[%s3 + $0x30] sm:$0x3]
    %v314 = vld [vmem:[%s4] sm:$0x1]
    %v316 = vlaneseq
    %v317 = vshrl.u32 %v316, 7
    %v318 = vsub.s32 0, %v317
    %v319 = vrot.slane %v314, %v318
    %v334 = vunpack.c.l.b16 %v301
    %v335 = vunpack.c.l.b16 %v302
    %v336 = vunpack.c.l.b16 %v303
    %v337 = vunpack.c.l.b16 %v304
    %v338 = vunpack.c.l.b16 %v305
    %v339 = vunpack.c.l.b16 %v306
    %v340 = vunpack.c.l.b16 %v307
    %v341 = vunpack.c.l.b16 %v308
    %v342 = vunpack.c.l.b16 %v309
    %v343 = vunpack.c.l.b16 %v310
    %v344 = vunpack.c.l.b16 %v311
    %v345 = vunpack.c.l.b16 %v312
    %v346 = vunpack.c.l.b16 %v313
    %v347 = vpack.c.b16 %v335, %v334
    %v348 = vpack.c.b16 %v337, %v336
    %v349 = vpack.c.b16 %v339, %v338
    %v350 = vpack.c.b16 %v341, %v340
    %v351 = vpack.c.b16 %v343, %v342
    %v352 = vpack.c.b16 %v345, %v344
    %v353 = vpack.c.b16 %v346, %v346
    %vm360 = vcmask 818176
    %v362 = vsel %vm360, %v300, 0
    %vm364 = vcmask 1041408
    %v366 = vsel %vm364, %v353, 0
    %368 = vmatprep.subr.bf16.mxu0 0
    %369 = vmatpush1.bf16.msra.mxu0 %v347
    %370 = vmatprep.subr.bf16.mxu0 0
    %371 = vmatpush1.bf16.msra.mxu0 %v348
    %372 = vmatprep.subr.bf16.mxu0 0
    %373 = vmatpush1.bf16.msra.mxu0 %v349
    %374 = vmatprep.subr.bf16.mxu0 0
    %375 = vmatpush1.bf16.msra.mxu0 %v350
    %376 = vmatprep.subr.bf16.mxu0 0
    %377 = vmatpush1.bf16.msra.mxu0 %v351
    %378 = vmatprep.subr.bf16.mxu0 0
    %379 = vmatpush1.bf16.msra.mxu0 %v352
    %380 = vmatprep.subr.bf16.mxu0 0
    %381 = vmatpush1.bf16.msra.mxu0 %v366
    %382 = vmatprep.subr.bf16.mxu0 0
    %383 = vmatpush1.bf16.msra.mxu0 0
    %384 = vmatprep.subr.bf16.mxu0 0
    %385 = vmatpush1.bf16.msra.mxu0 0
    %386 = vmatprep.subr.bf16.mxu0 0
    %387 = vmatpush1.bf16.msra.mxu0 0
    %388 = vmatprep.subr.bf16.mxu0 0
    %389 = vmatpush1.bf16.msra.mxu0 0
    %390 = vmatprep.subr.bf16.mxu0 0
    %391 = vmatpush1.bf16.msra.mxu0 0
    %392 = vmatprep.subr.bf16.mxu0 0
    %393 = vmatpush1.bf16.msra.mxu0 0
    %394 = vmatprep.subr.bf16.mxu0 0
    %395 = vmatpush1.bf16.msra.mxu0 0
    %396 = vmatprep.subr.bf16.mxu0 0
    %397 = vmatpush1.bf16.msra.mxu0 0
    %398 = vmatprep.subr.bf16.mxu0 0
    %399 = vmatpush1.bf16.msra.mxu0 0
    %400 = vmatprep.mubr.bf16.mxu0 0
    %401 = vmatmul.mubr.bf16.gmra.mrb[0].mxu0 %v362
    %v402 = vpop.f32.mrb[0].mxu0
    %v403 = vadd.f32 %v319, %v402
    %v404 = vpop.f32.mrb[0].mxu0
    %v405 = vpop.f32.mrb[0].mxu0
    %v406 = vpop.f32.mrb[0].mxu0
    %407 = vdwg.mxu0
    %vm408 = vcmask 74752
    %409 = vst.msk [vmem:[#allocation2] sm:$0x3] %vm408, %v403
    // Predicated region
    $region22: #{cnn_cifar_forward.7} parent=1 // pred_check
      _
    $region23: #{cnn_cifar_forward.7} parent=1 // pred_check_branch
      %411 = sbr.rel (0) target = $region25
    $region24: #{cnn_cifar_forward.7} parent=1 // pred_region
      %s413 = ssub.s32 32, 32
      %414 = vsyncadd [#allocation3], %s413
      %s416 = sshll.u32 [#allocation2], 4
      %s417 = int_to_ptr.vmem [resolvable:$true] %s416
      %419 = dma.vmem_to_hbm [thread:$0]  %s417, 32, %s5, [#allocation3]
    $region25: #{cnn_cifar_forward.7} parent=1 // pred_fallthru
      _
    // Predicated region
    $region26: #{cnn_cifar_forward.7} parent=1 // pred_check
      _
    $region27: #{cnn_cifar_forward.7} parent=1 // pred_check_branch
      %421 = sbr.rel (0) target = $region29
    $region28: #{cnn_cifar_forward.7} parent=1 // pred_region
      %422 = dma.done [#allocation3], 32
    $region29: #{cnn_cifar_forward.7} parent=1 // pred_fallthru
      _
    %423 = vsyncpa [#allocation3], 1

</llo_original>
